<compile_context>
chip_gen: v5e
topology: v5e:2x2
jax: 0.10.0
libtpu: 0.0.40
codegen_flags: <defaults>
</compile_context>

<pallas_src>
import functools

import jax
import jax.numpy as jnp
from jax.experimental import pallas as pl
from jax.experimental.pallas import tpu as pltpu

EPS = 1e-12
_VMEM_LIMIT = 32 * 1024 * 1024
_CP_1D = pltpu.CompilerParams(dimension_semantics=("parallel",),
                              vmem_limit_bytes=_VMEM_LIMIT)
_CP_2D = pltpu.CompilerParams(dimension_semantics=("parallel", "parallel"),
                              vmem_limit_bytes=_VMEM_LIMIT)


# ----------------------------------------------------------------------------
# Shared math helpers (pure jnp: used inside kernels and by the references)
# ----------------------------------------------------------------------------
def _layernorm(x, gamma, beta):
    # Matches the PyTorch LayerNorm module exactly: mean over last dim,
    # *unbiased* std (N-1), divide by (std + eps), then gamma * out + beta.
    h = x.shape[-1]
    mean = jnp.mean(x, axis=-1, keepdims=True)
    diff = x - mean
    var = jnp.sum(diff * diff, axis=-1, keepdims=True) / (h - 1)
    std = jnp.sqrt(var)
    return gamma * (diff / (std + EPS)) + beta


# ----------------------------------------------------------------------------
# Kernels
# ----------------------------------------------------------------------------
def _linear_kernel(x_ref, w_ref, b_ref, o_ref):
    # o = x @ W + b   (x tile: [TN, Din] f32, W: [Din, Dout] bf16, b: [1, Dout] f32)
    x_b = x_ref[...].astype(jnp.bfloat16)
    o_ref[...] = (
        jnp.dot(x_b, w_ref[...], preferred_element_type=jnp.float32) + b_ref[...]
    ).astype(o_ref.dtype)


def _encoder_layer_kernel(n_heads,
                          xq_ref, xkv_ref,
                          wq_ref, bq_ref, wk_ref, bk_ref, wv_ref, bv_ref,
                          wo_ref, bo_ref,
                          g1_ref, be1_ref,
                          w1_ref, c1_ref, w2_ref, c2_ref,
                          g2_ref, be2_ref,
                          o_ref):
    f32 = jnp.float32
    bf16 = jnp.bfloat16

    xq = xq_ref[0]                  # (TQ, H) query tile (also residual input), f32
    xkv = xkv_ref[0]                # (S,  H) full sequence for K/V, f32
    tq, hid = xq.shape
    hd = hid // n_heads
    inv_scale = 1.0 / float(hd) ** 0.5

    xq_b = xq.astype(bf16)
    xkv_b = xkv.astype(bf16)

    # --- projections (bf16 operands on the MXU, f32 accumulation) ------------
    q = jnp.dot(xq_b, wq_ref[...], preferred_element_type=f32) + bq_ref[...]
    k = jnp.dot(xkv_b, wk_ref[...], preferred_element_type=f32) + bk_ref[...]
    v = jnp.dot(xkv_b, wv_ref[...], preferred_element_type=f32) + bv_ref[...]

    # Fold 1/sqrt(head_dim) into q before the energy matmul.
    q_b = (q * inv_scale).astype(bf16)
    k_b = k.astype(bf16)
    v_b = v.astype(bf16)

    # Head-major tensors (nh, TQ/S, hd) via lane slicing + leading-axis stack.
    qh = jnp.stack([q_b[:, h * hd:(h + 1) * hd] for h in range(n_heads)], axis=0)
    kh = jnp.stack([k_b[:, h * hd:(h + 1) * hd] for h in range(n_heads)], axis=0)
    vh = jnp.stack([v_b[:, h * hd:(h + 1) * hd] for h in range(n_heads)], axis=0)

    # --- batched attention over all heads -------------------------------------
    energy = jnp.einsum("hqd,hkd->hqk", qh, kh,
                        preferred_element_type=f32)             # (nh, TQ, S)
    energy = energy - jnp.max(energy, axis=-1, keepdims=True)
    p = jnp.exp(energy)
    inv_denom = pl.reciprocal(jnp.sum(p, axis=-1, keepdims=True))
    attn = (p * inv_denom).astype(bf16)
    ctx = jnp.einsum("hqk,hkd->hqd", attn, vh,
                     preferred_element_type=f32)                 # (nh, TQ, hd)
    ctx = jnp.concatenate([ctx[h] for h in range(n_heads)], axis=-1)  # (TQ, H)

    sa = jnp.dot(ctx.astype(bf16), wo_ref[...],
                 preferred_element_type=f32) + bo_ref[...]

    # residual + LN1 (f32)
    t = _layernorm(xq + sa, g1_ref[...], be1_ref[...])

    # --- positionwise feed-forward (Conv1d k=1 == per-position linear) --------
    h1 = jnp.dot(t.astype(bf16), w1_ref[...],
                 preferred_element_type=f32) + c1_ref[...]
    h1 = jnp.maximum(h1, 0.0)
    ff = jnp.dot(h1.astype(bf16), w2_ref[...],
                 preferred_element_type=f32) + c2_ref[...]

    # residual + LN2 (f32)
    o_ref[0] = _layernorm(t + ff, g2_ref[...], be2_ref[...]).astype(o_ref.dtype)


# ----------------------------------------------------------------------------
# Wrappers
# ----------------------------------------------------------------------------
def pallas_linear(x2d, w, b, row_tile=256):
    """x2d: [N, Din] f32, w: [Din, Dout] f32, b: [1, Dout] f32 -> [N, Dout] f32."""
    N, Din = x2d.shape
    Dout = w.shape[1]
    tn = row_tile if N % row_tile == 0 else N
    return pl.pallas_call(
        _linear_kernel,
        grid=(N // tn,),
        out_shape=jax.ShapeDtypeStruct((N, Dout), jnp.float32),
        in_specs=[
            pl.BlockSpec((tn, Din), lambda i: (i, 0)),
            pl.BlockSpec((Din, Dout), lambda i: (0, 0)),   # resident weight
            pl.BlockSpec((1, Dout), lambda i: (0, 0)),
        ],
        out_specs=pl.BlockSpec((tn, Dout), lambda i: (i, 0)),
        compiler_params=_CP_1D,
    )(x2d, w.astype(jnp.bfloat16), b)


def pallas_encoder_layer(x, p, n_heads, seq_tile=128):
    """x: [B, S, H] f32; p: dict of layer params; returns [B, S, H] f32."""
    B, S, H = x.shape
    PF = p["w1"].shape[1]
    assert H % n_heads == 0
    tq = seq_tile if S % seq_tile == 0 else S
    n_qt = S // tq

    def rep(shape):
        nd = len(shape)
        return pl.BlockSpec(shape, lambda b, qi, _nd=nd: (0,) * _nd)

    bf = jnp.bfloat16
    kernel = functools.partial(_encoder_layer_kernel, n_heads)
    return pl.pallas_call(
        kernel,
        grid=(B, n_qt),
        out_shape=jax.ShapeDtypeStruct((B, S, H), jnp.float32),
        in_specs=[
            pl.BlockSpec((1, tq, H), lambda b, qi: (b, qi, 0)),   # query tile
            pl.BlockSpec((1, S, H), lambda b, qi: (b, 0, 0)),     # full seq (K/V)
            rep((H, H)), rep((1, H)),      # w_q, b_q
            rep((H, H)), rep((1, H)),      # w_k, b_k
            rep((H, H)), rep((1, H)),      # w_v, b_v
            rep((H, H)), rep((1, H)),      # fc (attn out proj)
            rep((1, H)), rep((1, H)),      # ln1 gamma, beta
            rep((H, PF)), rep((1, PF)),    # fc_1
            rep((PF, H)), rep((1, H)),     # fc_2
            rep((1, H)), rep((1, H)),      # ln2 gamma, beta
        ],
        out_specs=pl.BlockSpec((1, tq, H), lambda b, qi: (b, qi, 0)),
        compiler_params=_CP_2D,
    )(x, x,
      p["wq"].astype(bf), p["bq"], p["wk"].astype(bf), p["bk"],
      p["wv"].astype(bf), p["bv"], p["wo"].astype(bf), p["bo"],
      p["g1"], p["be1"],
      p["w1"].astype(bf), p["c1"], p["w2"].astype(bf), p["c2"],
      p["g2"], p["be2"])


def encoder_forward(x, params, n_heads, seq_tile=128):
    """x: [B, S, dna_dim] -> [B, S, hid_dim]."""
    B, S, D = x.shape
    H = params["ft_w"].shape[1]
    h = pallas_linear(x.reshape(B * S, D), params["ft_w"], params["ft_b"])
    h = h.reshape(B, S, H)
    for layer_p in params["layers"]:
        h = pallas_encoder_layer(h, layer_p, n_heads, seq_tile=seq_tile)
    return h


# ----------------------------------------------------------------------------
# Deterministic parameter construction
# ----------------------------------------------------------------------------
def init_params(key, dna_dim, hid_dim, pf_dim, n_layers):
    def nxt():
        nonlocal key
        key, sub = jax.random.split(key)
        return sub

    def mat(din, dout, scale=0.05):
        return scale * jax.random.normal(nxt(), (din, dout), jnp.float32)

    def vec(d, scale=0.05):
        return scale * jax.random.normal(nxt(), (1, d), jnp.float32)

    params = {"ft_w": mat(dna_dim, hid_dim), "ft_b": vec(hid_dim), "layers": []}
    for _ in range(n_layers):
        params["layers"].append({
            "wq": mat(hid_dim, hid_dim), "bq": vec(hid_dim),
            "wk": mat(hid_dim, hid_dim), "bk": vec(hid_dim),
            "wv": mat(hid_dim, hid_dim), "bv": vec(hid_dim),
            "wo": mat(hid_dim, hid_dim), "bo": vec(hid_dim),
            "g1": jnp.ones((1, hid_dim), jnp.float32),
            "be1": jnp.zeros((1, hid_dim), jnp.float32),
            "w1": mat(hid_dim, pf_dim), "c1": vec(pf_dim),
            "w2": mat(pf_dim, hid_dim), "c2": vec(hid_dim),
            "g2": jnp.ones((1, hid_dim), jnp.float32),
            "be2": jnp.zeros((1, hid_dim), jnp.float32),
        })
    return params


# ----------------------------------------------------------------------------
# Pure-JAX references
#   * ref_forward_matched mirrors the kernel math (bf16 matmul operands, f32 acc)
#   * ref_forward_f32 is the plain f32 semantic reference of the PyTorch module
# ----------------------------------------------------------------------------
def ref_forward_matched(x, params, n_heads):
    bf, f32 = jnp.bfloat16, jnp.float32
    B, S, D = x.shape

    def bdot2(a, w, b):
        return jnp.dot(a.astype(bf), w.astype(bf), preferred_element_type=f32) + b

    def bdot3(a, w, b):
        return jnp.einsum("bsk,kn->bsn", a.astype(bf), w.astype(bf),
                          preferred_element_type=f32) + b

    h = bdot2(x.reshape(B * S, D), params["ft_w"], params["ft_b"])
    H = h.shape[-1]
    h = h.reshape(B, S, H)
    hd = H // n_heads
    inv_scale = 1.0 / float(hd) ** 0.5
    for p in params["layers"]:
        q = bdot3(h, p["wq"], p["bq"])
        k = bdot3(h, p["wk"], p["bk"])
        v = bdot3(h, p["wv"], p["bv"])
        qh = (q * inv_scale).astype(bf).reshape(B, S, n_heads, hd).transpose(0, 2, 1, 3)
        kh = k.astype(bf).reshape(B, S, n_heads, hd).transpose(0, 2, 1, 3)
        vh = v.astype(bf).reshape(B, S, n_heads, hd).transpose(0, 2, 1, 3)
        energy = jnp.einsum("bhqd,bhkd->bhqk", qh, kh, preferred_element_type=f32)
        energy = energy - jnp.max(energy, axis=-1, keepdims=True)
        pe = jnp.exp(energy)
        attn = (pe / jnp.sum(pe, axis=-1, keepdims=True)).astype(bf)
        ctx = jnp.einsum("bhqk,bhkd->bhqd", attn, vh, preferred_element_type=f32)
        ctx = ctx.transpose(0, 2, 1, 3).reshape(B, S, H)
        sa = bdot3(ctx, p["wo"], p["bo"])
        t = _layernorm(h + sa, p["g1"], p["be1"])
        h1 = jnp.maximum(bdot3(t, p["w1"], p["c1"]), 0.0)
        ff = bdot3(h1, p["w2"], p["c2"])
        h = _layernorm(t + ff, p["g2"], p["be2"])
    return h


def ref_forward_f32(x, params, n_heads):
    B, S, D = x.shape
    h = x @ params["ft_w"] + params["ft_b"]
    H = h.shape[-1]
    hd = H // n_heads
    for p in params["layers"]:
        q = (h @ p["wq"] + p["bq"]).reshape(B, S, n_heads, hd).transpose(0, 2, 1, 3)
        k = (h @ p["wk"] + p["bk"]).reshape(B, S, n_heads, hd).transpose(0, 2, 1, 3)
        v = (h @ p["wv"] + p["bv"]).reshape(B, S, n_heads, hd).transpose(0, 2, 1, 3)
        energy = jnp.einsum("bnqd,bnkd->bnqk", q, k) / jnp.sqrt(jnp.float32(hd))
        attn = jax.nn.softmax(energy, axis=-1)
        ctx = jnp.einsum("bnqk,bnkd->bnqd", attn, v).transpose(0, 2, 1, 3).reshape(B, S, H)
        sa = ctx @ p["wo"] + p["bo"]
        t = _layernorm(h + sa, p["g1"], p["be1"])
        ff = jnp.maximum(t @ p["w1"] + p["c1"], 0.0) @ p["w2"] + p["c2"]
        h = _layernorm(t + ff, p["g2"], p["be2"])
    return h


# ----------------------------------------------------------------------------
if __name__ == "__main__":
    # Small, lane-dense demo shapes (H and PF are multiples of 128 so stores are
    # unmasked full-lane vst; seq_tile=64 exercises the sequence-tiled grid).
    B, S = 2, 128
    dna_dim, hid_dim, pf_dim = 16, 128, 256
    n_layers, n_heads = 2, 4
    seq_tile = 64

    key = jax.random.PRNGKey(0)
    key, kx, kp = jax.random.split(key, 3)
    x = jax.random.normal(kx, (B, S, dna_dim), jnp.float32)
    params = init_params(kp, dna_dim, hid_dim, pf_dim, n_layers)

    fwd = jax.jit(functools.partial(encoder_forward, n_heads=n_heads,
                                    seq_tile=seq_tile))
    out = jax.block_until_ready(fwd(x, params))
    assert out.shape == (B, S, hid_dim)
    assert bool(jnp.all(jnp.isfinite(out)))

    # Strict check against a reference that mirrors the kernel math exactly.
    ref_m = jax.block_until_ready(ref_forward_matched(x, params, n_heads))
    assert jnp.allclose(out, ref_m, atol=1e-2, rtol=1e-2), \
        "mismatch vs matched (bf16-operand) JAX reference"

    # Loose sanity check against the full-f32 semantic reference.
    ref_f = jax.block_until_ready(ref_forward_f32(x, params, n_heads))
    assert jnp.allclose(out, ref_f, atol=1e-1, rtol=1e-1), \
        "mismatch vs f32 JAX reference"

    print("KERNEL_OK")
</pallas_src>

<mosaic_0001>
module attributes {stable_mosaic.version = 11 : i64} {
  func.func @_encoder_layer_kernel(%arg0: i32, %arg1: i32, %arg2: memref<1x64x128xf32, #tpu.memory_space<vmem>>, %arg3: memref<1x128x128xf32, #tpu.memory_space<vmem>>, %arg4: memref<128x128xbf16, #tpu.memory_space<vmem>>, %arg5: memref<1x128xf32, #tpu.memory_space<vmem>>, %arg6: memref<128x128xbf16, #tpu.memory_space<vmem>>, %arg7: memref<1x128xf32, #tpu.memory_space<vmem>>, %arg8: memref<128x128xbf16, #tpu.memory_space<vmem>>, %arg9: memref<1x128xf32, #tpu.memory_space<vmem>>, %arg10: memref<128x128xbf16, #tpu.memory_space<vmem>>, %arg11: memref<1x128xf32, #tpu.memory_space<vmem>>, %arg12: memref<1x128xf32, #tpu.memory_space<vmem>>, %arg13: memref<1x128xf32, #tpu.memory_space<vmem>>, %arg14: memref<128x256xbf16, #tpu.memory_space<vmem>>, %arg15: memref<1x256xf32, #tpu.memory_space<vmem>>, %arg16: memref<256x128xbf16, #tpu.memory_space<vmem>>, %arg17: memref<1x128xf32, #tpu.memory_space<vmem>>, %arg18: memref<1x128xf32, #tpu.memory_space<vmem>>, %arg19: memref<1x128xf32, #tpu.memory_space<vmem>>, %arg20: memref<1x64x128xf32, #tpu.memory_space<vmem>>) attributes {dimension_semantics = [#tpu.dimension_semantics<parallel>, #tpu.dimension_semantics<parallel>], iteration_bounds = array<i64: 2, 2>, scalar_prefetch = 0 : i64, scratch_operands = 0 : i64, tpu.core_type = #tpu.core_type<tc>, window_params = [{transform_indices = @transform_0, window_bounds = array<i64: 1, 64, 128>}, {transform_indices = @transform_1, window_bounds = array<i64: 1, 128, 128>}, {pipeline_mode = #tpu.pipeline_mode<synchronous>, transform_indices = @transform_2, window_bounds = array<i64: 128, 128>}, {pipeline_mode = #tpu.pipeline_mode<synchronous>, transform_indices = @transform_3, window_bounds = array<i64: 1, 128>}, {pipeline_mode = #tpu.pipeline_mode<synchronous>, transform_indices = @transform_4, window_bounds = array<i64: 128, 128>}, {pipeline_mode = #tpu.pipeline_mode<synchronous>, transform_indices = @transform_5, window_bounds = array<i64: 1, 128>}, {pipeline_mode = #tpu.pipeline_mode<synchronous>, transform_indices = @transform_6, window_bounds = array<i64: 128, 128>}, {pipeline_mode = #tpu.pipeline_mode<synchronous>, transform_indices = @transform_7, window_bounds = array<i64: 1, 128>}, {pipeline_mode = #tpu.pipeline_mode<synchronous>, transform_indices = @transform_8, window_bounds = array<i64: 128, 128>}, {pipeline_mode = #tpu.pipeline_mode<synchronous>, transform_indices = @transform_9, window_bounds = array<i64: 1, 128>}, {pipeline_mode = #tpu.pipeline_mode<synchronous>, transform_indices = @transform_10, window_bounds = array<i64: 1, 128>}, {pipeline_mode = #tpu.pipeline_mode<synchronous>, transform_indices = @transform_11, window_bounds = array<i64: 1, 128>}, {pipeline_mode = #tpu.pipeline_mode<synchronous>, transform_indices = @transform_12, window_bounds = array<i64: 128, 256>}, {pipeline_mode = #tpu.pipeline_mode<synchronous>, transform_indices = @transform_13, window_bounds = array<i64: 1, 256>}, {pipeline_mode = #tpu.pipeline_mode<synchronous>, transform_indices = @transform_14, window_bounds = array<i64: 256, 128>}, {pipeline_mode = #tpu.pipeline_mode<synchronous>, transform_indices = @transform_15, window_bounds = array<i64: 1, 128>}, {pipeline_mode = #tpu.pipeline_mode<synchronous>, transform_indices = @transform_16, window_bounds = array<i64: 1, 128>}, {pipeline_mode = #tpu.pipeline_mode<synchronous>, transform_indices = @transform_17, window_bounds = array<i64: 1, 128>}, {transform_indices = @transform_18, window_bounds = array<i64: 1, 64, 128>}]} {
    %c0 = arith.constant 0 : index
    %c0_0 = arith.constant 0 : index
    %c0_1 = arith.constant 0 : index
    %0 = vector.load %arg2[%c0, %c0_0, %c0_1] : memref<1x64x128xf32, #tpu.memory_space<vmem>>, vector<1x64x128xf32>
    %1 = vector.shape_cast %0 : vector<1x64x128xf32> to vector<64x128xf32>
    %c0_2 = arith.constant 0 : index
    %c0_3 = arith.constant 0 : index
    %c0_4 = arith.constant 0 : index
    %2 = vector.load %arg3[%c0_2, %c0_3, %c0_4] : memref<1x128x128xf32, #tpu.memory_space<vmem>>, vector<1x128x128xf32>
    %3 = vector.shape_cast %2 : vector<1x128x128xf32> to vector<128x128xf32>
    %4 = arith.truncf %1 : vector<64x128xf32> to vector<64x128xbf16>
    %5 = arith.truncf %3 : vector<128x128xf32> to vector<128x128xbf16>
    %c0_5 = arith.constant 0 : index
    %c0_6 = arith.constant 0 : index
    %6 = vector.load %arg4[%c0_5, %c0_6] : memref<128x128xbf16, #tpu.memory_space<vmem>>, vector<128x128xbf16>
    %cst = arith.constant dense<0.000000e+00> : vector<64x128xf32>
    %7 = tpu.matmul %4, %6, %cst {dimension_numbers = #tpu.dot_dimension_numbers<[1], [0], [0], [1], [0, 0, 1, 1], [], []>} : vector<64x128xbf16>, vector<128x128xbf16>, vector<64x128xf32> -> vector<64x128xf32>
    %c0_7 = arith.constant 0 : index
    %c0_8 = arith.constant 0 : index
    %8 = vector.load %arg5[%c0_7, %c0_8] : memref<1x128xf32, #tpu.memory_space<vmem>>, vector<1x128xf32>
    %9 = vector.broadcast %8 : vector<1x128xf32> to vector<64x128xf32>
    %10 = arith.addf %7, %9 : vector<64x128xf32>
    %c0_9 = arith.constant 0 : index
    %c0_10 = arith.constant 0 : index
    %11 = vector.load %arg6[%c0_9, %c0_10] : memref<128x128xbf16, #tpu.memory_space<vmem>>, vector<128x128xbf16>
    %cst_11 = arith.constant dense<0.000000e+00> : vector<128x128xf32>
    %12 = tpu.matmul %5, %11, %cst_11 {dimension_numbers = #tpu.dot_dimension_numbers<[1], [0], [0], [1], [0, 0, 1, 1], [], []>} : vector<128x128xbf16>, vector<128x128xbf16>, vector<128x128xf32> -> vector<128x128xf32>
    %c0_12 = arith.constant 0 : index
    %c0_13 = arith.constant 0 : index
    %13 = vector.load %arg7[%c0_12, %c0_13] : memref<1x128xf32, #tpu.memory_space<vmem>>, vector<1x128xf32>
    %14 = vector.broadcast %13 : vector<1x128xf32> to vector<128x128xf32>
    %15 = arith.addf %12, %14 : vector<128x128xf32>
    %c0_14 = arith.constant 0 : index
    %c0_15 = arith.constant 0 : index
    %16 = vector.load %arg8[%c0_14, %c0_15] : memref<128x128xbf16, #tpu.memory_space<vmem>>, vector<128x128xbf16>
    %cst_16 = arith.constant dense<0.000000e+00> : vector<128x128xf32>
    %17 = tpu.matmul %5, %16, %cst_16 {dimension_numbers = #tpu.dot_dimension_numbers<[1], [0], [0], [1], [0, 0, 1, 1], [], []>} : vector<128x128xbf16>, vector<128x128xbf16>, vector<128x128xf32> -> vector<128x128xf32>
    %c0_17 = arith.constant 0 : index
    %c0_18 = arith.constant 0 : index
    %18 = vector.load %arg9[%c0_17, %c0_18] : memref<1x128xf32, #tpu.memory_space<vmem>>, vector<1x128xf32>
    %19 = vector.broadcast %18 : vector<1x128xf32> to vector<128x128xf32>
    %20 = arith.addf %17, %19 : vector<128x128xf32>
    %cst_19 = arith.constant 0.176776692 : f32
    %21 = vector.broadcast %cst_19 : f32 to vector<64x128xf32>
    %22 = arith.mulf %10, %21 : vector<64x128xf32>
    %23 = arith.truncf %22 : vector<64x128xf32> to vector<64x128xbf16>
    %24 = arith.truncf %15 : vector<128x128xf32> to vector<128x128xbf16>
    %25 = arith.truncf %20 : vector<128x128xf32> to vector<128x128xbf16>
    %26 = vector.extract_strided_slice %23 {offsets = [0, 0], sizes = [64, 32], strides = [1, 1]} : vector<64x128xbf16> to vector<64x32xbf16>
    %27 = vector.extract_strided_slice %23 {offsets = [0, 32], sizes = [64, 32], strides = [1, 1]} : vector<64x128xbf16> to vector<64x32xbf16>
    %28 = vector.extract_strided_slice %23 {offsets = [0, 64], sizes = [64, 32], strides = [1, 1]} : vector<64x128xbf16> to vector<64x32xbf16>
    %29 = vector.extract_strided_slice %23 {offsets = [0, 96], sizes = [64, 32], strides = [1, 1]} : vector<64x128xbf16> to vector<64x32xbf16>
    %30 = vector.shape_cast %26 : vector<64x32xbf16> to vector<1x64x32xbf16>
    %31 = vector.shape_cast %27 : vector<64x32xbf16> to vector<1x64x32xbf16>
    %32 = vector.shape_cast %28 : vector<64x32xbf16> to vector<1x64x32xbf16>
    %33 = vector.shape_cast %29 : vector<64x32xbf16> to vector<1x64x32xbf16>
    %34 = tpu.concatenate %30, %31, %32, %33 in 0 : vector<1x64x32xbf16>, vector<1x64x32xbf16>, vector<1x64x32xbf16>, vector<1x64x32xbf16> -> vector<4x64x32xbf16>
    %35 = vector.extract_strided_slice %24 {offsets = [0, 0], sizes = [128, 32], strides = [1, 1]} : vector<128x128xbf16> to vector<128x32xbf16>
    %36 = vector.extract_strided_slice %24 {offsets = [0, 32], sizes = [128, 32], strides = [1, 1]} : vector<128x128xbf16> to vector<128x32xbf16>
    %37 = vector.extract_strided_slice %24 {offsets = [0, 64], sizes = [128, 32], strides = [1, 1]} : vector<128x128xbf16> to vector<128x32xbf16>
    %38 = vector.extract_strided_slice %24 {offsets = [0, 96], sizes = [128, 32], strides = [1, 1]} : vector<128x128xbf16> to vector<128x32xbf16>
    %39 = vector.shape_cast %35 : vector<128x32xbf16> to vector<1x128x32xbf16>
    %40 = vector.shape_cast %36 : vector<128x32xbf16> to vector<1x128x32xbf16>
    %41 = vector.shape_cast %37 : vector<128x32xbf16> to vector<1x128x32xbf16>
    %42 = vector.shape_cast %38 : vector<128x32xbf16> to vector<1x128x32xbf16>
    %43 = tpu.concatenate %39, %40, %41, %42 in 0 : vector<1x128x32xbf16>, vector<1x128x32xbf16>, vector<1x128x32xbf16>, vector<1x128x32xbf16> -> vector<4x128x32xbf16>
    %44 = vector.extract_strided_slice %25 {offsets = [0, 0], sizes = [128, 32], strides = [1, 1]} : vector<128x128xbf16> to vector<128x32xbf16>
    %45 = vector.extract_strided_slice %25 {offsets = [0, 32], sizes = [128, 32], strides = [1, 1]} : vector<128x128xbf16> to vector<128x32xbf16>
    %46 = vector.extract_strided_slice %25 {offsets = [0, 64], sizes = [128, 32], strides = [1, 1]} : vector<128x128xbf16> to vector<128x32xbf16>
    %47 = vector.extract_strided_slice %25 {offsets = [0, 96], sizes = [128, 32], strides = [1, 1]} : vector<128x128xbf16> to vector<128x32xbf16>
    %48 = vector.shape_cast %44 : vector<128x32xbf16> to vector<1x128x32xbf16>
    %49 = vector.shape_cast %45 : vector<128x32xbf16> to vector<1x128x32xbf16>
    %50 = vector.shape_cast %46 : vector<128x32xbf16> to vector<1x128x32xbf16>
    %51 = vector.shape_cast %47 : vector<128x32xbf16> to vector<1x128x32xbf16>
    %52 = tpu.concatenate %48, %49, %50, %51 in 0 : vector<1x128x32xbf16>, vector<1x128x32xbf16>, vector<1x128x32xbf16>, vector<1x128x32xbf16> -> vector<4x128x32xbf16>
    "tpu.trace_start"() <{level = 10 : i32, message = "hqd,hkd->hqk"}> : () -> ()
    %cst_20 = arith.constant dense<0.000000e+00> : vector<4x64x128xf32>
    %53 = tpu.matmul %34, %43, %cst_20 {dimension_numbers = #tpu.dot_dimension_numbers<[2], [2], [1], [1], [0, 0, 0, 1, 1, 1], [0], [0]>} : vector<4x64x32xbf16>, vector<4x128x32xbf16>, vector<4x64x128xf32> -> vector<4x64x128xf32>
    "tpu.trace_stop"() : () -> ()
    %cst_21 = arith.constant dense<0xFF800000> : vector<4x64xf32>
    %54 = vector.multi_reduction <maximumf>, %53, %cst_21 [2] : vector<4x64x128xf32> to vector<4x64xf32>
    %55 = vector.shape_cast %54 : vector<4x64xf32> to vector<4x64x1xf32>
    %56 = vector.broadcast %55 : vector<4x64x1xf32> to vector<4x64x128xf32>
    %57 = arith.subf %53, %56 : vector<4x64x128xf32>
    %58 = math.exp %57 : vector<4x64x128xf32>
    %cst_22 = arith.constant dense<0.000000e+00> : vector<4x64xf32>
    %59 = vector.multi_reduction <add>, %58, %cst_22 [2] : vector<4x64x128xf32> to vector<4x64xf32>
    %60 = vector.shape_cast %59 : vector<4x64xf32> to vector<4x64x1xf32>
    %61 = tpu.reciprocal %60 : vector<4x64x1xf32> -> vector<4x64x1xf32>
    %62 = vector.broadcast %61 : vector<4x64x1xf32> to vector<4x64x128xf32>
    %63 = arith.mulf %58, %62 : vector<4x64x128xf32>
    %64 = arith.truncf %63 : vector<4x64x128xf32> to vector<4x64x128xbf16>
    "tpu.trace_start"() <{level = 10 : i32, message = "hqk,hkd->hqd"}> : () -> ()
    %cst_23 = arith.constant dense<0.000000e+00> : vector<4x64x32xf32>
    %65 = tpu.matmul %64, %52, %cst_23 {dimension_numbers = #tpu.dot_dimension_numbers<[2], [1], [1], [2], [0, 0, 0, 1, 1, 2], [0], [0]>} : vector<4x64x128xbf16>, vector<4x128x32xbf16>, vector<4x64x32xf32> -> vector<4x64x32xf32>
    "tpu.trace_stop"() : () -> ()
    %66 = vector.extract_strided_slice %65 {offsets = [0, 0, 0], sizes = [1, 64, 32], strides = [1, 1, 1]} : vector<4x64x32xf32> to vector<1x64x32xf32>
    %67 = vector.shape_cast %66 : vector<1x64x32xf32> to vector<64x32xf32>
    %68 = vector.extract_strided_slice %65 {offsets = [1, 0, 0], sizes = [1, 64, 32], strides = [1, 1, 1]} : vector<4x64x32xf32> to vector<1x64x32xf32>
    %69 = vector.shape_cast %68 : vector<1x64x32xf32> to vector<64x32xf32>
    %70 = vector.extract_strided_slice %65 {offsets = [2, 0, 0], sizes = [1, 64, 32], strides = [1, 1, 1]} : vector<4x64x32xf32> to vector<1x64x32xf32>
    %71 = vector.shape_cast %70 : vector<1x64x32xf32> to vector<64x32xf32>
    %72 = vector.extract_strided_slice %65 {offsets = [3, 0, 0], sizes = [1, 64, 32], strides = [1, 1, 1]} : vector<4x64x32xf32> to vector<1x64x32xf32>
    %73 = vector.shape_cast %72 : vector<1x64x32xf32> to vector<64x32xf32>
    %74 = tpu.concatenate %67, %69, %71, %73 in 1 : vector<64x32xf32>, vector<64x32xf32>, vector<64x32xf32>, vector<64x32xf32> -> vector<64x128xf32>
    %75 = arith.truncf %74 : vector<64x128xf32> to vector<64x128xbf16>
    %c0_24 = arith.constant 0 : index
    %c0_25 = arith.constant 0 : index
    %76 = vector.load %arg10[%c0_24, %c0_25] : memref<128x128xbf16, #tpu.memory_space<vmem>>, vector<128x128xbf16>
    %cst_26 = arith.constant dense<0.000000e+00> : vector<64x128xf32>
    %77 = tpu.matmul %75, %76, %cst_26 {dimension_numbers = #tpu.dot_dimension_numbers<[1], [0], [0], [1], [0, 0, 1, 1], [], []>} : vector<64x128xbf16>, vector<128x128xbf16>, vector<64x128xf32> -> vector<64x128xf32>
    %c0_27 = arith.constant 0 : index
    %c0_28 = arith.constant 0 : index
    %78 = vector.load %arg11[%c0_27, %c0_28] : memref<1x128xf32, #tpu.memory_space<vmem>>, vector<1x128xf32>
    %79 = vector.broadcast %78 : vector<1x128xf32> to vector<64x128xf32>
    %80 = arith.addf %77, %79 : vector<64x128xf32>
    %81 = arith.addf %1, %80 : vector<64x128xf32>
    %c0_29 = arith.constant 0 : index
    %c0_30 = arith.constant 0 : index
    %82 = vector.load %arg12[%c0_29, %c0_30] : memref<1x128xf32, #tpu.memory_space<vmem>>, vector<1x128xf32>
    %c0_31 = arith.constant 0 : index
    %c0_32 = arith.constant 0 : index
    %83 = vector.load %arg13[%c0_31, %c0_32] : memref<1x128xf32, #tpu.memory_space<vmem>>, vector<1x128xf32>
    %cst_33 = arith.constant dense<0.000000e+00> : vector<64xf32>
    %84 = vector.multi_reduction <add>, %81, %cst_33 [1] : vector<64x128xf32> to vector<64xf32>
    %85 = vector.shape_cast %84 : vector<64xf32> to vector<64x1xf32>
    %cst_34 = arith.constant 1.280000e+02 : f32
    %86 = vector.broadcast %cst_34 : f32 to vector<64x1xf32>
    %87 = arith.divf %85, %86 : vector<64x1xf32>
    %88 = vector.broadcast %87 : vector<64x1xf32> to vector<64x128xf32>
    %89 = arith.subf %81, %88 : vector<64x128xf32>
    %90 = arith.mulf %89, %89 : vector<64x128xf32>
    %cst_35 = arith.constant dense<0.000000e+00> : vector<64xf32>
    %91 = vector.multi_reduction <add>, %90, %cst_35 [1] : vector<64x128xf32> to vector<64xf32>
    %92 = vector.shape_cast %91 : vector<64xf32> to vector<64x1xf32>
    %cst_36 = arith.constant 1.270000e+02 : f32
    %93 = vector.broadcast %cst_36 : f32 to vector<64x1xf32>
    %94 = arith.divf %92, %93 : vector<64x1xf32>
    %95 = math.sqrt %94 : vector<64x1xf32>
    %cst_37 = arith.constant 9.99999996E-13 : f32
    %96 = vector.broadcast %cst_37 : f32 to vector<64x1xf32>
    %97 = arith.addf %95, %96 : vector<64x1xf32>
    %98 = vector.broadcast %97 : vector<64x1xf32> to vector<64x128xf32>
    %99 = arith.divf %89, %98 : vector<64x128xf32>
    %100 = vector.broadcast %82 : vector<1x128xf32> to vector<64x128xf32>
    %101 = arith.mulf %100, %99 : vector<64x128xf32>
    %102 = vector.broadcast %83 : vector<1x128xf32> to vector<64x128xf32>
    %103 = arith.addf %101, %102 : vector<64x128xf32>
    %104 = arith.truncf %103 : vector<64x128xf32> to vector<64x128xbf16>
    %c0_38 = arith.constant 0 : index
    %c0_39 = arith.constant 0 : index
    %105 = vector.load %arg14[%c0_38, %c0_39] : memref<128x256xbf16, #tpu.memory_space<vmem>>, vector<128x256xbf16>
    %cst_40 = arith.constant dense<0.000000e+00> : vector<64x256xf32>
    %106 = tpu.matmul %104, %105, %cst_40 {dimension_numbers = #tpu.dot_dimension_numbers<[1], [0], [0], [1], [0, 0, 1, 1], [], []>} : vector<64x128xbf16>, vector<128x256xbf16>, vector<64x256xf32> -> vector<64x256xf32>
    %c0_41 = arith.constant 0 : index
    %c0_42 = arith.constant 0 : index
    %107 = vector.load %arg15[%c0_41, %c0_42] : memref<1x256xf32, #tpu.memory_space<vmem>>, vector<1x256xf32>
    %108 = vector.broadcast %107 : vector<1x256xf32> to vector<64x256xf32>
    %109 = arith.addf %106, %108 : vector<64x256xf32>
    %cst_43 = arith.constant 0.000000e+00 : f32
    %110 = vector.broadcast %cst_43 : f32 to vector<64x256xf32>
    %111 = arith.maximumf %109, %110 : vector<64x256xf32>
    %112 = arith.truncf %111 : vector<64x256xf32> to vector<64x256xbf16>
    %c0_44 = arith.constant 0 : index
    %c0_45 = arith.constant 0 : index
    %113 = vector.load %arg16[%c0_44, %c0_45] : memref<256x128xbf16, #tpu.memory_space<vmem>>, vector<256x128xbf16>
    %cst_46 = arith.constant dense<0.000000e+00> : vector<64x128xf32>
    %114 = tpu.matmul %112, %113, %cst_46 {dimension_numbers = #tpu.dot_dimension_numbers<[1], [0], [0], [1], [0, 0, 1, 1], [], []>} : vector<64x256xbf16>, vector<256x128xbf16>, vector<64x128xf32> -> vector<64x128xf32>
    %c0_47 = arith.constant 0 : index
    %c0_48 = arith.constant 0 : index
    %115 = vector.load %arg17[%c0_47, %c0_48] : memref<1x128xf32, #tpu.memory_space<vmem>>, vector<1x128xf32>
    %116 = vector.broadcast %115 : vector<1x128xf32> to vector<64x128xf32>
    %117 = arith.addf %114, %116 : vector<64x128xf32>
    %118 = arith.addf %103, %117 : vector<64x128xf32>
    %c0_49 = arith.constant 0 : index
    %c0_50 = arith.constant 0 : index
    %119 = vector.load %arg18[%c0_49, %c0_50] : memref<1x128xf32, #tpu.memory_space<vmem>>, vector<1x128xf32>
    %c0_51 = arith.constant 0 : index
    %c0_52 = arith.constant 0 : index
    %120 = vector.load %arg19[%c0_51, %c0_52] : memref<1x128xf32, #tpu.memory_space<vmem>>, vector<1x128xf32>
    %cst_53 = arith.constant dense<0.000000e+00> : vector<64xf32>
    %121 = vector.multi_reduction <add>, %118, %cst_53 [1] : vector<64x128xf32> to vector<64xf32>
    %122 = vector.shape_cast %121 : vector<64xf32> to vector<64x1xf32>
    %cst_54 = arith.constant 1.280000e+02 : f32
    %123 = vector.broadcast %cst_54 : f32 to vector<64x1xf32>
    %124 = arith.divf %122, %123 : vector<64x1xf32>
    %125 = vector.broadcast %124 : vector<64x1xf32> to vector<64x128xf32>
    %126 = arith.subf %118, %125 : vector<64x128xf32>
    %127 = arith.mulf %126, %126 : vector<64x128xf32>
    %cst_55 = arith.constant dense<0.000000e+00> : vector<64xf32>
    %128 = vector.multi_reduction <add>, %127, %cst_55 [1] : vector<64x128xf32> to vector<64xf32>
    %129 = vector.shape_cast %128 : vector<64xf32> to vector<64x1xf32>
    %cst_56 = arith.constant 1.270000e+02 : f32
    %130 = vector.broadcast %cst_56 : f32 to vector<64x1xf32>
    %131 = arith.divf %129, %130 : vector<64x1xf32>
    %132 = math.sqrt %131 : vector<64x1xf32>
    %cst_57 = arith.constant 9.99999996E-13 : f32
    %133 = vector.broadcast %cst_57 : f32 to vector<64x1xf32>
    %134 = arith.addf %132, %133 : vector<64x1xf32>
    %135 = vector.broadcast %134 : vector<64x1xf32> to vector<64x128xf32>
    %136 = arith.divf %126, %135 : vector<64x128xf32>
    %137 = vector.broadcast %119 : vector<1x128xf32> to vector<64x128xf32>
    %138 = arith.mulf %137, %136 : vector<64x128xf32>
    %139 = vector.broadcast %120 : vector<1x128xf32> to vector<64x128xf32>
    %140 = arith.addf %138, %139 : vector<64x128xf32>
    %c0_58 = arith.constant 0 : index
    %c0_59 = arith.constant 0 : index
    %c0_60 = arith.constant 0 : index
    %141 = vector.load %arg20[%c0_58, %c0_59, %c0_60] : memref<1x64x128xf32, #tpu.memory_space<vmem>>, vector<1x64x128xf32>
    %142 = vector.shape_cast %141 : vector<1x64x128xf32> to vector<64x128xf32>
    %143 = vector.shape_cast %140 : vector<64x128xf32> to vector<1x64x128xf32>
    tpu.vector_store %arg20[%c0_58, %c0_59, %c0_60], %143 {strides = array<i32>} : memref<1x64x128xf32, #tpu.memory_space<vmem>>, vector<1x64x128xf32>,
    return
  }
  func.func @transform_0(%arg0: i32, %arg1: i32) -> (i32, i32, i32) {
    %c0_i32 = arith.constant 0 : i32
    %c0_i32_0 = arith.constant 0 : i32
    return %arg0, %arg1, %c0_i32 : i32, i32, i32
  }
  func.func @transform_1(%arg0: i32, %arg1: i32) -> (i32, i32, i32) {
    %c0_i32 = arith.constant 0 : i32
    %c0_i32_0 = arith.constant 0 : i32
    %c0_i32_1 = arith.constant 0 : i32
    return %arg0, %c0_i32, %c0_i32_0 : i32, i32, i32
  }
  func.func @transform_2(%arg0: i32, %arg1: i32) -> (i32, i32) {
    %c0_i32 = arith.constant 0 : i32
    %c0_i32_0 = arith.constant 0 : i32
    %c0_i32_1 = arith.constant 0 : i32
    return %c0_i32, %c0_i32_0 : i32, i32
  }
  func.func @transform_3(%arg0: i32, %arg1: i32) -> (i32, i32) {
    %c0_i32 = arith.constant 0 : i32
    %c0_i32_0 = arith.constant 0 : i32
    %c0_i32_1 = arith.constant 0 : i32
    return %c0_i32, %c0_i32_0 : i32, i32
  }
  func.func @transform_4(%arg0: i32, %arg1: i32) -> (i32, i32) {
    %c0_i32 = arith.constant 0 : i32
    %c0_i32_0 = arith.constant 0 : i32
    %c0_i32_1 = arith.constant 0 : i32
    return %c0_i32, %c0_i32_0 : i32, i32
  }
  func.func @transform_5(%arg0: i32, %arg1: i32) -> (i32, i32) {
    %c0_i32 = arith.constant 0 : i32
    %c0_i32_0 = arith.constant 0 : i32
    %c0_i32_1 = arith.constant 0 : i32
    return %c0_i32, %c0_i32_0 : i32, i32
  }
  func.func @transform_6(%arg0: i32, %arg1: i32) -> (i32, i32) {
    %c0_i32 = arith.constant 0 : i32
    %c0_i32_0 = arith.constant 0 : i32
    %c0_i32_1 = arith.constant 0 : i32
    return %c0_i32, %c0_i32_0 : i32, i32
  }
  func.func @transform_7(%arg0: i32, %arg1: i32) -> (i32, i32) {
    %c0_i32 = arith.constant 0 : i32
    %c0_i32_0 = arith.constant 0 : i32
    %c0_i32_1 = arith.constant 0 : i32
    return %c0_i32, %c0_i32_0 : i32, i32
  }
  func.func @transform_8(%arg0: i32, %arg1: i32) -> (i32, i32) {
    %c0_i32 = arith.constant 0 : i32
    %c0_i32_0 = arith.constant 0 : i32
    %c0_i32_1 = arith.constant 0 : i32
    return %c0_i32, %c0_i32_0 : i32, i32
  }
  func.func @transform_9(%arg0: i32, %arg1: i32) -> (i32, i32) {
    %c0_i32 = arith.constant 0 : i32
    %c0_i32_0 = arith.constant 0 : i32
    %c0_i32_1 = arith.constant 0 : i32
    return %c0_i32, %c0_i32_0 : i32, i32
  }
  func.func @transform_10(%arg0: i32, %arg1: i32) -> (i32, i32) {
    %c0_i32 = arith.constant 0 : i32
    %c0_i32_0 = arith.constant 0 : i32
    %c0_i32_1 = arith.constant 0 : i32
    return %c0_i32, %c0_i32_0 : i32, i32
  }
  func.func @transform_11(%arg0: i32, %arg1: i32) -> (i32, i32) {
    %c0_i32 = arith.constant 0 : i32
    %c0_i32_0 = arith.constant 0 : i32
    %c0_i32_1 = arith.constant 0 : i32
    return %c0_i32, %c0_i32_0 : i32, i32
  }
  func.func @transform_12(%arg0: i32, %arg1: i32) -> (i32, i32) {
    %c0_i32 = arith.constant 0 : i32
    %c0_i32_0 = arith.constant 0 : i32
    %c0_i32_1 = arith.constant 0 : i32
    return %c0_i32, %c0_i32_0 : i32, i32
  }
  func.func @transform_13(%arg0: i32, %arg1: i32) -> (i32, i32) {
    %c0_i32 = arith.constant 0 : i32
    %c0_i32_0 = arith.constant 0 : i32
    %c0_i32_1 = arith.constant 0 : i32
    return %c0_i32, %c0_i32_0 : i32, i32
  }
  func.func @transform_14(%arg0: i32, %arg1: i32) -> (i32, i32) {
    %c0_i32 = arith.constant 0 : i32
    %c0_i32_0 = arith.constant 0 : i32
    %c0_i32_1 = arith.constant 0 : i32
    return %c0_i32, %c0_i32_0 : i32, i32
  }
  func.func @transform_15(%arg0: i32, %arg1: i32) -> (i32, i32) {
    %c0_i32 = arith.constant 0 : i32
    %c0_i32_0 = arith.constant 0 : i32
    %c0_i32_1 = arith.constant 0 : i32
    return %c0_i32, %c0_i32_0 : i32, i32
  }
  func.func @transform_16(%arg0: i32, %arg1: i32) -> (i32, i32) {
    %c0_i32 = arith.constant 0 : i32
    %c0_i32_0 = arith.constant 0 : i32
    %c0_i32_1 = arith.constant 0 : i32
    return %c0_i32, %c0_i32_0 : i32, i32
  }
  func.func @transform_17(%arg0: i32, %arg1: i32) -> (i32, i32) {
    %c0_i32 = arith.constant 0 : i32
    %c0_i32_0 = arith.constant 0 : i32
    %c0_i32_1 = arith.constant 0 : i32
    return %c0_i32, %c0_i32_0 : i32, i32
  }
  func.func @transform_18(%arg0: i32, %arg1: i32) -> (i32, i32, i32) {
    %c0_i32 = arith.constant 0 : i32
    %c0_i32_0 = arith.constant 0 : i32
    return %arg0, %arg1, %c0_i32 : i32, i32, i32
  }
}

module attributes {stable_mosaic.version = 11 : i64} {
  func.func @_linear_kernel(%arg0: i32, %arg1: memref<256x16xf32, #tpu.memory_space<vmem>>, %arg2: memref<16x128xbf16, #tpu.memory_space<vmem>>, %arg3: memref<1x128xf32, #tpu.memory_space<vmem>>, %arg4: memref<256x128xf32, #tpu.memory_space<vmem>>) attributes {dimension_semantics = [#tpu.dimension_semantics<parallel>], iteration_bounds = array<i64: 1>, scalar_prefetch = 0 : i64, scratch_operands = 0 : i64, tpu.core_type = #tpu.core_type<tc>, window_params = [{transform_indices = @transform_0, window_bounds = array<i64: 256, 16>}, {pipeline_mode = #tpu.pipeline_mode<synchronous>, transform_indices = @transform_1, window_bounds = array<i64: 16, 128>}, {pipeline_mode = #tpu.pipeline_mode<synchronous>, transform_indices = @transform_2, window_bounds = array<i64: 1, 128>}, {transform_indices = @transform_3, window_bounds = array<i64: 256, 128>}]} {
    %c0 = arith.constant 0 : index
    %c0_0 = arith.constant 0 : index
    %0 = vector.load %arg1[%c0, %c0_0] : memref<256x16xf32, #tpu.memory_space<vmem>>, vector<256x16xf32>
    %1 = arith.truncf %0 : vector<256x16xf32> to vector<256x16xbf16>
    %c0_1 = arith.constant 0 : index
    %c0_2 = arith.constant 0 : index
    %2 = vector.load %arg2[%c0_1, %c0_2] : memref<16x128xbf16, #tpu.memory_space<vmem>>, vector<16x128xbf16>
    %cst = arith.constant dense<0.000000e+00> : vector<256x128xf32>
    %3 = tpu.matmul %1, %2, %cst {dimension_numbers = #tpu.dot_dimension_numbers<[1], [0], [0], [1], [0, 0, 1, 1], [], []>} : vector<256x16xbf16>, vector<16x128xbf16>, vector<256x128xf32> -> vector<256x128xf32>
    %c0_3 = arith.constant 0 : index
    %c0_4 = arith.constant 0 : index
    %4 = vector.load %arg3[%c0_3, %c0_4] : memref<1x128xf32, #tpu.memory_space<vmem>>, vector<1x128xf32>
    %5 = vector.broadcast %4 : vector<1x128xf32> to vector<256x128xf32>
    %6 = arith.addf %3, %5 : vector<256x128xf32>
    %c0_5 = arith.constant 0 : index
    %c0_6 = arith.constant 0 : index
    %7 = vector.load %arg4[%c0_5, %c0_6] : memref<256x128xf32, #tpu.memory_space<vmem>>, vector<256x128xf32>
    tpu.vector_store %arg4[%c0_5, %c0_6], %6 {strides = array<i32>} : memref<256x128xf32, #tpu.memory_space<vmem>>, vector<256x128xf32>,
    return
  }
  func.func @transform_0(%arg0: i32) -> (i32, i32) {
    %c0_i32 = arith.constant 0 : i32
    %c0_i32_0 = arith.constant 0 : i32
    return %arg0, %c0_i32 : i32, i32
  }
  func.func @transform_1(%arg0: i32) -> (i32, i32) {
    %c0_i32 = arith.constant 0 : i32
    %c0_i32_0 = arith.constant 0 : i32
    %c0_i32_1 = arith.constant 0 : i32
    return %c0_i32, %c0_i32_0 : i32, i32
  }
  func.func @transform_2(%arg0: i32) -> (i32, i32) {
    %c0_i32 = arith.constant 0 : i32
    %c0_i32_0 = arith.constant 0 : i32
    %c0_i32_1 = arith.constant 0 : i32
    return %c0_i32, %c0_i32_0 : i32, i32
  }
  func.func @transform_3(%arg0: i32) -> (i32, i32) {
    %c0_i32 = arith.constant 0 : i32
    %c0_i32_0 = arith.constant 0 : i32
    return %arg0, %c0_i32 : i32, i32
  }
}

module attributes {stable_mosaic.version = 11 : i64} {
  func.func @_encoder_layer_kernel(%arg0: i32, %arg1: i32, %arg2: memref<1x64x128xf32, #tpu.memory_space<vmem>>, %arg3: memref<1x128x128xf32, #tpu.memory_space<vmem>>, %arg4: memref<128x128xbf16, #tpu.memory_space<vmem>>, %arg5: memref<1x128xf32, #tpu.memory_space<vmem>>, %arg6: memref<128x128xbf16, #tpu.memory_space<vmem>>, %arg7: memref<1x128xf32, #tpu.memory_space<vmem>>, %arg8: memref<128x128xbf16, #tpu.memory_space<vmem>>, %arg9: memref<1x128xf32, #tpu.memory_space<vmem>>, %arg10: memref<128x128xbf16, #tpu.memory_space<vmem>>, %arg11: memref<1x128xf32, #tpu.memory_space<vmem>>, %arg12: memref<1x128xf32, #tpu.memory_space<vmem>>, %arg13: memref<1x128xf32, #tpu.memory_space<vmem>>, %arg14: memref<128x256xbf16, #tpu.memory_space<vmem>>, %arg15: memref<1x256xf32, #tpu.memory_space<vmem>>, %arg16: memref<256x128xbf16, #tpu.memory_space<vmem>>, %arg17: memref<1x128xf32, #tpu.memory_space<vmem>>, %arg18: memref<1x128xf32, #tpu.memory_space<vmem>>, %arg19: memref<1x128xf32, #tpu.memory_space<vmem>>, %arg20: memref<1x64x128xf32, #tpu.memory_space<vmem>>) attributes {dimension_semantics = [#tpu.dimension_semantics<parallel>, #tpu.dimension_semantics<parallel>], iteration_bounds = array<i64: 2, 2>, scalar_prefetch = 0 : i64, scratch_operands = 0 : i64, tpu.core_type = #tpu.core_type<tc>, window_params = [{transform_indices = @transform_0, window_bounds = array<i64: 1, 64, 128>}, {transform_indices = @transform_1, window_bounds = array<i64: 1, 128, 128>}, {pipeline_mode = #tpu.pipeline_mode<synchronous>, transform_indices = @transform_2, window_bounds = array<i64: 128, 128>}, {pipeline_mode = #tpu.pipeline_mode<synchronous>, transform_indices = @transform_3, window_bounds = array<i64: 1, 128>}, {pipeline_mode = #tpu.pipeline_mode<synchronous>, transform_indices = @transform_4, window_bounds = array<i64: 128, 128>}, {pipeline_mode = #tpu.pipeline_mode<synchronous>, transform_indices = @transform_5, window_bounds = array<i64: 1, 128>}, {pipeline_mode = #tpu.pipeline_mode<synchronous>, transform_indices = @transform_6, window_bounds = array<i64: 128, 128>}, {pipeline_mode = #tpu.pipeline_mode<synchronous>, transform_indices = @transform_7, window_bounds = array<i64: 1, 128>}, {pipeline_mode = #tpu.pipeline_mode<synchronous>, transform_indices = @transform_8, window_bounds = array<i64: 128, 128>}, {pipeline_mode = #tpu.pipeline_mode<synchronous>, transform_indices = @transform_9, window_bounds = array<i64: 1, 128>}, {pipeline_mode = #tpu.pipeline_mode<synchronous>, transform_indices = @transform_10, window_bounds = array<i64: 1, 128>}, {pipeline_mode = #tpu.pipeline_mode<synchronous>, transform_indices = @transform_11, window_bounds = array<i64: 1, 128>}, {pipeline_mode = #tpu.pipeline_mode<synchronous>, transform_indices = @transform_12, window_bounds = array<i64: 128, 256>}, {pipeline_mode = #tpu.pipeline_mode<synchronous>, transform_indices = @transform_13, window_bounds = array<i64: 1, 256>}, {pipeline_mode = #tpu.pipeline_mode<synchronous>, transform_indices = @transform_14, window_bounds = array<i64: 256, 128>}, {pipeline_mode = #tpu.pipeline_mode<synchronous>, transform_indices = @transform_15, window_bounds = array<i64: 1, 128>}, {pipeline_mode = #tpu.pipeline_mode<synchronous>, transform_indices = @transform_16, window_bounds = array<i64: 1, 128>}, {pipeline_mode = #tpu.pipeline_mode<synchronous>, transform_indices = @transform_17, window_bounds = array<i64: 1, 128>}, {transform_indices = @transform_18, window_bounds = array<i64: 1, 64, 128>}]} {
    %c0 = arith.constant 0 : index
    %c0_0 = arith.constant 0 : index
    %c0_1 = arith.constant 0 : index
    %0 = vector.load %arg2[%c0, %c0_0, %c0_1] : memref<1x64x128xf32, #tpu.memory_space<vmem>>, vector<1x64x128xf32>
    %1 = vector.shape_cast %0 : vector<1x64x128xf32> to vector<64x128xf32>
    %c0_2 = arith.constant 0 : index
    %c0_3 = arith.constant 0 : index
    %c0_4 = arith.constant 0 : index
    %2 = vector.load %arg3[%c0_2, %c0_3, %c0_4] : memref<1x128x128xf32, #tpu.memory_space<vmem>>, vector<1x128x128xf32>
    %3 = vector.shape_cast %2 : vector<1x128x128xf32> to vector<128x128xf32>
    %4 = arith.truncf %1 : vector<64x128xf32> to vector<64x128xbf16>
    %5 = arith.truncf %3 : vector<128x128xf32> to vector<128x128xbf16>
    %c0_5 = arith.constant 0 : index
    %c0_6 = arith.constant 0 : index
    %6 = vector.load %arg4[%c0_5, %c0_6] : memref<128x128xbf16, #tpu.memory_space<vmem>>, vector<128x128xbf16>
    %cst = arith.constant dense<0.000000e+00> : vector<64x128xf32>
    %7 = tpu.matmul %4, %6, %cst {dimension_numbers = #tpu.dot_dimension_numbers<[1], [0], [0], [1], [0, 0, 1, 1], [], []>} : vector<64x128xbf16>, vector<128x128xbf16>, vector<64x128xf32> -> vector<64x128xf32>
    %c0_7 = arith.constant 0 : index
    %c0_8 = arith.constant 0 : index
    %8 = vector.load %arg5[%c0_7, %c0_8] : memref<1x128xf32, #tpu.memory_space<vmem>>, vector<1x128xf32>
    %9 = vector.broadcast %8 : vector<1x128xf32> to vector<64x128xf32>
    %10 = arith.addf %7, %9 : vector<64x128xf32>
    %c0_9 = arith.constant 0 : index
    %c0_10 = arith.constant 0 : index
    %11 = vector.load %arg6[%c0_9, %c0_10] : memref<128x128xbf16, #tpu.memory_space<vmem>>, vector<128x128xbf16>
    %cst_11 = arith.constant dense<0.000000e+00> : vector<128x128xf32>
    %12 = tpu.matmul %5, %11, %cst_11 {dimension_numbers = #tpu.dot_dimension_numbers<[1], [0], [0], [1], [0, 0, 1, 1], [], []>} : vector<128x128xbf16>, vector<128x128xbf16>, vector<128x128xf32> -> vector<128x128xf32>
    %c0_12 = arith.constant 0 : index
    %c0_13 = arith.constant 0 : index
    %13 = vector.load %arg7[%c0_12, %c0_13] : memref<1x128xf32, #tpu.memory_space<vmem>>, vector<1x128xf32>
    %14 = vector.broadcast %13 : vector<1x128xf32> to vector<128x128xf32>
    %15 = arith.addf %12, %14 : vector<128x128xf32>
    %c0_14 = arith.constant 0 : index
    %c0_15 = arith.constant 0 : index
    %16 = vector.load %arg8[%c0_14, %c0_15] : memref<128x128xbf16, #tpu.memory_space<vmem>>, vector<128x128xbf16>
    %cst_16 = arith.constant dense<0.000000e+00> : vector<128x128xf32>
    %17 = tpu.matmul %5, %16, %cst_16 {dimension_numbers = #tpu.dot_dimension_numbers<[1], [0], [0], [1], [0, 0, 1, 1], [], []>} : vector<128x128xbf16>, vector<128x128xbf16>, vector<128x128xf32> -> vector<128x128xf32>
    %c0_17 = arith.constant 0 : index
    %c0_18 = arith.constant 0 : index
    %18 = vector.load %arg9[%c0_17, %c0_18] : memref<1x128xf32, #tpu.memory_space<vmem>>, vector<1x128xf32>
    %19 = vector.broadcast %18 : vector<1x128xf32> to vector<128x128xf32>
    %20 = arith.addf %17, %19 : vector<128x128xf32>
    %cst_19 = arith.constant 0.176776692 : f32
    %21 = vector.broadcast %cst_19 : f32 to vector<64x128xf32>
    %22 = arith.mulf %10, %21 : vector<64x128xf32>
    %23 = arith.truncf %22 : vector<64x128xf32> to vector<64x128xbf16>
    %24 = arith.truncf %15 : vector<128x128xf32> to vector<128x128xbf16>
    %25 = arith.truncf %20 : vector<128x128xf32> to vector<128x128xbf16>
    %26 = vector.extract_strided_slice %23 {offsets = [0, 0], sizes = [64, 32], strides = [1, 1]} : vector<64x128xbf16> to vector<64x32xbf16>
    %27 = vector.extract_strided_slice %23 {offsets = [0, 32], sizes = [64, 32], strides = [1, 1]} : vector<64x128xbf16> to vector<64x32xbf16>
    %28 = vector.extract_strided_slice %23 {offsets = [0, 64], sizes = [64, 32], strides = [1, 1]} : vector<64x128xbf16> to vector<64x32xbf16>
    %29 = vector.extract_strided_slice %23 {offsets = [0, 96], sizes = [64, 32], strides = [1, 1]} : vector<64x128xbf16> to vector<64x32xbf16>
    %30 = vector.shape_cast %26 : vector<64x32xbf16> to vector<1x64x32xbf16>
    %31 = vector.shape_cast %27 : vector<64x32xbf16> to vector<1x64x32xbf16>
    %32 = vector.shape_cast %28 : vector<64x32xbf16> to vector<1x64x32xbf16>
    %33 = vector.shape_cast %29 : vector<64x32xbf16> to vector<1x64x32xbf16>
    %34 = tpu.concatenate %30, %31, %32, %33 in 0 : vector<1x64x32xbf16>, vector<1x64x32xbf16>, vector<1x64x32xbf16>, vector<1x64x32xbf16> -> vector<4x64x32xbf16>
    %35 = vector.extract_strided_slice %24 {offsets = [0, 0], sizes = [128, 32], strides = [1, 1]} : vector<128x128xbf16> to vector<128x32xbf16>
    %36 = vector.extract_strided_slice %24 {offsets = [0, 32], sizes = [128, 32], strides = [1, 1]} : vector<128x128xbf16> to vector<128x32xbf16>
    %37 = vector.extract_strided_slice %24 {offsets = [0, 64], sizes = [128, 32], strides = [1, 1]} : vector<128x128xbf16> to vector<128x32xbf16>
    %38 = vector.extract_strided_slice %24 {offsets = [0, 96], sizes = [128, 32], strides = [1, 1]} : vector<128x128xbf16> to vector<128x32xbf16>
    %39 = vector.shape_cast %35 : vector<128x32xbf16> to vector<1x128x32xbf16>
    %40 = vector.shape_cast %36 : vector<128x32xbf16> to vector<1x128x32xbf16>
    %41 = vector.shape_cast %37 : vector<128x32xbf16> to vector<1x128x32xbf16>
    %42 = vector.shape_cast %38 : vector<128x32xbf16> to vector<1x128x32xbf16>
    %43 = tpu.concatenate %39, %40, %41, %42 in 0 : vector<1x128x32xbf16>, vector<1x128x32xbf16>, vector<1x128x32xbf16>, vector<1x128x32xbf16> -> vector<4x128x32xbf16>
    %44 = vector.extract_strided_slice %25 {offsets = [0, 0], sizes = [128, 32], strides = [1, 1]} : vector<128x128xbf16> to vector<128x32xbf16>
    %45 = vector.extract_strided_slice %25 {offsets = [0, 32], sizes = [128, 32], strides = [1, 1]} : vector<128x128xbf16> to vector<128x32xbf16>
    %46 = vector.extract_strided_slice %25 {offsets = [0, 64], sizes = [128, 32], strides = [1, 1]} : vector<128x128xbf16> to vector<128x32xbf16>
    %47 = vector.extract_strided_slice %25 {offsets = [0, 96], sizes = [128, 32], strides = [1, 1]} : vector<128x128xbf16> to vector<128x32xbf16>
    %48 = vector.shape_cast %44 : vector<128x32xbf16> to vector<1x128x32xbf16>
    %49 = vector.shape_cast %45 : vector<128x32xbf16> to vector<1x128x32xbf16>
    %50 = vector.shape_cast %46 : vector<128x32xbf16> to vector<1x128x32xbf16>
    %51 = vector.shape_cast %47 : vector<128x32xbf16> to vector<1x128x32xbf16>
    %52 = tpu.concatenate %48, %49, %50, %51 in 0 : vector<1x128x32xbf16>, vector<1x128x32xbf16>, vector<1x128x32xbf16>, vector<1x128x32xbf16> -> vector<4x128x32xbf16>
    "tpu.trace_start"() <{level = 10 : i32, message = "hqd,hkd->hqk"}> : () -> ()
    %cst_20 = arith.constant dense<0.000000e+00> : vector<4x64x128xf32>
    %53 = tpu.matmul %34, %43, %cst_20 {dimension_numbers = #tpu.dot_dimension_numbers<[2], [2], [1], [1], [0, 0, 0, 1, 1, 1], [0], [0]>} : vector<4x64x32xbf16>, vector<4x128x32xbf16>, vector<4x64x128xf32> -> vector<4x64x128xf32>
    "tpu.trace_stop"() : () -> ()
    %cst_21 = arith.constant dense<0xFF800000> : vector<4x64xf32>
    %54 = vector.multi_reduction <maximumf>, %53, %cst_21 [2] : vector<4x64x128xf32> to vector<4x64xf32>
    %55 = vector.shape_cast %54 : vector<4x64xf32> to vector<4x64x1xf32>
    %56 = vector.broadcast %55 : vector<4x64x1xf32> to vector<4x64x128xf32>
    %57 = arith.subf %53, %56 : vector<4x64x128xf32>
    %58 = math.exp %57 : vector<4x64x128xf32>
    %cst_22 = arith.constant dense<0.000000e+00> : vector<4x64xf32>
    %59 = vector.multi_reduction <add>, %58, %cst_22 [2] : vector<4x64x128xf32> to vector<4x64xf32>
    %60 = vector.shape_cast %59 : vector<4x64xf32> to vector<4x64x1xf32>
    %61 = tpu.reciprocal %60 : vector<4x64x1xf32> -> vector<4x64x1xf32>
    %62 = vector.broadcast %61 : vector<4x64x1xf32> to vector<4x64x128xf32>
    %63 = arith.mulf %58, %62 : vector<4x64x128xf32>
    %64 = arith.truncf %63 : vector<4x64x128xf32> to vector<4x64x128xbf16>
    "tpu.trace_start"() <{level = 10 : i32, message = "hqk,hkd->hqd"}> : () -> ()
    %cst_23 = arith.constant dense<0.000000e+00> : vector<4x64x32xf32>
    %65 = tpu.matmul %64, %52, %cst_23 {dimension_numbers = #tpu.dot_dimension_numbers<[2], [1], [1], [2], [0, 0, 0, 1, 1, 2], [0], [0]>} : vector<4x64x128xbf16>, vector<4x128x32xbf16>, vector<4x64x32xf32> -> vector<4x64x32xf32>
    "tpu.trace_stop"() : () -> ()
    %66 = vector.extract_strided_slice %65 {offsets = [0, 0, 0], sizes = [1, 64, 32], strides = [1, 1, 1]} : vector<4x64x32xf32> to vector<1x64x32xf32>
    %67 = vector.shape_cast %66 : vector<1x64x32xf32> to vector<64x32xf32>
    %68 = vector.extract_strided_slice %65 {offsets = [1, 0, 0], sizes = [1, 64, 32], strides = [1, 1, 1]} : vector<4x64x32xf32> to vector<1x64x32xf32>
    %69 = vector.shape_cast %68 : vector<1x64x32xf32> to vector<64x32xf32>
    %70 = vector.extract_strided_slice %65 {offsets = [2, 0, 0], sizes = [1, 64, 32], strides = [1, 1, 1]} : vector<4x64x32xf32> to vector<1x64x32xf32>
    %71 = vector.shape_cast %70 : vector<1x64x32xf32> to vector<64x32xf32>
    %72 = vector.extract_strided_slice %65 {offsets = [3, 0, 0], sizes = [1, 64, 32], strides = [1, 1, 1]} : vector<4x64x32xf32> to vector<1x64x32xf32>
    %73 = vector.shape_cast %72 : vector<1x64x32xf32> to vector<64x32xf32>
    %74 = tpu.concatenate %67, %69, %71, %73 in 1 : vector<64x32xf32>, vector<64x32xf32>, vector<64x32xf32>, vector<64x32xf32> -> vector<64x128xf32>
    %75 = arith.truncf %74 : vector<64x128xf32> to vector<64x128xbf16>
    %c0_24 = arith.constant 0 : index
    %c0_25 = arith.constant 0 : index
    %76 = vector.load %arg10[%c0_24, %c0_25] : memref<128x128xbf16, #tpu.memory_space<vmem>>, vector<128x128xbf16>
    %cst_26 = arith.constant dense<0.000000e+00> : vector<64x128xf32>
    %77 = tpu.matmul %75, %76, %cst_26 {dimension_numbers = #tpu.dot_dimension_numbers<[1], [0], [0], [1], [0, 0, 1, 1], [], []>} : vector<64x128xbf16>, vector<128x128xbf16>, vector<64x128xf32> -> vector<64x128xf32>
    %c0_27 = arith.constant 0 : index
    %c0_28 = arith.constant 0 : index
    %78 = vector.load %arg11[%c0_27, %c0_28] : memref<1x128xf32, #tpu.memory_space<vmem>>, vector<1x128xf32>
    %79 = vector.broadcast %78 : vector<1x128xf32> to vector<64x128xf32>
    %80 = arith.addf %77, %79 : vector<64x128xf32>
    %81 = arith.addf %1, %80 : vector<64x128xf32>
    %c0_29 = arith.constant 0 : index
    %c0_30 = arith.constant 0 : index
    %82 = vector.load %arg12[%c0_29, %c0_30] : memref<1x128xf32, #tpu.memory_space<vmem>>, vector<1x128xf32>
    %c0_31 = arith.constant 0 : index
    %c0_32 = arith.constant 0 : index
    %83 = vector.load %arg13[%c0_31, %c0_32] : memref<1x128xf32, #tpu.memory_space<vmem>>, vector<1x128xf32>
    %cst_33 = arith.constant dense<0.000000e+00> : vector<64xf32>
    %84 = vector.multi_reduction <add>, %81, %cst_33 [1] : vector<64x128xf32> to vector<64xf32>
    %85 = vector.shape_cast %84 : vector<64xf32> to vector<64x1xf32>
    %cst_34 = arith.constant 1.280000e+02 : f32
    %86 = vector.broadcast %cst_34 : f32 to vector<64x1xf32>
    %87 = arith.divf %85, %86 : vector<64x1xf32>
    %88 = vector.broadcast %87 : vector<64x1xf32> to vector<64x128xf32>
    %89 = arith.subf %81, %88 : vector<64x128xf32>
    %90 = arith.mulf %89, %89 : vector<64x128xf32>
    %cst_35 = arith.constant dense<0.000000e+00> : vector<64xf32>
    %91 = vector.multi_reduction <add>, %90, %cst_35 [1] : vector<64x128xf32> to vector<64xf32>
    %92 = vector.shape_cast %91 : vector<64xf32> to vector<64x1xf32>
    %cst_36 = arith.constant 1.270000e+02 : f32
    %93 = vector.broadcast %cst_36 : f32 to vector<64x1xf32>
    %94 = arith.divf %92, %93 : vector<64x1xf32>
    %95 = math.sqrt %94 : vector<64x1xf32>
    %cst_37 = arith.constant 9.99999996E-13 : f32
    %96 = vector.broadcast %cst_37 : f32 to vector<64x1xf32>
    %97 = arith.addf %95, %96 : vector<64x1xf32>
    %98 = vector.broadcast %97 : vector<64x1xf32> to vector<64x128xf32>
    %99 = arith.divf %89, %98 : vector<64x128xf32>
    %100 = vector.broadcast %82 : vector<1x128xf32> to vector<64x128xf32>
    %101 = arith.mulf %100, %99 : vector<64x128xf32>
    %102 = vector.broadcast %83 : vector<1x128xf32> to vector<64x128xf32>
    %103 = arith.addf %101, %102 : vector<64x128xf32>
    %104 = arith.truncf %103 : vector<64x128xf32> to vector<64x128xbf16>
    %c0_38 = arith.constant 0 : index
    %c0_39 = arith.constant 0 : index
    %105 = vector.load %arg14[%c0_38, %c0_39] : memref<128x256xbf16, #tpu.memory_space<vmem>>, vector<128x256xbf16>
    %cst_40 = arith.constant dense<0.000000e+00> : vector<64x256xf32>
    %106 = tpu.matmul %104, %105, %cst_40 {dimension_numbers = #tpu.dot_dimension_numbers<[1], [0], [0], [1], [0, 0, 1, 1], [], []>} : vector<64x128xbf16>, vector<128x256xbf16>, vector<64x256xf32> -> vector<64x256xf32>
    %c0_41 = arith.constant 0 : index
    %c0_42 = arith.constant 0 : index
    %107 = vector.load %arg15[%c0_41, %c0_42] : memref<1x256xf32, #tpu.memory_space<vmem>>, vector<1x256xf32>
    %108 = vector.broadcast %107 : vector<1x256xf32> to vector<64x256xf32>
    %109 = arith.addf %106, %108 : vector<64x256xf32>
    %cst_43 = arith.constant 0.000000e+00 : f32
    %110 = vector.broadcast %cst_43 : f32 to vector<64x256xf32>
    %111 = arith.maximumf %109, %110 : vector<64x256xf32>
    %112 = arith.truncf %111 : vector<64x256xf32> to vector<64x256xbf16>
    %c0_44 = arith.constant 0 : index
    %c0_45 = arith.constant 0 : index
    %113 = vector.load %arg16[%c0_44, %c0_45] : memref<256x128xbf16, #tpu.memory_space<vmem>>, vector<256x128xbf16>
    %cst_46 = arith.constant dense<0.000000e+00> : vector<64x128xf32>
    %114 = tpu.matmul %112, %113, %cst_46 {dimension_numbers = #tpu.dot_dimension_numbers<[1], [0], [0], [1], [0, 0, 1, 1], [], []>} : vector<64x256xbf16>, vector<256x128xbf16>, vector<64x128xf32> -> vector<64x128xf32>
    %c0_47 = arith.constant 0 : index
    %c0_48 = arith.constant 0 : index
    %115 = vector.load %arg17[%c0_47, %c0_48] : memref<1x128xf32, #tpu.memory_space<vmem>>, vector<1x128xf32>
    %116 = vector.broadcast %115 : vector<1x128xf32> to vector<64x128xf32>
    %117 = arith.addf %114, %116 : vector<64x128xf32>
    %118 = arith.addf %103, %117 : vector<64x128xf32>
    %c0_49 = arith.constant 0 : index
    %c0_50 = arith.constant 0 : index
    %119 = vector.load %arg18[%c0_49, %c0_50] : memref<1x128xf32, #tpu.memory_space<vmem>>, vector<1x128xf32>
    %c0_51 = arith.constant 0 : index
    %c0_52 = arith.constant 0 : index
    %120 = vector.load %arg19[%c0_51, %c0_52] : memref<1x128xf32, #tpu.memory_space<vmem>>, vector<1x128xf32>
    %cst_53 = arith.constant dense<0.000000e+00> : vector<64xf32>
    %121 = vector.multi_reduction <add>, %118, %cst_53 [1] : vector<64x128xf32> to vector<64xf32>
    %122 = vector.shape_cast %121 : vector<64xf32> to vector<64x1xf32>
    %cst_54 = arith.constant 1.280000e+02 : f32
    %123 = vector.broadcast %cst_54 : f32 to vector<64x1xf32>
    %124 = arith.divf %122, %123 : vector<64x1xf32>
    %125 = vector.broadcast %124 : vector<64x1xf32> to vector<64x128xf32>
    %126 = arith.subf %118, %125 : vector<64x128xf32>
    %127 = arith.mulf %126, %126 : vector<64x128xf32>
    %cst_55 = arith.constant dense<0.000000e+00> : vector<64xf32>
    %128 = vector.multi_reduction <add>, %127, %cst_55 [1] : vector<64x128xf32> to vector<64xf32>
    %129 = vector.shape_cast %128 : vector<64xf32> to vector<64x1xf32>
    %cst_56 = arith.constant 1.270000e+02 : f32
    %130 = vector.broadcast %cst_56 : f32 to vector<64x1xf32>
    %131 = arith.divf %129, %130 : vector<64x1xf32>
    %132 = math.sqrt %131 : vector<64x1xf32>
    %cst_57 = arith.constant 9.99999996E-13 : f32
    %133 = vector.broadcast %cst_57 : f32 to vector<64x1xf32>
    %134 = arith.addf %132, %133 : vector<64x1xf32>
    %135 = vector.broadcast %134 : vector<64x1xf32> to vector<64x128xf32>
    %136 = arith.divf %126, %135 : vector<64x128xf32>
    %137 = vector.broadcast %119 : vector<1x128xf32> to vector<64x128xf32>
    %138 = arith.mulf %137, %136 : vector<64x128xf32>
    %139 = vector.broadcast %120 : vector<1x128xf32> to vector<64x128xf32>
    %140 = arith.addf %138, %139 : vector<64x128xf32>
    %c0_58 = arith.constant 0 : index
    %c0_59 = arith.constant 0 : index
    %c0_60 = arith.constant 0 : index
    %141 = vector.load %arg20[%c0_58, %c0_59, %c0_60] : memref<1x64x128xf32, #tpu.memory_space<vmem>>, vector<1x64x128xf32>
    %142 = vector.shape_cast %141 : vector<1x64x128xf32> to vector<64x128xf32>
    %143 = vector.shape_cast %140 : vector<64x128xf32> to vector<1x64x128xf32>
    tpu.vector_store %arg20[%c0_58, %c0_59, %c0_60], %143 {strides = array<i32>} : memref<1x64x128xf32, #tpu.memory_space<vmem>>, vector<1x64x128xf32>,
    return
  }
  func.func @transform_0(%arg0: i32, %arg1: i32) -> (i32, i32, i32) {
    %c0_i32 = arith.constant 0 : i32
    %c0_i32_0 = arith.constant 0 : i32
    return %arg0, %arg1, %c0_i32 : i32, i32, i32
  }
  func.func @transform_1(%arg0: i32, %arg1: i32) -> (i32, i32, i32) {
    %c0_i32 = arith.constant 0 : i32
    %c0_i32_0 = arith.constant 0 : i32
    %c0_i32_1 = arith.constant 0 : i32
    return %arg0, %c0_i32, %c0_i32_0 : i32, i32, i32
  }
  func.func @transform_2(%arg0: i32, %arg1: i32) -> (i32, i32) {
    %c0_i32 = arith.constant 0 : i32
    %c0_i32_0 = arith.constant 0 : i32
    %c0_i32_1 = arith.constant 0 : i32
    return %c0_i32, %c0_i32_0 : i32, i32
  }
  func.func @transform_3(%arg0: i32, %arg1: i32) -> (i32, i32) {
    %c0_i32 = arith.constant 0 : i32
    %c0_i32_0 = arith.constant 0 : i32
    %c0_i32_1 = arith.constant 0 : i32
    return %c0_i32, %c0_i32_0 : i32, i32
  }
  func.func @transform_4(%arg0: i32, %arg1: i32) -> (i32, i32) {
    %c0_i32 = arith.constant 0 : i32
    %c0_i32_0 = arith.constant 0 : i32
    %c0_i32_1 = arith.constant 0 : i32
    return %c0_i32, %c0_i32_0 : i32, i32
  }
  func.func @transform_5(%arg0: i32, %arg1: i32) -> (i32, i32) {
    %c0_i32 = arith.constant 0 : i32
    %c0_i32_0 = arith.constant 0 : i32
    %c0_i32_1 = arith.constant 0 : i32
    return %c0_i32, %c0_i32_0 : i32, i32
  }
  func.func @transform_6(%arg0: i32, %arg1: i32) -> (i32, i32) {
    %c0_i32 = arith.constant 0 : i32
    %c0_i32_0 = arith.constant 0 : i32
    %c0_i32_1 = arith.constant 0 : i32
    return %c0_i32, %c0_i32_0 : i32, i32
  }
  func.func @transform_7(%arg0: i32, %arg1: i32) -> (i32, i32) {
    %c0_i32 = arith.constant 0 : i32
    %c0_i32_0 = arith.constant 0 : i32
    %c0_i32_1 = arith.constant 0 : i32
    return %c0_i32, %c0_i32_0 : i32, i32
  }
  func.func @transform_8(%arg0: i32, %arg1: i32) -> (i32, i32) {
    %c0_i32 = arith.constant 0 : i32
    %c0_i32_0 = arith.constant 0 : i32
    %c0_i32_1 = arith.constant 0 : i32
    return %c0_i32, %c0_i32_0 : i32, i32
  }
  func.func @transform_9(%arg0: i32, %arg1: i32) -> (i32, i32) {
    %c0_i32 = arith.constant 0 : i32
    %c0_i32_0 = arith.constant 0 : i32
    %c0_i32_1 = arith.constant 0 : i32
    return %c0_i32, %c0_i32_0 : i32, i32
  }
  func.func @transform_10(%arg0: i32, %arg1: i32) -> (i32, i32) {
    %c0_i32 = arith.constant 0 : i32
    %c0_i32_0 = arith.constant 0 : i32
    %c0_i32_1 = arith.constant 0 : i32
    return %c0_i32, %c0_i32_0 : i32, i32
  }
  func.func @transform_11(%arg0: i32, %arg1: i32) -> (i32, i32) {
    %c0_i32 = arith.constant 0 : i32
    %c0_i32_0 = arith.constant 0 : i32
    %c0_i32_1 = arith.constant 0 : i32
    return %c0_i32, %c0_i32_0 : i32, i32
  }
  func.func @transform_12(%arg0: i32, %arg1: i32) -> (i32, i32) {
    %c0_i32 = arith.constant 0 : i32
    %c0_i32_0 = arith.constant 0 : i32
    %c0_i32_1 = arith.constant 0 : i32
    return %c0_i32, %c0_i32_0 : i32, i32
  }
  func.func @transform_13(%arg0: i32, %arg1: i32) -> (i32, i32) {
    %c0_i32 = arith.constant 0 : i32
    %c0_i32_0 = arith.constant 0 : i32
    %c0_i32_1 = arith.constant 0 : i32
    return %c0_i32, %c0_i32_0 : i32, i32
  }
  func.func @transform_14(%arg0: i32, %arg1: i32) -> (i32, i32) {
    %c0_i32 = arith.constant 0 : i32
    %c0_i32_0 = arith.constant 0 : i32
    %c0_i32_1 = arith.constant 0 : i32
    return %c0_i32, %c0_i32_0 : i32, i32
  }
  func.func @transform_15(%arg0: i32, %arg1: i32) -> (i32, i32) {
    %c0_i32 = arith.constant 0 : i32
    %c0_i32_0 = arith.constant 0 : i32
    %c0_i32_1 = arith.constant 0 : i32
    return %c0_i32, %c0_i32_0 : i32, i32
  }
  func.func @transform_16(%arg0: i32, %arg1: i32) -> (i32, i32) {
    %c0_i32 = arith.constant 0 : i32
    %c0_i32_0 = arith.constant 0 : i32
    %c0_i32_1 = arith.constant 0 : i32
    return %c0_i32, %c0_i32_0 : i32, i32
  }
  func.func @transform_17(%arg0: i32, %arg1: i32) -> (i32, i32) {
    %c0_i32 = arith.constant 0 : i32
    %c0_i32_0 = arith.constant 0 : i32
    %c0_i32_1 = arith.constant 0 : i32
    return %c0_i32, %c0_i32_0 : i32, i32
  }
  func.func @transform_18(%arg0: i32, %arg1: i32) -> (i32, i32, i32) {
    %c0_i32 = arith.constant 0 : i32
    %c0_i32_0 = arith.constant 0 : i32
    return %arg0, %arg1, %c0_i32 : i32, i32, i32
  }
}

</mosaic_0001>

<llo_original>
// kernel: encoder_forward.3
$region0: #{encoder_forward.3}
  #allocation0 [shape = 'u32[]', space=smem, size = 0x4, offset = 0x4, fixed_abs, tag = 'smem constant byte address 0x4 - core index']
  #allocation1 [shape = 'u32[72,128]{1,0:T(1,128)}', space=vmem, size = 0x9000, scoped, tag = 'internal scratch']
  %s0 = inlined_call_operand.vmem [shape: f32[256,16], index: 0, kind: input, shape index: {}]
  %s1 = inlined_call_operand.vmem [shape: bf16[16,128], index: 1, kind: input, shape index: {}]
  %s2 = inlined_call_operand.vmem [shape: f32[1,128], index: 2, kind: input, shape index: {}]
  %s3 = inlined_call_operand.vmem [shape: f32[256,128], index: 3, kind: output, shape index: {}]
  %s4 = sld [smem:[#allocation0]]
  $region22: #{encoder_forward.3} parent=0
    _
  %s6 = ssub.s32 1, %s4
  %s7 = scalar_select 0, %s6, %s4
  // Predicated region
  $region2: #{encoder_forward.3} parent=0 // pred_check
    _
  $region3: #{encoder_forward.3} parent=0 // pred_check_branch
    %9 = sbr.rel (0) target = $region5
  $region4: #{encoder_forward.3} parent=0 // pred_region
    _
  $region5: #{encoder_forward.3} parent=0 // pred_fallthru
    _
  // Predicated region
  $region6: #{encoder_forward.3} parent=0 // pred_check
    _
  $region7: #{encoder_forward.3} parent=0 // pred_check_branch
    %11 = sbr.rel (0) target = $region9
  $region8: #{encoder_forward.3} parent=0 // pred_region
    _
  $region9: #{encoder_forward.3} parent=0 // pred_fallthru
    _
  // Predicated region
  $region10: #{encoder_forward.3} parent=0 // pred_check
    _
  $region11: #{encoder_forward.3} parent=0 // pred_check_branch
    %13 = sbr.rel (0) target = $region13
  $region12: #{encoder_forward.3} parent=0 // pred_region
    _
  $region13: #{encoder_forward.3} parent=0 // pred_fallthru
    _
  %v15 = vld [vmem:[%s0] sm:$0xff]
  %v16 = vld [vmem:[%s0 + $0x8] sm:$0xff]
  %v17 = vld [vmem:[%s0 + $0x10] sm:$0xff]
  %v18 = vld [vmem:[%s0 + $0x18] sm:$0xff]
  %v19 = vld [vmem:[%s0 + $0x20] sm:$0xff]
  %v20 = vld [vmem:[%s0 + $0x28] sm:$0xff]
  %v21 = vld [vmem:[%s0 + $0x30] sm:$0xff]
  %v22 = vld [vmem:[%s0 + $0x38] sm:$0xff]
  %v23 = vld [vmem:[%s0 + $0x40] sm:$0xff]
  %v24 = vld [vmem:[%s0 + $0x48] sm:$0xff]
  %v25 = vld [vmem:[%s0 + $0x50] sm:$0xff]
  %v26 = vld [vmem:[%s0 + $0x58] sm:$0xff]
  %v27 = vld [vmem:[%s0 + $0x60] sm:$0xff]
  %v28 = vld [vmem:[%s0 + $0x68] sm:$0xff]
  %v29 = vld [vmem:[%s0 + $0x70] sm:$0xff]
  %v30 = vld [vmem:[%s0 + $0x78] sm:$0xff]
  %v31 = vld [vmem:[%s0 + $0x80] sm:$0xff]
  %v32 = vld [vmem:[%s0 + $0x88] sm:$0xff]
  %v33 = vld [vmem:[%s0 + $0x90] sm:$0xff]
  %v34 = vld [vmem:[%s0 + $0x98] sm:$0xff]
  %v35 = vld [vmem:[%s0 + $0xa0] sm:$0xff]
  %v36 = vld [vmem:[%s0 + $0xa8] sm:$0xff]
  %v37 = vld [vmem:[%s0 + $0xb0] sm:$0xff]
  %v38 = vld [vmem:[%s0 + $0xb8] sm:$0xff]
  %v39 = vld [vmem:[%s0 + $0xc0] sm:$0xff]
  %v40 = vld [vmem:[%s0 + $0xc8] sm:$0xff]
  %v41 = vld [vmem:[%s0 + $0xd0] sm:$0xff]
  %v42 = vld [vmem:[%s0 + $0xd8] sm:$0xff]
  %v43 = vld [vmem:[%s0 + $0xe0] sm:$0xff]
  %v44 = vld [vmem:[%s0 + $0xe8] sm:$0xff]
  %v45 = vld [vmem:[%s0 + $0xf0] sm:$0xff]
  %v46 = vld [vmem:[%s0 + $0xf8] sm:$0xff]
  %v47 = vpack.c.bf16 %v16, %v15
  %v48 = vpack.c.bf16 %v18, %v17
  %v49 = vpack.c.bf16 %v20, %v19
  %v50 = vpack.c.bf16 %v22, %v21
  %v51 = vpack.c.bf16 %v24, %v23
  %v52 = vpack.c.bf16 %v26, %v25
  %v53 = vpack.c.bf16 %v28, %v27
  %v54 = vpack.c.bf16 %v30, %v29
  %v55 = vpack.c.bf16 %v32, %v31
  %v56 = vpack.c.bf16 %v34, %v33
  %v57 = vpack.c.bf16 %v36, %v35
  %v58 = vpack.c.bf16 %v38, %v37
  %v59 = vpack.c.bf16 %v40, %v39
  %v60 = vpack.c.bf16 %v42, %v41
  %v61 = vpack.c.bf16 %v44, %v43
  %v62 = vpack.c.bf16 %v46, %v45
  %v63 = vld [vmem:[%s1] sm:$0xf]
  %v64 = vld [vmem:[%s1 + $0x4] sm:$0xf]
  %v65 = vld [vmem:[%s2] sm:$0x1]
  %v67 = vperm.slane %v65, 0
  %v71 = vunpack.c.l.b16 %v63
  %v72 = vunpack.c.l.b16 %v64
  %v73 = vpack.c.b16 %v72, %v71
  %vm75 = vcmask 130048
  %v77 = vsel %vm75, %v47, 0
  %v80 = vsel %vm75, %v48, 0
  %v83 = vsel %vm75, %v49, 0
  %v86 = vsel %vm75, %v50, 0
  %v89 = vsel %vm75, %v51, 0
  %v92 = vsel %vm75, %v52, 0
  %v95 = vsel %vm75, %v53, 0
  %v98 = vsel %vm75, %v54, 0
  %v101 = vsel %vm75, %v55, 0
  %v104 = vsel %vm75, %v56, 0
  %v107 = vsel %vm75, %v57, 0
  %v110 = vsel %vm75, %v58, 0
  %v113 = vsel %vm75, %v59, 0
  %v116 = vsel %vm75, %v60, 0
  %v119 = vsel %vm75, %v61, 0
  %v122 = vsel %vm75, %v62, 0
  %124 = vmatpush.bf16.msra.mxu0 0
  %125 = vmatpush.bf16.msra.mxu0 0
  %126 = vmatpush.bf16.msra.mxu0 0
  %127 = vmatpush.bf16.msra.mxu0 0
  %128 = vmatpush.bf16.msra.mxu0 0
  %129 = vmatpush.bf16.msra.mxu0 0
  %130 = vmatpush.bf16.msra.mxu0 0
  %131 = vmatpush.bf16.msra.mxu0 %v73
  %132 = vmatmul.bf16.gmra.mxu0 %v77
  %v133 = vpop.f32.mrf.mxu0
  %v134 = vadd.f32 %v67, %v133
  %v135 = vpop.f32.mrf.mxu0
  %v136 = vadd.f32 %v67, %v135
  %137 = vmatmul.bf16.gmra.mxu0 %v80
  %v138 = vpop.f32.mrf.mxu0
  %v139 = vadd.f32 %v67, %v138
  %v140 = vpop.f32.mrf.mxu0
  %v141 = vadd.f32 %v67, %v140
  %142 = vmatmul.bf16.gmra.mxu0 %v83
  %v143 = vpop.f32.mrf.mxu0
  %v144 = vadd.f32 %v67, %v143
  %v145 = vpop.f32.mrf.mxu0
  %v146 = vadd.f32 %v67, %v145
  %147 = vmatmul.bf16.gmra.mxu0 %v86
  %v148 = vpop.f32.mrf.mxu0
  %v149 = vadd.f32 %v67, %v148
  %v150 = vpop.f32.mrf.mxu0
  %v151 = vadd.f32 %v67, %v150
  %152 = vmatmul.bf16.gmra.mxu0 %v89
  %v153 = vpop.f32.mrf.mxu0
  %v154 = vadd.f32 %v67, %v153
  %v155 = vpop.f32.mrf.mxu0
  %v156 = vadd.f32 %v67, %v155
  %157 = vmatmul.bf16.gmra.mxu0 %v92
  %v158 = vpop.f32.mrf.mxu0
  %v159 = vadd.f32 %v67, %v158
  %v160 = vpop.f32.mrf.mxu0
  %v161 = vadd.f32 %v67, %v160
  %162 = vmatmul.bf16.gmra.mxu0 %v95
  %v163 = vpop.f32.mrf.mxu0
  %v164 = vadd.f32 %v67, %v163
  %v165 = vpop.f32.mrf.mxu0
  %v166 = vadd.f32 %v67, %v165
  %167 = vmatmul.bf16.gmra.mxu0 %v98
  %v168 = vpop.f32.mrf.mxu0
  %v169 = vadd.f32 %v67, %v168
  %v170 = vpop.f32.mrf.mxu0
  %v171 = vadd.f32 %v67, %v170
  %172 = vmatmul.bf16.gmra.mxu0 %v101
  %v173 = vpop.f32.mrf.mxu0
  %v174 = vadd.f32 %v67, %v173
  %v175 = vpop.f32.mrf.mxu0
  %v176 = vadd.f32 %v67, %v175
  %177 = vmatmul.bf16.gmra.mxu0 %v104
  %v178 = vpop.f32.mrf.mxu0
  %v179 = vadd.f32 %v67, %v178
  %v180 = vpop.f32.mrf.mxu0
  %v181 = vadd.f32 %v67, %v180
  %182 = vmatmul.bf16.gmra.mxu0 %v107
  %v183 = vpop.f32.mrf.mxu0
  %v184 = vadd.f32 %v67, %v183
  %v185 = vpop.f32.mrf.mxu0
  %v186 = vadd.f32 %v67, %v185
  %187 = vmatmul.bf16.gmra.mxu0 %v110
  %v188 = vpop.f32.mrf.mxu0
  %v189 = vadd.f32 %v67, %v188
  %v190 = vpop.f32.mrf.mxu0
  %v191 = vadd.f32 %v67, %v190
  %192 = vmatmul.bf16.gmra.mxu0 %v113
  %v193 = vpop.f32.mrf.mxu0
  %v194 = vadd.f32 %v67, %v193
  %v195 = vpop.f32.mrf.mxu0
  %v196 = vadd.f32 %v67, %v195
  %197 = vmatmul.bf16.gmra.mxu0 %v116
  %v198 = vpop.f32.mrf.mxu0
  %v199 = vadd.f32 %v67, %v198
  %v200 = vpop.f32.mrf.mxu0
  %v201 = vadd.f32 %v67, %v200
  %202 = vmatmul.bf16.gmra.mxu0 %v119
  %v203 = vpop.f32.mrf.mxu0
  %v204 = vadd.f32 %v67, %v203
  %v205 = vpop.f32.mrf.mxu0
  %v206 = vadd.f32 %v67, %v205
  %207 = vmatmul.bf16.gmra.mxu0 %v122
  %v208 = vpop.f32.mrf.mxu0
  %v209 = vadd.f32 %v67, %v208
  %v210 = vpop.f32.mrf.mxu0
  %v211 = vadd.f32 %v67, %v210
  %212 = vdwg.mxu0
  %213 = vst [vmem:[%s3] sm:$0xff] %v134
  %214 = vst [vmem:[%s3 + $0x8] sm:$0xff] %v136
  %215 = vst [vmem:[%s3 + $0x10] sm:$0xff] %v139
  %216 = vst [vmem:[%s3 + $0x18] sm:$0xff] %v141
  %217 = vst [vmem:[%s3 + $0x20] sm:$0xff] %v144
  %218 = vst [vmem:[%s3 + $0x28] sm:$0xff] %v146
  %219 = vst [vmem:[%s3 + $0x30] sm:$0xff] %v149
  %220 = vst [vmem:[%s3 + $0x38] sm:$0xff] %v151
  %221 = vst [vmem:[%s3 + $0x40] sm:$0xff] %v154
  %222 = vst [vmem:[%s3 + $0x48] sm:$0xff] %v156
  %223 = vst [vmem:[%s3 + $0x50] sm:$0xff] %v159
  %224 = vst [vmem:[%s3 + $0x58] sm:$0xff] %v161
  %225 = vst [vmem:[%s3 + $0x60] sm:$0xff] %v164
  %226 = vst [vmem:[%s3 + $0x68] sm:$0xff] %v166
  %227 = vst [vmem:[%s3 + $0x70] sm:$0xff] %v169
  %228 = vst [vmem:[%s3 + $0x78] sm:$0xff] %v171
  %229 = vst [vmem:[%s3 + $0x80] sm:$0xff] %v174
  %230 = vst [vmem:[%s3 + $0x88] sm:$0xff] %v176
  %231 = vst [vmem:[%s3 + $0x90] sm:$0xff] %v179
  %232 = vst [vmem:[%s3 + $0x98] sm:$0xff] %v181
  %233 = vst [vmem:[%s3 + $0xa0] sm:$0xff] %v184
  %234 = vst [vmem:[%s3 + $0xa8] sm:$0xff] %v186
  %235 = vst [vmem:[%s3 + $0xb0] sm:$0xff] %v189
  %236 = vst [vmem:[%s3 + $0xb8] sm:$0xff] %v191
  %237 = vst [vmem:[%s3 + $0xc0] sm:$0xff] %v194
  %238 = vst [vmem:[%s3 + $0xc8] sm:$0xff] %v196
  %239 = vst [vmem:[%s3 + $0xd0] sm:$0xff] %v199
  %240 = vst [vmem:[%s3 + $0xd8] sm:$0xff] %v201
  %241 = vst [vmem:[%s3 + $0xe0] sm:$0xff] %v204
  %242 = vst [vmem:[%s3 + $0xe8] sm:$0xff] %v206
  %243 = vst [vmem:[%s3 + $0xf0] sm:$0xff] %v209
  %244 = vst [vmem:[%s3 + $0xf8] sm:$0xff] %v211
  // Predicated region
  $region14: #{encoder_forward.3} parent=0 // pred_check
    _
  $region15: #{encoder_forward.3} parent=0 // pred_check_branch
    %246 = sbr.rel (0) target = $region17
  $region16: #{encoder_forward.3} parent=0 // pred_region
    _
  $region17: #{encoder_forward.3} parent=0 // pred_fallthru
    _
  // Predicated region
  $region18: #{encoder_forward.3} parent=0 // pred_check
    _
  $region19: #{encoder_forward.3} parent=0 // pred_check_branch
    %248 = sbr.rel (0) target = $region21
  $region20: #{encoder_forward.3} parent=0 // pred_region
    _
  $region21: #{encoder_forward.3} parent=0 // pred_fallthru
    _

// kernel: encoder_forward.5
$region0: #{encoder_forward.5}
  #allocation0 [shape = 'u32[]', space=smem, size = 0x4, offset = 0x4, fixed_abs, tag = 'smem constant byte address 0x4 - core index']
  #allocation1 [shape = 'u32[72,128]{1,0:T(1,128)}', space=vmem, size = 0x9000, scoped, tag = 'internal scratch']
  %s0 = inlined_call_operand.vmem [shape: f32[2,128,128], index: 0, kind: input, shape index: {}, may-alias: {0,1}]
  %s1 = inlined_call_operand.vmem [shape: f32[2,128,128], index: 1, kind: input, shape index: {}, may-alias: {0,1}]
  %s2 = inlined_call_operand.vmem [shape: bf16[128,128], index: 2, kind: input, shape index: {}]
  %s3 = inlined_call_operand.vmem [shape: f32[1,128], index: 3, kind: input, shape index: {}]
  %s4 = inlined_call_operand.vmem [shape: bf16[128,128], index: 4, kind: input, shape index: {}]
  %s5 = inlined_call_operand.vmem [shape: f32[1,128], index: 5, kind: input, shape index: {}]
  %s6 = inlined_call_operand.vmem [shape: bf16[128,128], index: 6, kind: input, shape index: {}]
  %s7 = inlined_call_operand.vmem [shape: f32[1,128], index: 7, kind: input, shape index: {}]
  %s8 = inlined_call_operand.vmem [shape: bf16[128,128], index: 8, kind: input, shape index: {}]
  %s9 = inlined_call_operand.vmem [shape: f32[1,128], index: 9, kind: input, shape index: {}]
  %s10 = inlined_call_operand.vmem [shape: f32[1,128], index: 10, kind: input, shape index: {}]
  %s11 = inlined_call_operand.vmem [shape: f32[1,128], index: 11, kind: input, shape index: {}]
  %s12 = inlined_call_operand.vmem [shape: bf16[128,256], index: 12, kind: input, shape index: {}]
  %s13 = inlined_call_operand.vmem [shape: f32[1,256], index: 13, kind: input, shape index: {}]
  %s14 = inlined_call_operand.vmem [shape: bf16[256,128], index: 14, kind: input, shape index: {}]
  %s15 = inlined_call_operand.vmem [shape: f32[1,128], index: 15, kind: input, shape index: {}]
  %s16 = inlined_call_operand.vmem [shape: f32[1,128], index: 16, kind: input, shape index: {}]
  %s17 = inlined_call_operand.vmem [shape: f32[1,128], index: 17, kind: input, shape index: {}]
  %s18 = inlined_call_operand.hbm [shape: f32[2,128,128], index: 18, kind: output, shape index: {}]
  %s19 = sld [smem:[#allocation0]]
  $region105: #{encoder_forward.5} parent=0
    _
  %s21 = ssub.s32 1, %s19
  %s22 = scalar_select 0, %s21, %s19
  $region1: #{encoder_forward.5} parent=0
    #allocation2 [shape = 'u8[65536]{0}', space=vmem, size = 0x10000, scoped, tag = 'output window, operand 0']
    #allocation3 [shape = 's32[2]{0}', space=sflag, size = 0x8, scoped, tag = 'scoped memory for encoder_forward.5']
    %23 = vsyncpa [#allocation3], 0
    %s24 = scalar_lea.sflag [#allocation3], 1
    %25 = vsyncpa %s24, 0
    loop: start=0, step=1, limit=6
    $region2: #{encoder_forward.5} parent=1 // loop_pre_header
      _
    $region3: #{encoder_forward.5} parent=1 // loop_header
      %s27 = sphi 0, %s31
      %p28 = scmp.ge.s32.totalorder %s27, 6
      %s34 = sphi 0, %s46
      %s35 = sphi 0, %s42
      %s36 = sphi 0, %s34
      %s37 = sphi 0, %s35
      %s38 = sphi 0, %s36
      %s39 = sphi 0, %s37
      %s51 = sphi 0, %s53
      %s54 = sphi 0, %s51
      %s55 = sphi 0, %s54
      %s71 = sphi 0, %s55
      %s77 = sphi 0, %s79
      %s80 = sphi 0, %s77
      %s81 = sphi 0, %s80
      %s97 = sphi 0, %s81
      %s101 = sphi 0, %s101
      %s103 = sphi 0, %s101
      %s104 = sphi 0, %s103
      %s118 = sphi 0, %s104
      %s122 = sphi 0, %s122
      %s124 = sphi 0, %s122
      %s125 = sphi 0, %s124
      %s139 = sphi 0, %s125
      %s143 = sphi 0, %s143
      %s145 = sphi 0, %s143
      %s146 = sphi 0, %s145
      %s160 = sphi 0, %s146
      %s164 = sphi 0, %s164
      %s166 = sphi 0, %s164
      %s167 = sphi 0, %s166
      %s181 = sphi 0, %s167
      %s185 = sphi 0, %s185
      %s187 = sphi 0, %s185
      %s188 = sphi 0, %s187
      %s202 = sphi 0, %s188
      %s206 = sphi 0, %s206
      %s208 = sphi 0, %s206
      %s209 = sphi 0, %s208
      %s223 = sphi 0, %s209
      %s227 = sphi 0, %s227
      %s229 = sphi 0, %s227
      %s230 = sphi 0, %s229
      %s244 = sphi 0, %s230
      %s248 = sphi 0, %s248
      %s250 = sphi 0, %s248
      %s251 = sphi 0, %s250
      %s265 = sphi 0, %s251
      %s269 = sphi 0, %s269
      %s271 = sphi 0, %s269
      %s272 = sphi 0, %s271
      %s286 = sphi 0, %s272
      %s290 = sphi 0, %s290
      %s292 = sphi 0, %s290
      %s293 = sphi 0, %s292
      %s307 = sphi 0, %s293
      %s311 = sphi 0, %s311
      %s313 = sphi 0, %s311
      %s314 = sphi 0, %s313
      %s328 = sphi 0, %s314
      %s332 = sphi 0, %s332
      %s334 = sphi 0, %s332
      %s335 = sphi 0, %s334
      %s349 = sphi 0, %s335
      %s353 = sphi 0, %s353
      %s355 = sphi 0, %s353
      %s356 = sphi 0, %s355
      %s370 = sphi 0, %s356
      %s374 = sphi 0, %s374
      %s376 = sphi 0, %s374
      %s377 = sphi 0, %s376
      %s391 = sphi 0, %s377
      %s395 = sphi 0, %s395
      %s397 = sphi 0, %s395
      %s398 = sphi 0, %s397
      %s412 = sphi 0, %s398
      %s416 = sphi 0, %s416
      %s418 = sphi 0, %s416
      %s419 = sphi 0, %s418
      %s433 = sphi 0, %s419
      %s441 = sphi 0, %s443
      %s444 = sphi 0, %s441
      %s445 = sphi 0, %s444
      %s461 = sphi 0, %s445
    $region4: #{encoder_forward.5} parent=1 // loop_header_branch
      %30 = sbr.rel (%p28) target = $region8
    $region5: #{encoder_forward.5} parent=1 // loop_body
      %s32 = ssub.s32 %s27, 1
      %s33 = ssub.s32 %s27, 2
      %s40 = sadd.s32 1, %s35
      %p41 = scmp.ge.s32.totalorder %s40, 2
      %s42 = scalar_select %p41, 0, %s40
      %s43 = sadd.s32 1, %s34
      %s44 = scalar_select %p41, %s43, %s34
      %p45 = scmp.ge.s32.totalorder %s44, 2
      %s46 = scalar_select %p45, 0, %s44
      %s47 = ssub.s32 %s34, %s46
      %s48 = ssub.s32 %s35, %s42
      %s49 = sor.u32 %s47, %s48
      %p50 = scmp.eq.s32.totalorder %s49, 0
      %s52 = sadd.s32 %s51, 1
      %s53 = scalar_select %p50, %s51, %s52
      %p56 = pneg %p50
      %p57 = scmp.eq.s32.totalorder %s27, 3
      %p58 = por %p56, %p57
      %p59 = scmp.ne.s32.totalorder %s51, %s54
      %p60 = scmp.eq.s32.totalorder %s27, 0
      %p61 = por %p59, %p60
      %p62 = scmp.ne.s32.totalorder %s51, %s54
      %p63 = scmp.eq.s32.totalorder %s32, 3
      %p64 = por %p62, %p63
      %p65 = scmp.ne.s32.totalorder %s54, %s55
      %p66 = scmp.eq.s32.totalorder %s32, 0
      %p67 = por %p65, %p66
      %p68 = scmp.ne.s32.totalorder %s54, %s55
      %p69 = scmp.eq.s32.totalorder %s33, 3
      %p70 = por %p68, %p69
      %p72 = scmp.ne.s32.totalorder %s55, %s71
      %p73 = scmp.eq.s32.totalorder %s33, 0
      %p74 = por %p72, %p73
      %s75 = ssub.s32 %s34, %s46
      %p76 = scmp.eq.s32.totalorder %s75, 0
      %s78 = sadd.s32 %s77, 1
      %s79 = scalar_select %p76, %s77, %s78
      %p82 = pneg %p76
      %p83 = scmp.eq.s32.totalorder %s27, 3
      %p84 = por %p82, %p83
      %p85 = scmp.ne.s32.totalorder %s77, %s80
      %p86 = scmp.eq.s32.totalorder %s27, 0
      %p87 = por %p85, %p86
      %p88 = scmp.ne.s32.totalorder %s77, %s80
      %p89 = scmp.eq.s32.totalorder %s32, 3
      %p90 = por %p88, %p89
      %p91 = scmp.ne.s32.totalorder %s80, %s81
      %p92 = scmp.eq.s32.totalorder %s32, 0
      %p93 = por %p91, %p92
      %p94 = scmp.ne.s32.totalorder %s80, %s81
      %p95 = scmp.eq.s32.totalorder %s33, 3
      %p96 = por %p94, %p95
      %p98 = scmp.ne.s32.totalorder %s81, %s97
      %p99 = scmp.eq.s32.totalorder %s33, 0
      %p100 = por %p98, %p99
      %s102 = sadd.s32 %s101, 1
      %p105 = scmp.eq.s32.totalorder %s27, 3
      %p106 = scmp.ne.s32.totalorder %s101, %s103
      %p107 = scmp.eq.s32.totalorder %s27, 0
      %p108 = por %p106, %p107
      %p109 = scmp.ne.s32.totalorder %s101, %s103
      %p110 = scmp.eq.s32.totalorder %s32, 3
      %p111 = por %p109, %p110
      %p112 = scmp.ne.s32.totalorder %s103, %s104
      %p113 = scmp.eq.s32.totalorder %s32, 0
      %p114 = por %p112, %p113
      %p115 = scmp.ne.s32.totalorder %s103, %s104
      %p116 = scmp.eq.s32.totalorder %s33, 3
      %p117 = por %p115, %p116
      %p119 = scmp.ne.s32.totalorder %s104, %s118
      %p120 = scmp.eq.s32.totalorder %s33, 0
      %p121 = por %p119, %p120
      %s123 = sadd.s32 %s122, 1
      %p126 = scmp.eq.s32.totalorder %s27, 3
      %p127 = scmp.ne.s32.totalorder %s122, %s124
      %p128 = scmp.eq.s32.totalorder %s27, 0
      %p129 = por %p127, %p128
      %p130 = scmp.ne.s32.totalorder %s122, %s124
      %p131 = scmp.eq.s32.totalorder %s32, 3
      %p132 = por %p130, %p131
      %p133 = scmp.ne.s32.totalorder %s124, %s125
      %p134 = scmp.eq.s32.totalorder %s32, 0
      %p135 = por %p133, %p134
      %p136 = scmp.ne.s32.totalorder %s124, %s125
      %p137 = scmp.eq.s32.totalorder %s33, 3
      %p138 = por %p136, %p137
      %p140 = scmp.ne.s32.totalorder %s125, %s139
      %p141 = scmp.eq.s32.totalorder %s33, 0
      %p142 = por %p140, %p141
      %s144 = sadd.s32 %s143, 1
      %p147 = scmp.eq.s32.totalorder %s27, 3
      %p148 = scmp.ne.s32.totalorder %s143, %s145
      %p149 = scmp.eq.s32.totalorder %s27, 0
      %p150 = por %p148, %p149
      %p151 = scmp.ne.s32.totalorder %s143, %s145
      %p152 = scmp.eq.s32.totalorder %s32, 3
      %p153 = por %p151, %p152
      %p154 = scmp.ne.s32.totalorder %s145, %s146
      %p155 = scmp.eq.s32.totalorder %s32, 0
      %p156 = por %p154, %p155
      %p157 = scmp.ne.s32.totalorder %s145, %s146
      %p158 = scmp.eq.s32.totalorder %s33, 3
      %p159 = por %p157, %p158
      %p161 = scmp.ne.s32.totalorder %s146, %s160
      %p162 = scmp.eq.s32.totalorder %s33, 0
      %p163 = por %p161, %p162
      %s165 = sadd.s32 %s164, 1
      %p168 = scmp.eq.s32.totalorder %s27, 3
      %p169 = scmp.ne.s32.totalorder %s164, %s166
      %p170 = scmp.eq.s32.totalorder %s27, 0
      %p171 = por %p169, %p170
      %p172 = scmp.ne.s32.totalorder %s164, %s166
      %p173 = scmp.eq.s32.totalorder %s32, 3
      %p174 = por %p172, %p173
      %p175 = scmp.ne.s32.totalorder %s166, %s167
      %p176 = scmp.eq.s32.totalorder %s32, 0
      %p177 = por %p175, %p176
      %p178 = scmp.ne.s32.totalorder %s166, %s167
      %p179 = scmp.eq.s32.totalorder %s33, 3
      %p180 = por %p178, %p179
      %p182 = scmp.ne.s32.totalorder %s167, %s181
      %p183 = scmp.eq.s32.totalorder %s33, 0
      %p184 = por %p182, %p183
      %s186 = sadd.s32 %s185, 1
      %p189 = scmp.eq.s32.totalorder %s27, 3
      %p190 = scmp.ne.s32.totalorder %s185, %s187
      %p191 = scmp.eq.s32.totalorder %s27, 0
      %p192 = por %p190, %p191
      %p193 = scmp.ne.s32.totalorder %s185, %s187
      %p194 = scmp.eq.s32.totalorder %s32, 3
      %p195 = por %p193, %p194
      %p196 = scmp.ne.s32.totalorder %s187, %s188
      %p197 = scmp.eq.s32.totalorder %s32, 0
      %p198 = por %p196, %p197
      %p199 = scmp.ne.s32.totalorder %s187, %s188
      %p200 = scmp.eq.s32.totalorder %s33, 3
      %p201 = por %p199, %p200
      %p203 = scmp.ne.s32.totalorder %s188, %s202
      %p204 = scmp.eq.s32.totalorder %s33, 0
      %p205 = por %p203, %p204
      %s207 = sadd.s32 %s206, 1
      %p210 = scmp.eq.s32.totalorder %s27, 3
      %p211 = scmp.ne.s32.totalorder %s206, %s208
      %p212 = scmp.eq.s32.totalorder %s27, 0
      %p213 = por %p211, %p212
      %p214 = scmp.ne.s32.totalorder %s206, %s208
      %p215 = scmp.eq.s32.totalorder %s32, 3
      %p216 = por %p214, %p215
      %p217 = scmp.ne.s32.totalorder %s208, %s209
      %p218 = scmp.eq.s32.totalorder %s32, 0
      %p219 = por %p217, %p218
      %p220 = scmp.ne.s32.totalorder %s208, %s209
      %p221 = scmp.eq.s32.totalorder %s33, 3
      %p222 = por %p220, %p221
      %p224 = scmp.ne.s32.totalorder %s209, %s223
      %p225 = scmp.eq.s32.totalorder %s33, 0
      %p226 = por %p224, %p225
      %s228 = sadd.s32 %s227, 1
      %p231 = scmp.eq.s32.totalorder %s27, 3
      %p232 = scmp.ne.s32.totalorder %s227, %s229
      %p233 = scmp.eq.s32.totalorder %s27, 0
      %p234 = por %p232, %p233
      %p235 = scmp.ne.s32.totalorder %s227, %s229
      %p236 = scmp.eq.s32.totalorder %s32, 3
      %p237 = por %p235, %p236
      %p238 = scmp.ne.s32.totalorder %s229, %s230
      %p239 = scmp.eq.s32.totalorder %s32, 0
      %p240 = por %p238, %p239
      %p241 = scmp.ne.s32.totalorder %s229, %s230
      %p242 = scmp.eq.s32.totalorder %s33, 3
      %p243 = por %p241, %p242
      %p245 = scmp.ne.s32.totalorder %s230, %s244
      %p246 = scmp.eq.s32.totalorder %s33, 0
      %p247 = por %p245, %p246
      %s249 = sadd.s32 %s248, 1
      %p252 = scmp.eq.s32.totalorder %s27, 3
      %p253 = scmp.ne.s32.totalorder %s248, %s250
      %p254 = scmp.eq.s32.totalorder %s27, 0
      %p255 = por %p253, %p254
      %p256 = scmp.ne.s32.totalorder %s248, %s250
      %p257 = scmp.eq.s32.totalorder %s32, 3
      %p258 = por %p256, %p257
      %p259 = scmp.ne.s32.totalorder %s250, %s251
      %p260 = scmp.eq.s32.totalorder %s32, 0
      %p261 = por %p259, %p260
      %p262 = scmp.ne.s32.totalorder %s250, %s251
      %p263 = scmp.eq.s32.totalorder %s33, 3
      %p264 = por %p262, %p263
      %p266 = scmp.ne.s32.totalorder %s251, %s265
      %p267 = scmp.eq.s32.totalorder %s33, 0
      %p268 = por %p266, %p267
      %s270 = sadd.s32 %s269, 1
      %p273 = scmp.eq.s32.totalorder %s27, 3
      %p274 = scmp.ne.s32.totalorder %s269, %s271
      %p275 = scmp.eq.s32.totalorder %s27, 0
      %p276 = por %p274, %p275
      %p277 = scmp.ne.s32.totalorder %s269, %s271
      %p278 = scmp.eq.s32.totalorder %s32, 3
      %p279 = por %p277, %p278
      %p280 = scmp.ne.s32.totalorder %s271, %s272
      %p281 = scmp.eq.s32.totalorder %s32, 0
      %p282 = por %p280, %p281
      %p283 = scmp.ne.s32.totalorder %s271, %s272
      %p284 = scmp.eq.s32.totalorder %s33, 3
      %p285 = por %p283, %p284
      %p287 = scmp.ne.s32.totalorder %s272, %s286
      %p288 = scmp.eq.s32.totalorder %s33, 0
      %p289 = por %p287, %p288
      %s291 = sadd.s32 %s290, 1
      %p294 = scmp.eq.s32.totalorder %s27, 3
      %p295 = scmp.ne.s32.totalorder %s290, %s292
      %p296 = scmp.eq.s32.totalorder %s27, 0
      %p297 = por %p295, %p296
      %p298 = scmp.ne.s32.totalorder %s290, %s292
      %p299 = scmp.eq.s32.totalorder %s32, 3
      %p300 = por %p298, %p299
      %p301 = scmp.ne.s32.totalorder %s292, %s293
      %p302 = scmp.eq.s32.totalorder %s32, 0
      %p303 = por %p301, %p302
      %p304 = scmp.ne.s32.totalorder %s292, %s293
      %p305 = scmp.eq.s32.totalorder %s33, 3
      %p306 = por %p304, %p305
      %p308 = scmp.ne.s32.totalorder %s293, %s307
      %p309 = scmp.eq.s32.totalorder %s33, 0
      %p310 = por %p308, %p309
      %s312 = sadd.s32 %s311, 1
      %p315 = scmp.eq.s32.totalorder %s27, 3
      %p316 = scmp.ne.s32.totalorder %s311, %s313
      %p317 = scmp.eq.s32.totalorder %s27, 0
      %p318 = por %p316, %p317
      %p319 = scmp.ne.s32.totalorder %s311, %s313
      %p320 = scmp.eq.s32.totalorder %s32, 3
      %p321 = por %p319, %p320
      %p322 = scmp.ne.s32.totalorder %s313, %s314
      %p323 = scmp.eq.s32.totalorder %s32, 0
      %p324 = por %p322, %p323
      %p325 = scmp.ne.s32.totalorder %s313, %s314
      %p326 = scmp.eq.s32.totalorder %s33, 3
      %p327 = por %p325, %p326
      %p329 = scmp.ne.s32.totalorder %s314, %s328
      %p330 = scmp.eq.s32.totalorder %s33, 0
      %p331 = por %p329, %p330
      %s333 = sadd.s32 %s332, 1
      %p336 = scmp.eq.s32.totalorder %s27, 3
      %p337 = scmp.ne.s32.totalorder %s332, %s334
      %p338 = scmp.eq.s32.totalorder %s27, 0
      %p339 = por %p337, %p338
      %p340 = scmp.ne.s32.totalorder %s332, %s334
      %p341 = scmp.eq.s32.totalorder %s32, 3
      %p342 = por %p340, %p341
      %p343 = scmp.ne.s32.totalorder %s334, %s335
      %p344 = scmp.eq.s32.totalorder %s32, 0
      %p345 = por %p343, %p344
      %p346 = scmp.ne.s32.totalorder %s334, %s335
      %p347 = scmp.eq.s32.totalorder %s33, 3
      %p348 = por %p346, %p347
      %p350 = scmp.ne.s32.totalorder %s335, %s349
      %p351 = scmp.eq.s32.totalorder %s33, 0
      %p352 = por %p350, %p351
      %s354 = sadd.s32 %s353, 1
      %p357 = scmp.eq.s32.totalorder %s27, 3
      %p358 = scmp.ne.s32.totalorder %s353, %s355
      %p359 = scmp.eq.s32.totalorder %s27, 0
      %p360 = por %p358, %p359
      %p361 = scmp.ne.s32.totalorder %s353, %s355
      %p362 = scmp.eq.s32.totalorder %s32, 3
      %p363 = por %p361, %p362
      %p364 = scmp.ne.s32.totalorder %s355, %s356
      %p365 = scmp.eq.s32.totalorder %s32, 0
      %p366 = por %p364, %p365
      %p367 = scmp.ne.s32.totalorder %s355, %s356
      %p368 = scmp.eq.s32.totalorder %s33, 3
      %p369 = por %p367, %p368
      %p371 = scmp.ne.s32.totalorder %s356, %s370
      %p372 = scmp.eq.s32.totalorder %s33, 0
      %p373 = por %p371, %p372
      %s375 = sadd.s32 %s374, 1
      %p378 = scmp.eq.s32.totalorder %s27, 3
      %p379 = scmp.ne.s32.totalorder %s374, %s376
      %p380 = scmp.eq.s32.totalorder %s27, 0
      %p381 = por %p379, %p380
      %p382 = scmp.ne.s32.totalorder %s374, %s376
      %p383 = scmp.eq.s32.totalorder %s32, 3
      %p384 = por %p382, %p383
      %p385 = scmp.ne.s32.totalorder %s376, %s377
      %p386 = scmp.eq.s32.totalorder %s32, 0
      %p387 = por %p385, %p386
      %p388 = scmp.ne.s32.totalorder %s376, %s377
      %p389 = scmp.eq.s32.totalorder %s33, 3
      %p390 = por %p388, %p389
      %p392 = scmp.ne.s32.totalorder %s377, %s391
      %p393 = scmp.eq.s32.totalorder %s33, 0
      %p394 = por %p392, %p393
      %s396 = sadd.s32 %s395, 1
      %p399 = scmp.eq.s32.totalorder %s27, 3
      %p400 = scmp.ne.s32.totalorder %s395, %s397
      %p401 = scmp.eq.s32.totalorder %s27, 0
      %p402 = por %p400, %p401
      %p403 = scmp.ne.s32.totalorder %s395, %s397
      %p404 = scmp.eq.s32.totalorder %s32, 3
      %p405 = por %p403, %p404
      %p406 = scmp.ne.s32.totalorder %s397, %s398
      %p407 = scmp.eq.s32.totalorder %s32, 0
      %p408 = por %p406, %p407
      %p409 = scmp.ne.s32.totalorder %s397, %s398
      %p410 = scmp.eq.s32.totalorder %s33, 3
      %p411 = por %p409, %p410
      %p413 = scmp.ne.s32.totalorder %s398, %s412
      %p414 = scmp.eq.s32.totalorder %s33, 0
      %p415 = por %p413, %p414
      %s417 = sadd.s32 %s416, 1
      %p420 = scmp.eq.s32.totalorder %s27, 3
      %p421 = scmp.ne.s32.totalorder %s416, %s418
      %p422 = scmp.eq.s32.totalorder %s27, 0
      %p423 = por %p421, %p422
      %p424 = scmp.ne.s32.totalorder %s416, %s418
      %p425 = scmp.eq.s32.totalorder %s32, 3
      %p426 = por %p424, %p425
      %p427 = scmp.ne.s32.totalorder %s418, %s419
      %p428 = scmp.eq.s32.totalorder %s32, 0
      %p429 = por %p427, %p428
      %p430 = scmp.ne.s32.totalorder %s418, %s419
      %p431 = scmp.eq.s32.totalorder %s33, 3
      %p432 = por %p430, %p431
      %p434 = scmp.ne.s32.totalorder %s419, %s433
      %p435 = scmp.eq.s32.totalorder %s33, 0
      %p436 = por %p434, %p435
      %s437 = ssub.s32 %s34, %s46
      %s438 = ssub.s32 %s35, %s42
      %s439 = sor.u32 %s437, %s438
      %p440 = scmp.eq.s32.totalorder %s439, 0
      %s442 = sadd.s32 %s441, 1
      %s443 = scalar_select %p440, %s441, %s442
      %p446 = pneg %p440
      %p447 = scmp.eq.s32.totalorder %s27, 3
      %p448 = por %p446, %p447
      %p449 = scmp.ne.s32.totalorder %s441, %s444
      %p450 = scmp.eq.s32.totalorder %s27, 0
      %p451 = por %p449, %p450
      %p452 = scmp.ne.s32.totalorder %s441, %s444
      %p453 = scmp.eq.s32.totalorder %s32, 3
      %p454 = por %p452, %p453
      %p455 = scmp.ne.s32.totalorder %s444, %s445
      %p456 = scmp.eq.s32.totalorder %s32, 0
      %p457 = por %p455, %p456
      %p458 = scmp.ne.s32.totalorder %s444, %s445
      %p459 = scmp.eq.s32.totalorder %s33, 3
      %p460 = por %p458, %p459
      %p462 = scmp.ne.s32.totalorder %s445, %s461
      %p463 = scmp.eq.s32.totalorder %s33, 0
      %p464 = por %p462, %p463
      %p465 = scmp.le.s32.totalorder 1, %s27
      %p466 = scmp.lt.s32.totalorder %s27, 5
      %p467 = pnand %p465, %p466
      %p468 = pneg %p467
      // Predicated region
      $region9: #{encoder_forward.5} parent=5 // pred_check
        _
      $region10: #{encoder_forward.5} parent=5 // pred_check_branch
        %470 = sbr.rel (%p467) target = $region12
      $region11: #{encoder_forward.5} parent=5 // pred_region
        %s471 = ssub.s32 %s27, 1
        // Predicated region
        $region13: #{encoder_forward.5} parent=11 // pred_check
          %p472 = pneg %p114
        $region14: #{encoder_forward.5} parent=11 // pred_check_branch
          %474 = sbr.rel (%p472) target = $region16
        $region15: #{encoder_forward.5} parent=11 // pred_region
          _
        $region16: #{encoder_forward.5} parent=11 // pred_fallthru
          _
        // Predicated region
        $region17: #{encoder_forward.5} parent=11 // pred_check
          %p475 = pneg %p135
        $region18: #{encoder_forward.5} parent=11 // pred_check_branch
          %477 = sbr.rel (%p475) target = $region20
        $region19: #{encoder_forward.5} parent=11 // pred_region
          _
        $region20: #{encoder_forward.5} parent=11 // pred_fallthru
          _
        // Predicated region
        $region21: #{encoder_forward.5} parent=11 // pred_check
          %p478 = pneg %p156
        $region22: #{encoder_forward.5} parent=11 // pred_check_branch
          %480 = sbr.rel (%p478) target = $region24
        $region23: #{encoder_forward.5} parent=11 // pred_region
          _
        $region24: #{encoder_forward.5} parent=11 // pred_fallthru
          _
        // Predicated region
        $region25: #{encoder_forward.5} parent=11 // pred_check
          %p481 = pneg %p177
        $region26: #{encoder_forward.5} parent=11 // pred_check_branch
          %483 = sbr.rel (%p481) target = $region28
        $region27: #{encoder_forward.5} parent=11 // pred_region
          _
        $region28: #{encoder_forward.5} parent=11 // pred_fallthru
          _
        // Predicated region
        $region29: #{encoder_forward.5} parent=11 // pred_check
          %p484 = pneg %p198
        $region30: #{encoder_forward.5} parent=11 // pred_check_branch
          %486 = sbr.rel (%p484) target = $region32
        $region31: #{encoder_forward.5} parent=11 // pred_region
          _
        $region32: #{encoder_forward.5} parent=11 // pred_fallthru
          _
        // Predicated region
        $region33: #{encoder_forward.5} parent=11 // pred_check
          %p487 = pneg %p219
        $region34: #{encoder_forward.5} parent=11 // pred_check_branch
          %489 = sbr.rel (%p487) target = $region36
        $region35: #{encoder_forward.5} parent=11 // pred_region
          _
        $region36: #{encoder_forward.5} parent=11 // pred_fallthru
          _
        // Predicated region
        $region37: #{encoder_forward.5} parent=11 // pred_check
          %p490 = pneg %p240
        $region38: #{encoder_forward.5} parent=11 // pred_check_branch
          %492 = sbr.rel (%p490) target = $region40
        $region39: #{encoder_forward.5} parent=11 // pred_region
          _
        $region40: #{encoder_forward.5} parent=11 // pred_fallthru
          _
        // Predicated region
        $region41: #{encoder_forward.5} parent=11 // pred_check
          %p493 = pneg %p261
        $region42: #{encoder_forward.5} parent=11 // pred_check_branch
          %495 = sbr.rel (%p493) target = $region44
        $region43: #{encoder_forward.5} parent=11 // pred_region
          _
        $region44: #{encoder_forward.5} parent=11 // pred_fallthru
          _
        // Predicated region
        $region45: #{encoder_forward.5} parent=11 // pred_check
          %p496 = pneg %p282
        $region46: #{encoder_forward.5} parent=11 // pred_check_branch
          %498 = sbr.rel (%p496) target = $region48
        $region47: #{encoder_forward.5} parent=11 // pred_region
          _
        $region48: #{encoder_forward.5} parent=11 // pred_fallthru
          _
        // Predicated region
        $region49: #{encoder_forward.5} parent=11 // pred_check
          %p499 = pneg %p303
        $region50: #{encoder_forward.5} parent=11 // pred_check_branch
          %501 = sbr.rel (%p499) target = $region52
        $region51: #{encoder_forward.5} parent=11 // pred_region
          _
        $region52: #{encoder_forward.5} parent=11 // pred_fallthru
          _
        // Predicated region
        $region53: #{encoder_forward.5} parent=11 // pred_check
          %p502 = pneg %p324
        $region54: #{encoder_forward.5} parent=11 // pred_check_branch
          %504 = sbr.rel (%p502) target = $region56
        $region55: #{encoder_forward.5} parent=11 // pred_region
          _
        $region56: #{encoder_forward.5} parent=11 // pred_fallthru
          _
        // Predicated region
        $region57: #{encoder_forward.5} parent=11 // pred_check
          %p505 = pneg %p345
        $region58: #{encoder_forward.5} parent=11 // pred_check_branch
          %507 = sbr.rel (%p505) target = $region60
        $region59: #{encoder_forward.5} parent=11 // pred_region
          _
        $region60: #{encoder_forward.5} parent=11 // pred_fallthru
          _
        // Predicated region
        $region61: #{encoder_forward.5} parent=11 // pred_check
          %p508 = pneg %p366
        $region62: #{encoder_forward.5} parent=11 // pred_check_branch
          %510 = sbr.rel (%p508) target = $region64
        $region63: #{encoder_forward.5} parent=11 // pred_region
          _
        $region64: #{encoder_forward.5} parent=11 // pred_fallthru
          _
        // Predicated region
        $region65: #{encoder_forward.5} parent=11 // pred_check
          %p511 = pneg %p387
        $region66: #{encoder_forward.5} parent=11 // pred_check_branch
          %513 = sbr.rel (%p511) target = $region68
        $region67: #{encoder_forward.5} parent=11 // pred_region
          _
        $region68: #{encoder_forward.5} parent=11 // pred_fallthru
          _
        // Predicated region
        $region69: #{encoder_forward.5} parent=11 // pred_check
          %p514 = pneg %p408
        $region70: #{encoder_forward.5} parent=11 // pred_check_branch
          %516 = sbr.rel (%p514) target = $region72
        $region71: #{encoder_forward.5} parent=11 // pred_region
          _
        $region72: #{encoder_forward.5} parent=11 // pred_fallthru
          _
        // Predicated region
        $region73: #{encoder_forward.5} parent=11 // pred_check
          %p517 = pneg %p429
        $region74: #{encoder_forward.5} parent=11 // pred_check_branch
          %519 = sbr.rel (%p517) target = $region76
        $region75: #{encoder_forward.5} parent=11 // pred_region
          _
        $region76: #{encoder_forward.5} parent=11 // pred_fallthru
          _
      $region12: #{encoder_forward.5} parent=5 // pred_fallthru
        _
      %p520 = scmp.lt.s32.totalorder %s27, 4
      // Predicated region
      $region77: #{encoder_forward.5} parent=5 // pred_check
        %p521 = pneg %p520
      $region78: #{encoder_forward.5} parent=5 // pred_check_branch
        %523 = sbr.rel (%p521) target = $region80
      $region79: #{encoder_forward.5} parent=5 // pred_region
        // Predicated region
        $region81: #{encoder_forward.5} parent=79 // pred_check
          %p524 = pneg %p61
        $region82: #{encoder_forward.5} parent=79 // pred_check_branch
          %526 = sbr.rel (%p524) target = $region84
        $region83: #{encoder_forward.5} parent=79 // pred_region
          %s527 = smul.u32 8, %s35
          %p528 = scmp.lt.s32.totalorder %s34, 1
          %s529 = scalar_select %p528, %s34, 1
          %p530 = scmp.lt.s32.totalorder %s527, 15
          %s531 = scalar_select %p530, %s527, 15
          %s532 = smul.addr %s529, 16
          %s533 = sadd.s32 %s531, %s532
          %s534 = smul.addr %s533, 8
          %s535 = scalar_lea.vmem %s0, %s534
          %s536 = smul.u32 8, %s35
        $region84: #{encoder_forward.5} parent=79 // pred_fallthru
          _
        // Predicated region
        $region85: #{encoder_forward.5} parent=79 // pred_check
          %p537 = pneg %p87
        $region86: #{encoder_forward.5} parent=79 // pred_check_branch
          %539 = sbr.rel (%p537) target = $region88
        $region87: #{encoder_forward.5} parent=79 // pred_region
          %p540 = scmp.lt.s32.totalorder %s34, 1
          %s541 = scalar_select %p540, %s34, 1
          %s542 = smul.addr %s541, 16
          %s543 = smul.addr %s542, 8
          %s544 = scalar_lea.vmem %s1, %s543
        $region88: #{encoder_forward.5} parent=79 // pred_fallthru
          _
      $region80: #{encoder_forward.5} parent=5 // pred_fallthru
        _
      %p545 = scmp.le.s32.totalorder 1, %s27
      %p546 = scmp.lt.s32.totalorder %s27, 5
      %p547 = pnand %p545, %p546
      %p548 = pneg %p547
      // Predicated region
      $region89: #{encoder_forward.5} parent=5 // pred_check
        _
      $region90: #{encoder_forward.5} parent=5 // pred_check_branch
        %550 = sbr.rel (%p547) target = $region92
      $region91: #{encoder_forward.5} parent=5 // pred_region
        %s551 = ssub.s32 %s27, 1
        %s552 = smul.u32 8, %s37
        %p553 = scmp.lt.s32.totalorder %s36, 1
        %s554 = scalar_select %p553, %s36, 1
        %p555 = scmp.lt.s32.totalorder %s552, 15
        %s556 = scalar_select %p555, %s552, 15
        %s557 = smul.addr %s554, 16
        %s558 = sadd.s32 %s556, %s557
        %s559 = smul.addr %s558, 8
        %s560 = scalar_lea.vmem %s0, %s559
        %p561 = pneg %p67
        %p562 = pneg %p64
        %p563 = scmp.lt.s32.totalorder %s36, 1
        %s564 = scalar_select %p563, %s36, 1
        %s565 = smul.addr %s564, 16
        %s566 = smul.addr %s565, 8
        %s567 = scalar_lea.vmem %s1, %s566
        %p568 = pneg %p93
        %p569 = pneg %p90
        %p570 = pneg %p114
        %p571 = pneg %p111
        %p572 = pneg %p135
        %p573 = pneg %p132
        %p574 = pneg %p156
        %p575 = pneg %p153
        %p576 = pneg %p177
        %p577 = pneg %p174
        %p578 = pneg %p198
        %p579 = pneg %p195
        %p580 = pneg %p219
        %p581 = pneg %p216
        %p582 = pneg %p240
        %p583 = pneg %p237
        %p584 = pneg %p261
        %p585 = pneg %p258
        %p586 = pneg %p282
        %p587 = pneg %p279
        %p588 = pneg %p303
        %p589 = pneg %p300
        %p590 = pneg %p324
        %p591 = pneg %p321
        %p592 = pneg %p345
        %p593 = pneg %p342
        %p594 = pneg %p366
        %p595 = pneg %p363
        %p596 = pneg %p387
        %p597 = pneg %p384
        %p598 = pneg %p408
        %p599 = pneg %p405
        %p600 = pneg %p429
        %p601 = pneg %p426
        %p602 = pneg %p457
        %p603 = pneg %p454
        %s604 = sand.u32 %s444, 1
        %s605 = scalar_lea.sflag [#allocation3], %s604
        %s606 = sand.u32 %s444, 1
        %s607 = smul.addr %s606, 64
        %s608 = scalar_lea.vmem [#allocation2], %s607
        %s609 = smul.u32 8, %s37
        %p610 = scmp.lt.s32.totalorder %s36, 1
        %s611 = scalar_select %p610, %s36, 1
        %p612 = scmp.lt.s32.totalorder %s609, 15
        %s613 = scalar_select %p612, %s609, 15
        %s614 = smul.addr %s611, 16
        %s615 = sadd.s32 %s613, %s614
        %s616 = smul.addr %s615, 8
        %s617 = scalar_lea.vmem %s0, %s616
        %s618 = smul.u32 8, %s37
        %p619 = scmp.lt.s32.totalorder %s36, 1
        %s620 = scalar_select %p619, %s36, 1
        %s621 = smul.addr %s620, 16
        %s622 = smul.addr %s621, 8
        %s623 = scalar_lea.vmem %s1, %s622
        %s624 = smul.u32 8, %s37
        %v625 = vld [vmem:[%s617] sm:$0xff]
        %v626 = vld [vmem:[%s617 + $0x8] sm:$0xff]
        %v627 = vld [vmem:[%s617 + $0x10] sm:$0xff]
        %v628 = vld [vmem:[%s617 + $0x18] sm:$0xff]
        %v629 = vld [vmem:[%s617 + $0x20] sm:$0xff]
        %v630 = vld [vmem:[%s617 + $0x28] sm:$0xff]
        %v631 = vld [vmem:[%s617 + $0x30] sm:$0xff]
        %v632 = vld [vmem:[%s617 + $0x38] sm:$0xff]
        %v633 = vld [vmem:[%s623] sm:$0xff]
        %v634 = vld [vmem:[%s623 + $0x8] sm:$0xff]
        %v635 = vld [vmem:[%s623 + $0x10] sm:$0xff]
        %v636 = vld [vmem:[%s623 + $0x18] sm:$0xff]
        %v637 = vld [vmem:[%s623 + $0x20] sm:$0xff]
        %v638 = vld [vmem:[%s623 + $0x28] sm:$0xff]
        %v639 = vld [vmem:[%s623 + $0x30] sm:$0xff]
        %v640 = vld [vmem:[%s623 + $0x38] sm:$0xff]
        %v641 = vld [vmem:[%s623 + $0x40] sm:$0xff]
        %v642 = vld [vmem:[%s623 + $0x48] sm:$0xff]
        %v643 = vld [vmem:[%s623 + $0x50] sm:$0xff]
        %v644 = vld [vmem:[%s623 + $0x58] sm:$0xff]
        %v645 = vld [vmem:[%s623 + $0x60] sm:$0xff]
        %v646 = vld [vmem:[%s623 + $0x68] sm:$0xff]
        %v647 = vld [vmem:[%s623 + $0x70] sm:$0xff]
        %v648 = vld [vmem:[%s623 + $0x78] sm:$0xff]
        %v649 = vpack.c.bf16 %v626, %v625
        %v650 = vpack.c.bf16 %v628, %v627
        %v651 = vpack.c.bf16 %v630, %v629
        %v652 = vpack.c.bf16 %v632, %v631
        %v653 = vpack.c.bf16 %v634, %v633
        %v654 = vpack.c.bf16 %v636, %v635
        %v655 = vpack.c.bf16 %v638, %v637
        %v656 = vpack.c.bf16 %v640, %v639
        %v657 = vpack.c.bf16 %v642, %v641
        %v658 = vpack.c.bf16 %v644, %v643
        %v659 = vpack.c.bf16 %v646, %v645
        %v660 = vpack.c.bf16 %v648, %v647
        %v661 = vld [vmem:[%s2] sm:$0xf]
        %v662 = vld [vmem:[%s2 + $0x4] sm:$0xf]
        %v663 = vld [vmem:[%s2 + $0x8] sm:$0xf]
        %v664 = vld [vmem:[%s2 + $0xc] sm:$0xf]
        %v665 = vld [vmem:[%s2 + $0x10] sm:$0xf]
        %v666 = vld [vmem:[%s2 + $0x14] sm:$0xf]
        %v667 = vld [vmem:[%s2 + $0x18] sm:$0xf]
        %v668 = vld [vmem:[%s2 + $0x1c] sm:$0xf]
        %v669 = vld [vmem:[%s2 + $0x20] sm:$0xf]
        %v670 = vld [vmem:[%s2 + $0x24] sm:$0xf]
        %v671 = vld [vmem:[%s2 + $0x28] sm:$0xf]
        %v672 = vld [vmem:[%s2 + $0x2c] sm:$0xf]
        %v673 = vld [vmem:[%s2 + $0x30] sm:$0xf]
        %v674 = vld [vmem:[%s2 + $0x34] sm:$0xf]
        %v675 = vld [vmem:[%s2 + $0x38] sm:$0xf]
        %v676 = vld [vmem:[%s2 + $0x3c] sm:$0xf]
        %v677 = vld [vmem:[%s3] sm:$0x1]
        %v679 = vperm.slane %v677, 0
        %v697 = vunpack.c.l.b16 %v661
        %v698 = vunpack.c.l.b16 %v662
        %v699 = vunpack.c.l.b16 %v663
        %v700 = vunpack.c.l.b16 %v664
        %v701 = vunpack.c.l.b16 %v665
        %v702 = vunpack.c.l.b16 %v666
        %v703 = vunpack.c.l.b16 %v667
        %v704 = vunpack.c.l.b16 %v668
        %v705 = vunpack.c.l.b16 %v669
        %v706 = vunpack.c.l.b16 %v670
        %v707 = vunpack.c.l.b16 %v671
        %v708 = vunpack.c.l.b16 %v672
        %v709 = vunpack.c.l.b16 %v673
        %v710 = vunpack.c.l.b16 %v674
        %v711 = vunpack.c.l.b16 %v675
        %v712 = vunpack.c.l.b16 %v676
        %v713 = vpack.c.b16 %v698, %v697
        %v714 = vpack.c.b16 %v700, %v699
        %v715 = vpack.c.b16 %v702, %v701
        %v716 = vpack.c.b16 %v704, %v703
        %v717 = vpack.c.b16 %v706, %v705
        %v718 = vpack.c.b16 %v708, %v707
        %v719 = vpack.c.b16 %v710, %v709
        %v720 = vpack.c.b16 %v712, %v711
        %729 = vmatpush.bf16.msra.mxu0 %v720
        %730 = vmatpush.bf16.msra.mxu0 %v719
        %731 = vmatpush.bf16.msra.mxu0 %v718
        %732 = vmatpush.bf16.msra.mxu0 %v717
        %733 = vmatpush.bf16.msra.mxu0 %v716
        %734 = vmatpush.bf16.msra.mxu0 %v715
        %735 = vmatpush.bf16.msra.mxu0 %v714
        %736 = vmatpush.bf16.msra.mxu0 %v713
        %737 = vmatmul.bf16.gmra.mxu0 %v649
        %v738 = vpop.f32.mrf.mxu0
        %v739 = vadd.f32 %v679, %v738
        %v740 = vpop.f32.mrf.mxu0
        %v741 = vadd.f32 %v679, %v740
        %742 = vmatmul.bf16.gmra.mxu0 %v650
        %v743 = vpop.f32.mrf.mxu0
        %v744 = vadd.f32 %v679, %v743
        %v745 = vpop.f32.mrf.mxu0
        %v746 = vadd.f32 %v679, %v745
        %747 = vmatmul.bf16.gmra.mxu0 %v651
        %v748 = vpop.f32.mrf.mxu0
        %v749 = vadd.f32 %v679, %v748
        %v750 = vpop.f32.mrf.mxu0
        %v751 = vadd.f32 %v679, %v750
        %752 = vmatmul.bf16.gmra.mxu0 %v652
        %v753 = vpop.f32.mrf.mxu0
        %v754 = vadd.f32 %v679, %v753
        %v755 = vpop.f32.mrf.mxu0
        %v756 = vadd.f32 %v679, %v755
        %757 = vdwg.mxu0
        %v758 = vld [vmem:[%s4] sm:$0xf]
        %v759 = vld [vmem:[%s4 + $0x4] sm:$0xf]
        %v760 = vld [vmem:[%s4 + $0x8] sm:$0xf]
        %v761 = vld [vmem:[%s4 + $0xc] sm:$0xf]
        %v762 = vld [vmem:[%s4 + $0x10] sm:$0xf]
        %v763 = vld [vmem:[%s4 + $0x14] sm:$0xf]
        %v764 = vld [vmem:[%s4 + $0x18] sm:$0xf]
        %v765 = vld [vmem:[%s4 + $0x1c] sm:$0xf]
        %v766 = vld [vmem:[%s4 + $0x20] sm:$0xf]
        %v767 = vld [vmem:[%s4 + $0x24] sm:$0xf]
        %v768 = vld [vmem:[%s4 + $0x28] sm:$0xf]
        %v769 = vld [vmem:[%s4 + $0x2c] sm:$0xf]
        %v770 = vld [vmem:[%s4 + $0x30] sm:$0xf]
        %v771 = vld [vmem:[%s4 + $0x34] sm:$0xf]
        %v772 = vld [vmem:[%s4 + $0x38] sm:$0xf]
        %v773 = vld [vmem:[%s4 + $0x3c] sm:$0xf]
        %v774 = vld [vmem:[%s5] sm:$0x1]
        %v776 = vperm.slane %v774, 0
        %v794 = vunpack.c.l.b16 %v758
        %v795 = vunpack.c.l.b16 %v759
        %v796 = vunpack.c.l.b16 %v760
        %v797 = vunpack.c.l.b16 %v761
        %v798 = vunpack.c.l.b16 %v762
        %v799 = vunpack.c.l.b16 %v763
        %v800 = vunpack.c.l.b16 %v764
        %v801 = vunpack.c.l.b16 %v765
        %v802 = vunpack.c.l.b16 %v766
        %v803 = vunpack.c.l.b16 %v767
        %v804 = vunpack.c.l.b16 %v768
        %v805 = vunpack.c.l.b16 %v769
        %v806 = vunpack.c.l.b16 %v770
        %v807 = vunpack.c.l.b16 %v771
        %v808 = vunpack.c.l.b16 %v772
        %v809 = vunpack.c.l.b16 %v773
        %v810 = vpack.c.b16 %v795, %v794
        %v811 = vpack.c.b16 %v797, %v796
        %v812 = vpack.c.b16 %v799, %v798
        %v813 = vpack.c.b16 %v801, %v800
        %v814 = vpack.c.b16 %v803, %v802
        %v815 = vpack.c.b16 %v805, %v804
        %v816 = vpack.c.b16 %v807, %v806
        %v817 = vpack.c.b16 %v809, %v808
        %826 = vmatpush.bf16.msra.mxu0 %v817
        %827 = vmatpush.bf16.msra.mxu0 %v816
        %828 = vmatpush.bf16.msra.mxu0 %v815
        %829 = vmatpush.bf16.msra.mxu0 %v814
        %830 = vmatpush.bf16.msra.mxu0 %v813
        %831 = vmatpush.bf16.msra.mxu0 %v812
        %832 = vmatpush.bf16.msra.mxu0 %v811
        %833 = vmatpush.bf16.msra.mxu0 %v810
        %834 = vmatmul.bf16.gmra.mxu0 %v653
        %v835 = vpop.f32.mrf.mxu0
        %v836 = vadd.f32 %v776, %v835
        %v837 = vpop.f32.mrf.mxu0
        %v838 = vadd.f32 %v776, %v837
        %839 = vmatmul.bf16.gmra.mxu0 %v654
        %v840 = vpop.f32.mrf.mxu0
        %v841 = vadd.f32 %v776, %v840
        %v842 = vpop.f32.mrf.mxu0
        %v843 = vadd.f32 %v776, %v842
        %844 = vmatmul.bf16.gmra.mxu0 %v655
        %v845 = vpop.f32.mrf.mxu0
        %v846 = vadd.f32 %v776, %v845
        %v847 = vpop.f32.mrf.mxu0
        %v848 = vadd.f32 %v776, %v847
        %849 = vmatmul.bf16.gmra.mxu0 %v656
        %v850 = vpop.f32.mrf.mxu0
        %v851 = vadd.f32 %v776, %v850
        %v852 = vpop.f32.mrf.mxu0
        %v853 = vadd.f32 %v776, %v852
        %854 = vmatmul.bf16.gmra.mxu0 %v657
        %v855 = vpop.f32.mrf.mxu0
        %v856 = vadd.f32 %v776, %v855
        %v857 = vpop.f32.mrf.mxu0
        %v858 = vadd.f32 %v776, %v857
        %859 = vmatmul.bf16.gmra.mxu0 %v658
        %v860 = vpop.f32.mrf.mxu0
        %v861 = vadd.f32 %v776, %v860
        %v862 = vpop.f32.mrf.mxu0
        %v863 = vadd.f32 %v776, %v862
        %864 = vmatmul.bf16.gmra.mxu0 %v659
        %v865 = vpop.f32.mrf.mxu0
        %v866 = vadd.f32 %v776, %v865
        %v867 = vpop.f32.mrf.mxu0
        %v868 = vadd.f32 %v776, %v867
        %869 = vmatmul.bf16.gmra.mxu0 %v660
        %v870 = vpop.f32.mrf.mxu0
        %v871 = vadd.f32 %v776, %v870
        %v872 = vpop.f32.mrf.mxu0
        %v873 = vadd.f32 %v776, %v872
        %874 = vdwg.mxu0
        %v875 = vld [vmem:[%s6] sm:$0xf]
        %v876 = vld [vmem:[%s6 + $0x4] sm:$0xf]
        %v877 = vld [vmem:[%s6 + $0x8] sm:$0xf]
        %v878 = vld [vmem:[%s6 + $0xc] sm:$0xf]
        %v879 = vld [vmem:[%s6 + $0x10] sm:$0xf]
        %v880 = vld [vmem:[%s6 + $0x14] sm:$0xf]
        %v881 = vld [vmem:[%s6 + $0x18] sm:$0xf]
        %v882 = vld [vmem:[%s6 + $0x1c] sm:$0xf]
        %v883 = vld [vmem:[%s6 + $0x20] sm:$0xf]
        %v884 = vld [vmem:[%s6 + $0x24] sm:$0xf]
        %v885 = vld [vmem:[%s6 + $0x28] sm:$0xf]
        %v886 = vld [vmem:[%s6 + $0x2c] sm:$0xf]
        %v887 = vld [vmem:[%s6 + $0x30] sm:$0xf]
        %v888 = vld [vmem:[%s6 + $0x34] sm:$0xf]
        %v889 = vld [vmem:[%s6 + $0x38] sm:$0xf]
        %v890 = vld [vmem:[%s6 + $0x3c] sm:$0xf]
        %v891 = vld [vmem:[%s7] sm:$0x1]
        %v893 = vperm.slane %v891, 0
        %v911 = vunpack.c.l.b16 %v875
        %v912 = vunpack.c.l.b16 %v876
        %v913 = vunpack.c.l.b16 %v877
        %v914 = vunpack.c.l.b16 %v878
        %v915 = vunpack.c.l.b16 %v879
        %v916 = vunpack.c.l.b16 %v880
        %v917 = vunpack.c.l.b16 %v881
        %v918 = vunpack.c.l.b16 %v882
        %v919 = vunpack.c.l.b16 %v883
        %v920 = vunpack.c.l.b16 %v884
        %v921 = vunpack.c.l.b16 %v885
        %v922 = vunpack.c.l.b16 %v886
        %v923 = vunpack.c.l.b16 %v887
        %v924 = vunpack.c.l.b16 %v888
        %v925 = vunpack.c.l.b16 %v889
        %v926 = vunpack.c.l.b16 %v890
        %v927 = vpack.c.b16 %v912, %v911
        %v928 = vpack.c.b16 %v914, %v913
        %v929 = vpack.c.b16 %v916, %v915
        %v930 = vpack.c.b16 %v918, %v917
        %v931 = vpack.c.b16 %v920, %v919
        %v932 = vpack.c.b16 %v922, %v921
        %v933 = vpack.c.b16 %v924, %v923
        %v934 = vpack.c.b16 %v926, %v925
        %943 = vmatpush.bf16.msra.mxu0 %v934
        %944 = vmatpush.bf16.msra.mxu0 %v933
        %945 = vmatpush.bf16.msra.mxu0 %v932
        %946 = vmatpush.bf16.msra.mxu0 %v931
        %947 = vmatpush.bf16.msra.mxu0 %v930
        %948 = vmatpush.bf16.msra.mxu0 %v929
        %949 = vmatpush.bf16.msra.mxu0 %v928
        %950 = vmatpush.bf16.msra.mxu0 %v927
        %951 = vmatmul.bf16.gmra.mxu0 %v653
        %v952 = vpop.f32.mrf.mxu0
        %v953 = vadd.f32 %v893, %v952
        %v954 = vpop.f32.mrf.mxu0
        %v955 = vadd.f32 %v893, %v954
        %956 = vmatmul.bf16.gmra.mxu0 %v654
        %v957 = vpop.f32.mrf.mxu0
        %v958 = vadd.f32 %v893, %v957
        %v959 = vpop.f32.mrf.mxu0
        %v960 = vadd.f32 %v893, %v959
        %961 = vmatmul.bf16.gmra.mxu0 %v655
        %v962 = vpop.f32.mrf.mxu0
        %v963 = vadd.f32 %v893, %v962
        %v964 = vpop.f32.mrf.mxu0
        %v965 = vadd.f32 %v893, %v964
        %966 = vmatmul.bf16.gmra.mxu0 %v656
        %v967 = vpop.f32.mrf.mxu0
        %v968 = vadd.f32 %v893, %v967
        %v969 = vpop.f32.mrf.mxu0
        %v970 = vadd.f32 %v893, %v969
        %971 = vmatmul.bf16.gmra.mxu0 %v657
        %v972 = vpop.f32.mrf.mxu0
        %v973 = vadd.f32 %v893, %v972
        %v974 = vpop.f32.mrf.mxu0
        %v975 = vadd.f32 %v893, %v974
        %976 = vmatmul.bf16.gmra.mxu0 %v658
        %v977 = vpop.f32.mrf.mxu0
        %v978 = vadd.f32 %v893, %v977
        %v979 = vpop.f32.mrf.mxu0
        %v980 = vadd.f32 %v893, %v979
        %981 = vmatmul.bf16.gmra.mxu0 %v659
        %v982 = vpop.f32.mrf.mxu0
        %v983 = vadd.f32 %v893, %v982
        %v984 = vpop.f32.mrf.mxu0
        %v985 = vadd.f32 %v893, %v984
        %986 = vmatmul.bf16.gmra.mxu0 %v660
        %v987 = vpop.f32.mrf.mxu0
        %v988 = vadd.f32 %v893, %v987
        %v989 = vpop.f32.mrf.mxu0
        %v990 = vadd.f32 %v893, %v989
        %991 = vdwg.mxu0
        %v992 = vmul.f32 %v739, 0.17677669
        %v993 = vmul.f32 %v741, 0.17677669
        %v994 = vmul.f32 %v744, 0.17677669
        %v995 = vmul.f32 %v746, 0.17677669
        %v996 = vmul.f32 %v749, 0.17677669
        %v997 = vmul.f32 %v751, 0.17677669
        %v998 = vmul.f32 %v754, 0.17677669
        %v999 = vmul.f32 %v756, 0.17677669
        %v1000 = vpack.c.bf16 %v992, %v992
        %v1001 = vpack.c.bf16 %v993, %v993
        %v1002 = vpack.c.bf16 %v994, %v994
        %v1003 = vpack.c.bf16 %v995, %v995
        %v1004 = vpack.c.bf16 %v996, %v996
        %v1005 = vpack.c.bf16 %v997, %v997
        %v1006 = vpack.c.bf16 %v998, %v998
        %v1007 = vpack.c.bf16 %v999, %v999
        %v1008 = vpack.c.bf16 %v836, %v836
        %v1009 = vpack.c.bf16 %v838, %v838
        %v1010 = vpack.c.bf16 %v841, %v841
        %v1011 = vpack.c.bf16 %v843, %v843
        %v1012 = vpack.c.bf16 %v846, %v846
        %v1013 = vpack.c.bf16 %v848, %v848
        %v1014 = vpack.c.bf16 %v851, %v851
        %v1015 = vpack.c.bf16 %v853, %v853
        %v1016 = vpack.c.bf16 %v856, %v856
        %v1017 = vpack.c.bf16 %v858, %v858
        %v1018 = vpack.c.bf16 %v861, %v861
        %v1019 = vpack.c.bf16 %v863, %v863
        %v1020 = vpack.c.bf16 %v866, %v866
        %v1021 = vpack.c.bf16 %v868, %v868
        %v1022 = vpack.c.bf16 %v871, %v871
        %v1023 = vpack.c.bf16 %v873, %v873
        %v1024 = vpack.c.bf16 %v953, %v953
        %v1025 = vpack.c.bf16 %v955, %v955
        %v1026 = vpack.c.bf16 %v958, %v958
        %v1027 = vpack.c.bf16 %v960, %v960
        %v1028 = vpack.c.bf16 %v963, %v963
        %v1029 = vpack.c.bf16 %v965, %v965
        %v1030 = vpack.c.bf16 %v968, %v968
        %v1031 = vpack.c.bf16 %v970, %v970
        %v1032 = vpack.c.bf16 %v973, %v973
        %v1033 = vpack.c.bf16 %v975, %v975
        %v1034 = vpack.c.bf16 %v978, %v978
        %v1035 = vpack.c.bf16 %v980, %v980
        %v1036 = vpack.c.bf16 %v983, %v983
        %v1037 = vpack.c.bf16 %v985, %v985
        %v1038 = vpack.c.bf16 %v988, %v988
        %v1039 = vpack.c.bf16 %v990, %v990
        %1048 = vrot.lane.b32.xlu0 %v1000, 96
        %v1049 = vpop.permute.xlu0 %1048
        %1050 = vrot.lane.b32.xlu0 %v1001, 96
        %v1051 = vpop.permute.xlu0 %1050
        %1052 = vrot.lane.b32.xlu0 %v1002, 96
        %v1053 = vpop.permute.xlu0 %1052
        %1054 = vrot.lane.b32.xlu0 %v1003, 96
        %v1055 = vpop.permute.xlu0 %1054
        %1056 = vrot.lane.b32.xlu0 %v1004, 96
        %v1057 = vpop.permute.xlu0 %1056
        %1058 = vrot.lane.b32.xlu0 %v1005, 96
        %v1059 = vpop.permute.xlu0 %1058
        %1060 = vrot.lane.b32.xlu0 %v1006, 96
        %v1061 = vpop.permute.xlu0 %1060
        %1062 = vrot.lane.b32.xlu0 %v1007, 96
        %v1063 = vpop.permute.xlu0 %1062
        %1064 = vrot.lane.b32.xlu0 %v1000, 64
        %v1065 = vpop.permute.xlu0 %1064
        %1066 = vrot.lane.b32.xlu0 %v1001, 64
        %v1067 = vpop.permute.xlu0 %1066
        %1068 = vrot.lane.b32.xlu0 %v1002, 64
        %v1069 = vpop.permute.xlu0 %1068
        %1070 = vrot.lane.b32.xlu0 %v1003, 64
        %v1071 = vpop.permute.xlu0 %1070
        %1072 = vrot.lane.b32.xlu0 %v1004, 64
        %v1073 = vpop.permute.xlu0 %1072
        %1074 = vrot.lane.b32.xlu0 %v1005, 64
        %v1075 = vpop.permute.xlu0 %1074
        %1076 = vrot.lane.b32.xlu0 %v1006, 64
        %v1077 = vpop.permute.xlu0 %1076
        %1078 = vrot.lane.b32.xlu0 %v1007, 64
        %v1079 = vpop.permute.xlu0 %1078
        %1080 = vrot.lane.b32.xlu0 %v1000, 32
        %v1081 = vpop.permute.xlu0 %1080
        %1082 = vrot.lane.b32.xlu0 %v1001, 32
        %v1083 = vpop.permute.xlu0 %1082
        %1084 = vrot.lane.b32.xlu0 %v1002, 32
        %v1085 = vpop.permute.xlu0 %1084
        %1086 = vrot.lane.b32.xlu0 %v1003, 32
        %v1087 = vpop.permute.xlu0 %1086
        %1088 = vrot.lane.b32.xlu0 %v1004, 32
        %v1089 = vpop.permute.xlu0 %1088
        %1090 = vrot.lane.b32.xlu0 %v1005, 32
        %v1091 = vpop.permute.xlu0 %1090
        %1092 = vrot.lane.b32.xlu0 %v1006, 32
        %v1093 = vpop.permute.xlu0 %1092
        %1094 = vrot.lane.b32.xlu0 %v1007, 32
        %v1095 = vpop.permute.xlu0 %1094
        %1112 = vrot.lane.b32.xlu0 %v1008, 96
        %v1113 = vpop.permute.xlu0 %1112
        %1114 = vrot.lane.b32.xlu0 %v1009, 96
        %v1115 = vpop.permute.xlu0 %1114
        %1116 = vrot.lane.b32.xlu0 %v1010, 96
        %v1117 = vpop.permute.xlu0 %1116
        %1118 = vrot.lane.b32.xlu0 %v1011, 96
        %v1119 = vpop.permute.xlu0 %1118
        %1120 = vrot.lane.b32.xlu0 %v1012, 96
        %v1121 = vpop.permute.xlu0 %1120
        %1122 = vrot.lane.b32.xlu0 %v1013, 96
        %v1123 = vpop.permute.xlu0 %1122
        %1124 = vrot.lane.b32.xlu0 %v1014, 96
        %v1125 = vpop.permute.xlu0 %1124
        %1126 = vrot.lane.b32.xlu0 %v1015, 96
        %v1127 = vpop.permute.xlu0 %1126
        %1128 = vrot.lane.b32.xlu0 %v1016, 96
        %v1129 = vpop.permute.xlu0 %1128
        %1130 = vrot.lane.b32.xlu0 %v1017, 96
        %v1131 = vpop.permute.xlu0 %1130
        %1132 = vrot.lane.b32.xlu0 %v1018, 96
        %v1133 = vpop.permute.xlu0 %1132
        %1134 = vrot.lane.b32.xlu0 %v1019, 96
        %v1135 = vpop.permute.xlu0 %1134
        %1136 = vrot.lane.b32.xlu0 %v1020, 96
        %v1137 = vpop.permute.xlu0 %1136
        %1138 = vrot.lane.b32.xlu0 %v1021, 96
        %v1139 = vpop.permute.xlu0 %1138
        %1140 = vrot.lane.b32.xlu0 %v1022, 96
        %v1141 = vpop.permute.xlu0 %1140
        %1142 = vrot.lane.b32.xlu0 %v1023, 96
        %v1143 = vpop.permute.xlu0 %1142
        %1144 = vrot.lane.b32.xlu0 %v1008, 64
        %v1145 = vpop.permute.xlu0 %1144
        %1146 = vrot.lane.b32.xlu0 %v1009, 64
        %v1147 = vpop.permute.xlu0 %1146
        %1148 = vrot.lane.b32.xlu0 %v1010, 64
        %v1149 = vpop.permute.xlu0 %1148
        %1150 = vrot.lane.b32.xlu0 %v1011, 64
        %v1151 = vpop.permute.xlu0 %1150
        %1152 = vrot.lane.b32.xlu0 %v1012, 64
        %v1153 = vpop.permute.xlu0 %1152
        %1154 = vrot.lane.b32.xlu0 %v1013, 64
        %v1155 = vpop.permute.xlu0 %1154
        %1156 = vrot.lane.b32.xlu0 %v1014, 64
        %v1157 = vpop.permute.xlu0 %1156
        %1158 = vrot.lane.b32.xlu0 %v1015, 64
        %v1159 = vpop.permute.xlu0 %1158
        %1160 = vrot.lane.b32.xlu0 %v1016, 64
        %v1161 = vpop.permute.xlu0 %1160
        %1162 = vrot.lane.b32.xlu0 %v1017, 64
        %v1163 = vpop.permute.xlu0 %1162
        %1164 = vrot.lane.b32.xlu0 %v1018, 64
        %v1165 = vpop.permute.xlu0 %1164
        %1166 = vrot.lane.b32.xlu0 %v1019, 64
        %v1167 = vpop.permute.xlu0 %1166
        %1168 = vrot.lane.b32.xlu0 %v1020, 64
        %v1169 = vpop.permute.xlu0 %1168
        %1170 = vrot.lane.b32.xlu0 %v1021, 64
        %v1171 = vpop.permute.xlu0 %1170
        %1172 = vrot.lane.b32.xlu0 %v1022, 64
        %v1173 = vpop.permute.xlu0 %1172
        %1174 = vrot.lane.b32.xlu0 %v1023, 64
        %v1175 = vpop.permute.xlu0 %1174
        %1176 = vrot.lane.b32.xlu0 %v1008, 32
        %v1177 = vpop.permute.xlu0 %1176
        %1178 = vrot.lane.b32.xlu0 %v1009, 32
        %v1179 = vpop.permute.xlu0 %1178
        %1180 = vrot.lane.b32.xlu0 %v1010, 32
        %v1181 = vpop.permute.xlu0 %1180
        %1182 = vrot.lane.b32.xlu0 %v1011, 32
        %v1183 = vpop.permute.xlu0 %1182
        %1184 = vrot.lane.b32.xlu0 %v1012, 32
        %v1185 = vpop.permute.xlu0 %1184
        %1186 = vrot.lane.b32.xlu0 %v1013, 32
        %v1187 = vpop.permute.xlu0 %1186
        %1188 = vrot.lane.b32.xlu0 %v1014, 32
        %v1189 = vpop.permute.xlu0 %1188
        %1190 = vrot.lane.b32.xlu0 %v1015, 32
        %v1191 = vpop.permute.xlu0 %1190
        %1192 = vrot.lane.b32.xlu0 %v1016, 32
        %v1193 = vpop.permute.xlu0 %1192
        %1194 = vrot.lane.b32.xlu0 %v1017, 32
        %v1195 = vpop.permute.xlu0 %1194
        %1196 = vrot.lane.b32.xlu0 %v1018, 32
        %v1197 = vpop.permute.xlu0 %1196
        %1198 = vrot.lane.b32.xlu0 %v1019, 32
        %v1199 = vpop.permute.xlu0 %1198
        %1200 = vrot.lane.b32.xlu0 %v1020, 32
        %v1201 = vpop.permute.xlu0 %1200
        %1202 = vrot.lane.b32.xlu0 %v1021, 32
        %v1203 = vpop.permute.xlu0 %1202
        %1204 = vrot.lane.b32.xlu0 %v1022, 32
        %v1205 = vpop.permute.xlu0 %1204
        %1206 = vrot.lane.b32.xlu0 %v1023, 32
        %v1207 = vpop.permute.xlu0 %1206
        %1224 = vrot.lane.b32.xlu0 %v1024, 96
        %v1225 = vpop.permute.xlu0 %1224
        %1226 = vrot.lane.b32.xlu0 %v1025, 96
        %v1227 = vpop.permute.xlu0 %1226
        %1228 = vrot.lane.b32.xlu0 %v1026, 96
        %v1229 = vpop.permute.xlu0 %1228
        %1230 = vrot.lane.b32.xlu0 %v1027, 96
        %v1231 = vpop.permute.xlu0 %1230
        %1232 = vrot.lane.b32.xlu0 %v1028, 96
        %v1233 = vpop.permute.xlu0 %1232
        %1234 = vrot.lane.b32.xlu0 %v1029, 96
        %v1235 = vpop.permute.xlu0 %1234
        %1236 = vrot.lane.b32.xlu0 %v1030, 96
        %v1237 = vpop.permute.xlu0 %1236
        %1238 = vrot.lane.b32.xlu0 %v1031, 96
        %v1239 = vpop.permute.xlu0 %1238
        %1240 = vrot.lane.b32.xlu0 %v1032, 96
        %v1241 = vpop.permute.xlu0 %1240
        %1242 = vrot.lane.b32.xlu0 %v1033, 96
        %v1243 = vpop.permute.xlu0 %1242
        %1244 = vrot.lane.b32.xlu0 %v1034, 96
        %v1245 = vpop.permute.xlu0 %1244
        %1246 = vrot.lane.b32.xlu0 %v1035, 96
        %v1247 = vpop.permute.xlu0 %1246
        %1248 = vrot.lane.b32.xlu0 %v1036, 96
        %v1249 = vpop.permute.xlu0 %1248
        %1250 = vrot.lane.b32.xlu0 %v1037, 96
        %v1251 = vpop.permute.xlu0 %1250
        %1252 = vrot.lane.b32.xlu0 %v1038, 96
        %v1253 = vpop.permute.xlu0 %1252
        %1254 = vrot.lane.b32.xlu0 %v1039, 96
        %v1255 = vpop.permute.xlu0 %1254
        %1256 = vrot.lane.b32.xlu0 %v1024, 64
        %v1257 = vpop.permute.xlu0 %1256
        %1258 = vrot.lane.b32.xlu0 %v1025, 64
        %v1259 = vpop.permute.xlu0 %1258
        %1260 = vrot.lane.b32.xlu0 %v1026, 64
        %v1261 = vpop.permute.xlu0 %1260
        %1262 = vrot.lane.b32.xlu0 %v1027, 64
        %v1263 = vpop.permute.xlu0 %1262
        %1264 = vrot.lane.b32.xlu0 %v1028, 64
        %v1265 = vpop.permute.xlu0 %1264
        %1266 = vrot.lane.b32.xlu0 %v1029, 64
        %v1267 = vpop.permute.xlu0 %1266
        %1268 = vrot.lane.b32.xlu0 %v1030, 64
        %v1269 = vpop.permute.xlu0 %1268
        %1270 = vrot.lane.b32.xlu0 %v1031, 64
        %v1271 = vpop.permute.xlu0 %1270
        %1272 = vrot.lane.b32.xlu0 %v1032, 64
        %v1273 = vpop.permute.xlu0 %1272
        %1274 = vrot.lane.b32.xlu0 %v1033, 64
        %v1275 = vpop.permute.xlu0 %1274
        %1276 = vrot.lane.b32.xlu0 %v1034, 64
        %v1277 = vpop.permute.xlu0 %1276
        %1278 = vrot.lane.b32.xlu0 %v1035, 64
        %v1279 = vpop.permute.xlu0 %1278
        %1280 = vrot.lane.b32.xlu0 %v1036, 64
        %v1281 = vpop.permute.xlu0 %1280
        %1282 = vrot.lane.b32.xlu0 %v1037, 64
        %v1283 = vpop.permute.xlu0 %1282
        %1284 = vrot.lane.b32.xlu0 %v1038, 64
        %v1285 = vpop.permute.xlu0 %1284
        %1286 = vrot.lane.b32.xlu0 %v1039, 64
        %v1287 = vpop.permute.xlu0 %1286
        %1288 = vrot.lane.b32.xlu0 %v1024, 32
        %v1289 = vpop.permute.xlu0 %1288
        %1290 = vrot.lane.b32.xlu0 %v1025, 32
        %v1291 = vpop.permute.xlu0 %1290
        %1292 = vrot.lane.b32.xlu0 %v1026, 32
        %v1293 = vpop.permute.xlu0 %1292
        %1294 = vrot.lane.b32.xlu0 %v1027, 32
        %v1295 = vpop.permute.xlu0 %1294
        %1296 = vrot.lane.b32.xlu0 %v1028, 32
        %v1297 = vpop.permute.xlu0 %1296
        %1298 = vrot.lane.b32.xlu0 %v1029, 32
        %v1299 = vpop.permute.xlu0 %1298
        %1300 = vrot.lane.b32.xlu0 %v1030, 32
        %v1301 = vpop.permute.xlu0 %1300
        %1302 = vrot.lane.b32.xlu0 %v1031, 32
        %v1303 = vpop.permute.xlu0 %1302
        %1304 = vrot.lane.b32.xlu0 %v1032, 32
        %v1305 = vpop.permute.xlu0 %1304
        %1306 = vrot.lane.b32.xlu0 %v1033, 32
        %v1307 = vpop.permute.xlu0 %1306
        %1308 = vrot.lane.b32.xlu0 %v1034, 32
        %v1309 = vpop.permute.xlu0 %1308
        %1310 = vrot.lane.b32.xlu0 %v1035, 32
        %v1311 = vpop.permute.xlu0 %1310
        %1312 = vrot.lane.b32.xlu0 %v1036, 32
        %v1313 = vpop.permute.xlu0 %1312
        %1314 = vrot.lane.b32.xlu0 %v1037, 32
        %v1315 = vpop.permute.xlu0 %1314
        %1316 = vrot.lane.b32.xlu0 %v1038, 32
        %v1317 = vpop.permute.xlu0 %1316
        %1318 = vrot.lane.b32.xlu0 %v1039, 32
        %v1319 = vpop.permute.xlu0 %1318
        %v1320 = vunpack.c.l.b16 %v1000
        %v1321 = vunpack.c.l.b16 %v1001
        %v1322 = vunpack.c.l.b16 %v1002
        %v1323 = vunpack.c.l.b16 %v1003
        %v1324 = vunpack.c.l.b16 %v1004
        %v1325 = vunpack.c.l.b16 %v1005
        %v1326 = vunpack.c.l.b16 %v1006
        %v1327 = vunpack.c.l.b16 %v1007
        %v1328 = vpack.c.b16 %v1321, %v1320
        %v1329 = vpack.c.b16 %v1323, %v1322
        %v1330 = vpack.c.b16 %v1325, %v1324
        %v1331 = vpack.c.b16 %v1327, %v1326
        %v1332 = vunpack.c.l.b16 %v1008
        %v1333 = vunpack.c.l.b16 %v1009
        %v1334 = vunpack.c.l.b16 %v1010
        %v1335 = vunpack.c.l.b16 %v1011
        %v1336 = vunpack.c.l.b16 %v1012
        %v1337 = vunpack.c.l.b16 %v1013
        %v1338 = vunpack.c.l.b16 %v1014
        %v1339 = vunpack.c.l.b16 %v1015
        %v1340 = vunpack.c.l.b16 %v1016
        %v1341 = vunpack.c.l.b16 %v1017
        %v1342 = vunpack.c.l.b16 %v1018
        %v1343 = vunpack.c.l.b16 %v1019
        %v1344 = vunpack.c.l.b16 %v1020
        %v1345 = vunpack.c.l.b16 %v1021
        %v1346 = vunpack.c.l.b16 %v1022
        %v1347 = vunpack.c.l.b16 %v1023
        %v1348 = vpack.c.b16 %v1333, %v1332
        %v1349 = vpack.c.b16 %v1335, %v1334
        %v1350 = vpack.c.b16 %v1337, %v1336
        %v1351 = vpack.c.b16 %v1339, %v1338
        %v1352 = vpack.c.b16 %v1341, %v1340
        %v1353 = vpack.c.b16 %v1343, %v1342
        %v1354 = vpack.c.b16 %v1345, %v1344
        %v1355 = vpack.c.b16 %v1347, %v1346
        %vm1356 = vcmask 261120
        %v1358 = vsel %vm1356, %v1328, 0
        %v1361 = vsel %vm1356, %v1329, 0
        %v1364 = vsel %vm1356, %v1330, 0
        %v1367 = vsel %vm1356, %v1331, 0
        %v1370 = vsel %vm1356, %v1348, 0
        %v1373 = vsel %vm1356, %v1349, 0
        %v1376 = vsel %vm1356, %v1350, 0
        %v1379 = vsel %vm1356, %v1351, 0
        %v1382 = vsel %vm1356, %v1352, 0
        %v1385 = vsel %vm1356, %v1353, 0
        %v1388 = vsel %vm1356, %v1354, 0
        %v1391 = vsel %vm1356, %v1355, 0
        %1393 = vmatpush.bf16.xpose.msra.mxu0 %v1391
        %1394 = vmatpush.bf16.xpose.msra.mxu0 %v1388
        %1395 = vmatpush.bf16.xpose.msra.mxu0 %v1385
        %1396 = vmatpush.bf16.xpose.msra.mxu0 %v1382
        %1397 = vmatpush.bf16.xpose.msra.mxu0 %v1379
        %1398 = vmatpush.bf16.xpose.msra.mxu0 %v1376
        %1399 = vmatpush.bf16.xpose.msra.mxu0 %v1373
        %1400 = vmatpush.bf16.xpose.msra.mxu0 %v1370
        %1401 = vmatmul.bf16.gmra.mxu0 %v1358
        %v1402 = vpop.f32.mrf.mxu0
        %v1403 = vadd.f32 0.0, %v1402
        %v1404 = vpop.f32.mrf.mxu0
        %v1405 = vadd.f32 0.0, %v1404
        %1406 = vmatmul.bf16.gmra.mxu0 %v1361
        %v1407 = vpop.f32.mrf.mxu0
        %v1408 = vadd.f32 0.0, %v1407
        %v1409 = vpop.f32.mrf.mxu0
        %v1410 = vadd.f32 0.0, %v1409
        %1411 = vmatmul.bf16.gmra.mxu0 %v1364
        %v1412 = vpop.f32.mrf.mxu0
        %v1413 = vadd.f32 0.0, %v1412
        %v1414 = vpop.f32.mrf.mxu0
        %v1415 = vadd.f32 0.0, %v1414
        %1416 = vmatmul.bf16.gmra.mxu0 %v1367
        %v1417 = vpop.f32.mrf.mxu0
        %v1418 = vadd.f32 0.0, %v1417
        %v1419 = vpop.f32.mrf.mxu0
        %v1420 = vadd.f32 0.0, %v1419
        %1421 = vdwg.mxu0
        %v1422 = vunpack.c.l.b16 %v1049
        %v1423 = vunpack.c.l.b16 %v1051
        %v1424 = vunpack.c.l.b16 %v1053
        %v1425 = vunpack.c.l.b16 %v1055
        %v1426 = vunpack.c.l.b16 %v1057
        %v1427 = vunpack.c.l.b16 %v1059
        %v1428 = vunpack.c.l.b16 %v1061
        %v1429 = vunpack.c.l.b16 %v1063
        %v1430 = vpack.c.b16 %v1423, %v1422
        %v1431 = vpack.c.b16 %v1425, %v1424
        %v1432 = vpack.c.b16 %v1427, %v1426
        %v1433 = vpack.c.b16 %v1429, %v1428
        %v1434 = vunpack.c.l.b16 %v1113
        %v1435 = vunpack.c.l.b16 %v1115
        %v1436 = vunpack.c.l.b16 %v1117
        %v1437 = vunpack.c.l.b16 %v1119
        %v1438 = vunpack.c.l.b16 %v1121
        %v1439 = vunpack.c.l.b16 %v1123
        %v1440 = vunpack.c.l.b16 %v1125
        %v1441 = vunpack.c.l.b16 %v1127
        %v1442 = vunpack.c.l.b16 %v1129
        %v1443 = vunpack.c.l.b16 %v1131
        %v1444 = vunpack.c.l.b16 %v1133
        %v1445 = vunpack.c.l.b16 %v1135
        %v1446 = vunpack.c.l.b16 %v1137
        %v1447 = vunpack.c.l.b16 %v1139
        %v1448 = vunpack.c.l.b16 %v1141
        %v1449 = vunpack.c.l.b16 %v1143
        %v1450 = vpack.c.b16 %v1435, %v1434
        %v1451 = vpack.c.b16 %v1437, %v1436
        %v1452 = vpack.c.b16 %v1439, %v1438
        %v1453 = vpack.c.b16 %v1441, %v1440
        %v1454 = vpack.c.b16 %v1443, %v1442
        %v1455 = vpack.c.b16 %v1445, %v1444
        %v1456 = vpack.c.b16 %v1447, %v1446
        %v1457 = vpack.c.b16 %v1449, %v1448
        %v1459 = vsel %vm1356, %v1430, 0
        %v1462 = vsel %vm1356, %v1431, 0
        %v1465 = vsel %vm1356, %v1432, 0
        %v1468 = vsel %vm1356, %v1433, 0
        %v1471 = vsel %vm1356, %v1450, 0
        %v1474 = vsel %vm1356, %v1451, 0
        %v1477 = vsel %vm1356, %v1452, 0
        %v1480 = vsel %vm1356, %v1453, 0
        %v1483 = vsel %vm1356, %v1454, 0
        %v1486 = vsel %vm1356, %v1455, 0
        %v1489 = vsel %vm1356, %v1456, 0
        %v1492 = vsel %vm1356, %v1457, 0
        %1494 = vmatpush.bf16.xpose.msra.mxu0 %v1492
        %1495 = vmatpush.bf16.xpose.msra.mxu0 %v1489
        %1496 = vmatpush.bf16.xpose.msra.mxu0 %v1486
        %1497 = vmatpush.bf16.xpose.msra.mxu0 %v1483
        %1498 = vmatpush.bf16.xpose.msra.mxu0 %v1480
        %1499 = vmatpush.bf16.xpose.msra.mxu0 %v1477
        %1500 = vmatpush.bf16.xpose.msra.mxu0 %v1474
        %1501 = vmatpush.bf16.xpose.msra.mxu0 %v1471
        %1502 = vmatmul.bf16.gmra.mxu0 %v1459
        %v1503 = vpop.f32.mrf.mxu0
        %v1504 = vadd.f32 0.0, %v1503
        %v1505 = vpop.f32.mrf.mxu0
        %v1506 = vadd.f32 0.0, %v1505
        %1507 = vmatmul.bf16.gmra.mxu0 %v1462
        %v1508 = vpop.f32.mrf.mxu0
        %v1509 = vadd.f32 0.0, %v1508
        %v1510 = vpop.f32.mrf.mxu0
        %v1511 = vadd.f32 0.0, %v1510
        %1512 = vmatmul.bf16.gmra.mxu0 %v1465
        %v1513 = vpop.f32.mrf.mxu0
        %v1514 = vadd.f32 0.0, %v1513
        %v1515 = vpop.f32.mrf.mxu0
        %v1516 = vadd.f32 0.0, %v1515
        %1517 = vmatmul.bf16.gmra.mxu0 %v1468
        %v1518 = vpop.f32.mrf.mxu0
        %v1519 = vadd.f32 0.0, %v1518
        %v1520 = vpop.f32.mrf.mxu0
        %v1521 = vadd.f32 0.0, %v1520
        %1522 = vdwg.mxu0
        %v1523 = vunpack.c.l.b16 %v1065
        %v1524 = vunpack.c.l.b16 %v1067
        %v1525 = vunpack.c.l.b16 %v1069
        %v1526 = vunpack.c.l.b16 %v1071
        %v1527 = vunpack.c.l.b16 %v1073
        %v1528 = vunpack.c.l.b16 %v1075
        %v1529 = vunpack.c.l.b16 %v1077
        %v1530 = vunpack.c.l.b16 %v1079
        %v1531 = vpack.c.b16 %v1524, %v1523
        %v1532 = vpack.c.b16 %v1526, %v1525
        %v1533 = vpack.c.b16 %v1528, %v1527
        %v1534 = vpack.c.b16 %v1530, %v1529
        %v1535 = vunpack.c.l.b16 %v1145
        %v1536 = vunpack.c.l.b16 %v1147
        %v1537 = vunpack.c.l.b16 %v1149
        %v1538 = vunpack.c.l.b16 %v1151
        %v1539 = vunpack.c.l.b16 %v1153
        %v1540 = vunpack.c.l.b16 %v1155
        %v1541 = vunpack.c.l.b16 %v1157
        %v1542 = vunpack.c.l.b16 %v1159
        %v1543 = vunpack.c.l.b16 %v1161
        %v1544 = vunpack.c.l.b16 %v1163
        %v1545 = vunpack.c.l.b16 %v1165
        %v1546 = vunpack.c.l.b16 %v1167
        %v1547 = vunpack.c.l.b16 %v1169
        %v1548 = vunpack.c.l.b16 %v1171
        %v1549 = vunpack.c.l.b16 %v1173
        %v1550 = vunpack.c.l.b16 %v1175
        %v1551 = vpack.c.b16 %v1536, %v1535
        %v1552 = vpack.c.b16 %v1538, %v1537
        %v1553 = vpack.c.b16 %v1540, %v1539
        %v1554 = vpack.c.b16 %v1542, %v1541
        %v1555 = vpack.c.b16 %v1544, %v1543
        %v1556 = vpack.c.b16 %v1546, %v1545
        %v1557 = vpack.c.b16 %v1548, %v1547
        %v1558 = vpack.c.b16 %v1550, %v1549
        %v1560 = vsel %vm1356, %v1531, 0
        %v1563 = vsel %vm1356, %v1532, 0
        %v1566 = vsel %vm1356, %v1533, 0
        %v1569 = vsel %vm1356, %v1534, 0
        %v1572 = vsel %vm1356, %v1551, 0
        %v1575 = vsel %vm1356, %v1552, 0
        %v1578 = vsel %vm1356, %v1553, 0
        %v1581 = vsel %vm1356, %v1554, 0
        %v1584 = vsel %vm1356, %v1555, 0
        %v1587 = vsel %vm1356, %v1556, 0
        %v1590 = vsel %vm1356, %v1557, 0
        %v1593 = vsel %vm1356, %v1558, 0
        %1595 = vmatpush.bf16.xpose.msra.mxu0 %v1593
        %1596 = vmatpush.bf16.xpose.msra.mxu0 %v1590
        %1597 = vmatpush.bf16.xpose.msra.mxu0 %v1587
        %1598 = vmatpush.bf16.xpose.msra.mxu0 %v1584
        %1599 = vmatpush.bf16.xpose.msra.mxu0 %v1581
        %1600 = vmatpush.bf16.xpose.msra.mxu0 %v1578
        %1601 = vmatpush.bf16.xpose.msra.mxu0 %v1575
        %1602 = vmatpush.bf16.xpose.msra.mxu0 %v1572
        %1603 = vmatmul.bf16.gmra.mxu0 %v1560
        %v1604 = vpop.f32.mrf.mxu0
        %v1605 = vadd.f32 0.0, %v1604
        %v1606 = vpop.f32.mrf.mxu0
        %v1607 = vadd.f32 0.0, %v1606
        %1608 = vmatmul.bf16.gmra.mxu0 %v1563
        %v1609 = vpop.f32.mrf.mxu0
        %v1610 = vadd.f32 0.0, %v1609
        %v1611 = vpop.f32.mrf.mxu0
        %v1612 = vadd.f32 0.0, %v1611
        %1613 = vmatmul.bf16.gmra.mxu0 %v1566
        %v1614 = vpop.f32.mrf.mxu0
        %v1615 = vadd.f32 0.0, %v1614
        %v1616 = vpop.f32.mrf.mxu0
        %v1617 = vadd.f32 0.0, %v1616
        %1618 = vmatmul.bf16.gmra.mxu0 %v1569
        %v1619 = vpop.f32.mrf.mxu0
        %v1620 = vadd.f32 0.0, %v1619
        %v1621 = vpop.f32.mrf.mxu0
        %v1622 = vadd.f32 0.0, %v1621
        %1623 = vdwg.mxu0
        %v1624 = vunpack.c.l.b16 %v1081
        %v1625 = vunpack.c.l.b16 %v1083
        %v1626 = vunpack.c.l.b16 %v1085
        %v1627 = vunpack.c.l.b16 %v1087
        %v1628 = vunpack.c.l.b16 %v1089
        %v1629 = vunpack.c.l.b16 %v1091
        %v1630 = vunpack.c.l.b16 %v1093
        %v1631 = vunpack.c.l.b16 %v1095
        %v1632 = vpack.c.b16 %v1625, %v1624
        %v1633 = vpack.c.b16 %v1627, %v1626
        %v1634 = vpack.c.b16 %v1629, %v1628
        %v1635 = vpack.c.b16 %v1631, %v1630
        %v1636 = vunpack.c.l.b16 %v1177
        %v1637 = vunpack.c.l.b16 %v1179
        %v1638 = vunpack.c.l.b16 %v1181
        %v1639 = vunpack.c.l.b16 %v1183
        %v1640 = vunpack.c.l.b16 %v1185
        %v1641 = vunpack.c.l.b16 %v1187
        %v1642 = vunpack.c.l.b16 %v1189
        %v1643 = vunpack.c.l.b16 %v1191
        %v1644 = vunpack.c.l.b16 %v1193
        %v1645 = vunpack.c.l.b16 %v1195
        %v1646 = vunpack.c.l.b16 %v1197
        %v1647 = vunpack.c.l.b16 %v1199
        %v1648 = vunpack.c.l.b16 %v1201
        %v1649 = vunpack.c.l.b16 %v1203
        %v1650 = vunpack.c.l.b16 %v1205
        %v1651 = vunpack.c.l.b16 %v1207
        %v1652 = vpack.c.b16 %v1637, %v1636
        %v1653 = vpack.c.b16 %v1639, %v1638
        %v1654 = vpack.c.b16 %v1641, %v1640
        %v1655 = vpack.c.b16 %v1643, %v1642
        %v1656 = vpack.c.b16 %v1645, %v1644
        %v1657 = vpack.c.b16 %v1647, %v1646
        %v1658 = vpack.c.b16 %v1649, %v1648
        %v1659 = vpack.c.b16 %v1651, %v1650
        %v1661 = vsel %vm1356, %v1632, 0
        %v1664 = vsel %vm1356, %v1633, 0
        %v1667 = vsel %vm1356, %v1634, 0
        %v1670 = vsel %vm1356, %v1635, 0
        %v1673 = vsel %vm1356, %v1652, 0
        %v1676 = vsel %vm1356, %v1653, 0
        %v1679 = vsel %vm1356, %v1654, 0
        %v1682 = vsel %vm1356, %v1655, 0
        %v1685 = vsel %vm1356, %v1656, 0
        %v1688 = vsel %vm1356, %v1657, 0
        %v1691 = vsel %vm1356, %v1658, 0
        %v1694 = vsel %vm1356, %v1659, 0
        %1696 = vmatpush.bf16.xpose.msra.mxu0 %v1694
        %1697 = vmatpush.bf16.xpose.msra.mxu0 %v1691
        %1698 = vmatpush.bf16.xpose.msra.mxu0 %v1688
        %1699 = vmatpush.bf16.xpose.msra.mxu0 %v1685
        %1700 = vmatpush.bf16.xpose.msra.mxu0 %v1682
        %1701 = vmatpush.bf16.xpose.msra.mxu0 %v1679
        %1702 = vmatpush.bf16.xpose.msra.mxu0 %v1676
        %1703 = vmatpush.bf16.xpose.msra.mxu0 %v1673
        %1704 = vmatmul.bf16.gmra.mxu0 %v1661
        %v1705 = vpop.f32.mrf.mxu0
        %v1706 = vadd.f32 0.0, %v1705
        %v1707 = vpop.f32.mrf.mxu0
        %v1708 = vadd.f32 0.0, %v1707
        %1709 = vmatmul.bf16.gmra.mxu0 %v1664
        %v1710 = vpop.f32.mrf.mxu0
        %v1711 = vadd.f32 0.0, %v1710
        %v1712 = vpop.f32.mrf.mxu0
        %v1713 = vadd.f32 0.0, %v1712
        %1714 = vmatmul.bf16.gmra.mxu0 %v1667
        %v1715 = vpop.f32.mrf.mxu0
        %v1716 = vadd.f32 0.0, %v1715
        %v1717 = vpop.f32.mrf.mxu0
        %v1718 = vadd.f32 0.0, %v1717
        %1719 = vmatmul.bf16.gmra.mxu0 %v1670
        %v1720 = vpop.f32.mrf.mxu0
        %v1721 = vadd.f32 0.0, %v1720
        %v1722 = vpop.f32.mrf.mxu0
        %v1723 = vadd.f32 0.0, %v1722
        %1724 = vdwg.mxu0
        %1725 = vmax.xlane.f32.xlu0 %v1403
        %v1726 = vpop.xlane.xlu0 %1725
        %1727 = vmax.xlane.f32.xlu0 %v1405
        %v1728 = vpop.xlane.xlu0 %1727
        %1729 = vmax.xlane.f32.xlu0 %v1408
        %v1730 = vpop.xlane.xlu0 %1729
        %1731 = vmax.xlane.f32.xlu0 %v1410
        %v1732 = vpop.xlane.xlu0 %1731
        %1733 = vmax.xlane.f32.xlu0 %v1413
        %v1734 = vpop.xlane.xlu0 %1733
        %1735 = vmax.xlane.f32.xlu0 %v1415
        %v1736 = vpop.xlane.xlu0 %1735
        %1737 = vmax.xlane.f32.xlu0 %v1418
        %v1738 = vpop.xlane.xlu0 %1737
        %1739 = vmax.xlane.f32.xlu0 %v1420
        %v1740 = vpop.xlane.xlu0 %1739
        %1741 = vmax.xlane.f32.xlu0 %v1504
        %v1742 = vpop.xlane.xlu0 %1741
        %1743 = vmax.xlane.f32.xlu0 %v1506
        %v1744 = vpop.xlane.xlu0 %1743
        %1745 = vmax.xlane.f32.xlu0 %v1509
        %v1746 = vpop.xlane.xlu0 %1745
        %1747 = vmax.xlane.f32.xlu0 %v1511
        %v1748 = vpop.xlane.xlu0 %1747
        %1749 = vmax.xlane.f32.xlu0 %v1514
        %v1750 = vpop.xlane.xlu0 %1749
        %1751 = vmax.xlane.f32.xlu0 %v1516
        %v1752 = vpop.xlane.xlu0 %1751
        %1753 = vmax.xlane.f32.xlu0 %v1519
        %v1754 = vpop.xlane.xlu0 %1753
        %1755 = vmax.xlane.f32.xlu0 %v1521
        %v1756 = vpop.xlane.xlu0 %1755
        %1757 = vmax.xlane.f32.xlu0 %v1605
        %v1758 = vpop.xlane.xlu0 %1757
        %1759 = vmax.xlane.f32.xlu0 %v1607
        %v1760 = vpop.xlane.xlu0 %1759
        %1761 = vmax.xlane.f32.xlu0 %v1610
        %v1762 = vpop.xlane.xlu0 %1761
        %1763 = vmax.xlane.f32.xlu0 %v1612
        %v1764 = vpop.xlane.xlu0 %1763
        %1765 = vmax.xlane.f32.xlu0 %v1615
        %v1766 = vpop.xlane.xlu0 %1765
        %1767 = vmax.xlane.f32.xlu0 %v1617
        %v1768 = vpop.xlane.xlu0 %1767
        %1769 = vmax.xlane.f32.xlu0 %v1620
        %v1770 = vpop.xlane.xlu0 %1769
        %1771 = vmax.xlane.f32.xlu0 %v1622
        %v1772 = vpop.xlane.xlu0 %1771
        %1773 = vmax.xlane.f32.xlu0 %v1706
        %v1774 = vpop.xlane.xlu0 %1773
        %1775 = vmax.xlane.f32.xlu0 %v1708
        %v1776 = vpop.xlane.xlu0 %1775
        %1777 = vmax.xlane.f32.xlu0 %v1711
        %v1778 = vpop.xlane.xlu0 %1777
        %1779 = vmax.xlane.f32.xlu0 %v1713
        %v1780 = vpop.xlane.xlu0 %1779
        %1781 = vmax.xlane.f32.xlu0 %v1716
        %v1782 = vpop.xlane.xlu0 %1781
        %1783 = vmax.xlane.f32.xlu0 %v1718
        %v1784 = vpop.xlane.xlu0 %1783
        %1785 = vmax.xlane.f32.xlu0 %v1721
        %v1786 = vpop.xlane.xlu0 %1785
        %1787 = vmax.xlane.f32.xlu0 %v1723
        %v1788 = vpop.xlane.xlu0 %1787
        %v1789 = vsub.f32 %v1403, %v1726
        %v1790 = vsub.f32 %v1405, %v1728
        %v1791 = vsub.f32 %v1408, %v1730
        %v1792 = vsub.f32 %v1410, %v1732
        %v1793 = vsub.f32 %v1413, %v1734
        %v1794 = vsub.f32 %v1415, %v1736
        %v1795 = vsub.f32 %v1418, %v1738
        %v1796 = vsub.f32 %v1420, %v1740
        %v1797 = vsub.f32 %v1504, %v1742
        %v1798 = vsub.f32 %v1506, %v1744
        %v1799 = vsub.f32 %v1509, %v1746
        %v1800 = vsub.f32 %v1511, %v1748
        %v1801 = vsub.f32 %v1514, %v1750
        %v1802 = vsub.f32 %v1516, %v1752
        %v1803 = vsub.f32 %v1519, %v1754
        %v1804 = vsub.f32 %v1521, %v1756
        %v1805 = vsub.f32 %v1605, %v1758
        %v1806 = vsub.f32 %v1607, %v1760
        %v1807 = vsub.f32 %v1610, %v1762
        %v1808 = vsub.f32 %v1612, %v1764
        %v1809 = vsub.f32 %v1615, %v1766
        %v1810 = vsub.f32 %v1617, %v1768
        %v1811 = vsub.f32 %v1620, %v1770
        %v1812 = vsub.f32 %v1622, %v1772
        %v1813 = vsub.f32 %v1706, %v1774
        %v1814 = vsub.f32 %v1708, %v1776
        %v1815 = vsub.f32 %v1711, %v1778
        %v1816 = vsub.f32 %v1713, %v1780
        %v1817 = vsub.f32 %v1716, %v1782
        %v1818 = vsub.f32 %v1718, %v1784
        %v1819 = vsub.f32 %v1721, %v1786
        %v1820 = vsub.f32 %v1723, %v1788
        %v1821 = vmul.f32 %v1789, 1.442695
        %v1822 = vpow.pop %v1821
        %v1823 = vmul.f32 %v1790, 1.442695
        %v1824 = vpow.pop %v1823
        %v1825 = vmul.f32 %v1791, 1.442695
        %v1826 = vpow.pop %v1825
        %v1827 = vmul.f32 %v1792, 1.442695
        %v1828 = vpow.pop %v1827
        %v1829 = vmul.f32 %v1793, 1.442695
        %v1830 = vpow.pop %v1829
        %v1831 = vmul.f32 %v1794, 1.442695
        %v1832 = vpow.pop %v1831
        %v1833 = vmul.f32 %v1795, 1.442695
        %v1834 = vpow.pop %v1833
        %v1835 = vmul.f32 %v1796, 1.442695
        %v1836 = vpow.pop %v1835
        %v1837 = vmul.f32 %v1797, 1.442695
        %v1838 = vpow.pop %v1837
        %v1839 = vmul.f32 %v1798, 1.442695
        %v1840 = vpow.pop %v1839
        %v1841 = vmul.f32 %v1799, 1.442695
        %v1842 = vpow.pop %v1841
        %v1843 = vmul.f32 %v1800, 1.442695
        %v1844 = vpow.pop %v1843
        %v1845 = vmul.f32 %v1801, 1.442695
        %v1846 = vpow.pop %v1845
        %v1847 = vmul.f32 %v1802, 1.442695
        %v1848 = vpow.pop %v1847
        %v1849 = vmul.f32 %v1803, 1.442695
        %v1850 = vpow.pop %v1849
        %v1851 = vmul.f32 %v1804, 1.442695
        %v1852 = vpow.pop %v1851
        %v1853 = vmul.f32 %v1805, 1.442695
        %v1854 = vpow.pop %v1853
        %v1855 = vmul.f32 %v1806, 1.442695
        %v1856 = vpow.pop %v1855
        %v1857 = vmul.f32 %v1807, 1.442695
        %v1858 = vpow.pop %v1857
        %v1859 = vmul.f32 %v1808, 1.442695
        %v1860 = vpow.pop %v1859
        %v1861 = vmul.f32 %v1809, 1.442695
        %v1862 = vpow.pop %v1861
        %v1863 = vmul.f32 %v1810, 1.442695
        %v1864 = vpow.pop %v1863
        %v1865 = vmul.f32 %v1811, 1.442695
        %v1866 = vpow.pop %v1865
        %v1867 = vmul.f32 %v1812, 1.442695
        %v1868 = vpow.pop %v1867
        %v1869 = vmul.f32 %v1813, 1.442695
        %v1870 = vpow.pop %v1869
        %v1871 = vmul.f32 %v1814, 1.442695
        %v1872 = vpow.pop %v1871
        %v1873 = vmul.f32 %v1815, 1.442695
        %v1874 = vpow.pop %v1873
        %v1875 = vmul.f32 %v1816, 1.442695
        %v1876 = vpow.pop %v1875
        %v1877 = vmul.f32 %v1817, 1.442695
        %v1878 = vpow.pop %v1877
        %v1879 = vmul.f32 %v1818, 1.442695
        %v1880 = vpow.pop %v1879
        %v1881 = vmul.f32 %v1819, 1.442695
        %v1882 = vpow.pop %v1881
        %v1883 = vmul.f32 %v1820, 1.442695
        %v1884 = vpow.pop %v1883
        %1885 = vadd.xlane.f32.xlu0 %v1822
        %v1886 = vpop.xlane.xlu0 %1885
        %1887 = vadd.xlane.f32.xlu0 %v1824
        %v1888 = vpop.xlane.xlu0 %1887
        %1889 = vadd.xlane.f32.xlu0 %v1826
        %v1890 = vpop.xlane.xlu0 %1889
        %1891 = vadd.xlane.f32.xlu0 %v1828
        %v1892 = vpop.xlane.xlu0 %1891
        %1893 = vadd.xlane.f32.xlu0 %v1830
        %v1894 = vpop.xlane.xlu0 %1893
        %1895 = vadd.xlane.f32.xlu0 %v1832
        %v1896 = vpop.xlane.xlu0 %1895
        %1897 = vadd.xlane.f32.xlu0 %v1834
        %v1898 = vpop.xlane.xlu0 %1897
        %1899 = vadd.xlane.f32.xlu0 %v1836
        %v1900 = vpop.xlane.xlu0 %1899
        %1901 = vadd.xlane.f32.xlu0 %v1838
        %v1902 = vpop.xlane.xlu0 %1901
        %1903 = vadd.xlane.f32.xlu0 %v1840
        %v1904 = vpop.xlane.xlu0 %1903
        %1905 = vadd.xlane.f32.xlu0 %v1842
        %v1906 = vpop.xlane.xlu0 %1905
        %1907 = vadd.xlane.f32.xlu0 %v1844
        %v1908 = vpop.xlane.xlu0 %1907
        %1909 = vadd.xlane.f32.xlu0 %v1846
        %v1910 = vpop.xlane.xlu0 %1909
        %1911 = vadd.xlane.f32.xlu0 %v1848
        %v1912 = vpop.xlane.xlu0 %1911
        %1913 = vadd.xlane.f32.xlu0 %v1850
        %v1914 = vpop.xlane.xlu0 %1913
        %1915 = vadd.xlane.f32.xlu0 %v1852
        %v1916 = vpop.xlane.xlu0 %1915
        %1917 = vadd.xlane.f32.xlu0 %v1854
        %v1918 = vpop.xlane.xlu0 %1917
        %1919 = vadd.xlane.f32.xlu0 %v1856
        %v1920 = vpop.xlane.xlu0 %1919
        %1921 = vadd.xlane.f32.xlu0 %v1858
        %v1922 = vpop.xlane.xlu0 %1921
        %1923 = vadd.xlane.f32.xlu0 %v1860
        %v1924 = vpop.xlane.xlu0 %1923
        %1925 = vadd.xlane.f32.xlu0 %v1862
        %v1926 = vpop.xlane.xlu0 %1925
        %1927 = vadd.xlane.f32.xlu0 %v1864
        %v1928 = vpop.xlane.xlu0 %1927
        %1929 = vadd.xlane.f32.xlu0 %v1866
        %v1930 = vpop.xlane.xlu0 %1929
        %1931 = vadd.xlane.f32.xlu0 %v1868
        %v1932 = vpop.xlane.xlu0 %1931
        %1933 = vadd.xlane.f32.xlu0 %v1870
        %v1934 = vpop.xlane.xlu0 %1933
        %1935 = vadd.xlane.f32.xlu0 %v1872
        %v1936 = vpop.xlane.xlu0 %1935
        %1937 = vadd.xlane.f32.xlu0 %v1874
        %v1938 = vpop.xlane.xlu0 %1937
        %1939 = vadd.xlane.f32.xlu0 %v1876
        %v1940 = vpop.xlane.xlu0 %1939
        %1941 = vadd.xlane.f32.xlu0 %v1878
        %v1942 = vpop.xlane.xlu0 %1941
        %1943 = vadd.xlane.f32.xlu0 %v1880
        %v1944 = vpop.xlane.xlu0 %1943
        %1945 = vadd.xlane.f32.xlu0 %v1882
        %v1946 = vpop.xlane.xlu0 %1945
        %1947 = vadd.xlane.f32.xlu0 %v1884
        %v1948 = vpop.xlane.xlu0 %1947
        %v1949 = vrcp.pop %v1886
        %v1950 = vmul.f32 %v1886, %v1949
        %v1951 = vsub.f32 1.0, %v1950
        %v1952 = vmul.f32 %v1949, %v1951
        %v1953 = vadd.f32 %v1949, %v1952
        %vm1954 = vweird.f32 %v1886
        %vm1955 = vweird.f32 %v1949
        %vm1956 = vmor %vm1954, %vm1955
        %v1957 = vsel %vm1956, %v1949, %v1953
        %v1958 = vand.u32 2147483647, %v1886
        %vm1959 = vcmp.eq.f32.partialorder %v1958, 8.507059e+37
        %v1960 = vand.u32 %v1886, 2147483648
        %v1961 = vor.u32 1.1754944e-38, %v1960
        %v1962 = vsel %vm1959, %v1961, %v1957
        %v1963 = vrcp.pop %v1888
        %v1964 = vmul.f32 %v1888, %v1963
        %v1965 = vsub.f32 1.0, %v1964
        %v1966 = vmul.f32 %v1963, %v1965
        %v1967 = vadd.f32 %v1963, %v1966
        %vm1968 = vweird.f32 %v1888
        %vm1969 = vweird.f32 %v1963
        %vm1970 = vmor %vm1968, %vm1969
        %v1971 = vsel %vm1970, %v1963, %v1967
        %v1972 = vand.u32 2147483647, %v1888
        %vm1973 = vcmp.eq.f32.partialorder %v1972, 8.507059e+37
        %v1974 = vand.u32 %v1888, 2147483648
        %v1975 = vor.u32 1.1754944e-38, %v1974
        %v1976 = vsel %vm1973, %v1975, %v1971
        %v1977 = vrcp.pop %v1890
        %v1978 = vmul.f32 %v1890, %v1977
        %v1979 = vsub.f32 1.0, %v1978
        %v1980 = vmul.f32 %v1977, %v1979
        %v1981 = vadd.f32 %v1977, %v1980
        %vm1982 = vweird.f32 %v1890
        %vm1983 = vweird.f32 %v1977
        %vm1984 = vmor %vm1982, %vm1983
        %v1985 = vsel %vm1984, %v1977, %v1981
        %v1986 = vand.u32 2147483647, %v1890
        %vm1987 = vcmp.eq.f32.partialorder %v1986, 8.507059e+37
        %v1988 = vand.u32 %v1890, 2147483648
        %v1989 = vor.u32 1.1754944e-38, %v1988
        %v1990 = vsel %vm1987, %v1989, %v1985
        %v1991 = vrcp.pop %v1892
        %v1992 = vmul.f32 %v1892, %v1991
        %v1993 = vsub.f32 1.0, %v1992
        %v1994 = vmul.f32 %v1991, %v1993
        %v1995 = vadd.f32 %v1991, %v1994
        %vm1996 = vweird.f32 %v1892
        %vm1997 = vweird.f32 %v1991
        %vm1998 = vmor %vm1996, %vm1997
        %v1999 = vsel %vm1998, %v1991, %v1995
        %v2000 = vand.u32 2147483647, %v1892
        %vm2001 = vcmp.eq.f32.partialorder %v2000, 8.507059e+37
        %v2002 = vand.u32 %v1892, 2147483648
        %v2003 = vor.u32 1.1754944e-38, %v2002
        %v2004 = vsel %vm2001, %v2003, %v1999
        %v2005 = vrcp.pop %v1894
        %v2006 = vmul.f32 %v1894, %v2005
        %v2007 = vsub.f32 1.0, %v2006
        %v2008 = vmul.f32 %v2005, %v2007
        %v2009 = vadd.f32 %v2005, %v2008
        %vm2010 = vweird.f32 %v1894
        %vm2011 = vweird.f32 %v2005
        %vm2012 = vmor %vm2010, %vm2011
        %v2013 = vsel %vm2012, %v2005, %v2009
        %v2014 = vand.u32 2147483647, %v1894
        %vm2015 = vcmp.eq.f32.partialorder %v2014, 8.507059e+37
        %v2016 = vand.u32 %v1894, 2147483648
        %v2017 = vor.u32 1.1754944e-38, %v2016
        %v2018 = vsel %vm2015, %v2017, %v2013
        %v2019 = vrcp.pop %v1896
        %v2020 = vmul.f32 %v1896, %v2019
        %v2021 = vsub.f32 1.0, %v2020
        %v2022 = vmul.f32 %v2019, %v2021
        %v2023 = vadd.f32 %v2019, %v2022
        %vm2024 = vweird.f32 %v1896
        %vm2025 = vweird.f32 %v2019
        %vm2026 = vmor %vm2024, %vm2025
        %v2027 = vsel %vm2026, %v2019, %v2023
        %v2028 = vand.u32 2147483647, %v1896
        %vm2029 = vcmp.eq.f32.partialorder %v2028, 8.507059e+37
        %v2030 = vand.u32 %v1896, 2147483648
        %v2031 = vor.u32 1.1754944e-38, %v2030
        %v2032 = vsel %vm2029, %v2031, %v2027
        %v2033 = vrcp.pop %v1898
        %v2034 = vmul.f32 %v1898, %v2033
        %v2035 = vsub.f32 1.0, %v2034
        %v2036 = vmul.f32 %v2033, %v2035
        %v2037 = vadd.f32 %v2033, %v2036
        %vm2038 = vweird.f32 %v1898
        %vm2039 = vweird.f32 %v2033
        %vm2040 = vmor %vm2038, %vm2039
        %v2041 = vsel %vm2040, %v2033, %v2037
        %v2042 = vand.u32 2147483647, %v1898
        %vm2043 = vcmp.eq.f32.partialorder %v2042, 8.507059e+37
        %v2044 = vand.u32 %v1898, 2147483648
        %v2045 = vor.u32 1.1754944e-38, %v2044
        %v2046 = vsel %vm2043, %v2045, %v2041
        %v2047 = vrcp.pop %v1900
        %v2048 = vmul.f32 %v1900, %v2047
        %v2049 = vsub.f32 1.0, %v2048
        %v2050 = vmul.f32 %v2047, %v2049
        %v2051 = vadd.f32 %v2047, %v2050
        %vm2052 = vweird.f32 %v1900
        %vm2053 = vweird.f32 %v2047
        %vm2054 = vmor %vm2052, %vm2053
        %v2055 = vsel %vm2054, %v2047, %v2051
        %v2056 = vand.u32 2147483647, %v1900
        %vm2057 = vcmp.eq.f32.partialorder %v2056, 8.507059e+37
        %v2058 = vand.u32 %v1900, 2147483648
        %v2059 = vor.u32 1.1754944e-38, %v2058
        %v2060 = vsel %vm2057, %v2059, %v2055
        %v2061 = vrcp.pop %v1902
        %v2062 = vmul.f32 %v1902, %v2061
        %v2063 = vsub.f32 1.0, %v2062
        %v2064 = vmul.f32 %v2061, %v2063
        %v2065 = vadd.f32 %v2061, %v2064
        %vm2066 = vweird.f32 %v1902
        %vm2067 = vweird.f32 %v2061
        %vm2068 = vmor %vm2066, %vm2067
        %v2069 = vsel %vm2068, %v2061, %v2065
        %v2070 = vand.u32 2147483647, %v1902
        %vm2071 = vcmp.eq.f32.partialorder %v2070, 8.507059e+37
        %v2072 = vand.u32 %v1902, 2147483648
        %v2073 = vor.u32 1.1754944e-38, %v2072
        %v2074 = vsel %vm2071, %v2073, %v2069
        %v2075 = vrcp.pop %v1904
        %v2076 = vmul.f32 %v1904, %v2075
        %v2077 = vsub.f32 1.0, %v2076
        %v2078 = vmul.f32 %v2075, %v2077
        %v2079 = vadd.f32 %v2075, %v2078
        %vm2080 = vweird.f32 %v1904
        %vm2081 = vweird.f32 %v2075
        %vm2082 = vmor %vm2080, %vm2081
        %v2083 = vsel %vm2082, %v2075, %v2079
        %v2084 = vand.u32 2147483647, %v1904
        %vm2085 = vcmp.eq.f32.partialorder %v2084, 8.507059e+37
        %v2086 = vand.u32 %v1904, 2147483648
        %v2087 = vor.u32 1.1754944e-38, %v2086
        %v2088 = vsel %vm2085, %v2087, %v2083
        %v2089 = vrcp.pop %v1906
        %v2090 = vmul.f32 %v1906, %v2089
        %v2091 = vsub.f32 1.0, %v2090
        %v2092 = vmul.f32 %v2089, %v2091
        %v2093 = vadd.f32 %v2089, %v2092
        %vm2094 = vweird.f32 %v1906
        %vm2095 = vweird.f32 %v2089
        %vm2096 = vmor %vm2094, %vm2095
        %v2097 = vsel %vm2096, %v2089, %v2093
        %v2098 = vand.u32 2147483647, %v1906
        %vm2099 = vcmp.eq.f32.partialorder %v2098, 8.507059e+37
        %v2100 = vand.u32 %v1906, 2147483648
        %v2101 = vor.u32 1.1754944e-38, %v2100
        %v2102 = vsel %vm2099, %v2101, %v2097
        %v2103 = vrcp.pop %v1908
        %v2104 = vmul.f32 %v1908, %v2103
        %v2105 = vsub.f32 1.0, %v2104
        %v2106 = vmul.f32 %v2103, %v2105
        %v2107 = vadd.f32 %v2103, %v2106
        %vm2108 = vweird.f32 %v1908
        %vm2109 = vweird.f32 %v2103
        %vm2110 = vmor %vm2108, %vm2109
        %v2111 = vsel %vm2110, %v2103, %v2107
        %v2112 = vand.u32 2147483647, %v1908
        %vm2113 = vcmp.eq.f32.partialorder %v2112, 8.507059e+37
        %v2114 = vand.u32 %v1908, 2147483648
        %v2115 = vor.u32 1.1754944e-38, %v2114
        %v2116 = vsel %vm2113, %v2115, %v2111
        %v2117 = vrcp.pop %v1910
        %v2118 = vmul.f32 %v1910, %v2117
        %v2119 = vsub.f32 1.0, %v2118
        %v2120 = vmul.f32 %v2117, %v2119
        %v2121 = vadd.f32 %v2117, %v2120
        %vm2122 = vweird.f32 %v1910
        %vm2123 = vweird.f32 %v2117
        %vm2124 = vmor %vm2122, %vm2123
        %v2125 = vsel %vm2124, %v2117, %v2121
        %v2126 = vand.u32 2147483647, %v1910
        %vm2127 = vcmp.eq.f32.partialorder %v2126, 8.507059e+37
        %v2128 = vand.u32 %v1910, 2147483648
        %v2129 = vor.u32 1.1754944e-38, %v2128
        %v2130 = vsel %vm2127, %v2129, %v2125
        %v2131 = vrcp.pop %v1912
        %v2132 = vmul.f32 %v1912, %v2131
        %v2133 = vsub.f32 1.0, %v2132
        %v2134 = vmul.f32 %v2131, %v2133
        %v2135 = vadd.f32 %v2131, %v2134
        %vm2136 = vweird.f32 %v1912
        %vm2137 = vweird.f32 %v2131
        %vm2138 = vmor %vm2136, %vm2137
        %v2139 = vsel %vm2138, %v2131, %v2135
        %v2140 = vand.u32 2147483647, %v1912
        %vm2141 = vcmp.eq.f32.partialorder %v2140, 8.507059e+37
        %v2142 = vand.u32 %v1912, 2147483648
        %v2143 = vor.u32 1.1754944e-38, %v2142
        %v2144 = vsel %vm2141, %v2143, %v2139
        %v2145 = vrcp.pop %v1914
        %v2146 = vmul.f32 %v1914, %v2145
        %v2147 = vsub.f32 1.0, %v2146
        %v2148 = vmul.f32 %v2145, %v2147
        %v2149 = vadd.f32 %v2145, %v2148
        %vm2150 = vweird.f32 %v1914
        %vm2151 = vweird.f32 %v2145
        %vm2152 = vmor %vm2150, %vm2151
        %v2153 = vsel %vm2152, %v2145, %v2149
        %v2154 = vand.u32 2147483647, %v1914
        %vm2155 = vcmp.eq.f32.partialorder %v2154, 8.507059e+37
        %v2156 = vand.u32 %v1914, 2147483648
        %v2157 = vor.u32 1.1754944e-38, %v2156
        %v2158 = vsel %vm2155, %v2157, %v2153
        %v2159 = vrcp.pop %v1916
        %v2160 = vmul.f32 %v1916, %v2159
        %v2161 = vsub.f32 1.0, %v2160
        %v2162 = vmul.f32 %v2159, %v2161
        %v2163 = vadd.f32 %v2159, %v2162
        %vm2164 = vweird.f32 %v1916
        %vm2165 = vweird.f32 %v2159
        %vm2166 = vmor %vm2164, %vm2165
        %v2167 = vsel %vm2166, %v2159, %v2163
        %v2168 = vand.u32 2147483647, %v1916
        %vm2169 = vcmp.eq.f32.partialorder %v2168, 8.507059e+37
        %v2170 = vand.u32 %v1916, 2147483648
        %v2171 = vor.u32 1.1754944e-38, %v2170
        %v2172 = vsel %vm2169, %v2171, %v2167
        %v2173 = vrcp.pop %v1918
        %v2174 = vmul.f32 %v1918, %v2173
        %v2175 = vsub.f32 1.0, %v2174
        %v2176 = vmul.f32 %v2173, %v2175
        %v2177 = vadd.f32 %v2173, %v2176
        %vm2178 = vweird.f32 %v1918
        %vm2179 = vweird.f32 %v2173
        %vm2180 = vmor %vm2178, %vm2179
        %v2181 = vsel %vm2180, %v2173, %v2177
        %v2182 = vand.u32 2147483647, %v1918
        %vm2183 = vcmp.eq.f32.partialorder %v2182, 8.507059e+37
        %v2184 = vand.u32 %v1918, 2147483648
        %v2185 = vor.u32 1.1754944e-38, %v2184
        %v2186 = vsel %vm2183, %v2185, %v2181
        %v2187 = vrcp.pop %v1920
        %v2188 = vmul.f32 %v1920, %v2187
        %v2189 = vsub.f32 1.0, %v2188
        %v2190 = vmul.f32 %v2187, %v2189
        %v2191 = vadd.f32 %v2187, %v2190
        %vm2192 = vweird.f32 %v1920
        %vm2193 = vweird.f32 %v2187
        %vm2194 = vmor %vm2192, %vm2193
        %v2195 = vsel %vm2194, %v2187, %v2191
        %v2196 = vand.u32 2147483647, %v1920
        %vm2197 = vcmp.eq.f32.partialorder %v2196, 8.507059e+37
        %v2198 = vand.u32 %v1920, 2147483648
        %v2199 = vor.u32 1.1754944e-38, %v2198
        %v2200 = vsel %vm2197, %v2199, %v2195
        %v2201 = vrcp.pop %v1922
        %v2202 = vmul.f32 %v1922, %v2201
        %v2203 = vsub.f32 1.0, %v2202
        %v2204 = vmul.f32 %v2201, %v2203
        %v2205 = vadd.f32 %v2201, %v2204
        %vm2206 = vweird.f32 %v1922
        %vm2207 = vweird.f32 %v2201
        %vm2208 = vmor %vm2206, %vm2207
        %v2209 = vsel %vm2208, %v2201, %v2205
        %v2210 = vand.u32 2147483647, %v1922
        %vm2211 = vcmp.eq.f32.partialorder %v2210, 8.507059e+37
        %v2212 = vand.u32 %v1922, 2147483648
        %v2213 = vor.u32 1.1754944e-38, %v2212
        %v2214 = vsel %vm2211, %v2213, %v2209
        %v2215 = vrcp.pop %v1924
        %v2216 = vmul.f32 %v1924, %v2215
        %v2217 = vsub.f32 1.0, %v2216
        %v2218 = vmul.f32 %v2215, %v2217
        %v2219 = vadd.f32 %v2215, %v2218
        %vm2220 = vweird.f32 %v1924
        %vm2221 = vweird.f32 %v2215
        %vm2222 = vmor %vm2220, %vm2221
        %v2223 = vsel %vm2222, %v2215, %v2219
        %v2224 = vand.u32 2147483647, %v1924
        %vm2225 = vcmp.eq.f32.partialorder %v2224, 8.507059e+37
        %v2226 = vand.u32 %v1924, 2147483648
        %v2227 = vor.u32 1.1754944e-38, %v2226
        %v2228 = vsel %vm2225, %v2227, %v2223
        %v2229 = vrcp.pop %v1926
        %v2230 = vmul.f32 %v1926, %v2229
        %v2231 = vsub.f32 1.0, %v2230
        %v2232 = vmul.f32 %v2229, %v2231
        %v2233 = vadd.f32 %v2229, %v2232
        %vm2234 = vweird.f32 %v1926
        %vm2235 = vweird.f32 %v2229
        %vm2236 = vmor %vm2234, %vm2235
        %v2237 = vsel %vm2236, %v2229, %v2233
        %v2238 = vand.u32 2147483647, %v1926
        %vm2239 = vcmp.eq.f32.partialorder %v2238, 8.507059e+37
        %v2240 = vand.u32 %v1926, 2147483648
        %v2241 = vor.u32 1.1754944e-38, %v2240
        %v2242 = vsel %vm2239, %v2241, %v2237
        %v2243 = vrcp.pop %v1928
        %v2244 = vmul.f32 %v1928, %v2243
        %v2245 = vsub.f32 1.0, %v2244
        %v2246 = vmul.f32 %v2243, %v2245
        %v2247 = vadd.f32 %v2243, %v2246
        %vm2248 = vweird.f32 %v1928
        %vm2249 = vweird.f32 %v2243
        %vm2250 = vmor %vm2248, %vm2249
        %v2251 = vsel %vm2250, %v2243, %v2247
        %v2252 = vand.u32 2147483647, %v1928
        %vm2253 = vcmp.eq.f32.partialorder %v2252, 8.507059e+37
        %v2254 = vand.u32 %v1928, 2147483648
        %v2255 = vor.u32 1.1754944e-38, %v2254
        %v2256 = vsel %vm2253, %v2255, %v2251
        %v2257 = vrcp.pop %v1930
        %v2258 = vmul.f32 %v1930, %v2257
        %v2259 = vsub.f32 1.0, %v2258
        %v2260 = vmul.f32 %v2257, %v2259
        %v2261 = vadd.f32 %v2257, %v2260
        %vm2262 = vweird.f32 %v1930
        %vm2263 = vweird.f32 %v2257
        %vm2264 = vmor %vm2262, %vm2263
        %v2265 = vsel %vm2264, %v2257, %v2261
        %v2266 = vand.u32 2147483647, %v1930
        %vm2267 = vcmp.eq.f32.partialorder %v2266, 8.507059e+37
        %v2268 = vand.u32 %v1930, 2147483648
        %v2269 = vor.u32 1.1754944e-38, %v2268
        %v2270 = vsel %vm2267, %v2269, %v2265
        %v2271 = vrcp.pop %v1932
        %v2272 = vmul.f32 %v1932, %v2271
        %v2273 = vsub.f32 1.0, %v2272
        %v2274 = vmul.f32 %v2271, %v2273
        %v2275 = vadd.f32 %v2271, %v2274
        %vm2276 = vweird.f32 %v1932
        %vm2277 = vweird.f32 %v2271
        %vm2278 = vmor %vm2276, %vm2277
        %v2279 = vsel %vm2278, %v2271, %v2275
        %v2280 = vand.u32 2147483647, %v1932
        %vm2281 = vcmp.eq.f32.partialorder %v2280, 8.507059e+37
        %v2282 = vand.u32 %v1932, 2147483648
        %v2283 = vor.u32 1.1754944e-38, %v2282
        %v2284 = vsel %vm2281, %v2283, %v2279
        %v2285 = vrcp.pop %v1934
        %v2286 = vmul.f32 %v1934, %v2285
        %v2287 = vsub.f32 1.0, %v2286
        %v2288 = vmul.f32 %v2285, %v2287
        %v2289 = vadd.f32 %v2285, %v2288
        %vm2290 = vweird.f32 %v1934
        %vm2291 = vweird.f32 %v2285
        %vm2292 = vmor %vm2290, %vm2291
        %v2293 = vsel %vm2292, %v2285, %v2289
        %v2294 = vand.u32 2147483647, %v1934
        %vm2295 = vcmp.eq.f32.partialorder %v2294, 8.507059e+37
        %v2296 = vand.u32 %v1934, 2147483648
        %v2297 = vor.u32 1.1754944e-38, %v2296
        %v2298 = vsel %vm2295, %v2297, %v2293
        %v2299 = vrcp.pop %v1936
        %v2300 = vmul.f32 %v1936, %v2299
        %v2301 = vsub.f32 1.0, %v2300
        %v2302 = vmul.f32 %v2299, %v2301
        %v2303 = vadd.f32 %v2299, %v2302
        %vm2304 = vweird.f32 %v1936
        %vm2305 = vweird.f32 %v2299
        %vm2306 = vmor %vm2304, %vm2305
        %v2307 = vsel %vm2306, %v2299, %v2303
        %v2308 = vand.u32 2147483647, %v1936
        %vm2309 = vcmp.eq.f32.partialorder %v2308, 8.507059e+37
        %v2310 = vand.u32 %v1936, 2147483648
        %v2311 = vor.u32 1.1754944e-38, %v2310
        %v2312 = vsel %vm2309, %v2311, %v2307
        %v2313 = vrcp.pop %v1938
        %v2314 = vmul.f32 %v1938, %v2313
        %v2315 = vsub.f32 1.0, %v2314
        %v2316 = vmul.f32 %v2313, %v2315
        %v2317 = vadd.f32 %v2313, %v2316
        %vm2318 = vweird.f32 %v1938
        %vm2319 = vweird.f32 %v2313
        %vm2320 = vmor %vm2318, %vm2319
        %v2321 = vsel %vm2320, %v2313, %v2317
        %v2322 = vand.u32 2147483647, %v1938
        %vm2323 = vcmp.eq.f32.partialorder %v2322, 8.507059e+37
        %v2324 = vand.u32 %v1938, 2147483648
        %v2325 = vor.u32 1.1754944e-38, %v2324
        %v2326 = vsel %vm2323, %v2325, %v2321
        %v2327 = vrcp.pop %v1940
        %v2328 = vmul.f32 %v1940, %v2327
        %v2329 = vsub.f32 1.0, %v2328
        %v2330 = vmul.f32 %v2327, %v2329
        %v2331 = vadd.f32 %v2327, %v2330
        %vm2332 = vweird.f32 %v1940
        %vm2333 = vweird.f32 %v2327
        %vm2334 = vmor %vm2332, %vm2333
        %v2335 = vsel %vm2334, %v2327, %v2331
        %v2336 = vand.u32 2147483647, %v1940
        %vm2337 = vcmp.eq.f32.partialorder %v2336, 8.507059e+37
        %v2338 = vand.u32 %v1940, 2147483648
        %v2339 = vor.u32 1.1754944e-38, %v2338
        %v2340 = vsel %vm2337, %v2339, %v2335
        %v2341 = vrcp.pop %v1942
        %v2342 = vmul.f32 %v1942, %v2341
        %v2343 = vsub.f32 1.0, %v2342
        %v2344 = vmul.f32 %v2341, %v2343
        %v2345 = vadd.f32 %v2341, %v2344
        %vm2346 = vweird.f32 %v1942
        %vm2347 = vweird.f32 %v2341
        %vm2348 = vmor %vm2346, %vm2347
        %v2349 = vsel %vm2348, %v2341, %v2345
        %v2350 = vand.u32 2147483647, %v1942
        %vm2351 = vcmp.eq.f32.partialorder %v2350, 8.507059e+37
        %v2352 = vand.u32 %v1942, 2147483648
        %v2353 = vor.u32 1.1754944e-38, %v2352
        %v2354 = vsel %vm2351, %v2353, %v2349
        %v2355 = vrcp.pop %v1944
        %v2356 = vmul.f32 %v1944, %v2355
        %v2357 = vsub.f32 1.0, %v2356
        %v2358 = vmul.f32 %v2355, %v2357
        %v2359 = vadd.f32 %v2355, %v2358
        %vm2360 = vweird.f32 %v1944
        %vm2361 = vweird.f32 %v2355
        %vm2362 = vmor %vm2360, %vm2361
        %v2363 = vsel %vm2362, %v2355, %v2359
        %v2364 = vand.u32 2147483647, %v1944
        %vm2365 = vcmp.eq.f32.partialorder %v2364, 8.507059e+37
        %v2366 = vand.u32 %v1944, 2147483648
        %v2367 = vor.u32 1.1754944e-38, %v2366
        %v2368 = vsel %vm2365, %v2367, %v2363
        %v2369 = vrcp.pop %v1946
        %v2370 = vmul.f32 %v1946, %v2369
        %v2371 = vsub.f32 1.0, %v2370
        %v2372 = vmul.f32 %v2369, %v2371
        %v2373 = vadd.f32 %v2369, %v2372
        %vm2374 = vweird.f32 %v1946
        %vm2375 = vweird.f32 %v2369
        %vm2376 = vmor %vm2374, %vm2375
        %v2377 = vsel %vm2376, %v2369, %v2373
        %v2378 = vand.u32 2147483647, %v1946
        %vm2379 = vcmp.eq.f32.partialorder %v2378, 8.507059e+37
        %v2380 = vand.u32 %v1946, 2147483648
        %v2381 = vor.u32 1.1754944e-38, %v2380
        %v2382 = vsel %vm2379, %v2381, %v2377
        %v2383 = vrcp.pop %v1948
        %v2384 = vmul.f32 %v1948, %v2383
        %v2385 = vsub.f32 1.0, %v2384
        %v2386 = vmul.f32 %v2383, %v2385
        %v2387 = vadd.f32 %v2383, %v2386
        %vm2388 = vweird.f32 %v1948
        %vm2389 = vweird.f32 %v2383
        %vm2390 = vmor %vm2388, %vm2389
        %v2391 = vsel %vm2390, %v2383, %v2387
        %v2392 = vand.u32 2147483647, %v1948
        %vm2393 = vcmp.eq.f32.partialorder %v2392, 8.507059e+37
        %v2394 = vand.u32 %v1948, 2147483648
        %v2395 = vor.u32 1.1754944e-38, %v2394
        %v2396 = vsel %vm2393, %v2395, %v2391
        %v2397 = vmul.f32 %v1822, %v1962
        %v2398 = vmul.f32 %v1824, %v1976
        %v2399 = vmul.f32 %v1826, %v1990
        %v2400 = vmul.f32 %v1828, %v2004
        %v2401 = vmul.f32 %v1830, %v2018
        %v2402 = vmul.f32 %v1832, %v2032
        %v2403 = vmul.f32 %v1834, %v2046
        %v2404 = vmul.f32 %v1836, %v2060
        %v2405 = vmul.f32 %v1838, %v2074
        %v2406 = vmul.f32 %v1840, %v2088
        %v2407 = vmul.f32 %v1842, %v2102
        %v2408 = vmul.f32 %v1844, %v2116
        %v2409 = vmul.f32 %v1846, %v2130
        %v2410 = vmul.f32 %v1848, %v2144
        %v2411 = vmul.f32 %v1850, %v2158
        %v2412 = vmul.f32 %v1852, %v2172
        %v2413 = vmul.f32 %v1854, %v2186
        %v2414 = vmul.f32 %v1856, %v2200
        %v2415 = vmul.f32 %v1858, %v2214
        %v2416 = vmul.f32 %v1860, %v2228
        %v2417 = vmul.f32 %v1862, %v2242
        %v2418 = vmul.f32 %v1864, %v2256
        %v2419 = vmul.f32 %v1866, %v2270
        %v2420 = vmul.f32 %v1868, %v2284
        %v2421 = vmul.f32 %v1870, %v2298
        %v2422 = vmul.f32 %v1872, %v2312
        %v2423 = vmul.f32 %v1874, %v2326
        %v2424 = vmul.f32 %v1876, %v2340
        %v2425 = vmul.f32 %v1878, %v2354
        %v2426 = vmul.f32 %v1880, %v2368
        %v2427 = vmul.f32 %v1882, %v2382
        %v2428 = vmul.f32 %v1884, %v2396
        %v2429 = vpack.c.bf16 %v2397, %v2397
        %v2430 = vpack.c.bf16 %v2398, %v2398
        %v2431 = vpack.c.bf16 %v2399, %v2399
        %v2432 = vpack.c.bf16 %v2400, %v2400
        %v2433 = vpack.c.bf16 %v2401, %v2401
        %v2434 = vpack.c.bf16 %v2402, %v2402
        %v2435 = vpack.c.bf16 %v2403, %v2403
        %v2436 = vpack.c.bf16 %v2404, %v2404
        %v2437 = vpack.c.bf16 %v2405, %v2405
        %v2438 = vpack.c.bf16 %v2406, %v2406
        %v2439 = vpack.c.bf16 %v2407, %v2407
        %v2440 = vpack.c.bf16 %v2408, %v2408
        %v2441 = vpack.c.bf16 %v2409, %v2409
        %v2442 = vpack.c.bf16 %v2410, %v2410
        %v2443 = vpack.c.bf16 %v2411, %v2411
        %v2444 = vpack.c.bf16 %v2412, %v2412
        %v2445 = vpack.c.bf16 %v2413, %v2413
        %v2446 = vpack.c.bf16 %v2414, %v2414
        %v2447 = vpack.c.bf16 %v2415, %v2415
        %v2448 = vpack.c.bf16 %v2416, %v2416
        %v2449 = vpack.c.bf16 %v2417, %v2417
        %v2450 = vpack.c.bf16 %v2418, %v2418
        %v2451 = vpack.c.bf16 %v2419, %v2419
        %v2452 = vpack.c.bf16 %v2420, %v2420
        %v2453 = vpack.c.bf16 %v2421, %v2421
        %v2454 = vpack.c.bf16 %v2422, %v2422
        %v2455 = vpack.c.bf16 %v2423, %v2423
        %v2456 = vpack.c.bf16 %v2424, %v2424
        %v2457 = vpack.c.bf16 %v2425, %v2425
        %v2458 = vpack.c.bf16 %v2426, %v2426
        %v2459 = vpack.c.bf16 %v2427, %v2427
        %v2460 = vpack.c.bf16 %v2428, %v2428
        %v2469 = vunpack.c.l.b16 %v2429
        %v2470 = vunpack.c.l.b16 %v2430
        %v2471 = vunpack.c.l.b16 %v2431
        %v2472 = vunpack.c.l.b16 %v2432
        %v2473 = vunpack.c.l.b16 %v2433
        %v2474 = vunpack.c.l.b16 %v2434
        %v2475 = vunpack.c.l.b16 %v2435
        %v2476 = vunpack.c.l.b16 %v2436
        %v2477 = vpack.c.b16 %v2470, %v2469
        %v2478 = vpack.c.b16 %v2472, %v2471
        %v2479 = vpack.c.b16 %v2474, %v2473
        %v2480 = vpack.c.b16 %v2476, %v2475
        %v2485 = vunpack.c.l.b16 %v1024
        %v2486 = vunpack.c.l.b16 %v1025
        %v2487 = vunpack.c.l.b16 %v1026
        %v2488 = vunpack.c.l.b16 %v1027
        %v2489 = vunpack.c.l.b16 %v1028
        %v2490 = vunpack.c.l.b16 %v1029
        %v2491 = vunpack.c.l.b16 %v1030
        %v2492 = vunpack.c.l.b16 %v1031
        %v2493 = vunpack.c.l.b16 %v1032
        %v2494 = vunpack.c.l.b16 %v1033
        %v2495 = vunpack.c.l.b16 %v1034
        %v2496 = vunpack.c.l.b16 %v1035
        %v2497 = vunpack.c.l.b16 %v1036
        %v2498 = vunpack.c.l.b16 %v1037
        %v2499 = vunpack.c.l.b16 %v1038
        %v2500 = vunpack.c.l.b16 %v1039
        %v2501 = vpack.c.b16 %v2486, %v2485
        %v2502 = vpack.c.b16 %v2488, %v2487
        %v2503 = vpack.c.b16 %v2490, %v2489
        %v2504 = vpack.c.b16 %v2492, %v2491
        %v2505 = vpack.c.b16 %v2494, %v2493
        %v2506 = vpack.c.b16 %v2496, %v2495
        %v2507 = vpack.c.b16 %v2498, %v2497
        %v2508 = vpack.c.b16 %v2500, %v2499
        %2517 = vmatpush.bf16.msra.mxu0 %v2508
        %2518 = vmatpush.bf16.msra.mxu0 %v2507
        %2519 = vmatpush.bf16.msra.mxu0 %v2506
        %2520 = vmatpush.bf16.msra.mxu0 %v2505
        %2521 = vmatpush.bf16.msra.mxu0 %v2504
        %2522 = vmatpush.bf16.msra.mxu0 %v2503
        %2523 = vmatpush.bf16.msra.mxu0 %v2502
        %2524 = vmatpush.bf16.msra.mxu0 %v2501
        %2525 = vmatmul.bf16.gmra.mxu0 %v2477
        %v2526 = vpop.f32.mrf.mxu0
        %v2527 = vadd.f32 0.0, %v2526
        %v2528 = vpop.f32.mrf.mxu0
        %v2529 = vadd.f32 0.0, %v2528
        %2530 = vmatmul.bf16.gmra.mxu0 %v2478
        %v2531 = vpop.f32.mrf.mxu0
        %v2532 = vadd.f32 0.0, %v2531
        %v2533 = vpop.f32.mrf.mxu0
        %v2534 = vadd.f32 0.0, %v2533
        %2535 = vmatmul.bf16.gmra.mxu0 %v2479
        %v2536 = vpop.f32.mrf.mxu0
        %v2537 = vadd.f32 0.0, %v2536
        %v2538 = vpop.f32.mrf.mxu0
        %v2539 = vadd.f32 0.0, %v2538
        %2540 = vmatmul.bf16.gmra.mxu0 %v2480
        %v2541 = vpop.f32.mrf.mxu0
        %v2542 = vadd.f32 0.0, %v2541
        %v2543 = vpop.f32.mrf.mxu0
        %v2544 = vadd.f32 0.0, %v2543
        %2545 = vdwg.mxu0
        %v2554 = vunpack.c.l.b16 %v2437
        %v2555 = vunpack.c.l.b16 %v2438
        %v2556 = vunpack.c.l.b16 %v2439
        %v2557 = vunpack.c.l.b16 %v2440
        %v2558 = vunpack.c.l.b16 %v2441
        %v2559 = vunpack.c.l.b16 %v2442
        %v2560 = vunpack.c.l.b16 %v2443
        %v2561 = vunpack.c.l.b16 %v2444
        %v2562 = vpack.c.b16 %v2555, %v2554
        %v2563 = vpack.c.b16 %v2557, %v2556
        %v2564 = vpack.c.b16 %v2559, %v2558
        %v2565 = vpack.c.b16 %v2561, %v2560
        %v2570 = vunpack.c.l.b16 %v1225
        %v2571 = vunpack.c.l.b16 %v1227
        %v2572 = vunpack.c.l.b16 %v1229
        %v2573 = vunpack.c.l.b16 %v1231
        %v2574 = vunpack.c.l.b16 %v1233
        %v2575 = vunpack.c.l.b16 %v1235
        %v2576 = vunpack.c.l.b16 %v1237
        %v2577 = vunpack.c.l.b16 %v1239
        %v2578 = vunpack.c.l.b16 %v1241
        %v2579 = vunpack.c.l.b16 %v1243
        %v2580 = vunpack.c.l.b16 %v1245
        %v2581 = vunpack.c.l.b16 %v1247
        %v2582 = vunpack.c.l.b16 %v1249
        %v2583 = vunpack.c.l.b16 %v1251
        %v2584 = vunpack.c.l.b16 %v1253
        %v2585 = vunpack.c.l.b16 %v1255
        %v2586 = vpack.c.b16 %v2571, %v2570
        %v2587 = vpack.c.b16 %v2573, %v2572
        %v2588 = vpack.c.b16 %v2575, %v2574
        %v2589 = vpack.c.b16 %v2577, %v2576
        %v2590 = vpack.c.b16 %v2579, %v2578
        %v2591 = vpack.c.b16 %v2581, %v2580
        %v2592 = vpack.c.b16 %v2583, %v2582
        %v2593 = vpack.c.b16 %v2585, %v2584
        %2602 = vmatpush.bf16.msra.mxu0 %v2593
        %2603 = vmatpush.bf16.msra.mxu0 %v2592
        %2604 = vmatpush.bf16.msra.mxu0 %v2591
        %2605 = vmatpush.bf16.msra.mxu0 %v2590
        %2606 = vmatpush.bf16.msra.mxu0 %v2589
        %2607 = vmatpush.bf16.msra.mxu0 %v2588
        %2608 = vmatpush.bf16.msra.mxu0 %v2587
        %2609 = vmatpush.bf16.msra.mxu0 %v2586
        %2610 = vmatmul.bf16.gmra.mxu0 %v2562
        %v2611 = vpop.f32.mrf.mxu0
        %v2612 = vadd.f32 0.0, %v2611
        %v2613 = vpop.f32.mrf.mxu0
        %v2614 = vadd.f32 0.0, %v2613
        %2615 = vmatmul.bf16.gmra.mxu0 %v2563
        %v2616 = vpop.f32.mrf.mxu0
        %v2617 = vadd.f32 0.0, %v2616
        %v2618 = vpop.f32.mrf.mxu0
        %v2619 = vadd.f32 0.0, %v2618
        %2620 = vmatmul.bf16.gmra.mxu0 %v2564
        %v2621 = vpop.f32.mrf.mxu0
        %v2622 = vadd.f32 0.0, %v2621
        %v2623 = vpop.f32.mrf.mxu0
        %v2624 = vadd.f32 0.0, %v2623
        %2625 = vmatmul.bf16.gmra.mxu0 %v2565
        %v2626 = vpop.f32.mrf.mxu0
        %v2627 = vadd.f32 0.0, %v2626
        %v2628 = vpop.f32.mrf.mxu0
        %v2629 = vadd.f32 0.0, %v2628
        %2630 = vdwg.mxu0
        %v2639 = vunpack.c.l.b16 %v2445
        %v2640 = vunpack.c.l.b16 %v2446
        %v2641 = vunpack.c.l.b16 %v2447
        %v2642 = vunpack.c.l.b16 %v2448
        %v2643 = vunpack.c.l.b16 %v2449
        %v2644 = vunpack.c.l.b16 %v2450
        %v2645 = vunpack.c.l.b16 %v2451
        %v2646 = vunpack.c.l.b16 %v2452
        %v2647 = vpack.c.b16 %v2640, %v2639
        %v2648 = vpack.c.b16 %v2642, %v2641
        %v2649 = vpack.c.b16 %v2644, %v2643
        %v2650 = vpack.c.b16 %v2646, %v2645
        %v2655 = vunpack.c.l.b16 %v1257
        %v2656 = vunpack.c.l.b16 %v1259
        %v2657 = vunpack.c.l.b16 %v1261
        %v2658 = vunpack.c.l.b16 %v1263
        %v2659 = vunpack.c.l.b16 %v1265
        %v2660 = vunpack.c.l.b16 %v1267
        %v2661 = vunpack.c.l.b16 %v1269
        %v2662 = vunpack.c.l.b16 %v1271
        %v2663 = vunpack.c.l.b16 %v1273
        %v2664 = vunpack.c.l.b16 %v1275
        %v2665 = vunpack.c.l.b16 %v1277
        %v2666 = vunpack.c.l.b16 %v1279
        %v2667 = vunpack.c.l.b16 %v1281
        %v2668 = vunpack.c.l.b16 %v1283
        %v2669 = vunpack.c.l.b16 %v1285
        %v2670 = vunpack.c.l.b16 %v1287
        %v2671 = vpack.c.b16 %v2656, %v2655
        %v2672 = vpack.c.b16 %v2658, %v2657
        %v2673 = vpack.c.b16 %v2660, %v2659
        %v2674 = vpack.c.b16 %v2662, %v2661
        %v2675 = vpack.c.b16 %v2664, %v2663
        %v2676 = vpack.c.b16 %v2666, %v2665
        %v2677 = vpack.c.b16 %v2668, %v2667
        %v2678 = vpack.c.b16 %v2670, %v2669
        %2687 = vmatpush.bf16.msra.mxu0 %v2678
        %2688 = vmatpush.bf16.msra.mxu0 %v2677
        %2689 = vmatpush.bf16.msra.mxu0 %v2676
        %2690 = vmatpush.bf16.msra.mxu0 %v2675
        %2691 = vmatpush.bf16.msra.mxu0 %v2674
        %2692 = vmatpush.bf16.msra.mxu0 %v2673
        %2693 = vmatpush.bf16.msra.mxu0 %v2672
        %2694 = vmatpush.bf16.msra.mxu0 %v2671
        %2695 = vmatmul.bf16.gmra.mxu0 %v2647
        %v2696 = vpop.f32.mrf.mxu0
        %v2697 = vadd.f32 0.0, %v2696
        %v2698 = vpop.f32.mrf.mxu0
        %v2699 = vadd.f32 0.0, %v2698
        %2700 = vmatmul.bf16.gmra.mxu0 %v2648
        %v2701 = vpop.f32.mrf.mxu0
        %v2702 = vadd.f32 0.0, %v2701
        %v2703 = vpop.f32.mrf.mxu0
        %v2704 = vadd.f32 0.0, %v2703
        %2705 = vmatmul.bf16.gmra.mxu0 %v2649
        %v2706 = vpop.f32.mrf.mxu0
        %v2707 = vadd.f32 0.0, %v2706
        %v2708 = vpop.f32.mrf.mxu0
        %v2709 = vadd.f32 0.0, %v2708
        %2710 = vmatmul.bf16.gmra.mxu0 %v2650
        %v2711 = vpop.f32.mrf.mxu0
        %v2712 = vadd.f32 0.0, %v2711
        %v2713 = vpop.f32.mrf.mxu0
        %v2714 = vadd.f32 0.0, %v2713
        %2715 = vdwg.mxu0
        %v2724 = vunpack.c.l.b16 %v2453
        %v2725 = vunpack.c.l.b16 %v2454
        %v2726 = vunpack.c.l.b16 %v2455
        %v2727 = vunpack.c.l.b16 %v2456
        %v2728 = vunpack.c.l.b16 %v2457
        %v2729 = vunpack.c.l.b16 %v2458
        %v2730 = vunpack.c.l.b16 %v2459
        %v2731 = vunpack.c.l.b16 %v2460
        %v2732 = vpack.c.b16 %v2725, %v2724
        %v2733 = vpack.c.b16 %v2727, %v2726
        %v2734 = vpack.c.b16 %v2729, %v2728
        %v2735 = vpack.c.b16 %v2731, %v2730
        %v2740 = vunpack.c.l.b16 %v1289
        %v2741 = vunpack.c.l.b16 %v1291
        %v2742 = vunpack.c.l.b16 %v1293
        %v2743 = vunpack.c.l.b16 %v1295
        %v2744 = vunpack.c.l.b16 %v1297
        %v2745 = vunpack.c.l.b16 %v1299
        %v2746 = vunpack.c.l.b16 %v1301
        %v2747 = vunpack.c.l.b16 %v1303
        %v2748 = vunpack.c.l.b16 %v1305
        %v2749 = vunpack.c.l.b16 %v1307
        %v2750 = vunpack.c.l.b16 %v1309
        %v2751 = vunpack.c.l.b16 %v1311
        %v2752 = vunpack.c.l.b16 %v1313
        %v2753 = vunpack.c.l.b16 %v1315
        %v2754 = vunpack.c.l.b16 %v1317
        %v2755 = vunpack.c.l.b16 %v1319
        %v2756 = vpack.c.b16 %v2741, %v2740
        %v2757 = vpack.c.b16 %v2743, %v2742
        %v2758 = vpack.c.b16 %v2745, %v2744
        %v2759 = vpack.c.b16 %v2747, %v2746
        %v2760 = vpack.c.b16 %v2749, %v2748
        %v2761 = vpack.c.b16 %v2751, %v2750
        %v2762 = vpack.c.b16 %v2753, %v2752
        %v2763 = vpack.c.b16 %v2755, %v2754
        %2772 = vmatpush.bf16.msra.mxu0 %v2763
        %2773 = vmatpush.bf16.msra.mxu0 %v2762
        %2774 = vmatpush.bf16.msra.mxu0 %v2761
        %2775 = vmatpush.bf16.msra.mxu0 %v2760
        %2776 = vmatpush.bf16.msra.mxu0 %v2759
        %2777 = vmatpush.bf16.msra.mxu0 %v2758
        %2778 = vmatpush.bf16.msra.mxu0 %v2757
        %2779 = vmatpush.bf16.msra.mxu0 %v2756
        %2780 = vmatmul.bf16.gmra.mxu0 %v2732
        %v2781 = vpop.f32.mrf.mxu0
        %v2782 = vadd.f32 0.0, %v2781
        %v2783 = vpop.f32.mrf.mxu0
        %v2784 = vadd.f32 0.0, %v2783
        %2785 = vmatmul.bf16.gmra.mxu0 %v2733
        %v2786 = vpop.f32.mrf.mxu0
        %v2787 = vadd.f32 0.0, %v2786
        %v2788 = vpop.f32.mrf.mxu0
        %v2789 = vadd.f32 0.0, %v2788
        %2790 = vmatmul.bf16.gmra.mxu0 %v2734
        %v2791 = vpop.f32.mrf.mxu0
        %v2792 = vadd.f32 0.0, %v2791
        %v2793 = vpop.f32.mrf.mxu0
        %v2794 = vadd.f32 0.0, %v2793
        %2795 = vmatmul.bf16.gmra.mxu0 %v2735
        %v2796 = vpop.f32.mrf.mxu0
        %v2797 = vadd.f32 0.0, %v2796
        %v2798 = vpop.f32.mrf.mxu0
        %v2799 = vadd.f32 0.0, %v2798
        %2800 = vdwg.mxu0
        %2809 = vrot.lane.b32.xlu0 %v2612, 32
        %v2810 = vpop.permute.xlu0 %2809
        %2811 = vrot.lane.b32.xlu0 %v2614, 32
        %v2812 = vpop.permute.xlu0 %2811
        %2813 = vrot.lane.b32.xlu0 %v2617, 32
        %v2814 = vpop.permute.xlu0 %2813
        %2815 = vrot.lane.b32.xlu0 %v2619, 32
        %v2816 = vpop.permute.xlu0 %2815
        %2817 = vrot.lane.b32.xlu0 %v2622, 32
        %v2818 = vpop.permute.xlu0 %2817
        %2819 = vrot.lane.b32.xlu0 %v2624, 32
        %v2820 = vpop.permute.xlu0 %2819
        %2821 = vrot.lane.b32.xlu0 %v2627, 32
        %v2822 = vpop.permute.xlu0 %2821
        %2823 = vrot.lane.b32.xlu0 %v2629, 32
        %v2824 = vpop.permute.xlu0 %2823
        %2841 = vrot.lane.b32.xlu0 %v2697, 64
        %v2842 = vpop.permute.xlu0 %2841
        %2843 = vrot.lane.b32.xlu0 %v2699, 64
        %v2844 = vpop.permute.xlu0 %2843
        %2845 = vrot.lane.b32.xlu0 %v2702, 64
        %v2846 = vpop.permute.xlu0 %2845
        %2847 = vrot.lane.b32.xlu0 %v2704, 64
        %v2848 = vpop.permute.xlu0 %2847
        %2849 = vrot.lane.b32.xlu0 %v2707, 64
        %v2850 = vpop.permute.xlu0 %2849
        %2851 = vrot.lane.b32.xlu0 %v2709, 64
        %v2852 = vpop.permute.xlu0 %2851
        %2853 = vrot.lane.b32.xlu0 %v2712, 64
        %v2854 = vpop.permute.xlu0 %2853
        %2855 = vrot.lane.b32.xlu0 %v2714, 64
        %v2856 = vpop.permute.xlu0 %2855
        %2873 = vrot.lane.b32.xlu0 %v2782, 96
        %v2874 = vpop.permute.xlu0 %2873
        %2875 = vrot.lane.b32.xlu0 %v2784, 96
        %v2876 = vpop.permute.xlu0 %2875
        %2877 = vrot.lane.b32.xlu0 %v2787, 96
        %v2878 = vpop.permute.xlu0 %2877
        %2879 = vrot.lane.b32.xlu0 %v2789, 96
        %v2880 = vpop.permute.xlu0 %2879
        %2881 = vrot.lane.b32.xlu0 %v2792, 96
        %v2882 = vpop.permute.xlu0 %2881
        %2883 = vrot.lane.b32.xlu0 %v2794, 96
        %v2884 = vpop.permute.xlu0 %2883
        %2885 = vrot.lane.b32.xlu0 %v2797, 96
        %v2886 = vpop.permute.xlu0 %2885
        %2887 = vrot.lane.b32.xlu0 %v2799, 96
        %v2888 = vpop.permute.xlu0 %2887
        %v2897 = vsel %vm1356, %v2527, %v2810
        %v2898 = vsel %vm1356, %v2529, %v2812
        %v2899 = vsel %vm1356, %v2532, %v2814
        %v2900 = vsel %vm1356, %v2534, %v2816
        %v2901 = vsel %vm1356, %v2537, %v2818
        %v2902 = vsel %vm1356, %v2539, %v2820
        %v2903 = vsel %vm1356, %v2542, %v2822
        %v2904 = vsel %vm1356, %v2544, %v2824
        %vm2905 = vcmask 523264
        %v2906 = vsel %vm2905, %v2897, %v2842
        %v2907 = vsel %vm2905, %v2898, %v2844
        %v2908 = vsel %vm2905, %v2899, %v2846
        %v2909 = vsel %vm2905, %v2900, %v2848
        %v2910 = vsel %vm2905, %v2901, %v2850
        %v2911 = vsel %vm2905, %v2902, %v2852
        %v2912 = vsel %vm2905, %v2903, %v2854
        %v2913 = vsel %vm2905, %v2904, %v2856
        %vm2914 = vcmask 785408
        %v2915 = vsel %vm2914, %v2906, %v2874
        %v2916 = vsel %vm2914, %v2907, %v2876
        %v2917 = vsel %vm2914, %v2908, %v2878
        %v2918 = vsel %vm2914, %v2909, %v2880
        %v2919 = vsel %vm2914, %v2910, %v2882
        %v2920 = vsel %vm2914, %v2911, %v2884
        %v2921 = vsel %vm2914, %v2912, %v2886
        %v2922 = vsel %vm2914, %v2913, %v2888
        %v2923 = vpack.c.bf16 %v2916, %v2915
        %v2924 = vpack.c.bf16 %v2918, %v2917
        %v2925 = vpack.c.bf16 %v2920, %v2919
        %v2926 = vpack.c.bf16 %v2922, %v2921
        %v2927 = vld [vmem:[%s8] sm:$0xf]
        %v2928 = vld [vmem:[%s8 + $0x4] sm:$0xf]
        %v2929 = vld [vmem:[%s8 + $0x8] sm:$0xf]
        %v2930 = vld [vmem:[%s8 + $0xc] sm:$0xf]
        %v2931 = vld [vmem:[%s8 + $0x10] sm:$0xf]
        %v2932 = vld [vmem:[%s8 + $0x14] sm:$0xf]
        %v2933 = vld [vmem:[%s8 + $0x18] sm:$0xf]
        %v2934 = vld [vmem:[%s8 + $0x1c] sm:$0xf]
        %v2935 = vld [vmem:[%s8 + $0x20] sm:$0xf]
        %v2936 = vld [vmem:[%s8 + $0x24] sm:$0xf]
        %v2937 = vld [vmem:[%s8 + $0x28] sm:$0xf]
        %v2938 = vld [vmem:[%s8 + $0x2c] sm:$0xf]
        %v2939 = vld [vmem:[%s8 + $0x30] sm:$0xf]
        %v2940 = vld [vmem:[%s8 + $0x34] sm:$0xf]
        %v2941 = vld [vmem:[%s8 + $0x38] sm:$0xf]
        %v2942 = vld [vmem:[%s8 + $0x3c] sm:$0xf]
        %v2943 = vld [vmem:[%s9] sm:$0x1]
        %v2945 = vperm.slane %v2943, 0
        %v2963 = vunpack.c.l.b16 %v2927
        %v2964 = vunpack.c.l.b16 %v2928
        %v2965 = vunpack.c.l.b16 %v2929
        %v2966 = vunpack.c.l.b16 %v2930
        %v2967 = vunpack.c.l.b16 %v2931
        %v2968 = vunpack.c.l.b16 %v2932
        %v2969 = vunpack.c.l.b16 %v2933
        %v2970 = vunpack.c.l.b16 %v2934
        %v2971 = vunpack.c.l.b16 %v2935
        %v2972 = vunpack.c.l.b16 %v2936
        %v2973 = vunpack.c.l.b16 %v2937
        %v2974 = vunpack.c.l.b16 %v2938
        %v2975 = vunpack.c.l.b16 %v2939
        %v2976 = vunpack.c.l.b16 %v2940
        %v2977 = vunpack.c.l.b16 %v2941
        %v2978 = vunpack.c.l.b16 %v2942
        %v2979 = vpack.c.b16 %v2964, %v2963
        %v2980 = vpack.c.b16 %v2966, %v2965
        %v2981 = vpack.c.b16 %v2968, %v2967
        %v2982 = vpack.c.b16 %v2970, %v2969
        %v2983 = vpack.c.b16 %v2972, %v2971
        %v2984 = vpack.c.b16 %v2974, %v2973
        %v2985 = vpack.c.b16 %v2976, %v2975
        %v2986 = vpack.c.b16 %v2978, %v2977
        %2995 = vmatpush.bf16.msra.mxu0 %v2986
        %2996 = vmatpush.bf16.msra.mxu0 %v2985
        %2997 = vmatpush.bf16.msra.mxu0 %v2984
        %2998 = vmatpush.bf16.msra.mxu0 %v2983
        %2999 = vmatpush.bf16.msra.mxu0 %v2982
        %3000 = vmatpush.bf16.msra.mxu0 %v2981
        %3001 = vmatpush.bf16.msra.mxu0 %v2980
        %3002 = vmatpush.bf16.msra.mxu0 %v2979
        %3003 = vmatmul.bf16.gmra.mxu0 %v2923
        %v3004 = vpop.f32.mrf.mxu0
        %v3005 = vadd.f32 %v2945, %v3004
        %v3006 = vpop.f32.mrf.mxu0
        %v3007 = vadd.f32 %v2945, %v3006
        %3008 = vmatmul.bf16.gmra.mxu0 %v2924
        %v3009 = vpop.f32.mrf.mxu0
        %v3010 = vadd.f32 %v2945, %v3009
        %v3011 = vpop.f32.mrf.mxu0
        %v3012 = vadd.f32 %v2945, %v3011
        %3013 = vmatmul.bf16.gmra.mxu0 %v2925
        %v3014 = vpop.f32.mrf.mxu0
        %v3015 = vadd.f32 %v2945, %v3014
        %v3016 = vpop.f32.mrf.mxu0
        %v3017 = vadd.f32 %v2945, %v3016
        %3018 = vmatmul.bf16.gmra.mxu0 %v2926
        %v3019 = vpop.f32.mrf.mxu0
        %v3020 = vadd.f32 %v2945, %v3019
        %v3021 = vpop.f32.mrf.mxu0
        %v3022 = vadd.f32 %v2945, %v3021
        %3023 = vdwg.mxu0
        %v3024 = vadd.f32 %v625, %v3005
        %v3025 = vadd.f32 %v626, %v3007
        %v3026 = vadd.f32 %v627, %v3010
        %v3027 = vadd.f32 %v628, %v3012
        %v3028 = vadd.f32 %v629, %v3015
        %v3029 = vadd.f32 %v630, %v3017
        %v3030 = vadd.f32 %v631, %v3020
        %v3031 = vadd.f32 %v632, %v3022
        %v3032 = vld [vmem:[%s10] sm:$0x1]
        %v3033 = vld [vmem:[%s11] sm:$0x1]
        %3034 = vadd.xlane.f32.xlu0 %v3024
        %v3035 = vpop.xlane.xlu0 %3034
        %3036 = vadd.xlane.f32.xlu0 %v3025
        %v3037 = vpop.xlane.xlu0 %3036
        %3038 = vadd.xlane.f32.xlu0 %v3026
        %v3039 = vpop.xlane.xlu0 %3038
        %3040 = vadd.xlane.f32.xlu0 %v3027
        %v3041 = vpop.xlane.xlu0 %3040
        %3042 = vadd.xlane.f32.xlu0 %v3028
        %v3043 = vpop.xlane.xlu0 %3042
        %3044 = vadd.xlane.f32.xlu0 %v3029
        %v3045 = vpop.xlane.xlu0 %3044
        %3046 = vadd.xlane.f32.xlu0 %v3030
        %v3047 = vpop.xlane.xlu0 %3046
        %3048 = vadd.xlane.f32.xlu0 %v3031
        %v3049 = vpop.xlane.xlu0 %3048
        %v3050 = vrcp.pop 128.0
        %v3051 = vmul.f32 128.0, %v3050
        %v3052 = vsub.f32 1.0, %v3051
        %v3053 = vmul.f32 %v3050, %v3052
        %v3054 = vadd.f32 %v3050, %v3053
        %vm3055 = vweird.f32 %v3050
        %v3056 = vsel %vm3055, %v3050, %v3054
        %v3057 = vmul.f32 %v3035, %v3056
        %v3058 = vmul.f32 %v3037, %v3056
        %v3059 = vmul.f32 %v3039, %v3056
        %v3060 = vmul.f32 %v3041, %v3056
        %v3061 = vmul.f32 %v3043, %v3056
        %v3062 = vmul.f32 %v3045, %v3056
        %v3063 = vmul.f32 %v3047, %v3056
        %v3064 = vmul.f32 %v3049, %v3056
        %v3065 = vsub.f32 %v3024, %v3057
        %v3066 = vsub.f32 %v3025, %v3058
        %v3067 = vsub.f32 %v3026, %v3059
        %v3068 = vsub.f32 %v3027, %v3060
        %v3069 = vsub.f32 %v3028, %v3061
        %v3070 = vsub.f32 %v3029, %v3062
        %v3071 = vsub.f32 %v3030, %v3063
        %v3072 = vsub.f32 %v3031, %v3064
        %v3073 = vmul.f32 %v3065, %v3065
        %v3074 = vmul.f32 %v3066, %v3066
        %v3075 = vmul.f32 %v3067, %v3067
        %v3076 = vmul.f32 %v3068, %v3068
        %v3077 = vmul.f32 %v3069, %v3069
        %v3078 = vmul.f32 %v3070, %v3070
        %v3079 = vmul.f32 %v3071, %v3071
        %v3080 = vmul.f32 %v3072, %v3072
        %3081 = vadd.xlane.f32.xlu0 %v3073
        %v3082 = vpop.xlane.xlu0 %3081
        %3083 = vadd.xlane.f32.xlu0 %v3074
        %v3084 = vpop.xlane.xlu0 %3083
        %3085 = vadd.xlane.f32.xlu0 %v3075
        %v3086 = vpop.xlane.xlu0 %3085
        %3087 = vadd.xlane.f32.xlu0 %v3076
        %v3088 = vpop.xlane.xlu0 %3087
        %3089 = vadd.xlane.f32.xlu0 %v3077
        %v3090 = vpop.xlane.xlu0 %3089
        %3091 = vadd.xlane.f32.xlu0 %v3078
        %v3092 = vpop.xlane.xlu0 %3091
        %3093 = vadd.xlane.f32.xlu0 %v3079
        %v3094 = vpop.xlane.xlu0 %3093
        %3095 = vadd.xlane.f32.xlu0 %v3080
        %v3096 = vpop.xlane.xlu0 %3095
        %v3097 = vrcp.pop 127.0
        %v3098 = vmul.f32 127.0, %v3097
        %v3099 = vsub.f32 1.0, %v3098
        %v3100 = vmul.f32 %v3097, %v3099
        %v3101 = vadd.f32 %v3097, %v3100
        %vm3102 = vweird.f32 %v3097
        %v3103 = vsel %vm3102, %v3097, %v3101
        %v3104 = vmul.f32 %v3082, %v3103
        %v3105 = vmul.f32 %v3084, %v3103
        %v3106 = vmul.f32 %v3086, %v3103
        %v3107 = vmul.f32 %v3088, %v3103
        %v3108 = vmul.f32 %v3090, %v3103
        %v3109 = vmul.f32 %v3092, %v3103
        %v3110 = vmul.f32 %v3094, %v3103
        %v3111 = vmul.f32 %v3096, %v3103
        %v3112 = vrsqrt.pop %v3104
        %v3113 = vmul.f32 %v3112, %v3104
        %v3114 = vmul.f32 %v3113, %v3112
        %v3115 = vmul.f32 0.5, %v3114
        %v3116 = vsub.f32 1.5, %v3115
        %v3117 = vmul.f32 %v3112, %v3116
        %v3118 = vmul.f32 %v3104, %v3117
        %vm3119 = vcmp.eq.f32.partialorder %v3104, inf
        %v3120 = vsel %vm3119, %v3104, %v3118
        %vm3121 = vcmp.eq.f32.partialorder %v3104, 0.0
        %v3122 = vand.u32 %v3104, 2147483648
        %v3123 = vsel %vm3121, %v3122, %v3120
        %v3124 = vrsqrt.pop %v3105
        %v3125 = vmul.f32 %v3124, %v3105
        %v3126 = vmul.f32 %v3125, %v3124
        %v3127 = vmul.f32 0.5, %v3126
        %v3128 = vsub.f32 1.5, %v3127
        %v3129 = vmul.f32 %v3124, %v3128
        %v3130 = vmul.f32 %v3105, %v3129
        %vm3131 = vcmp.eq.f32.partialorder %v3105, inf
        %v3132 = vsel %vm3131, %v3105, %v3130
        %vm3133 = vcmp.eq.f32.partialorder %v3105, 0.0
        %v3134 = vand.u32 %v3105, 2147483648
        %v3135 = vsel %vm3133, %v3134, %v3132
        %v3136 = vrsqrt.pop %v3106
        %v3137 = vmul.f32 %v3136, %v3106
        %v3138 = vmul.f32 %v3137, %v3136
        %v3139 = vmul.f32 0.5, %v3138
        %v3140 = vsub.f32 1.5, %v3139
        %v3141 = vmul.f32 %v3136, %v3140
        %v3142 = vmul.f32 %v3106, %v3141
        %vm3143 = vcmp.eq.f32.partialorder %v3106, inf
        %v3144 = vsel %vm3143, %v3106, %v3142
        %vm3145 = vcmp.eq.f32.partialorder %v3106, 0.0
        %v3146 = vand.u32 %v3106, 2147483648
        %v3147 = vsel %vm3145, %v3146, %v3144
        %v3148 = vrsqrt.pop %v3107
        %v3149 = vmul.f32 %v3148, %v3107
        %v3150 = vmul.f32 %v3149, %v3148
        %v3151 = vmul.f32 0.5, %v3150
        %v3152 = vsub.f32 1.5, %v3151
        %v3153 = vmul.f32 %v3148, %v3152
        %v3154 = vmul.f32 %v3107, %v3153
        %vm3155 = vcmp.eq.f32.partialorder %v3107, inf
        %v3156 = vsel %vm3155, %v3107, %v3154
        %vm3157 = vcmp.eq.f32.partialorder %v3107, 0.0
        %v3158 = vand.u32 %v3107, 2147483648
        %v3159 = vsel %vm3157, %v3158, %v3156
        %v3160 = vrsqrt.pop %v3108
        %v3161 = vmul.f32 %v3160, %v3108
        %v3162 = vmul.f32 %v3161, %v3160
        %v3163 = vmul.f32 0.5, %v3162
        %v3164 = vsub.f32 1.5, %v3163
        %v3165 = vmul.f32 %v3160, %v3164
        %v3166 = vmul.f32 %v3108, %v3165
        %vm3167 = vcmp.eq.f32.partialorder %v3108, inf
        %v3168 = vsel %vm3167, %v3108, %v3166
        %vm3169 = vcmp.eq.f32.partialorder %v3108, 0.0
        %v3170 = vand.u32 %v3108, 2147483648
        %v3171 = vsel %vm3169, %v3170, %v3168
        %v3172 = vrsqrt.pop %v3109
        %v3173 = vmul.f32 %v3172, %v3109
        %v3174 = vmul.f32 %v3173, %v3172
        %v3175 = vmul.f32 0.5, %v3174
        %v3176 = vsub.f32 1.5, %v3175
        %v3177 = vmul.f32 %v3172, %v3176
        %v3178 = vmul.f32 %v3109, %v3177
        %vm3179 = vcmp.eq.f32.partialorder %v3109, inf
        %v3180 = vsel %vm3179, %v3109, %v3178
        %vm3181 = vcmp.eq.f32.partialorder %v3109, 0.0
        %v3182 = vand.u32 %v3109, 2147483648
        %v3183 = vsel %vm3181, %v3182, %v3180
        %v3184 = vrsqrt.pop %v3110
        %v3185 = vmul.f32 %v3184, %v3110
        %v3186 = vmul.f32 %v3185, %v3184
        %v3187 = vmul.f32 0.5, %v3186
        %v3188 = vsub.f32 1.5, %v3187
        %v3189 = vmul.f32 %v3184, %v3188
        %v3190 = vmul.f32 %v3110, %v3189
        %vm3191 = vcmp.eq.f32.partialorder %v3110, inf
        %v3192 = vsel %vm3191, %v3110, %v3190
        %vm3193 = vcmp.eq.f32.partialorder %v3110, 0.0
        %v3194 = vand.u32 %v3110, 2147483648
        %v3195 = vsel %vm3193, %v3194, %v3192
        %v3196 = vrsqrt.pop %v3111
        %v3197 = vmul.f32 %v3196, %v3111
        %v3198 = vmul.f32 %v3197, %v3196
        %v3199 = vmul.f32 0.5, %v3198
        %v3200 = vsub.f32 1.5, %v3199
        %v3201 = vmul.f32 %v3196, %v3200
        %v3202 = vmul.f32 %v3111, %v3201
        %vm3203 = vcmp.eq.f32.partialorder %v3111, inf
        %v3204 = vsel %vm3203, %v3111, %v3202
        %vm3205 = vcmp.eq.f32.partialorder %v3111, 0.0
        %v3206 = vand.u32 %v3111, 2147483648
        %v3207 = vsel %vm3205, %v3206, %v3204
        %v3208 = vadd.f32 %v3123, 1e-12
        %v3209 = vadd.f32 %v3135, 1e-12
        %v3210 = vadd.f32 %v3147, 1e-12
        %v3211 = vadd.f32 %v3159, 1e-12
        %v3212 = vadd.f32 %v3171, 1e-12
        %v3213 = vadd.f32 %v3183, 1e-12
        %v3214 = vadd.f32 %v3195, 1e-12
        %v3215 = vadd.f32 %v3207, 1e-12
        %v3216 = vrcp.pop %v3208
        %v3217 = vmul.f32 %v3208, %v3216
        %v3218 = vsub.f32 1.0, %v3217
        %v3219 = vmul.f32 %v3216, %v3218
        %v3220 = vadd.f32 %v3216, %v3219
        %vm3221 = vweird.f32 %v3208
        %vm3222 = vweird.f32 %v3216
        %vm3223 = vmor %vm3221, %vm3222
        %v3224 = vsel %vm3223, %v3216, %v3220
        %v3225 = vand.u32 2147483647, %v3208
        %vm3226 = vcmp.eq.f32.partialorder %v3225, 8.507059e+37
        %v3227 = vand.u32 %v3208, 2147483648
        %v3228 = vor.u32 1.1754944e-38, %v3227
        %v3229 = vsel %vm3226, %v3228, %v3224
        %v3230 = vmul.f32 %v3065, %v3229
        %v3231 = vrcp.pop %v3209
        %v3232 = vmul.f32 %v3209, %v3231
        %v3233 = vsub.f32 1.0, %v3232
        %v3234 = vmul.f32 %v3231, %v3233
        %v3235 = vadd.f32 %v3231, %v3234
        %vm3236 = vweird.f32 %v3209
        %vm3237 = vweird.f32 %v3231
        %vm3238 = vmor %vm3236, %vm3237
        %v3239 = vsel %vm3238, %v3231, %v3235
        %v3240 = vand.u32 2147483647, %v3209
        %vm3241 = vcmp.eq.f32.partialorder %v3240, 8.507059e+37
        %v3242 = vand.u32 %v3209, 2147483648
        %v3243 = vor.u32 1.1754944e-38, %v3242
        %v3244 = vsel %vm3241, %v3243, %v3239
        %v3245 = vmul.f32 %v3066, %v3244
        %v3246 = vrcp.pop %v3210
        %v3247 = vmul.f32 %v3210, %v3246
        %v3248 = vsub.f32 1.0, %v3247
        %v3249 = vmul.f32 %v3246, %v3248
        %v3250 = vadd.f32 %v3246, %v3249
        %vm3251 = vweird.f32 %v3210
        %vm3252 = vweird.f32 %v3246
        %vm3253 = vmor %vm3251, %vm3252
        %v3254 = vsel %vm3253, %v3246, %v3250
        %v3255 = vand.u32 2147483647, %v3210
        %vm3256 = vcmp.eq.f32.partialorder %v3255, 8.507059e+37
        %v3257 = vand.u32 %v3210, 2147483648
        %v3258 = vor.u32 1.1754944e-38, %v3257
        %v3259 = vsel %vm3256, %v3258, %v3254
        %v3260 = vmul.f32 %v3067, %v3259
        %v3261 = vrcp.pop %v3211
        %v3262 = vmul.f32 %v3211, %v3261
        %v3263 = vsub.f32 1.0, %v3262
        %v3264 = vmul.f32 %v3261, %v3263
        %v3265 = vadd.f32 %v3261, %v3264
        %vm3266 = vweird.f32 %v3211
        %vm3267 = vweird.f32 %v3261
        %vm3268 = vmor %vm3266, %vm3267
        %v3269 = vsel %vm3268, %v3261, %v3265
        %v3270 = vand.u32 2147483647, %v3211
        %vm3271 = vcmp.eq.f32.partialorder %v3270, 8.507059e+37
        %v3272 = vand.u32 %v3211, 2147483648
        %v3273 = vor.u32 1.1754944e-38, %v3272
        %v3274 = vsel %vm3271, %v3273, %v3269
        %v3275 = vmul.f32 %v3068, %v3274
        %v3276 = vrcp.pop %v3212
        %v3277 = vmul.f32 %v3212, %v3276
        %v3278 = vsub.f32 1.0, %v3277
        %v3279 = vmul.f32 %v3276, %v3278
        %v3280 = vadd.f32 %v3276, %v3279
        %vm3281 = vweird.f32 %v3212
        %vm3282 = vweird.f32 %v3276
        %vm3283 = vmor %vm3281, %vm3282
        %v3284 = vsel %vm3283, %v3276, %v3280
        %v3285 = vand.u32 2147483647, %v3212
        %vm3286 = vcmp.eq.f32.partialorder %v3285, 8.507059e+37
        %v3287 = vand.u32 %v3212, 2147483648
        %v3288 = vor.u32 1.1754944e-38, %v3287
        %v3289 = vsel %vm3286, %v3288, %v3284
        %v3290 = vmul.f32 %v3069, %v3289
        %v3291 = vrcp.pop %v3213
        %v3292 = vmul.f32 %v3213, %v3291
        %v3293 = vsub.f32 1.0, %v3292
        %v3294 = vmul.f32 %v3291, %v3293
        %v3295 = vadd.f32 %v3291, %v3294
        %vm3296 = vweird.f32 %v3213
        %vm3297 = vweird.f32 %v3291
        %vm3298 = vmor %vm3296, %vm3297
        %v3299 = vsel %vm3298, %v3291, %v3295
        %v3300 = vand.u32 2147483647, %v3213
        %vm3301 = vcmp.eq.f32.partialorder %v3300, 8.507059e+37
        %v3302 = vand.u32 %v3213, 2147483648
        %v3303 = vor.u32 1.1754944e-38, %v3302
        %v3304 = vsel %vm3301, %v3303, %v3299
        %v3305 = vmul.f32 %v3070, %v3304
        %v3306 = vrcp.pop %v3214
        %v3307 = vmul.f32 %v3214, %v3306
        %v3308 = vsub.f32 1.0, %v3307
        %v3309 = vmul.f32 %v3306, %v3308
        %v3310 = vadd.f32 %v3306, %v3309
        %vm3311 = vweird.f32 %v3214
        %vm3312 = vweird.f32 %v3306
        %vm3313 = vmor %vm3311, %vm3312
        %v3314 = vsel %vm3313, %v3306, %v3310
        %v3315 = vand.u32 2147483647, %v3214
        %vm3316 = vcmp.eq.f32.partialorder %v3315, 8.507059e+37
        %v3317 = vand.u32 %v3214, 2147483648
        %v3318 = vor.u32 1.1754944e-38, %v3317
        %v3319 = vsel %vm3316, %v3318, %v3314
        %v3320 = vmul.f32 %v3071, %v3319
        %v3321 = vrcp.pop %v3215
        %v3322 = vmul.f32 %v3215, %v3321
        %v3323 = vsub.f32 1.0, %v3322
        %v3324 = vmul.f32 %v3321, %v3323
        %v3325 = vadd.f32 %v3321, %v3324
        %vm3326 = vweird.f32 %v3215
        %vm3327 = vweird.f32 %v3321
        %vm3328 = vmor %vm3326, %vm3327
        %v3329 = vsel %vm3328, %v3321, %v3325
        %v3330 = vand.u32 2147483647, %v3215
        %vm3331 = vcmp.eq.f32.partialorder %v3330, 8.507059e+37
        %v3332 = vand.u32 %v3215, 2147483648
        %v3333 = vor.u32 1.1754944e-38, %v3332
        %v3334 = vsel %vm3331, %v3333, %v3329
        %v3335 = vmul.f32 %v3072, %v3334
        %v3337 = vperm.slane %v3032, 0
        %v3339 = vmul.f32 %v3337, %v3230
        %v3340 = vmul.f32 %v3337, %v3245
        %v3341 = vmul.f32 %v3337, %v3260
        %v3342 = vmul.f32 %v3337, %v3275
        %v3343 = vmul.f32 %v3337, %v3290
        %v3344 = vmul.f32 %v3337, %v3305
        %v3345 = vmul.f32 %v3337, %v3320
        %v3346 = vmul.f32 %v3337, %v3335
        %v3348 = vperm.slane %v3033, 0
        %v3350 = vadd.f32 %v3339, %v3348
        %v3351 = vadd.f32 %v3340, %v3348
        %v3352 = vadd.f32 %v3341, %v3348
        %v3353 = vadd.f32 %v3342, %v3348
        %v3354 = vadd.f32 %v3343, %v3348
        %v3355 = vadd.f32 %v3344, %v3348
        %v3356 = vadd.f32 %v3345, %v3348
        %v3357 = vadd.f32 %v3346, %v3348
        %v3358 = vpack.c.bf16 %v3351, %v3350
        %v3359 = vpack.c.bf16 %v3353, %v3352
        %v3360 = vpack.c.bf16 %v3355, %v3354
        %v3361 = vpack.c.bf16 %v3357, %v3356
        %v3362 = vld [vmem:[%s12] sm:$0xff]
        %v3363 = vld [vmem:[%s12 + $0x8] sm:$0xff]
        %v3364 = vld [vmem:[%s12 + $0x10] sm:$0xff]
        %v3365 = vld [vmem:[%s12 + $0x18] sm:$0xff]
        %v3366 = vld [vmem:[%s12 + $0x20] sm:$0xff]
        %v3367 = vld [vmem:[%s12 + $0x28] sm:$0xff]
        %v3368 = vld [vmem:[%s12 + $0x30] sm:$0xff]
        %v3369 = vld [vmem:[%s12 + $0x38] sm:$0xff]
        %v3370 = vld [vmem:[%s12 + $0x40] sm:$0xff]
        %v3371 = vld [vmem:[%s12 + $0x48] sm:$0xff]
        %v3372 = vld [vmem:[%s12 + $0x50] sm:$0xff]
        %v3373 = vld [vmem:[%s12 + $0x58] sm:$0xff]
        %v3374 = vld [vmem:[%s12 + $0x60] sm:$0xff]
        %v3375 = vld [vmem:[%s12 + $0x68] sm:$0xff]
        %v3376 = vld [vmem:[%s12 + $0x70] sm:$0xff]
        %v3377 = vld [vmem:[%s12 + $0x78] sm:$0xff]
        %v3378 = vld [vmem:[%s13] sm:$0x3]
        %v3380 = vperm.slane %v3378, 0
        %v3381 = vperm.slane %v3378, 1
        %v3400 = vunpack.c.l.b16 %v3362
        %v3401 = vunpack.c.h.b16 %v3362
        %v3402 = vunpack.c.l.b16 %v3363
        %v3403 = vunpack.c.h.b16 %v3363
        %v3404 = vunpack.c.l.b16 %v3364
        %v3405 = vunpack.c.h.b16 %v3364
        %v3406 = vunpack.c.l.b16 %v3365
        %v3407 = vunpack.c.h.b16 %v3365
        %v3408 = vunpack.c.l.b16 %v3366
        %v3409 = vunpack.c.h.b16 %v3366
        %v3410 = vunpack.c.l.b16 %v3367
        %v3411 = vunpack.c.h.b16 %v3367
        %v3412 = vunpack.c.l.b16 %v3368
        %v3413 = vunpack.c.h.b16 %v3368
        %v3414 = vunpack.c.l.b16 %v3369
        %v3415 = vunpack.c.h.b16 %v3369
        %v3416 = vunpack.c.l.b16 %v3370
        %v3417 = vunpack.c.h.b16 %v3370
        %v3418 = vunpack.c.l.b16 %v3371
        %v3419 = vunpack.c.h.b16 %v3371
        %v3420 = vunpack.c.l.b16 %v3372
        %v3421 = vunpack.c.h.b16 %v3372
        %v3422 = vunpack.c.l.b16 %v3373
        %v3423 = vunpack.c.h.b16 %v3373
        %v3424 = vunpack.c.l.b16 %v3374
        %v3425 = vunpack.c.h.b16 %v3374
        %v3426 = vunpack.c.l.b16 %v3375
        %v3427 = vunpack.c.h.b16 %v3375
        %v3428 = vunpack.c.l.b16 %v3376
        %v3429 = vunpack.c.h.b16 %v3376
        %v3430 = vunpack.c.l.b16 %v3377
        %v3431 = vunpack.c.h.b16 %v3377
        %v3432 = vpack.c.b16 %v3402, %v3400
        %v3433 = vpack.c.b16 %v3403, %v3401
        %v3434 = vpack.c.b16 %v3406, %v3404
        %v3435 = vpack.c.b16 %v3407, %v3405
        %v3436 = vpack.c.b16 %v3410, %v3408
        %v3437 = vpack.c.b16 %v3411, %v3409
        %v3438 = vpack.c.b16 %v3414, %v3412
        %v3439 = vpack.c.b16 %v3415, %v3413
        %v3440 = vpack.c.b16 %v3418, %v3416
        %v3441 = vpack.c.b16 %v3419, %v3417
        %v3442 = vpack.c.b16 %v3422, %v3420
        %v3443 = vpack.c.b16 %v3423, %v3421
        %v3444 = vpack.c.b16 %v3426, %v3424
        %v3445 = vpack.c.b16 %v3427, %v3425
        %v3446 = vpack.c.b16 %v3430, %v3428
        %v3447 = vpack.c.b16 %v3431, %v3429
        %3464 = vmatpush.bf16.msra.mxu0 %v3446
        %3465 = vmatpush.bf16.msra.mxu0 %v3444
        %3466 = vmatpush.bf16.msra.mxu0 %v3442
        %3467 = vmatpush.bf16.msra.mxu0 %v3440
        %3468 = vmatpush.bf16.msra.mxu0 %v3438
        %3469 = vmatpush.bf16.msra.mxu0 %v3436
        %3470 = vmatpush.bf16.msra.mxu0 %v3434
        %3471 = vmatpush.bf16.msra.mxu0 %v3432
        %3472 = vmatmul.bf16.gmra.mxu0 %v3358
        %v3473 = vpop.f32.mrf.mxu0
        %v3474 = vadd.f32 %v3380, %v3473
        %v3475 = vpop.f32.mrf.mxu0
        %v3476 = vadd.f32 %v3380, %v3475
        %3477 = vmatmul.bf16.gmra.mxu0 %v3359
        %v3478 = vpop.f32.mrf.mxu0
        %v3479 = vadd.f32 %v3380, %v3478
        %v3480 = vpop.f32.mrf.mxu0
        %v3481 = vadd.f32 %v3380, %v3480
        %3482 = vmatmul.bf16.gmra.mxu0 %v3360
        %v3483 = vpop.f32.mrf.mxu0
        %v3484 = vadd.f32 %v3380, %v3483
        %v3485 = vpop.f32.mrf.mxu0
        %v3486 = vadd.f32 %v3380, %v3485
        %3487 = vmatmul.bf16.gmra.mxu0 %v3361
        %v3488 = vpop.f32.mrf.mxu0
        %v3489 = vadd.f32 %v3380, %v3488
        %v3490 = vpop.f32.mrf.mxu0
        %v3491 = vadd.f32 %v3380, %v3490
        %3492 = vdwg.mxu0
        %3493 = vmatpush.bf16.msra.mxu0 %v3447
        %3494 = vmatpush.bf16.msra.mxu0 %v3445
        %3495 = vmatpush.bf16.msra.mxu0 %v3443
        %3496 = vmatpush.bf16.msra.mxu0 %v3441
        %3497 = vmatpush.bf16.msra.mxu0 %v3439
        %3498 = vmatpush.bf16.msra.mxu0 %v3437
        %3499 = vmatpush.bf16.msra.mxu0 %v3435
        %3500 = vmatpush.bf16.msra.mxu0 %v3433
        %3501 = vmatmul.bf16.gmra.mxu0 %v3358
        %v3502 = vpop.f32.mrf.mxu0
        %v3503 = vadd.f32 %v3381, %v3502
        %v3504 = vpop.f32.mrf.mxu0
        %v3505 = vadd.f32 %v3381, %v3504
        %3506 = vmatmul.bf16.gmra.mxu0 %v3359
        %v3507 = vpop.f32.mrf.mxu0
        %v3508 = vadd.f32 %v3381, %v3507
        %v3509 = vpop.f32.mrf.mxu0
        %v3510 = vadd.f32 %v3381, %v3509
        %3511 = vmatmul.bf16.gmra.mxu0 %v3360
        %v3512 = vpop.f32.mrf.mxu0
        %v3513 = vadd.f32 %v3381, %v3512
        %v3514 = vpop.f32.mrf.mxu0
        %v3515 = vadd.f32 %v3381, %v3514
        %3516 = vmatmul.bf16.gmra.mxu0 %v3361
        %v3517 = vpop.f32.mrf.mxu0
        %v3518 = vadd.f32 %v3381, %v3517
        %v3519 = vpop.f32.mrf.mxu0
        %v3520 = vadd.f32 %v3381, %v3519
        %3521 = vdwg.mxu0
        %v3522 = vmax.f32 %v3474, 0.0
        %v3523 = vmax.f32 %v3503, 0.0
        %v3524 = vmax.f32 %v3476, 0.0
        %v3525 = vmax.f32 %v3505, 0.0
        %v3526 = vmax.f32 %v3479, 0.0
        %v3527 = vmax.f32 %v3508, 0.0
        %v3528 = vmax.f32 %v3481, 0.0
        %v3529 = vmax.f32 %v3510, 0.0
        %v3530 = vmax.f32 %v3484, 0.0
        %v3531 = vmax.f32 %v3513, 0.0
        %v3532 = vmax.f32 %v3486, 0.0
        %v3533 = vmax.f32 %v3515, 0.0
        %v3534 = vmax.f32 %v3489, 0.0
        %v3535 = vmax.f32 %v3518, 0.0
        %v3536 = vmax.f32 %v3491, 0.0
        %v3537 = vmax.f32 %v3520, 0.0
        %v3538 = vpack.c.bf16 %v3524, %v3522
        %v3539 = vpack.c.bf16 %v3525, %v3523
        %v3540 = vpack.c.bf16 %v3528, %v3526
        %v3541 = vpack.c.bf16 %v3529, %v3527
        %v3542 = vpack.c.bf16 %v3532, %v3530
        %v3543 = vpack.c.bf16 %v3533, %v3531
        %v3544 = vpack.c.bf16 %v3536, %v3534
        %v3545 = vpack.c.bf16 %v3537, %v3535
        %v3546 = vld [vmem:[%s14] sm:$0xf]
        %v3547 = vld [vmem:[%s14 + $0x4] sm:$0xf]
        %v3548 = vld [vmem:[%s14 + $0x8] sm:$0xf]
        %v3549 = vld [vmem:[%s14 + $0xc] sm:$0xf]
        %v3550 = vld [vmem:[%s14 + $0x10] sm:$0xf]
        %v3551 = vld [vmem:[%s14 + $0x14] sm:$0xf]
        %v3552 = vld [vmem:[%s14 + $0x18] sm:$0xf]
        %v3553 = vld [vmem:[%s14 + $0x1c] sm:$0xf]
        %v3554 = vld [vmem:[%s14 + $0x20] sm:$0xf]
        %v3555 = vld [vmem:[%s14 + $0x24] sm:$0xf]
        %v3556 = vld [vmem:[%s14 + $0x28] sm:$0xf]
        %v3557 = vld [vmem:[%s14 + $0x2c] sm:$0xf]
        %v3558 = vld [vmem:[%s14 + $0x30] sm:$0xf]
        %v3559 = vld [vmem:[%s14 + $0x34] sm:$0xf]
        %v3560 = vld [vmem:[%s14 + $0x38] sm:$0xf]
        %v3561 = vld [vmem:[%s14 + $0x3c] sm:$0xf]
        %v3562 = vld [vmem:[%s14 + $0x40] sm:$0xf]
        %v3563 = vld [vmem:[%s14 + $0x44] sm:$0xf]
        %v3564 = vld [vmem:[%s14 + $0x48] sm:$0xf]
        %v3565 = vld [vmem:[%s14 + $0x4c] sm:$0xf]
        %v3566 = vld [vmem:[%s14 + $0x50] sm:$0xf]
        %v3567 = vld [vmem:[%s14 + $0x54] sm:$0xf]
        %v3568 = vld [vmem:[%s14 + $0x58] sm:$0xf]
        %v3569 = vld [vmem:[%s14 + $0x5c] sm:$0xf]
        %v3570 = vld [vmem:[%s14 + $0x60] sm:$0xf]
        %v3571 = vld [vmem:[%s14 + $0x64] sm:$0xf]
        %v3572 = vld [vmem:[%s14 + $0x68] sm:$0xf]
        %v3573 = vld [vmem:[%s14 + $0x6c] sm:$0xf]
        %v3574 = vld [vmem:[%s14 + $0x70] sm:$0xf]
        %v3575 = vld [vmem:[%s14 + $0x74] sm:$0xf]
        %v3576 = vld [vmem:[%s14 + $0x78] sm:$0xf]
        %v3577 = vld [vmem:[%s14 + $0x7c] sm:$0xf]
        %v3578 = vld [vmem:[%s15] sm:$0x1]
        %v3580 = vperm.slane %v3578, 0
        %v3614 = vunpack.c.l.b16 %v3546
        %v3615 = vunpack.c.l.b16 %v3547
        %v3616 = vunpack.c.l.b16 %v3548
        %v3617 = vunpack.c.l.b16 %v3549
        %v3618 = vunpack.c.l.b16 %v3550
        %v3619 = vunpack.c.l.b16 %v3551
        %v3620 = vunpack.c.l.b16 %v3552
        %v3621 = vunpack.c.l.b16 %v3553
        %v3622 = vunpack.c.l.b16 %v3554
        %v3623 = vunpack.c.l.b16 %v3555
        %v3624 = vunpack.c.l.b16 %v3556
        %v3625 = vunpack.c.l.b16 %v3557
        %v3626 = vunpack.c.l.b16 %v3558
        %v3627 = vunpack.c.l.b16 %v3559
        %v3628 = vunpack.c.l.b16 %v3560
        %v3629 = vunpack.c.l.b16 %v3561
        %v3630 = vunpack.c.l.b16 %v3562
        %v3631 = vunpack.c.l.b16 %v3563
        %v3632 = vunpack.c.l.b16 %v3564
        %v3633 = vunpack.c.l.b16 %v3565
        %v3634 = vunpack.c.l.b16 %v3566
        %v3635 = vunpack.c.l.b16 %v3567
        %v3636 = vunpack.c.l.b16 %v3568
        %v3637 = vunpack.c.l.b16 %v3569
        %v3638 = vunpack.c.l.b16 %v3570
        %v3639 = vunpack.c.l.b16 %v3571
        %v3640 = vunpack.c.l.b16 %v3572
        %v3641 = vunpack.c.l.b16 %v3573
        %v3642 = vunpack.c.l.b16 %v3574
        %v3643 = vunpack.c.l.b16 %v3575
        %v3644 = vunpack.c.l.b16 %v3576
        %v3645 = vunpack.c.l.b16 %v3577
        %v3646 = vpack.c.b16 %v3615, %v3614
        %v3647 = vpack.c.b16 %v3617, %v3616
        %v3648 = vpack.c.b16 %v3619, %v3618
        %v3649 = vpack.c.b16 %v3621, %v3620
        %v3650 = vpack.c.b16 %v3623, %v3622
        %v3651 = vpack.c.b16 %v3625, %v3624
        %v3652 = vpack.c.b16 %v3627, %v3626
        %v3653 = vpack.c.b16 %v3629, %v3628
        %v3654 = vpack.c.b16 %v3631, %v3630
        %v3655 = vpack.c.b16 %v3633, %v3632
        %v3656 = vpack.c.b16 %v3635, %v3634
        %v3657 = vpack.c.b16 %v3637, %v3636
        %v3658 = vpack.c.b16 %v3639, %v3638
        %v3659 = vpack.c.b16 %v3641, %v3640
        %v3660 = vpack.c.b16 %v3643, %v3642
        %v3661 = vpack.c.b16 %v3645, %v3644
        %3678 = vmatpush.bf16.msra.mxu0 %v3653
        %3679 = vmatpush.bf16.msra.mxu0 %v3652
        %3680 = vmatpush.bf16.msra.mxu0 %v3651
        %3681 = vmatpush.bf16.msra.mxu0 %v3650
        %3682 = vmatpush.bf16.msra.mxu0 %v3649
        %3683 = vmatpush.bf16.msra.mxu0 %v3648
        %3684 = vmatpush.bf16.msra.mxu0 %v3647
        %3685 = vmatpush.bf16.msra.mxu0 %v3646
        %3686 = vmatmul.bf16.gmra.mxu0 %v3538
        %v3687 = vpop.f32.mrf.mxu0
        %v3688 = vadd.f32 %v3580, %v3687
        %v3689 = vpop.f32.mrf.mxu0
        %v3690 = vadd.f32 %v3580, %v3689
        %3691 = vmatmul.bf16.gmra.mxu0 %v3540
        %v3692 = vpop.f32.mrf.mxu0
        %v3693 = vadd.f32 %v3580, %v3692
        %v3694 = vpop.f32.mrf.mxu0
        %v3695 = vadd.f32 %v3580, %v3694
        %3696 = vmatmul.bf16.gmra.mxu0 %v3542
        %v3697 = vpop.f32.mrf.mxu0
        %v3698 = vadd.f32 %v3580, %v3697
        %v3699 = vpop.f32.mrf.mxu0
        %v3700 = vadd.f32 %v3580, %v3699
        %3701 = vmatmul.bf16.gmra.mxu0 %v3544
        %v3702 = vpop.f32.mrf.mxu0
        %v3703 = vadd.f32 %v3580, %v3702
        %v3704 = vpop.f32.mrf.mxu0
        %v3705 = vadd.f32 %v3580, %v3704
        %3706 = vdwg.mxu0
        %3707 = vmatpush.bf16.msra.mxu0 %v3661
        %3708 = vmatpush.bf16.msra.mxu0 %v3660
        %3709 = vmatpush.bf16.msra.mxu0 %v3659
        %3710 = vmatpush.bf16.msra.mxu0 %v3658
        %3711 = vmatpush.bf16.msra.mxu0 %v3657
        %3712 = vmatpush.bf16.msra.mxu0 %v3656
        %3713 = vmatpush.bf16.msra.mxu0 %v3655
        %3714 = vmatpush.bf16.msra.mxu0 %v3654
        %3715 = vmatmul.bf16.gmra.mxu0 %v3539
        %v3716 = vpop.f32.mrf.mxu0
        %v3717 = vadd.f32 %v3688, %v3716
        %v3718 = vpop.f32.mrf.mxu0
        %v3719 = vadd.f32 %v3690, %v3718
        %3720 = vmatmul.bf16.gmra.mxu0 %v3541
        %v3721 = vpop.f32.mrf.mxu0
        %v3722 = vadd.f32 %v3693, %v3721
        %v3723 = vpop.f32.mrf.mxu0
        %v3724 = vadd.f32 %v3695, %v3723
        %3725 = vmatmul.bf16.gmra.mxu0 %v3543
        %v3726 = vpop.f32.mrf.mxu0
        %v3727 = vadd.f32 %v3698, %v3726
        %v3728 = vpop.f32.mrf.mxu0
        %v3729 = vadd.f32 %v3700, %v3728
        %3730 = vmatmul.bf16.gmra.mxu0 %v3545
        %v3731 = vpop.f32.mrf.mxu0
        %v3732 = vadd.f32 %v3703, %v3731
        %v3733 = vpop.f32.mrf.mxu0
        %v3734 = vadd.f32 %v3705, %v3733
        %3735 = vdwg.mxu0
        %v3736 = vadd.f32 %v3350, %v3717
        %v3737 = vadd.f32 %v3351, %v3719
        %v3738 = vadd.f32 %v3352, %v3722
        %v3739 = vadd.f32 %v3353, %v3724
        %v3740 = vadd.f32 %v3354, %v3727
        %v3741 = vadd.f32 %v3355, %v3729
        %v3742 = vadd.f32 %v3356, %v3732
        %v3743 = vadd.f32 %v3357, %v3734
        %v3744 = vld [vmem:[%s16] sm:$0x1]
        %v3745 = vld [vmem:[%s17] sm:$0x1]
        %3746 = vadd.xlane.f32.xlu0 %v3736
        %v3747 = vpop.xlane.xlu0 %3746
        %3748 = vadd.xlane.f32.xlu0 %v3737
        %v3749 = vpop.xlane.xlu0 %3748
        %3750 = vadd.xlane.f32.xlu0 %v3738
        %v3751 = vpop.xlane.xlu0 %3750
        %3752 = vadd.xlane.f32.xlu0 %v3739
        %v3753 = vpop.xlane.xlu0 %3752
        %3754 = vadd.xlane.f32.xlu0 %v3740
        %v3755 = vpop.xlane.xlu0 %3754
        %3756 = vadd.xlane.f32.xlu0 %v3741
        %v3757 = vpop.xlane.xlu0 %3756
        %3758 = vadd.xlane.f32.xlu0 %v3742
        %v3759 = vpop.xlane.xlu0 %3758
        %3760 = vadd.xlane.f32.xlu0 %v3743
        %v3761 = vpop.xlane.xlu0 %3760
        %v3762 = vmul.f32 %v3747, %v3056
        %v3763 = vmul.f32 %v3749, %v3056
        %v3764 = vmul.f32 %v3751, %v3056
        %v3765 = vmul.f32 %v3753, %v3056
        %v3766 = vmul.f32 %v3755, %v3056
        %v3767 = vmul.f32 %v3757, %v3056
        %v3768 = vmul.f32 %v3759, %v3056
        %v3769 = vmul.f32 %v3761, %v3056
        %v3770 = vsub.f32 %v3736, %v3762
        %v3771 = vsub.f32 %v3737, %v3763
        %v3772 = vsub.f32 %v3738, %v3764
        %v3773 = vsub.f32 %v3739, %v3765
        %v3774 = vsub.f32 %v3740, %v3766
        %v3775 = vsub.f32 %v3741, %v3767
        %v3776 = vsub.f32 %v3742, %v3768
        %v3777 = vsub.f32 %v3743, %v3769
        %v3778 = vmul.f32 %v3770, %v3770
        %v3779 = vmul.f32 %v3771, %v3771
        %v3780 = vmul.f32 %v3772, %v3772
        %v3781 = vmul.f32 %v3773, %v3773
        %v3782 = vmul.f32 %v3774, %v3774
        %v3783 = vmul.f32 %v3775, %v3775
        %v3784 = vmul.f32 %v3776, %v3776
        %v3785 = vmul.f32 %v3777, %v3777
        %3786 = vadd.xlane.f32.xlu0 %v3778
        %v3787 = vpop.xlane.xlu0 %3786
        %3788 = vadd.xlane.f32.xlu0 %v3779
        %v3789 = vpop.xlane.xlu0 %3788
        %3790 = vadd.xlane.f32.xlu0 %v3780
        %v3791 = vpop.xlane.xlu0 %3790
        %3792 = vadd.xlane.f32.xlu0 %v3781
        %v3793 = vpop.xlane.xlu0 %3792
        %3794 = vadd.xlane.f32.xlu0 %v3782
        %v3795 = vpop.xlane.xlu0 %3794
        %3796 = vadd.xlane.f32.xlu0 %v3783
        %v3797 = vpop.xlane.xlu0 %3796
        %3798 = vadd.xlane.f32.xlu0 %v3784
        %v3799 = vpop.xlane.xlu0 %3798
        %3800 = vadd.xlane.f32.xlu0 %v3785
        %v3801 = vpop.xlane.xlu0 %3800
        %v3802 = vmul.f32 %v3787, %v3103
        %v3803 = vmul.f32 %v3789, %v3103
        %v3804 = vmul.f32 %v3791, %v3103
        %v3805 = vmul.f32 %v3793, %v3103
        %v3806 = vmul.f32 %v3795, %v3103
        %v3807 = vmul.f32 %v3797, %v3103
        %v3808 = vmul.f32 %v3799, %v3103
        %v3809 = vmul.f32 %v3801, %v3103
        %v3810 = vrsqrt.pop %v3802
        %v3811 = vmul.f32 %v3810, %v3802
        %v3812 = vmul.f32 %v3811, %v3810
        %v3813 = vmul.f32 0.5, %v3812
        %v3814 = vsub.f32 1.5, %v3813
        %v3815 = vmul.f32 %v3810, %v3814
        %v3816 = vmul.f32 %v3802, %v3815
        %vm3817 = vcmp.eq.f32.partialorder %v3802, inf
        %v3818 = vsel %vm3817, %v3802, %v3816
        %vm3819 = vcmp.eq.f32.partialorder %v3802, 0.0
        %v3820 = vand.u32 %v3802, 2147483648
        %v3821 = vsel %vm3819, %v3820, %v3818
        %v3822 = vrsqrt.pop %v3803
        %v3823 = vmul.f32 %v3822, %v3803
        %v3824 = vmul.f32 %v3823, %v3822
        %v3825 = vmul.f32 0.5, %v3824
        %v3826 = vsub.f32 1.5, %v3825
        %v3827 = vmul.f32 %v3822, %v3826
        %v3828 = vmul.f32 %v3803, %v3827
        %vm3829 = vcmp.eq.f32.partialorder %v3803, inf
        %v3830 = vsel %vm3829, %v3803, %v3828
        %vm3831 = vcmp.eq.f32.partialorder %v3803, 0.0
        %v3832 = vand.u32 %v3803, 2147483648
        %v3833 = vsel %vm3831, %v3832, %v3830
        %v3834 = vrsqrt.pop %v3804
        %v3835 = vmul.f32 %v3834, %v3804
        %v3836 = vmul.f32 %v3835, %v3834
        %v3837 = vmul.f32 0.5, %v3836
        %v3838 = vsub.f32 1.5, %v3837
        %v3839 = vmul.f32 %v3834, %v3838
        %v3840 = vmul.f32 %v3804, %v3839
        %vm3841 = vcmp.eq.f32.partialorder %v3804, inf
        %v3842 = vsel %vm3841, %v3804, %v3840
        %vm3843 = vcmp.eq.f32.partialorder %v3804, 0.0
        %v3844 = vand.u32 %v3804, 2147483648
        %v3845 = vsel %vm3843, %v3844, %v3842
        %v3846 = vrsqrt.pop %v3805
        %v3847 = vmul.f32 %v3846, %v3805
        %v3848 = vmul.f32 %v3847, %v3846
        %v3849 = vmul.f32 0.5, %v3848
        %v3850 = vsub.f32 1.5, %v3849
        %v3851 = vmul.f32 %v3846, %v3850
        %v3852 = vmul.f32 %v3805, %v3851
        %vm3853 = vcmp.eq.f32.partialorder %v3805, inf
        %v3854 = vsel %vm3853, %v3805, %v3852
        %vm3855 = vcmp.eq.f32.partialorder %v3805, 0.0
        %v3856 = vand.u32 %v3805, 2147483648
        %v3857 = vsel %vm3855, %v3856, %v3854
        %v3858 = vrsqrt.pop %v3806
        %v3859 = vmul.f32 %v3858, %v3806
        %v3860 = vmul.f32 %v3859, %v3858
        %v3861 = vmul.f32 0.5, %v3860
        %v3862 = vsub.f32 1.5, %v3861
        %v3863 = vmul.f32 %v3858, %v3862
        %v3864 = vmul.f32 %v3806, %v3863
        %vm3865 = vcmp.eq.f32.partialorder %v3806, inf
        %v3866 = vsel %vm3865, %v3806, %v3864
        %vm3867 = vcmp.eq.f32.partialorder %v3806, 0.0
        %v3868 = vand.u32 %v3806, 2147483648
        %v3869 = vsel %vm3867, %v3868, %v3866
        %v3870 = vrsqrt.pop %v3807
        %v3871 = vmul.f32 %v3870, %v3807
        %v3872 = vmul.f32 %v3871, %v3870
        %v3873 = vmul.f32 0.5, %v3872
        %v3874 = vsub.f32 1.5, %v3873
        %v3875 = vmul.f32 %v3870, %v3874
        %v3876 = vmul.f32 %v3807, %v3875
        %vm3877 = vcmp.eq.f32.partialorder %v3807, inf
        %v3878 = vsel %vm3877, %v3807, %v3876
        %vm3879 = vcmp.eq.f32.partialorder %v3807, 0.0
        %v3880 = vand.u32 %v3807, 2147483648
        %v3881 = vsel %vm3879, %v3880, %v3878
        %v3882 = vrsqrt.pop %v3808
        %v3883 = vmul.f32 %v3882, %v3808
        %v3884 = vmul.f32 %v3883, %v3882
        %v3885 = vmul.f32 0.5, %v3884
        %v3886 = vsub.f32 1.5, %v3885
        %v3887 = vmul.f32 %v3882, %v3886
        %v3888 = vmul.f32 %v3808, %v3887
        %vm3889 = vcmp.eq.f32.partialorder %v3808, inf
        %v3890 = vsel %vm3889, %v3808, %v3888
        %vm3891 = vcmp.eq.f32.partialorder %v3808, 0.0
        %v3892 = vand.u32 %v3808, 2147483648
        %v3893 = vsel %vm3891, %v3892, %v3890
        %v3894 = vrsqrt.pop %v3809
        %v3895 = vmul.f32 %v3894, %v3809
        %v3896 = vmul.f32 %v3895, %v3894
        %v3897 = vmul.f32 0.5, %v3896
        %v3898 = vsub.f32 1.5, %v3897
        %v3899 = vmul.f32 %v3894, %v3898
        %v3900 = vmul.f32 %v3809, %v3899
        %vm3901 = vcmp.eq.f32.partialorder %v3809, inf
        %v3902 = vsel %vm3901, %v3809, %v3900
        %vm3903 = vcmp.eq.f32.partialorder %v3809, 0.0
        %v3904 = vand.u32 %v3809, 2147483648
        %v3905 = vsel %vm3903, %v3904, %v3902
        %v3906 = vadd.f32 %v3821, 1e-12
        %v3907 = vadd.f32 %v3833, 1e-12
        %v3908 = vadd.f32 %v3845, 1e-12
        %v3909 = vadd.f32 %v3857, 1e-12
        %v3910 = vadd.f32 %v3869, 1e-12
        %v3911 = vadd.f32 %v3881, 1e-12
        %v3912 = vadd.f32 %v3893, 1e-12
        %v3913 = vadd.f32 %v3905, 1e-12
        %v3914 = vrcp.pop %v3906
        %v3915 = vmul.f32 %v3906, %v3914
        %v3916 = vsub.f32 1.0, %v3915
        %v3917 = vmul.f32 %v3914, %v3916
        %v3918 = vadd.f32 %v3914, %v3917
        %vm3919 = vweird.f32 %v3906
        %vm3920 = vweird.f32 %v3914
        %vm3921 = vmor %vm3919, %vm3920
        %v3922 = vsel %vm3921, %v3914, %v3918
        %v3923 = vand.u32 2147483647, %v3906
        %vm3924 = vcmp.eq.f32.partialorder %v3923, 8.507059e+37
        %v3925 = vand.u32 %v3906, 2147483648
        %v3926 = vor.u32 1.1754944e-38, %v3925
        %v3927 = vsel %vm3924, %v3926, %v3922
        %v3928 = vmul.f32 %v3770, %v3927
        %v3929 = vrcp.pop %v3907
        %v3930 = vmul.f32 %v3907, %v3929
        %v3931 = vsub.f32 1.0, %v3930
        %v3932 = vmul.f32 %v3929, %v3931
        %v3933 = vadd.f32 %v3929, %v3932
        %vm3934 = vweird.f32 %v3907
        %vm3935 = vweird.f32 %v3929
        %vm3936 = vmor %vm3934, %vm3935
        %v3937 = vsel %vm3936, %v3929, %v3933
        %v3938 = vand.u32 2147483647, %v3907
        %vm3939 = vcmp.eq.f32.partialorder %v3938, 8.507059e+37
        %v3940 = vand.u32 %v3907, 2147483648
        %v3941 = vor.u32 1.1754944e-38, %v3940
        %v3942 = vsel %vm3939, %v3941, %v3937
        %v3943 = vmul.f32 %v3771, %v3942
        %v3944 = vrcp.pop %v3908
        %v3945 = vmul.f32 %v3908, %v3944
        %v3946 = vsub.f32 1.0, %v3945
        %v3947 = vmul.f32 %v3944, %v3946
        %v3948 = vadd.f32 %v3944, %v3947
        %vm3949 = vweird.f32 %v3908
        %vm3950 = vweird.f32 %v3944
        %vm3951 = vmor %vm3949, %vm3950
        %v3952 = vsel %vm3951, %v3944, %v3948
        %v3953 = vand.u32 2147483647, %v3908
        %vm3954 = vcmp.eq.f32.partialorder %v3953, 8.507059e+37
        %v3955 = vand.u32 %v3908, 2147483648
        %v3956 = vor.u32 1.1754944e-38, %v3955
        %v3957 = vsel %vm3954, %v3956, %v3952
        %v3958 = vmul.f32 %v3772, %v3957
        %v3959 = vrcp.pop %v3909
        %v3960 = vmul.f32 %v3909, %v3959
        %v3961 = vsub.f32 1.0, %v3960
        %v3962 = vmul.f32 %v3959, %v3961
        %v3963 = vadd.f32 %v3959, %v3962
        %vm3964 = vweird.f32 %v3909
        %vm3965 = vweird.f32 %v3959
        %vm3966 = vmor %vm3964, %vm3965
        %v3967 = vsel %vm3966, %v3959, %v3963
        %v3968 = vand.u32 2147483647, %v3909
        %vm3969 = vcmp.eq.f32.partialorder %v3968, 8.507059e+37
        %v3970 = vand.u32 %v3909, 2147483648
        %v3971 = vor.u32 1.1754944e-38, %v3970
        %v3972 = vsel %vm3969, %v3971, %v3967
        %v3973 = vmul.f32 %v3773, %v3972
        %v3974 = vrcp.pop %v3910
        %v3975 = vmul.f32 %v3910, %v3974
        %v3976 = vsub.f32 1.0, %v3975
        %v3977 = vmul.f32 %v3974, %v3976
        %v3978 = vadd.f32 %v3974, %v3977
        %vm3979 = vweird.f32 %v3910
        %vm3980 = vweird.f32 %v3974
        %vm3981 = vmor %vm3979, %vm3980
        %v3982 = vsel %vm3981, %v3974, %v3978
        %v3983 = vand.u32 2147483647, %v3910
        %vm3984 = vcmp.eq.f32.partialorder %v3983, 8.507059e+37
        %v3985 = vand.u32 %v3910, 2147483648
        %v3986 = vor.u32 1.1754944e-38, %v3985
        %v3987 = vsel %vm3984, %v3986, %v3982
        %v3988 = vmul.f32 %v3774, %v3987
        %v3989 = vrcp.pop %v3911
        %v3990 = vmul.f32 %v3911, %v3989
        %v3991 = vsub.f32 1.0, %v3990
        %v3992 = vmul.f32 %v3989, %v3991
        %v3993 = vadd.f32 %v3989, %v3992
        %vm3994 = vweird.f32 %v3911
        %vm3995 = vweird.f32 %v3989
        %vm3996 = vmor %vm3994, %vm3995
        %v3997 = vsel %vm3996, %v3989, %v3993
        %v3998 = vand.u32 2147483647, %v3911
        %vm3999 = vcmp.eq.f32.partialorder %v3998, 8.507059e+37
        %v4000 = vand.u32 %v3911, 2147483648
        %v4001 = vor.u32 1.1754944e-38, %v4000
        %v4002 = vsel %vm3999, %v4001, %v3997
        %v4003 = vmul.f32 %v3775, %v4002
        %v4004 = vrcp.pop %v3912
        %v4005 = vmul.f32 %v3912, %v4004
        %v4006 = vsub.f32 1.0, %v4005
        %v4007 = vmul.f32 %v4004, %v4006
        %v4008 = vadd.f32 %v4004, %v4007
        %vm4009 = vweird.f32 %v3912
        %vm4010 = vweird.f32 %v4004
        %vm4011 = vmor %vm4009, %vm4010
        %v4012 = vsel %vm4011, %v4004, %v4008
        %v4013 = vand.u32 2147483647, %v3912
        %vm4014 = vcmp.eq.f32.partialorder %v4013, 8.507059e+37
        %v4015 = vand.u32 %v3912, 2147483648
        %v4016 = vor.u32 1.1754944e-38, %v4015
        %v4017 = vsel %vm4014, %v4016, %v4012
        %v4018 = vmul.f32 %v3776, %v4017
        %v4019 = vrcp.pop %v3913
        %v4020 = vmul.f32 %v3913, %v4019
        %v4021 = vsub.f32 1.0, %v4020
        %v4022 = vmul.f32 %v4019, %v4021
        %v4023 = vadd.f32 %v4019, %v4022
        %vm4024 = vweird.f32 %v3913
        %vm4025 = vweird.f32 %v4019
        %vm4026 = vmor %vm4024, %vm4025
        %v4027 = vsel %vm4026, %v4019, %v4023
        %v4028 = vand.u32 2147483647, %v3913
        %vm4029 = vcmp.eq.f32.partialorder %v4028, 8.507059e+37
        %v4030 = vand.u32 %v3913, 2147483648
        %v4031 = vor.u32 1.1754944e-38, %v4030
        %v4032 = vsel %vm4029, %v4031, %v4027
        %v4033 = vmul.f32 %v3777, %v4032
        %v4035 = vperm.slane %v3744, 0
        %v4037 = vmul.f32 %v4035, %v3928
        %v4038 = vmul.f32 %v4035, %v3943
        %v4039 = vmul.f32 %v4035, %v3958
        %v4040 = vmul.f32 %v4035, %v3973
        %v4041 = vmul.f32 %v4035, %v3988
        %v4042 = vmul.f32 %v4035, %v4003
        %v4043 = vmul.f32 %v4035, %v4018
        %v4044 = vmul.f32 %v4035, %v4033
        %v4046 = vperm.slane %v3745, 0
        %v4048 = vadd.f32 %v4037, %v4046
        %v4049 = vadd.f32 %v4038, %v4046
        %v4050 = vadd.f32 %v4039, %v4046
        %v4051 = vadd.f32 %v4040, %v4046
        %v4052 = vadd.f32 %v4041, %v4046
        %v4053 = vadd.f32 %v4042, %v4046
        %v4054 = vadd.f32 %v4043, %v4046
        %v4055 = vadd.f32 %v4044, %v4046
        %4056 = vst [vmem:[%s608] sm:$0xff] %v4048
        %4057 = vst [vmem:[%s608 + $0x8] sm:$0xff] %v4049
        %4058 = vst [vmem:[%s608 + $0x10] sm:$0xff] %v4050
        %4059 = vst [vmem:[%s608 + $0x18] sm:$0xff] %v4051
        %4060 = vst [vmem:[%s608 + $0x20] sm:$0xff] %v4052
        %4061 = vst [vmem:[%s608 + $0x28] sm:$0xff] %v4053
        %4062 = vst [vmem:[%s608 + $0x30] sm:$0xff] %v4054
        %4063 = vst [vmem:[%s608 + $0x38] sm:$0xff] %v4055
        %s4064 = sand.u32 %s444, 1
        %s4065 = scalar_lea.sflag [#allocation3], %s4064
        %s4066 = sand.u32 %s444, 1
        %s4067 = smul.addr %s4066, 64
        %s4068 = scalar_lea.vmem [#allocation2], %s4067
        // Predicated region
        $region93: #{encoder_forward.5} parent=91 // pred_check
          %p4069 = pneg %p454
        $region94: #{encoder_forward.5} parent=91 // pred_check_branch
          %4071 = sbr.rel (%p4069) target = $region96
        $region95: #{encoder_forward.5} parent=91 // pred_region
          %s4072 = smul.u32 8, %s37
          %4074 = vsyncadd %s4065, 0
          %s4075 = smul.addr %s36, 16
          %s4076 = sadd.s32 %s4072, %s4075
          %s4077 = smul.addr %s4076, 8
          %s4078 = scalar_lea.hbm %s18, %s4077
          %s4079 = sshll.u32 %s4068, 4
          %s4080 = int_to_ptr.vmem [resolvable:$true] %s4079
          %s4081 = sshll.u32 %s4078, 4
          %s4082 = int_to_ptr.hbm [resolvable:$true] %s4081
          %4087 = dma.vmem_to_hbm [thread:$0]  %s4080, 1024, %s4082, %s4065, 128, 128, 8
        $region96: #{encoder_forward.5} parent=91 // pred_fallthru
          _
      $region92: #{encoder_forward.5} parent=5 // pred_fallthru
        _
      %p4088 = scmp.le.s32.totalorder 2, %s27
      // Predicated region
      $region97: #{encoder_forward.5} parent=5 // pred_check
        %p4089 = pneg %p4088
      $region98: #{encoder_forward.5} parent=5 // pred_check_branch
        %4091 = sbr.rel (%p4089) target = $region100
      $region99: #{encoder_forward.5} parent=5 // pred_region
        %s4092 = ssub.s32 %s27, 2
        // Predicated region
        $region101: #{encoder_forward.5} parent=99 // pred_check
          %p4093 = pneg %p460
        $region102: #{encoder_forward.5} parent=99 // pred_check_branch
          %4095 = sbr.rel (%p4093) target = $region104
        $region103: #{encoder_forward.5} parent=99 // pred_region
          %s4096 = sand.u32 %s445, 1
          %s4097 = scalar_lea.sflag [#allocation3], %s4096
          %s4098 = sand.u32 %s445, 1
          %s4099 = smul.addr %s4098, 64
          %s4100 = scalar_lea.vmem [#allocation2], %s4099
          %4102 = dma.done %s4097, 1024
        $region104: #{encoder_forward.5} parent=99 // pred_fallthru
          _
      $region100: #{encoder_forward.5} parent=5 // pred_fallthru
        _
    $region6: #{encoder_forward.5} parent=1 // loop_footer
      %s31 = sadd.s32 1, %s27
    $region7: #{encoder_forward.5} parent=1 // loop_footer_branch
      %26 = sbr.rel target = $region3
    $region8: #{encoder_forward.5} parent=1 // loop_exit
      _
    %4103 = vsyncpa [#allocation3], 1
    %s4104 = scalar_lea.sflag [#allocation3], 1
    %4105 = vsyncpa %s4104, 1

// kernel: encoder_forward.4
$region0: #{encoder_forward.4}
  #allocation0 [shape = 'u32[]', space=smem, size = 0x4, offset = 0x4, fixed_abs, tag = 'smem constant byte address 0x4 - core index']
  #allocation1 [shape = 'u32[72,128]{1,0:T(1,128)}', space=vmem, size = 0x9000, scoped, tag = 'internal scratch']
  %s0 = inlined_call_operand.vmem [shape: f32[2,128,128], index: 0, kind: input, shape index: {}, may-alias: {0,1}]
  %s1 = inlined_call_operand.vmem [shape: f32[2,128,128], index: 1, kind: input, shape index: {}, may-alias: {0,1}]
  %s2 = inlined_call_operand.vmem [shape: bf16[128,128], index: 2, kind: input, shape index: {}]
  %s3 = inlined_call_operand.vmem [shape: f32[1,128], index: 3, kind: input, shape index: {}]
  %s4 = inlined_call_operand.vmem [shape: bf16[128,128], index: 4, kind: input, shape index: {}]
  %s5 = inlined_call_operand.vmem [shape: f32[1,128], index: 5, kind: input, shape index: {}]
  %s6 = inlined_call_operand.vmem [shape: bf16[128,128], index: 6, kind: input, shape index: {}]
  %s7 = inlined_call_operand.vmem [shape: f32[1,128], index: 7, kind: input, shape index: {}]
  %s8 = inlined_call_operand.vmem [shape: bf16[128,128], index: 8, kind: input, shape index: {}]
  %s9 = inlined_call_operand.vmem [shape: f32[1,128], index: 9, kind: input, shape index: {}]
  %s10 = inlined_call_operand.vmem [shape: f32[1,128], index: 10, kind: input, shape index: {}]
  %s11 = inlined_call_operand.vmem [shape: f32[1,128], index: 11, kind: input, shape index: {}]
  %s12 = inlined_call_operand.vmem [shape: bf16[128,256], index: 12, kind: input, shape index: {}]
  %s13 = inlined_call_operand.vmem [shape: f32[1,256], index: 13, kind: input, shape index: {}]
  %s14 = inlined_call_operand.vmem [shape: bf16[256,128], index: 14, kind: input, shape index: {}]
  %s15 = inlined_call_operand.vmem [shape: f32[1,128], index: 15, kind: input, shape index: {}]
  %s16 = inlined_call_operand.vmem [shape: f32[1,128], index: 16, kind: input, shape index: {}]
  %s17 = inlined_call_operand.vmem [shape: f32[1,128], index: 17, kind: input, shape index: {}]
  %s18 = inlined_call_operand.vmem [shape: f32[2,128,128], index: 18, kind: output, shape index: {}]
  %s19 = sld [smem:[#allocation0]]
  $region105: #{encoder_forward.4} parent=0
    _
  %s21 = ssub.s32 1, %s19
  %s22 = scalar_select 0, %s21, %s19
  loop: start=0, step=1, limit=6
  $region2: #{encoder_forward.4} parent=0 // loop_pre_header
    _
  $region3: #{encoder_forward.4} parent=0 // loop_header
    %s24 = sphi 0, %s28
    %p25 = scmp.ge.s32.totalorder %s24, 6
    %s31 = sphi 0, %s43
    %s32 = sphi 0, %s39
    %s33 = sphi 0, %s31
    %s34 = sphi 0, %s32
    %s35 = sphi 0, %s33
    %s36 = sphi 0, %s34
    %s48 = sphi 0, %s50
    %s51 = sphi 0, %s48
    %s52 = sphi 0, %s51
    %s68 = sphi 0, %s52
    %s74 = sphi 0, %s76
    %s77 = sphi 0, %s74
    %s78 = sphi 0, %s77
    %s94 = sphi 0, %s78
    %s98 = sphi 0, %s98
    %s100 = sphi 0, %s98
    %s101 = sphi 0, %s100
    %s115 = sphi 0, %s101
    %s119 = sphi 0, %s119
    %s121 = sphi 0, %s119
    %s122 = sphi 0, %s121
    %s136 = sphi 0, %s122
    %s140 = sphi 0, %s140
    %s142 = sphi 0, %s140
    %s143 = sphi 0, %s142
    %s157 = sphi 0, %s143
    %s161 = sphi 0, %s161
    %s163 = sphi 0, %s161
    %s164 = sphi 0, %s163
    %s178 = sphi 0, %s164
    %s182 = sphi 0, %s182
    %s184 = sphi 0, %s182
    %s185 = sphi 0, %s184
    %s199 = sphi 0, %s185
    %s203 = sphi 0, %s203
    %s205 = sphi 0, %s203
    %s206 = sphi 0, %s205
    %s220 = sphi 0, %s206
    %s224 = sphi 0, %s224
    %s226 = sphi 0, %s224
    %s227 = sphi 0, %s226
    %s241 = sphi 0, %s227
    %s245 = sphi 0, %s245
    %s247 = sphi 0, %s245
    %s248 = sphi 0, %s247
    %s262 = sphi 0, %s248
    %s266 = sphi 0, %s266
    %s268 = sphi 0, %s266
    %s269 = sphi 0, %s268
    %s283 = sphi 0, %s269
    %s287 = sphi 0, %s287
    %s289 = sphi 0, %s287
    %s290 = sphi 0, %s289
    %s304 = sphi 0, %s290
    %s308 = sphi 0, %s308
    %s310 = sphi 0, %s308
    %s311 = sphi 0, %s310
    %s325 = sphi 0, %s311
    %s329 = sphi 0, %s329
    %s331 = sphi 0, %s329
    %s332 = sphi 0, %s331
    %s346 = sphi 0, %s332
    %s350 = sphi 0, %s350
    %s352 = sphi 0, %s350
    %s353 = sphi 0, %s352
    %s367 = sphi 0, %s353
    %s371 = sphi 0, %s371
    %s373 = sphi 0, %s371
    %s374 = sphi 0, %s373
    %s388 = sphi 0, %s374
    %s392 = sphi 0, %s392
    %s394 = sphi 0, %s392
    %s395 = sphi 0, %s394
    %s409 = sphi 0, %s395
    %s413 = sphi 0, %s413
    %s415 = sphi 0, %s413
    %s416 = sphi 0, %s415
    %s430 = sphi 0, %s416
    %s438 = sphi 0, %s440
    %s441 = sphi 0, %s438
    %s442 = sphi 0, %s441
    %s458 = sphi 0, %s442
  $region4: #{encoder_forward.4} parent=0 // loop_header_branch
    %27 = sbr.rel (%p25) target = $region8
  $region5: #{encoder_forward.4} parent=0 // loop_body
    %s29 = ssub.s32 %s24, 1
    %s30 = ssub.s32 %s24, 2
    %s37 = sadd.s32 1, %s32
    %p38 = scmp.ge.s32.totalorder %s37, 2
    %s39 = scalar_select %p38, 0, %s37
    %s40 = sadd.s32 1, %s31
    %s41 = scalar_select %p38, %s40, %s31
    %p42 = scmp.ge.s32.totalorder %s41, 2
    %s43 = scalar_select %p42, 0, %s41
    %s44 = ssub.s32 %s31, %s43
    %s45 = ssub.s32 %s32, %s39
    %s46 = sor.u32 %s44, %s45
    %p47 = scmp.eq.s32.totalorder %s46, 0
    %s49 = sadd.s32 %s48, 1
    %s50 = scalar_select %p47, %s48, %s49
    %p53 = pneg %p47
    %p54 = scmp.eq.s32.totalorder %s24, 3
    %p55 = por %p53, %p54
    %p56 = scmp.ne.s32.totalorder %s48, %s51
    %p57 = scmp.eq.s32.totalorder %s24, 0
    %p58 = por %p56, %p57
    %p59 = scmp.ne.s32.totalorder %s48, %s51
    %p60 = scmp.eq.s32.totalorder %s29, 3
    %p61 = por %p59, %p60
    %p62 = scmp.ne.s32.totalorder %s51, %s52
    %p63 = scmp.eq.s32.totalorder %s29, 0
    %p64 = por %p62, %p63
    %p65 = scmp.ne.s32.totalorder %s51, %s52
    %p66 = scmp.eq.s32.totalorder %s30, 3
    %p67 = por %p65, %p66
    %p69 = scmp.ne.s32.totalorder %s52, %s68
    %p70 = scmp.eq.s32.totalorder %s30, 0
    %p71 = por %p69, %p70
    %s72 = ssub.s32 %s31, %s43
    %p73 = scmp.eq.s32.totalorder %s72, 0
    %s75 = sadd.s32 %s74, 1
    %s76 = scalar_select %p73, %s74, %s75
    %p79 = pneg %p73
    %p80 = scmp.eq.s32.totalorder %s24, 3
    %p81 = por %p79, %p80
    %p82 = scmp.ne.s32.totalorder %s74, %s77
    %p83 = scmp.eq.s32.totalorder %s24, 0
    %p84 = por %p82, %p83
    %p85 = scmp.ne.s32.totalorder %s74, %s77
    %p86 = scmp.eq.s32.totalorder %s29, 3
    %p87 = por %p85, %p86
    %p88 = scmp.ne.s32.totalorder %s77, %s78
    %p89 = scmp.eq.s32.totalorder %s29, 0
    %p90 = por %p88, %p89
    %p91 = scmp.ne.s32.totalorder %s77, %s78
    %p92 = scmp.eq.s32.totalorder %s30, 3
    %p93 = por %p91, %p92
    %p95 = scmp.ne.s32.totalorder %s78, %s94
    %p96 = scmp.eq.s32.totalorder %s30, 0
    %p97 = por %p95, %p96
    %s99 = sadd.s32 %s98, 1
    %p102 = scmp.eq.s32.totalorder %s24, 3
    %p103 = scmp.ne.s32.totalorder %s98, %s100
    %p104 = scmp.eq.s32.totalorder %s24, 0
    %p105 = por %p103, %p104
    %p106 = scmp.ne.s32.totalorder %s98, %s100
    %p107 = scmp.eq.s32.totalorder %s29, 3
    %p108 = por %p106, %p107
    %p109 = scmp.ne.s32.totalorder %s100, %s101
    %p110 = scmp.eq.s32.totalorder %s29, 0
    %p111 = por %p109, %p110
    %p112 = scmp.ne.s32.totalorder %s100, %s101
    %p113 = scmp.eq.s32.totalorder %s30, 3
    %p114 = por %p112, %p113
    %p116 = scmp.ne.s32.totalorder %s101, %s115
    %p117 = scmp.eq.s32.totalorder %s30, 0
    %p118 = por %p116, %p117
    %s120 = sadd.s32 %s119, 1
    %p123 = scmp.eq.s32.totalorder %s24, 3
    %p124 = scmp.ne.s32.totalorder %s119, %s121
    %p125 = scmp.eq.s32.totalorder %s24, 0
    %p126 = por %p124, %p125
    %p127 = scmp.ne.s32.totalorder %s119, %s121
    %p128 = scmp.eq.s32.totalorder %s29, 3
    %p129 = por %p127, %p128
    %p130 = scmp.ne.s32.totalorder %s121, %s122
    %p131 = scmp.eq.s32.totalorder %s29, 0
    %p132 = por %p130, %p131
    %p133 = scmp.ne.s32.totalorder %s121, %s122
    %p134 = scmp.eq.s32.totalorder %s30, 3
    %p135 = por %p133, %p134
    %p137 = scmp.ne.s32.totalorder %s122, %s136
    %p138 = scmp.eq.s32.totalorder %s30, 0
    %p139 = por %p137, %p138
    %s141 = sadd.s32 %s140, 1
    %p144 = scmp.eq.s32.totalorder %s24, 3
    %p145 = scmp.ne.s32.totalorder %s140, %s142
    %p146 = scmp.eq.s32.totalorder %s24, 0
    %p147 = por %p145, %p146
    %p148 = scmp.ne.s32.totalorder %s140, %s142
    %p149 = scmp.eq.s32.totalorder %s29, 3
    %p150 = por %p148, %p149
    %p151 = scmp.ne.s32.totalorder %s142, %s143
    %p152 = scmp.eq.s32.totalorder %s29, 0
    %p153 = por %p151, %p152
    %p154 = scmp.ne.s32.totalorder %s142, %s143
    %p155 = scmp.eq.s32.totalorder %s30, 3
    %p156 = por %p154, %p155
    %p158 = scmp.ne.s32.totalorder %s143, %s157
    %p159 = scmp.eq.s32.totalorder %s30, 0
    %p160 = por %p158, %p159
    %s162 = sadd.s32 %s161, 1
    %p165 = scmp.eq.s32.totalorder %s24, 3
    %p166 = scmp.ne.s32.totalorder %s161, %s163
    %p167 = scmp.eq.s32.totalorder %s24, 0
    %p168 = por %p166, %p167
    %p169 = scmp.ne.s32.totalorder %s161, %s163
    %p170 = scmp.eq.s32.totalorder %s29, 3
    %p171 = por %p169, %p170
    %p172 = scmp.ne.s32.totalorder %s163, %s164
    %p173 = scmp.eq.s32.totalorder %s29, 0
    %p174 = por %p172, %p173
    %p175 = scmp.ne.s32.totalorder %s163, %s164
    %p176 = scmp.eq.s32.totalorder %s30, 3
    %p177 = por %p175, %p176
    %p179 = scmp.ne.s32.totalorder %s164, %s178
    %p180 = scmp.eq.s32.totalorder %s30, 0
    %p181 = por %p179, %p180
    %s183 = sadd.s32 %s182, 1
    %p186 = scmp.eq.s32.totalorder %s24, 3
    %p187 = scmp.ne.s32.totalorder %s182, %s184
    %p188 = scmp.eq.s32.totalorder %s24, 0
    %p189 = por %p187, %p188
    %p190 = scmp.ne.s32.totalorder %s182, %s184
    %p191 = scmp.eq.s32.totalorder %s29, 3
    %p192 = por %p190, %p191
    %p193 = scmp.ne.s32.totalorder %s184, %s185
    %p194 = scmp.eq.s32.totalorder %s29, 0
    %p195 = por %p193, %p194
    %p196 = scmp.ne.s32.totalorder %s184, %s185
    %p197 = scmp.eq.s32.totalorder %s30, 3
    %p198 = por %p196, %p197
    %p200 = scmp.ne.s32.totalorder %s185, %s199
    %p201 = scmp.eq.s32.totalorder %s30, 0
    %p202 = por %p200, %p201
    %s204 = sadd.s32 %s203, 1
    %p207 = scmp.eq.s32.totalorder %s24, 3
    %p208 = scmp.ne.s32.totalorder %s203, %s205
    %p209 = scmp.eq.s32.totalorder %s24, 0
    %p210 = por %p208, %p209
    %p211 = scmp.ne.s32.totalorder %s203, %s205
    %p212 = scmp.eq.s32.totalorder %s29, 3
    %p213 = por %p211, %p212
    %p214 = scmp.ne.s32.totalorder %s205, %s206
    %p215 = scmp.eq.s32.totalorder %s29, 0
    %p216 = por %p214, %p215
    %p217 = scmp.ne.s32.totalorder %s205, %s206
    %p218 = scmp.eq.s32.totalorder %s30, 3
    %p219 = por %p217, %p218
    %p221 = scmp.ne.s32.totalorder %s206, %s220
    %p222 = scmp.eq.s32.totalorder %s30, 0
    %p223 = por %p221, %p222
    %s225 = sadd.s32 %s224, 1
    %p228 = scmp.eq.s32.totalorder %s24, 3
    %p229 = scmp.ne.s32.totalorder %s224, %s226
    %p230 = scmp.eq.s32.totalorder %s24, 0
    %p231 = por %p229, %p230
    %p232 = scmp.ne.s32.totalorder %s224, %s226
    %p233 = scmp.eq.s32.totalorder %s29, 3
    %p234 = por %p232, %p233
    %p235 = scmp.ne.s32.totalorder %s226, %s227
    %p236 = scmp.eq.s32.totalorder %s29, 0
    %p237 = por %p235, %p236
    %p238 = scmp.ne.s32.totalorder %s226, %s227
    %p239 = scmp.eq.s32.totalorder %s30, 3
    %p240 = por %p238, %p239
    %p242 = scmp.ne.s32.totalorder %s227, %s241
    %p243 = scmp.eq.s32.totalorder %s30, 0
    %p244 = por %p242, %p243
    %s246 = sadd.s32 %s245, 1
    %p249 = scmp.eq.s32.totalorder %s24, 3
    %p250 = scmp.ne.s32.totalorder %s245, %s247
    %p251 = scmp.eq.s32.totalorder %s24, 0
    %p252 = por %p250, %p251
    %p253 = scmp.ne.s32.totalorder %s245, %s247
    %p254 = scmp.eq.s32.totalorder %s29, 3
    %p255 = por %p253, %p254
    %p256 = scmp.ne.s32.totalorder %s247, %s248
    %p257 = scmp.eq.s32.totalorder %s29, 0
    %p258 = por %p256, %p257
    %p259 = scmp.ne.s32.totalorder %s247, %s248
    %p260 = scmp.eq.s32.totalorder %s30, 3
    %p261 = por %p259, %p260
    %p263 = scmp.ne.s32.totalorder %s248, %s262
    %p264 = scmp.eq.s32.totalorder %s30, 0
    %p265 = por %p263, %p264
    %s267 = sadd.s32 %s266, 1
    %p270 = scmp.eq.s32.totalorder %s24, 3
    %p271 = scmp.ne.s32.totalorder %s266, %s268
    %p272 = scmp.eq.s32.totalorder %s24, 0
    %p273 = por %p271, %p272
    %p274 = scmp.ne.s32.totalorder %s266, %s268
    %p275 = scmp.eq.s32.totalorder %s29, 3
    %p276 = por %p274, %p275
    %p277 = scmp.ne.s32.totalorder %s268, %s269
    %p278 = scmp.eq.s32.totalorder %s29, 0
    %p279 = por %p277, %p278
    %p280 = scmp.ne.s32.totalorder %s268, %s269
    %p281 = scmp.eq.s32.totalorder %s30, 3
    %p282 = por %p280, %p281
    %p284 = scmp.ne.s32.totalorder %s269, %s283
    %p285 = scmp.eq.s32.totalorder %s30, 0
    %p286 = por %p284, %p285
    %s288 = sadd.s32 %s287, 1
    %p291 = scmp.eq.s32.totalorder %s24, 3
    %p292 = scmp.ne.s32.totalorder %s287, %s289
    %p293 = scmp.eq.s32.totalorder %s24, 0
    %p294 = por %p292, %p293
    %p295 = scmp.ne.s32.totalorder %s287, %s289
    %p296 = scmp.eq.s32.totalorder %s29, 3
    %p297 = por %p295, %p296
    %p298 = scmp.ne.s32.totalorder %s289, %s290
    %p299 = scmp.eq.s32.totalorder %s29, 0
    %p300 = por %p298, %p299
    %p301 = scmp.ne.s32.totalorder %s289, %s290
    %p302 = scmp.eq.s32.totalorder %s30, 3
    %p303 = por %p301, %p302
    %p305 = scmp.ne.s32.totalorder %s290, %s304
    %p306 = scmp.eq.s32.totalorder %s30, 0
    %p307 = por %p305, %p306
    %s309 = sadd.s32 %s308, 1
    %p312 = scmp.eq.s32.totalorder %s24, 3
    %p313 = scmp.ne.s32.totalorder %s308, %s310
    %p314 = scmp.eq.s32.totalorder %s24, 0
    %p315 = por %p313, %p314
    %p316 = scmp.ne.s32.totalorder %s308, %s310
    %p317 = scmp.eq.s32.totalorder %s29, 3
    %p318 = por %p316, %p317
    %p319 = scmp.ne.s32.totalorder %s310, %s311
    %p320 = scmp.eq.s32.totalorder %s29, 0
    %p321 = por %p319, %p320
    %p322 = scmp.ne.s32.totalorder %s310, %s311
    %p323 = scmp.eq.s32.totalorder %s30, 3
    %p324 = por %p322, %p323
    %p326 = scmp.ne.s32.totalorder %s311, %s325
    %p327 = scmp.eq.s32.totalorder %s30, 0
    %p328 = por %p326, %p327
    %s330 = sadd.s32 %s329, 1
    %p333 = scmp.eq.s32.totalorder %s24, 3
    %p334 = scmp.ne.s32.totalorder %s329, %s331
    %p335 = scmp.eq.s32.totalorder %s24, 0
    %p336 = por %p334, %p335
    %p337 = scmp.ne.s32.totalorder %s329, %s331
    %p338 = scmp.eq.s32.totalorder %s29, 3
    %p339 = por %p337, %p338
    %p340 = scmp.ne.s32.totalorder %s331, %s332
    %p341 = scmp.eq.s32.totalorder %s29, 0
    %p342 = por %p340, %p341
    %p343 = scmp.ne.s32.totalorder %s331, %s332
    %p344 = scmp.eq.s32.totalorder %s30, 3
    %p345 = por %p343, %p344
    %p347 = scmp.ne.s32.totalorder %s332, %s346
    %p348 = scmp.eq.s32.totalorder %s30, 0
    %p349 = por %p347, %p348
    %s351 = sadd.s32 %s350, 1
    %p354 = scmp.eq.s32.totalorder %s24, 3
    %p355 = scmp.ne.s32.totalorder %s350, %s352
    %p356 = scmp.eq.s32.totalorder %s24, 0
    %p357 = por %p355, %p356
    %p358 = scmp.ne.s32.totalorder %s350, %s352
    %p359 = scmp.eq.s32.totalorder %s29, 3
    %p360 = por %p358, %p359
    %p361 = scmp.ne.s32.totalorder %s352, %s353
    %p362 = scmp.eq.s32.totalorder %s29, 0
    %p363 = por %p361, %p362
    %p364 = scmp.ne.s32.totalorder %s352, %s353
    %p365 = scmp.eq.s32.totalorder %s30, 3
    %p366 = por %p364, %p365
    %p368 = scmp.ne.s32.totalorder %s353, %s367
    %p369 = scmp.eq.s32.totalorder %s30, 0
    %p370 = por %p368, %p369
    %s372 = sadd.s32 %s371, 1
    %p375 = scmp.eq.s32.totalorder %s24, 3
    %p376 = scmp.ne.s32.totalorder %s371, %s373
    %p377 = scmp.eq.s32.totalorder %s24, 0
    %p378 = por %p376, %p377
    %p379 = scmp.ne.s32.totalorder %s371, %s373
    %p380 = scmp.eq.s32.totalorder %s29, 3
    %p381 = por %p379, %p380
    %p382 = scmp.ne.s32.totalorder %s373, %s374
    %p383 = scmp.eq.s32.totalorder %s29, 0
    %p384 = por %p382, %p383
    %p385 = scmp.ne.s32.totalorder %s373, %s374
    %p386 = scmp.eq.s32.totalorder %s30, 3
    %p387 = por %p385, %p386
    %p389 = scmp.ne.s32.totalorder %s374, %s388
    %p390 = scmp.eq.s32.totalorder %s30, 0
    %p391 = por %p389, %p390
    %s393 = sadd.s32 %s392, 1
    %p396 = scmp.eq.s32.totalorder %s24, 3
    %p397 = scmp.ne.s32.totalorder %s392, %s394
    %p398 = scmp.eq.s32.totalorder %s24, 0
    %p399 = por %p397, %p398
    %p400 = scmp.ne.s32.totalorder %s392, %s394
    %p401 = scmp.eq.s32.totalorder %s29, 3
    %p402 = por %p400, %p401
    %p403 = scmp.ne.s32.totalorder %s394, %s395
    %p404 = scmp.eq.s32.totalorder %s29, 0
    %p405 = por %p403, %p404
    %p406 = scmp.ne.s32.totalorder %s394, %s395
    %p407 = scmp.eq.s32.totalorder %s30, 3
    %p408 = por %p406, %p407
    %p410 = scmp.ne.s32.totalorder %s395, %s409
    %p411 = scmp.eq.s32.totalorder %s30, 0
    %p412 = por %p410, %p411
    %s414 = sadd.s32 %s413, 1
    %p417 = scmp.eq.s32.totalorder %s24, 3
    %p418 = scmp.ne.s32.totalorder %s413, %s415
    %p419 = scmp.eq.s32.totalorder %s24, 0
    %p420 = por %p418, %p419
    %p421 = scmp.ne.s32.totalorder %s413, %s415
    %p422 = scmp.eq.s32.totalorder %s29, 3
    %p423 = por %p421, %p422
    %p424 = scmp.ne.s32.totalorder %s415, %s416
    %p425 = scmp.eq.s32.totalorder %s29, 0
    %p426 = por %p424, %p425
    %p427 = scmp.ne.s32.totalorder %s415, %s416
    %p428 = scmp.eq.s32.totalorder %s30, 3
    %p429 = por %p427, %p428
    %p431 = scmp.ne.s32.totalorder %s416, %s430
    %p432 = scmp.eq.s32.totalorder %s30, 0
    %p433 = por %p431, %p432
    %s434 = ssub.s32 %s31, %s43
    %s435 = ssub.s32 %s32, %s39
    %s436 = sor.u32 %s434, %s435
    %p437 = scmp.eq.s32.totalorder %s436, 0
    %s439 = sadd.s32 %s438, 1
    %s440 = scalar_select %p437, %s438, %s439
    %p443 = pneg %p437
    %p444 = scmp.eq.s32.totalorder %s24, 3
    %p445 = por %p443, %p444
    %p446 = scmp.ne.s32.totalorder %s438, %s441
    %p447 = scmp.eq.s32.totalorder %s24, 0
    %p448 = por %p446, %p447
    %p449 = scmp.ne.s32.totalorder %s438, %s441
    %p450 = scmp.eq.s32.totalorder %s29, 3
    %p451 = por %p449, %p450
    %p452 = scmp.ne.s32.totalorder %s441, %s442
    %p453 = scmp.eq.s32.totalorder %s29, 0
    %p454 = por %p452, %p453
    %p455 = scmp.ne.s32.totalorder %s441, %s442
    %p456 = scmp.eq.s32.totalorder %s30, 3
    %p457 = por %p455, %p456
    %p459 = scmp.ne.s32.totalorder %s442, %s458
    %p460 = scmp.eq.s32.totalorder %s30, 0
    %p461 = por %p459, %p460
    %p462 = scmp.le.s32.totalorder 1, %s24
    %p463 = scmp.lt.s32.totalorder %s24, 5
    %p464 = pnand %p462, %p463
    %p465 = pneg %p464
    // Predicated region
    $region9: #{encoder_forward.4} parent=5 // pred_check
      _
    $region10: #{encoder_forward.4} parent=5 // pred_check_branch
      %467 = sbr.rel (%p464) target = $region12
    $region11: #{encoder_forward.4} parent=5 // pred_region
      %s468 = ssub.s32 %s24, 1
      // Predicated region
      $region13: #{encoder_forward.4} parent=11 // pred_check
        %p469 = pneg %p111
      $region14: #{encoder_forward.4} parent=11 // pred_check_branch
        %471 = sbr.rel (%p469) target = $region16
      $region15: #{encoder_forward.4} parent=11 // pred_region
        _
      $region16: #{encoder_forward.4} parent=11 // pred_fallthru
        _
      // Predicated region
      $region17: #{encoder_forward.4} parent=11 // pred_check
        %p472 = pneg %p132
      $region18: #{encoder_forward.4} parent=11 // pred_check_branch
        %474 = sbr.rel (%p472) target = $region20
      $region19: #{encoder_forward.4} parent=11 // pred_region
        _
      $region20: #{encoder_forward.4} parent=11 // pred_fallthru
        _
      // Predicated region
      $region21: #{encoder_forward.4} parent=11 // pred_check
        %p475 = pneg %p153
      $region22: #{encoder_forward.4} parent=11 // pred_check_branch
        %477 = sbr.rel (%p475) target = $region24
      $region23: #{encoder_forward.4} parent=11 // pred_region
        _
      $region24: #{encoder_forward.4} parent=11 // pred_fallthru
        _
      // Predicated region
      $region25: #{encoder_forward.4} parent=11 // pred_check
        %p478 = pneg %p174
      $region26: #{encoder_forward.4} parent=11 // pred_check_branch
        %480 = sbr.rel (%p478) target = $region28
      $region27: #{encoder_forward.4} parent=11 // pred_region
        _
      $region28: #{encoder_forward.4} parent=11 // pred_fallthru
        _
      // Predicated region
      $region29: #{encoder_forward.4} parent=11 // pred_check
        %p481 = pneg %p195
      $region30: #{encoder_forward.4} parent=11 // pred_check_branch
        %483 = sbr.rel (%p481) target = $region32
      $region31: #{encoder_forward.4} parent=11 // pred_region
        _
      $region32: #{encoder_forward.4} parent=11 // pred_fallthru
        _
      // Predicated region
      $region33: #{encoder_forward.4} parent=11 // pred_check
        %p484 = pneg %p216
      $region34: #{encoder_forward.4} parent=11 // pred_check_branch
        %486 = sbr.rel (%p484) target = $region36
      $region35: #{encoder_forward.4} parent=11 // pred_region
        _
      $region36: #{encoder_forward.4} parent=11 // pred_fallthru
        _
      // Predicated region
      $region37: #{encoder_forward.4} parent=11 // pred_check
        %p487 = pneg %p237
      $region38: #{encoder_forward.4} parent=11 // pred_check_branch
        %489 = sbr.rel (%p487) target = $region40
      $region39: #{encoder_forward.4} parent=11 // pred_region
        _
      $region40: #{encoder_forward.4} parent=11 // pred_fallthru
        _
      // Predicated region
      $region41: #{encoder_forward.4} parent=11 // pred_check
        %p490 = pneg %p258
      $region42: #{encoder_forward.4} parent=11 // pred_check_branch
        %492 = sbr.rel (%p490) target = $region44
      $region43: #{encoder_forward.4} parent=11 // pred_region
        _
      $region44: #{encoder_forward.4} parent=11 // pred_fallthru
        _
      // Predicated region
      $region45: #{encoder_forward.4} parent=11 // pred_check
        %p493 = pneg %p279
      $region46: #{encoder_forward.4} parent=11 // pred_check_branch
        %495 = sbr.rel (%p493) target = $region48
      $region47: #{encoder_forward.4} parent=11 // pred_region
        _
      $region48: #{encoder_forward.4} parent=11 // pred_fallthru
        _
      // Predicated region
      $region49: #{encoder_forward.4} parent=11 // pred_check
        %p496 = pneg %p300
      $region50: #{encoder_forward.4} parent=11 // pred_check_branch
        %498 = sbr.rel (%p496) target = $region52
      $region51: #{encoder_forward.4} parent=11 // pred_region
        _
      $region52: #{encoder_forward.4} parent=11 // pred_fallthru
        _
      // Predicated region
      $region53: #{encoder_forward.4} parent=11 // pred_check
        %p499 = pneg %p321
      $region54: #{encoder_forward.4} parent=11 // pred_check_branch
        %501 = sbr.rel (%p499) target = $region56
      $region55: #{encoder_forward.4} parent=11 // pred_region
        _
      $region56: #{encoder_forward.4} parent=11 // pred_fallthru
        _
      // Predicated region
      $region57: #{encoder_forward.4} parent=11 // pred_check
        %p502 = pneg %p342
      $region58: #{encoder_forward.4} parent=11 // pred_check_branch
        %504 = sbr.rel (%p502) target = $region60
      $region59: #{encoder_forward.4} parent=11 // pred_region
        _
      $region60: #{encoder_forward.4} parent=11 // pred_fallthru
        _
      // Predicated region
      $region61: #{encoder_forward.4} parent=11 // pred_check
        %p505 = pneg %p363
      $region62: #{encoder_forward.4} parent=11 // pred_check_branch
        %507 = sbr.rel (%p505) target = $region64
      $region63: #{encoder_forward.4} parent=11 // pred_region
        _
      $region64: #{encoder_forward.4} parent=11 // pred_fallthru
        _
      // Predicated region
      $region65: #{encoder_forward.4} parent=11 // pred_check
        %p508 = pneg %p384
      $region66: #{encoder_forward.4} parent=11 // pred_check_branch
        %510 = sbr.rel (%p508) target = $region68
      $region67: #{encoder_forward.4} parent=11 // pred_region
        _
      $region68: #{encoder_forward.4} parent=11 // pred_fallthru
        _
      // Predicated region
      $region69: #{encoder_forward.4} parent=11 // pred_check
        %p511 = pneg %p405
      $region70: #{encoder_forward.4} parent=11 // pred_check_branch
        %513 = sbr.rel (%p511) target = $region72
      $region71: #{encoder_forward.4} parent=11 // pred_region
        _
      $region72: #{encoder_forward.4} parent=11 // pred_fallthru
        _
      // Predicated region
      $region73: #{encoder_forward.4} parent=11 // pred_check
        %p514 = pneg %p426
      $region74: #{encoder_forward.4} parent=11 // pred_check_branch
        %516 = sbr.rel (%p514) target = $region76
      $region75: #{encoder_forward.4} parent=11 // pred_region
        _
      $region76: #{encoder_forward.4} parent=11 // pred_fallthru
        _
    $region12: #{encoder_forward.4} parent=5 // pred_fallthru
      _
    %p517 = scmp.lt.s32.totalorder %s24, 4
    // Predicated region
    $region77: #{encoder_forward.4} parent=5 // pred_check
      %p518 = pneg %p517
    $region78: #{encoder_forward.4} parent=5 // pred_check_branch
      %520 = sbr.rel (%p518) target = $region80
    $region79: #{encoder_forward.4} parent=5 // pred_region
      // Predicated region
      $region81: #{encoder_forward.4} parent=79 // pred_check
        %p521 = pneg %p58
      $region82: #{encoder_forward.4} parent=79 // pred_check_branch
        %523 = sbr.rel (%p521) target = $region84
      $region83: #{encoder_forward.4} parent=79 // pred_region
        %s524 = smul.u32 8, %s32
        %p525 = scmp.lt.s32.totalorder %s31, 1
        %s526 = scalar_select %p525, %s31, 1
        %p527 = scmp.lt.s32.totalorder %s524, 15
        %s528 = scalar_select %p527, %s524, 15
        %s529 = smul.addr %s526, 16
        %s530 = sadd.s32 %s528, %s529
        %s531 = smul.addr %s530, 8
        %s532 = scalar_lea.vmem %s0, %s531
        %s533 = smul.u32 8, %s32
      $region84: #{encoder_forward.4} parent=79 // pred_fallthru
        _
      // Predicated region
      $region85: #{encoder_forward.4} parent=79 // pred_check
        %p534 = pneg %p84
      $region86: #{encoder_forward.4} parent=79 // pred_check_branch
        %536 = sbr.rel (%p534) target = $region88
      $region87: #{encoder_forward.4} parent=79 // pred_region
        %p537 = scmp.lt.s32.totalorder %s31, 1
        %s538 = scalar_select %p537, %s31, 1
        %s539 = smul.addr %s538, 16
        %s540 = smul.addr %s539, 8
        %s541 = scalar_lea.vmem %s1, %s540
      $region88: #{encoder_forward.4} parent=79 // pred_fallthru
        _
    $region80: #{encoder_forward.4} parent=5 // pred_fallthru
      _
    %p542 = scmp.le.s32.totalorder 1, %s24
    %p543 = scmp.lt.s32.totalorder %s24, 5
    %p544 = pnand %p542, %p543
    %p545 = pneg %p544
    // Predicated region
    $region89: #{encoder_forward.4} parent=5 // pred_check
      _
    $region90: #{encoder_forward.4} parent=5 // pred_check_branch
      %547 = sbr.rel (%p544) target = $region92
    $region91: #{encoder_forward.4} parent=5 // pred_region
      %s548 = ssub.s32 %s24, 1
      %s549 = smul.u32 8, %s34
      %p550 = scmp.lt.s32.totalorder %s33, 1
      %s551 = scalar_select %p550, %s33, 1
      %p552 = scmp.lt.s32.totalorder %s549, 15
      %s553 = scalar_select %p552, %s549, 15
      %s554 = smul.addr %s551, 16
      %s555 = sadd.s32 %s553, %s554
      %s556 = smul.addr %s555, 8
      %s557 = scalar_lea.vmem %s0, %s556
      %p558 = pneg %p64
      %p559 = pneg %p61
      %p560 = scmp.lt.s32.totalorder %s33, 1
      %s561 = scalar_select %p560, %s33, 1
      %s562 = smul.addr %s561, 16
      %s563 = smul.addr %s562, 8
      %s564 = scalar_lea.vmem %s1, %s563
      %p565 = pneg %p90
      %p566 = pneg %p87
      %p567 = pneg %p111
      %p568 = pneg %p108
      %p569 = pneg %p132
      %p570 = pneg %p129
      %p571 = pneg %p153
      %p572 = pneg %p150
      %p573 = pneg %p174
      %p574 = pneg %p171
      %p575 = pneg %p195
      %p576 = pneg %p192
      %p577 = pneg %p216
      %p578 = pneg %p213
      %p579 = pneg %p237
      %p580 = pneg %p234
      %p581 = pneg %p258
      %p582 = pneg %p255
      %p583 = pneg %p279
      %p584 = pneg %p276
      %p585 = pneg %p300
      %p586 = pneg %p297
      %p587 = pneg %p321
      %p588 = pneg %p318
      %p589 = pneg %p342
      %p590 = pneg %p339
      %p591 = pneg %p363
      %p592 = pneg %p360
      %p593 = pneg %p384
      %p594 = pneg %p381
      %p595 = pneg %p405
      %p596 = pneg %p402
      %p597 = pneg %p426
      %p598 = pneg %p423
      %p599 = pneg %p454
      %p600 = pneg %p451
      %s601 = smul.u32 8, %s34
      %p602 = scmp.lt.s32.totalorder %s33, 1
      %s603 = scalar_select %p602, %s33, 1
      %p604 = scmp.lt.s32.totalorder %s601, 15
      %s605 = scalar_select %p604, %s601, 15
      %s606 = smul.addr %s603, 16
      %s607 = sadd.s32 %s605, %s606
      %s608 = smul.addr %s607, 8
      %s609 = scalar_lea.vmem %s18, %s608
      %s610 = smul.u32 8, %s34
      %p611 = scmp.lt.s32.totalorder %s33, 1
      %s612 = scalar_select %p611, %s33, 1
      %p613 = scmp.lt.s32.totalorder %s610, 15
      %s614 = scalar_select %p613, %s610, 15
      %s615 = smul.addr %s612, 16
      %s616 = sadd.s32 %s614, %s615
      %s617 = smul.addr %s616, 8
      %s618 = scalar_lea.vmem %s0, %s617
      %s619 = smul.u32 8, %s34
      %p620 = scmp.lt.s32.totalorder %s33, 1
      %s621 = scalar_select %p620, %s33, 1
      %s622 = smul.addr %s621, 16
      %s623 = smul.addr %s622, 8
      %s624 = scalar_lea.vmem %s1, %s623
      %s625 = smul.u32 8, %s34
      %p626 = scmp.lt.s32.totalorder %s33, 1
      %s627 = scalar_select %p626, %s33, 1
      %p628 = scmp.lt.s32.totalorder %s625, 15
      %s629 = scalar_select %p628, %s625, 15
      %s630 = smul.addr %s627, 16
      %s631 = sadd.s32 %s629, %s630
      %s632 = smul.addr %s631, 8
      %s633 = scalar_lea.vmem %s18, %s632
      %s634 = smul.u32 8, %s34
      %v635 = vld [vmem:[%s618] sm:$0xff]
      %v636 = vld [vmem:[%s618 + $0x8] sm:$0xff]
      %v637 = vld [vmem:[%s618 + $0x10] sm:$0xff]
      %v638 = vld [vmem:[%s618 + $0x18] sm:$0xff]
      %v639 = vld [vmem:[%s618 + $0x20] sm:$0xff]
      %v640 = vld [vmem:[%s618 + $0x28] sm:$0xff]
      %v641 = vld [vmem:[%s618 + $0x30] sm:$0xff]
      %v642 = vld [vmem:[%s618 + $0x38] sm:$0xff]
      %v643 = vld [vmem:[%s624] sm:$0xff]
      %v644 = vld [vmem:[%s624 + $0x8] sm:$0xff]
      %v645 = vld [vmem:[%s624 + $0x10] sm:$0xff]
      %v646 = vld [vmem:[%s624 + $0x18] sm:$0xff]
      %v647 = vld [vmem:[%s624 + $0x20] sm:$0xff]
      %v648 = vld [vmem:[%s624 + $0x28] sm:$0xff]
      %v649 = vld [vmem:[%s624 + $0x30] sm:$0xff]
      %v650 = vld [vmem:[%s624 + $0x38] sm:$0xff]
      %v651 = vld [vmem:[%s624 + $0x40] sm:$0xff]
      %v652 = vld [vmem:[%s624 + $0x48] sm:$0xff]
      %v653 = vld [vmem:[%s624 + $0x50] sm:$0xff]
      %v654 = vld [vmem:[%s624 + $0x58] sm:$0xff]
      %v655 = vld [vmem:[%s624 + $0x60] sm:$0xff]
      %v656 = vld [vmem:[%s624 + $0x68] sm:$0xff]
      %v657 = vld [vmem:[%s624 + $0x70] sm:$0xff]
      %v658 = vld [vmem:[%s624 + $0x78] sm:$0xff]
      %v659 = vpack.c.bf16 %v636, %v635
      %v660 = vpack.c.bf16 %v638, %v637
      %v661 = vpack.c.bf16 %v640, %v639
      %v662 = vpack.c.bf16 %v642, %v641
      %v663 = vpack.c.bf16 %v644, %v643
      %v664 = vpack.c.bf16 %v646, %v645
      %v665 = vpack.c.bf16 %v648, %v647
      %v666 = vpack.c.bf16 %v650, %v649
      %v667 = vpack.c.bf16 %v652, %v651
      %v668 = vpack.c.bf16 %v654, %v653
      %v669 = vpack.c.bf16 %v656, %v655
      %v670 = vpack.c.bf16 %v658, %v657
      %v671 = vld [vmem:[%s2] sm:$0xf]
      %v672 = vld [vmem:[%s2 + $0x4] sm:$0xf]
      %v673 = vld [vmem:[%s2 + $0x8] sm:$0xf]
      %v674 = vld [vmem:[%s2 + $0xc] sm:$0xf]
      %v675 = vld [vmem:[%s2 + $0x10] sm:$0xf]
      %v676 = vld [vmem:[%s2 + $0x14] sm:$0xf]
      %v677 = vld [vmem:[%s2 + $0x18] sm:$0xf]
      %v678 = vld [vmem:[%s2 + $0x1c] sm:$0xf]
      %v679 = vld [vmem:[%s2 + $0x20] sm:$0xf]
      %v680 = vld [vmem:[%s2 + $0x24] sm:$0xf]
      %v681 = vld [vmem:[%s2 + $0x28] sm:$0xf]
      %v682 = vld [vmem:[%s2 + $0x2c] sm:$0xf]
      %v683 = vld [vmem:[%s2 + $0x30] sm:$0xf]
      %v684 = vld [vmem:[%s2 + $0x34] sm:$0xf]
      %v685 = vld [vmem:[%s2 + $0x38] sm:$0xf]
      %v686 = vld [vmem:[%s2 + $0x3c] sm:$0xf]
      %v687 = vld [vmem:[%s3] sm:$0x1]
      %v689 = vperm.slane %v687, 0
      %v707 = vunpack.c.l.b16 %v671
      %v708 = vunpack.c.l.b16 %v672
      %v709 = vunpack.c.l.b16 %v673
      %v710 = vunpack.c.l.b16 %v674
      %v711 = vunpack.c.l.b16 %v675
      %v712 = vunpack.c.l.b16 %v676
      %v713 = vunpack.c.l.b16 %v677
      %v714 = vunpack.c.l.b16 %v678
      %v715 = vunpack.c.l.b16 %v679
      %v716 = vunpack.c.l.b16 %v680
      %v717 = vunpack.c.l.b16 %v681
      %v718 = vunpack.c.l.b16 %v682
      %v719 = vunpack.c.l.b16 %v683
      %v720 = vunpack.c.l.b16 %v684
      %v721 = vunpack.c.l.b16 %v685
      %v722 = vunpack.c.l.b16 %v686
      %v723 = vpack.c.b16 %v708, %v707
      %v724 = vpack.c.b16 %v710, %v709
      %v725 = vpack.c.b16 %v712, %v711
      %v726 = vpack.c.b16 %v714, %v713
      %v727 = vpack.c.b16 %v716, %v715
      %v728 = vpack.c.b16 %v718, %v717
      %v729 = vpack.c.b16 %v720, %v719
      %v730 = vpack.c.b16 %v722, %v721
      %739 = vmatpush.bf16.msra.mxu0 %v730
      %740 = vmatpush.bf16.msra.mxu0 %v729
      %741 = vmatpush.bf16.msra.mxu0 %v728
      %742 = vmatpush.bf16.msra.mxu0 %v727
      %743 = vmatpush.bf16.msra.mxu0 %v726
      %744 = vmatpush.bf16.msra.mxu0 %v725
      %745 = vmatpush.bf16.msra.mxu0 %v724
      %746 = vmatpush.bf16.msra.mxu0 %v723
      %747 = vmatmul.bf16.gmra.mxu0 %v659
      %v748 = vpop.f32.mrf.mxu0
      %v749 = vadd.f32 %v689, %v748
      %v750 = vpop.f32.mrf.mxu0
      %v751 = vadd.f32 %v689, %v750
      %752 = vmatmul.bf16.gmra.mxu0 %v660
      %v753 = vpop.f32.mrf.mxu0
      %v754 = vadd.f32 %v689, %v753
      %v755 = vpop.f32.mrf.mxu0
      %v756 = vadd.f32 %v689, %v755
      %757 = vmatmul.bf16.gmra.mxu0 %v661
      %v758 = vpop.f32.mrf.mxu0
      %v759 = vadd.f32 %v689, %v758
      %v760 = vpop.f32.mrf.mxu0
      %v761 = vadd.f32 %v689, %v760
      %762 = vmatmul.bf16.gmra.mxu0 %v662
      %v763 = vpop.f32.mrf.mxu0
      %v764 = vadd.f32 %v689, %v763
      %v765 = vpop.f32.mrf.mxu0
      %v766 = vadd.f32 %v689, %v765
      %767 = vdwg.mxu0
      %v768 = vld [vmem:[%s4] sm:$0xf]
      %v769 = vld [vmem:[%s4 + $0x4] sm:$0xf]
      %v770 = vld [vmem:[%s4 + $0x8] sm:$0xf]
      %v771 = vld [vmem:[%s4 + $0xc] sm:$0xf]
      %v772 = vld [vmem:[%s4 + $0x10] sm:$0xf]
      %v773 = vld [vmem:[%s4 + $0x14] sm:$0xf]
      %v774 = vld [vmem:[%s4 + $0x18] sm:$0xf]
      %v775 = vld [vmem:[%s4 + $0x1c] sm:$0xf]
      %v776 = vld [vmem:[%s4 + $0x20] sm:$0xf]
      %v777 = vld [vmem:[%s4 + $0x24] sm:$0xf]
      %v778 = vld [vmem:[%s4 + $0x28] sm:$0xf]
      %v779 = vld [vmem:[%s4 + $0x2c] sm:$0xf]
      %v780 = vld [vmem:[%s4 + $0x30] sm:$0xf]
      %v781 = vld [vmem:[%s4 + $0x34] sm:$0xf]
      %v782 = vld [vmem:[%s4 + $0x38] sm:$0xf]
      %v783 = vld [vmem:[%s4 + $0x3c] sm:$0xf]
      %v784 = vld [vmem:[%s5] sm:$0x1]
      %v786 = vperm.slane %v784, 0
      %v804 = vunpack.c.l.b16 %v768
      %v805 = vunpack.c.l.b16 %v769
      %v806 = vunpack.c.l.b16 %v770
      %v807 = vunpack.c.l.b16 %v771
      %v808 = vunpack.c.l.b16 %v772
      %v809 = vunpack.c.l.b16 %v773
      %v810 = vunpack.c.l.b16 %v774
      %v811 = vunpack.c.l.b16 %v775
      %v812 = vunpack.c.l.b16 %v776
      %v813 = vunpack.c.l.b16 %v777
      %v814 = vunpack.c.l.b16 %v778
      %v815 = vunpack.c.l.b16 %v779
      %v816 = vunpack.c.l.b16 %v780
      %v817 = vunpack.c.l.b16 %v781
      %v818 = vunpack.c.l.b16 %v782
      %v819 = vunpack.c.l.b16 %v783
      %v820 = vpack.c.b16 %v805, %v804
      %v821 = vpack.c.b16 %v807, %v806
      %v822 = vpack.c.b16 %v809, %v808
      %v823 = vpack.c.b16 %v811, %v810
      %v824 = vpack.c.b16 %v813, %v812
      %v825 = vpack.c.b16 %v815, %v814
      %v826 = vpack.c.b16 %v817, %v816
      %v827 = vpack.c.b16 %v819, %v818
      %836 = vmatpush.bf16.msra.mxu0 %v827
      %837 = vmatpush.bf16.msra.mxu0 %v826
      %838 = vmatpush.bf16.msra.mxu0 %v825
      %839 = vmatpush.bf16.msra.mxu0 %v824
      %840 = vmatpush.bf16.msra.mxu0 %v823
      %841 = vmatpush.bf16.msra.mxu0 %v822
      %842 = vmatpush.bf16.msra.mxu0 %v821
      %843 = vmatpush.bf16.msra.mxu0 %v820
      %844 = vmatmul.bf16.gmra.mxu0 %v663
      %v845 = vpop.f32.mrf.mxu0
      %v846 = vadd.f32 %v786, %v845
      %v847 = vpop.f32.mrf.mxu0
      %v848 = vadd.f32 %v786, %v847
      %849 = vmatmul.bf16.gmra.mxu0 %v664
      %v850 = vpop.f32.mrf.mxu0
      %v851 = vadd.f32 %v786, %v850
      %v852 = vpop.f32.mrf.mxu0
      %v853 = vadd.f32 %v786, %v852
      %854 = vmatmul.bf16.gmra.mxu0 %v665
      %v855 = vpop.f32.mrf.mxu0
      %v856 = vadd.f32 %v786, %v855
      %v857 = vpop.f32.mrf.mxu0
      %v858 = vadd.f32 %v786, %v857
      %859 = vmatmul.bf16.gmra.mxu0 %v666
      %v860 = vpop.f32.mrf.mxu0
      %v861 = vadd.f32 %v786, %v860
      %v862 = vpop.f32.mrf.mxu0
      %v863 = vadd.f32 %v786, %v862
      %864 = vmatmul.bf16.gmra.mxu0 %v667
      %v865 = vpop.f32.mrf.mxu0
      %v866 = vadd.f32 %v786, %v865
      %v867 = vpop.f32.mrf.mxu0
      %v868 = vadd.f32 %v786, %v867
      %869 = vmatmul.bf16.gmra.mxu0 %v668
      %v870 = vpop.f32.mrf.mxu0
      %v871 = vadd.f32 %v786, %v870
      %v872 = vpop.f32.mrf.mxu0
      %v873 = vadd.f32 %v786, %v872
      %874 = vmatmul.bf16.gmra.mxu0 %v669
      %v875 = vpop.f32.mrf.mxu0
      %v876 = vadd.f32 %v786, %v875
      %v877 = vpop.f32.mrf.mxu0
      %v878 = vadd.f32 %v786, %v877
      %879 = vmatmul.bf16.gmra.mxu0 %v670
      %v880 = vpop.f32.mrf.mxu0
      %v881 = vadd.f32 %v786, %v880
      %v882 = vpop.f32.mrf.mxu0
      %v883 = vadd.f32 %v786, %v882
      %884 = vdwg.mxu0
      %v885 = vld [vmem:[%s6] sm:$0xf]
      %v886 = vld [vmem:[%s6 + $0x4] sm:$0xf]
      %v887 = vld [vmem:[%s6 + $0x8] sm:$0xf]
      %v888 = vld [vmem:[%s6 + $0xc] sm:$0xf]
      %v889 = vld [vmem:[%s6 + $0x10] sm:$0xf]
      %v890 = vld [vmem:[%s6 + $0x14] sm:$0xf]
      %v891 = vld [vmem:[%s6 + $0x18] sm:$0xf]
      %v892 = vld [vmem:[%s6 + $0x1c] sm:$0xf]
      %v893 = vld [vmem:[%s6 + $0x20] sm:$0xf]
      %v894 = vld [vmem:[%s6 + $0x24] sm:$0xf]
      %v895 = vld [vmem:[%s6 + $0x28] sm:$0xf]
      %v896 = vld [vmem:[%s6 + $0x2c] sm:$0xf]
      %v897 = vld [vmem:[%s6 + $0x30] sm:$0xf]
      %v898 = vld [vmem:[%s6 + $0x34] sm:$0xf]
      %v899 = vld [vmem:[%s6 + $0x38] sm:$0xf]
      %v900 = vld [vmem:[%s6 + $0x3c] sm:$0xf]
      %v901 = vld [vmem:[%s7] sm:$0x1]
      %v903 = vperm.slane %v901, 0
      %v921 = vunpack.c.l.b16 %v885
      %v922 = vunpack.c.l.b16 %v886
      %v923 = vunpack.c.l.b16 %v887
      %v924 = vunpack.c.l.b16 %v888
      %v925 = vunpack.c.l.b16 %v889
      %v926 = vunpack.c.l.b16 %v890
      %v927 = vunpack.c.l.b16 %v891
      %v928 = vunpack.c.l.b16 %v892
      %v929 = vunpack.c.l.b16 %v893
      %v930 = vunpack.c.l.b16 %v894
      %v931 = vunpack.c.l.b16 %v895
      %v932 = vunpack.c.l.b16 %v896
      %v933 = vunpack.c.l.b16 %v897
      %v934 = vunpack.c.l.b16 %v898
      %v935 = vunpack.c.l.b16 %v899
      %v936 = vunpack.c.l.b16 %v900
      %v937 = vpack.c.b16 %v922, %v921
      %v938 = vpack.c.b16 %v924, %v923
      %v939 = vpack.c.b16 %v926, %v925
      %v940 = vpack.c.b16 %v928, %v927
      %v941 = vpack.c.b16 %v930, %v929
      %v942 = vpack.c.b16 %v932, %v931
      %v943 = vpack.c.b16 %v934, %v933
      %v944 = vpack.c.b16 %v936, %v935
      %953 = vmatpush.bf16.msra.mxu0 %v944
      %954 = vmatpush.bf16.msra.mxu0 %v943
      %955 = vmatpush.bf16.msra.mxu0 %v942
      %956 = vmatpush.bf16.msra.mxu0 %v941
      %957 = vmatpush.bf16.msra.mxu0 %v940
      %958 = vmatpush.bf16.msra.mxu0 %v939
      %959 = vmatpush.bf16.msra.mxu0 %v938
      %960 = vmatpush.bf16.msra.mxu0 %v937
      %961 = vmatmul.bf16.gmra.mxu0 %v663
      %v962 = vpop.f32.mrf.mxu0
      %v963 = vadd.f32 %v903, %v962
      %v964 = vpop.f32.mrf.mxu0
      %v965 = vadd.f32 %v903, %v964
      %966 = vmatmul.bf16.gmra.mxu0 %v664
      %v967 = vpop.f32.mrf.mxu0
      %v968 = vadd.f32 %v903, %v967
      %v969 = vpop.f32.mrf.mxu0
      %v970 = vadd.f32 %v903, %v969
      %971 = vmatmul.bf16.gmra.mxu0 %v665
      %v972 = vpop.f32.mrf.mxu0
      %v973 = vadd.f32 %v903, %v972
      %v974 = vpop.f32.mrf.mxu0
      %v975 = vadd.f32 %v903, %v974
      %976 = vmatmul.bf16.gmra.mxu0 %v666
      %v977 = vpop.f32.mrf.mxu0
      %v978 = vadd.f32 %v903, %v977
      %v979 = vpop.f32.mrf.mxu0
      %v980 = vadd.f32 %v903, %v979
      %981 = vmatmul.bf16.gmra.mxu0 %v667
      %v982 = vpop.f32.mrf.mxu0
      %v983 = vadd.f32 %v903, %v982
      %v984 = vpop.f32.mrf.mxu0
      %v985 = vadd.f32 %v903, %v984
      %986 = vmatmul.bf16.gmra.mxu0 %v668
      %v987 = vpop.f32.mrf.mxu0
      %v988 = vadd.f32 %v903, %v987
      %v989 = vpop.f32.mrf.mxu0
      %v990 = vadd.f32 %v903, %v989
      %991 = vmatmul.bf16.gmra.mxu0 %v669
      %v992 = vpop.f32.mrf.mxu0
      %v993 = vadd.f32 %v903, %v992
      %v994 = vpop.f32.mrf.mxu0
      %v995 = vadd.f32 %v903, %v994
      %996 = vmatmul.bf16.gmra.mxu0 %v670
      %v997 = vpop.f32.mrf.mxu0
      %v998 = vadd.f32 %v903, %v997
      %v999 = vpop.f32.mrf.mxu0
      %v1000 = vadd.f32 %v903, %v999
      %1001 = vdwg.mxu0
      %v1002 = vmul.f32 %v749, 0.17677669
      %v1003 = vmul.f32 %v751, 0.17677669
      %v1004 = vmul.f32 %v754, 0.17677669
      %v1005 = vmul.f32 %v756, 0.17677669
      %v1006 = vmul.f32 %v759, 0.17677669
      %v1007 = vmul.f32 %v761, 0.17677669
      %v1008 = vmul.f32 %v764, 0.17677669
      %v1009 = vmul.f32 %v766, 0.17677669
      %v1010 = vpack.c.bf16 %v1002, %v1002
      %v1011 = vpack.c.bf16 %v1003, %v1003
      %v1012 = vpack.c.bf16 %v1004, %v1004
      %v1013 = vpack.c.bf16 %v1005, %v1005
      %v1014 = vpack.c.bf16 %v1006, %v1006
      %v1015 = vpack.c.bf16 %v1007, %v1007
      %v1016 = vpack.c.bf16 %v1008, %v1008
      %v1017 = vpack.c.bf16 %v1009, %v1009
      %v1018 = vpack.c.bf16 %v846, %v846
      %v1019 = vpack.c.bf16 %v848, %v848
      %v1020 = vpack.c.bf16 %v851, %v851
      %v1021 = vpack.c.bf16 %v853, %v853
      %v1022 = vpack.c.bf16 %v856, %v856
      %v1023 = vpack.c.bf16 %v858, %v858
      %v1024 = vpack.c.bf16 %v861, %v861
      %v1025 = vpack.c.bf16 %v863, %v863
      %v1026 = vpack.c.bf16 %v866, %v866
      %v1027 = vpack.c.bf16 %v868, %v868
      %v1028 = vpack.c.bf16 %v871, %v871
      %v1029 = vpack.c.bf16 %v873, %v873
      %v1030 = vpack.c.bf16 %v876, %v876
      %v1031 = vpack.c.bf16 %v878, %v878
      %v1032 = vpack.c.bf16 %v881, %v881
      %v1033 = vpack.c.bf16 %v883, %v883
      %v1034 = vpack.c.bf16 %v963, %v963
      %v1035 = vpack.c.bf16 %v965, %v965
      %v1036 = vpack.c.bf16 %v968, %v968
      %v1037 = vpack.c.bf16 %v970, %v970
      %v1038 = vpack.c.bf16 %v973, %v973
      %v1039 = vpack.c.bf16 %v975, %v975
      %v1040 = vpack.c.bf16 %v978, %v978
      %v1041 = vpack.c.bf16 %v980, %v980
      %v1042 = vpack.c.bf16 %v983, %v983
      %v1043 = vpack.c.bf16 %v985, %v985
      %v1044 = vpack.c.bf16 %v988, %v988
      %v1045 = vpack.c.bf16 %v990, %v990
      %v1046 = vpack.c.bf16 %v993, %v993
      %v1047 = vpack.c.bf16 %v995, %v995
      %v1048 = vpack.c.bf16 %v998, %v998
      %v1049 = vpack.c.bf16 %v1000, %v1000
      %1058 = vrot.lane.b32.xlu0 %v1010, 96
      %v1059 = vpop.permute.xlu0 %1058
      %1060 = vrot.lane.b32.xlu0 %v1011, 96
      %v1061 = vpop.permute.xlu0 %1060
      %1062 = vrot.lane.b32.xlu0 %v1012, 96
      %v1063 = vpop.permute.xlu0 %1062
      %1064 = vrot.lane.b32.xlu0 %v1013, 96
      %v1065 = vpop.permute.xlu0 %1064
      %1066 = vrot.lane.b32.xlu0 %v1014, 96
      %v1067 = vpop.permute.xlu0 %1066
      %1068 = vrot.lane.b32.xlu0 %v1015, 96
      %v1069 = vpop.permute.xlu0 %1068
      %1070 = vrot.lane.b32.xlu0 %v1016, 96
      %v1071 = vpop.permute.xlu0 %1070
      %1072 = vrot.lane.b32.xlu0 %v1017, 96
      %v1073 = vpop.permute.xlu0 %1072
      %1074 = vrot.lane.b32.xlu0 %v1010, 64
      %v1075 = vpop.permute.xlu0 %1074
      %1076 = vrot.lane.b32.xlu0 %v1011, 64
      %v1077 = vpop.permute.xlu0 %1076
      %1078 = vrot.lane.b32.xlu0 %v1012, 64
      %v1079 = vpop.permute.xlu0 %1078
      %1080 = vrot.lane.b32.xlu0 %v1013, 64
      %v1081 = vpop.permute.xlu0 %1080
      %1082 = vrot.lane.b32.xlu0 %v1014, 64
      %v1083 = vpop.permute.xlu0 %1082
      %1084 = vrot.lane.b32.xlu0 %v1015, 64
      %v1085 = vpop.permute.xlu0 %1084
      %1086 = vrot.lane.b32.xlu0 %v1016, 64
      %v1087 = vpop.permute.xlu0 %1086
      %1088 = vrot.lane.b32.xlu0 %v1017, 64
      %v1089 = vpop.permute.xlu0 %1088
      %1090 = vrot.lane.b32.xlu0 %v1010, 32
      %v1091 = vpop.permute.xlu0 %1090
      %1092 = vrot.lane.b32.xlu0 %v1011, 32
      %v1093 = vpop.permute.xlu0 %1092
      %1094 = vrot.lane.b32.xlu0 %v1012, 32
      %v1095 = vpop.permute.xlu0 %1094
      %1096 = vrot.lane.b32.xlu0 %v1013, 32
      %v1097 = vpop.permute.xlu0 %1096
      %1098 = vrot.lane.b32.xlu0 %v1014, 32
      %v1099 = vpop.permute.xlu0 %1098
      %1100 = vrot.lane.b32.xlu0 %v1015, 32
      %v1101 = vpop.permute.xlu0 %1100
      %1102 = vrot.lane.b32.xlu0 %v1016, 32
      %v1103 = vpop.permute.xlu0 %1102
      %1104 = vrot.lane.b32.xlu0 %v1017, 32
      %v1105 = vpop.permute.xlu0 %1104
      %1122 = vrot.lane.b32.xlu0 %v1018, 96
      %v1123 = vpop.permute.xlu0 %1122
      %1124 = vrot.lane.b32.xlu0 %v1019, 96
      %v1125 = vpop.permute.xlu0 %1124
      %1126 = vrot.lane.b32.xlu0 %v1020, 96
      %v1127 = vpop.permute.xlu0 %1126
      %1128 = vrot.lane.b32.xlu0 %v1021, 96
      %v1129 = vpop.permute.xlu0 %1128
      %1130 = vrot.lane.b32.xlu0 %v1022, 96
      %v1131 = vpop.permute.xlu0 %1130
      %1132 = vrot.lane.b32.xlu0 %v1023, 96
      %v1133 = vpop.permute.xlu0 %1132
      %1134 = vrot.lane.b32.xlu0 %v1024, 96
      %v1135 = vpop.permute.xlu0 %1134
      %1136 = vrot.lane.b32.xlu0 %v1025, 96
      %v1137 = vpop.permute.xlu0 %1136
      %1138 = vrot.lane.b32.xlu0 %v1026, 96
      %v1139 = vpop.permute.xlu0 %1138
      %1140 = vrot.lane.b32.xlu0 %v1027, 96
      %v1141 = vpop.permute.xlu0 %1140
      %1142 = vrot.lane.b32.xlu0 %v1028, 96
      %v1143 = vpop.permute.xlu0 %1142
      %1144 = vrot.lane.b32.xlu0 %v1029, 96
      %v1145 = vpop.permute.xlu0 %1144
      %1146 = vrot.lane.b32.xlu0 %v1030, 96
      %v1147 = vpop.permute.xlu0 %1146
      %1148 = vrot.lane.b32.xlu0 %v1031, 96
      %v1149 = vpop.permute.xlu0 %1148
      %1150 = vrot.lane.b32.xlu0 %v1032, 96
      %v1151 = vpop.permute.xlu0 %1150
      %1152 = vrot.lane.b32.xlu0 %v1033, 96
      %v1153 = vpop.permute.xlu0 %1152
      %1154 = vrot.lane.b32.xlu0 %v1018, 64
      %v1155 = vpop.permute.xlu0 %1154
      %1156 = vrot.lane.b32.xlu0 %v1019, 64
      %v1157 = vpop.permute.xlu0 %1156
      %1158 = vrot.lane.b32.xlu0 %v1020, 64
      %v1159 = vpop.permute.xlu0 %1158
      %1160 = vrot.lane.b32.xlu0 %v1021, 64
      %v1161 = vpop.permute.xlu0 %1160
      %1162 = vrot.lane.b32.xlu0 %v1022, 64
      %v1163 = vpop.permute.xlu0 %1162
      %1164 = vrot.lane.b32.xlu0 %v1023, 64
      %v1165 = vpop.permute.xlu0 %1164
      %1166 = vrot.lane.b32.xlu0 %v1024, 64
      %v1167 = vpop.permute.xlu0 %1166
      %1168 = vrot.lane.b32.xlu0 %v1025, 64
      %v1169 = vpop.permute.xlu0 %1168
      %1170 = vrot.lane.b32.xlu0 %v1026, 64
      %v1171 = vpop.permute.xlu0 %1170
      %1172 = vrot.lane.b32.xlu0 %v1027, 64
      %v1173 = vpop.permute.xlu0 %1172
      %1174 = vrot.lane.b32.xlu0 %v1028, 64
      %v1175 = vpop.permute.xlu0 %1174
      %1176 = vrot.lane.b32.xlu0 %v1029, 64
      %v1177 = vpop.permute.xlu0 %1176
      %1178 = vrot.lane.b32.xlu0 %v1030, 64
      %v1179 = vpop.permute.xlu0 %1178
      %1180 = vrot.lane.b32.xlu0 %v1031, 64
      %v1181 = vpop.permute.xlu0 %1180
      %1182 = vrot.lane.b32.xlu0 %v1032, 64
      %v1183 = vpop.permute.xlu0 %1182
      %1184 = vrot.lane.b32.xlu0 %v1033, 64
      %v1185 = vpop.permute.xlu0 %1184
      %1186 = vrot.lane.b32.xlu0 %v1018, 32
      %v1187 = vpop.permute.xlu0 %1186
      %1188 = vrot.lane.b32.xlu0 %v1019, 32
      %v1189 = vpop.permute.xlu0 %1188
      %1190 = vrot.lane.b32.xlu0 %v1020, 32
      %v1191 = vpop.permute.xlu0 %1190
      %1192 = vrot.lane.b32.xlu0 %v1021, 32
      %v1193 = vpop.permute.xlu0 %1192
      %1194 = vrot.lane.b32.xlu0 %v1022, 32
      %v1195 = vpop.permute.xlu0 %1194
      %1196 = vrot.lane.b32.xlu0 %v1023, 32
      %v1197 = vpop.permute.xlu0 %1196
      %1198 = vrot.lane.b32.xlu0 %v1024, 32
      %v1199 = vpop.permute.xlu0 %1198
      %1200 = vrot.lane.b32.xlu0 %v1025, 32
      %v1201 = vpop.permute.xlu0 %1200
      %1202 = vrot.lane.b32.xlu0 %v1026, 32
      %v1203 = vpop.permute.xlu0 %1202
      %1204 = vrot.lane.b32.xlu0 %v1027, 32
      %v1205 = vpop.permute.xlu0 %1204
      %1206 = vrot.lane.b32.xlu0 %v1028, 32
      %v1207 = vpop.permute.xlu0 %1206
      %1208 = vrot.lane.b32.xlu0 %v1029, 32
      %v1209 = vpop.permute.xlu0 %1208
      %1210 = vrot.lane.b32.xlu0 %v1030, 32
      %v1211 = vpop.permute.xlu0 %1210
      %1212 = vrot.lane.b32.xlu0 %v1031, 32
      %v1213 = vpop.permute.xlu0 %1212
      %1214 = vrot.lane.b32.xlu0 %v1032, 32
      %v1215 = vpop.permute.xlu0 %1214
      %1216 = vrot.lane.b32.xlu0 %v1033, 32
      %v1217 = vpop.permute.xlu0 %1216
      %1234 = vrot.lane.b32.xlu0 %v1034, 96
      %v1235 = vpop.permute.xlu0 %1234
      %1236 = vrot.lane.b32.xlu0 %v1035, 96
      %v1237 = vpop.permute.xlu0 %1236
      %1238 = vrot.lane.b32.xlu0 %v1036, 96
      %v1239 = vpop.permute.xlu0 %1238
      %1240 = vrot.lane.b32.xlu0 %v1037, 96
      %v1241 = vpop.permute.xlu0 %1240
      %1242 = vrot.lane.b32.xlu0 %v1038, 96
      %v1243 = vpop.permute.xlu0 %1242
      %1244 = vrot.lane.b32.xlu0 %v1039, 96
      %v1245 = vpop.permute.xlu0 %1244
      %1246 = vrot.lane.b32.xlu0 %v1040, 96
      %v1247 = vpop.permute.xlu0 %1246
      %1248 = vrot.lane.b32.xlu0 %v1041, 96
      %v1249 = vpop.permute.xlu0 %1248
      %1250 = vrot.lane.b32.xlu0 %v1042, 96
      %v1251 = vpop.permute.xlu0 %1250
      %1252 = vrot.lane.b32.xlu0 %v1043, 96
      %v1253 = vpop.permute.xlu0 %1252
      %1254 = vrot.lane.b32.xlu0 %v1044, 96
      %v1255 = vpop.permute.xlu0 %1254
      %1256 = vrot.lane.b32.xlu0 %v1045, 96
      %v1257 = vpop.permute.xlu0 %1256
      %1258 = vrot.lane.b32.xlu0 %v1046, 96
      %v1259 = vpop.permute.xlu0 %1258
      %1260 = vrot.lane.b32.xlu0 %v1047, 96
      %v1261 = vpop.permute.xlu0 %1260
      %1262 = vrot.lane.b32.xlu0 %v1048, 96
      %v1263 = vpop.permute.xlu0 %1262
      %1264 = vrot.lane.b32.xlu0 %v1049, 96
      %v1265 = vpop.permute.xlu0 %1264
      %1266 = vrot.lane.b32.xlu0 %v1034, 64
      %v1267 = vpop.permute.xlu0 %1266
      %1268 = vrot.lane.b32.xlu0 %v1035, 64
      %v1269 = vpop.permute.xlu0 %1268
      %1270 = vrot.lane.b32.xlu0 %v1036, 64
      %v1271 = vpop.permute.xlu0 %1270
      %1272 = vrot.lane.b32.xlu0 %v1037, 64
      %v1273 = vpop.permute.xlu0 %1272
      %1274 = vrot.lane.b32.xlu0 %v1038, 64
      %v1275 = vpop.permute.xlu0 %1274
      %1276 = vrot.lane.b32.xlu0 %v1039, 64
      %v1277 = vpop.permute.xlu0 %1276
      %1278 = vrot.lane.b32.xlu0 %v1040, 64
      %v1279 = vpop.permute.xlu0 %1278
      %1280 = vrot.lane.b32.xlu0 %v1041, 64
      %v1281 = vpop.permute.xlu0 %1280
      %1282 = vrot.lane.b32.xlu0 %v1042, 64
      %v1283 = vpop.permute.xlu0 %1282
      %1284 = vrot.lane.b32.xlu0 %v1043, 64
      %v1285 = vpop.permute.xlu0 %1284
      %1286 = vrot.lane.b32.xlu0 %v1044, 64
      %v1287 = vpop.permute.xlu0 %1286
      %1288 = vrot.lane.b32.xlu0 %v1045, 64
      %v1289 = vpop.permute.xlu0 %1288
      %1290 = vrot.lane.b32.xlu0 %v1046, 64
      %v1291 = vpop.permute.xlu0 %1290
      %1292 = vrot.lane.b32.xlu0 %v1047, 64
      %v1293 = vpop.permute.xlu0 %1292
      %1294 = vrot.lane.b32.xlu0 %v1048, 64
      %v1295 = vpop.permute.xlu0 %1294
      %1296 = vrot.lane.b32.xlu0 %v1049, 64
      %v1297 = vpop.permute.xlu0 %1296
      %1298 = vrot.lane.b32.xlu0 %v1034, 32
      %v1299 = vpop.permute.xlu0 %1298
      %1300 = vrot.lane.b32.xlu0 %v1035, 32
      %v1301 = vpop.permute.xlu0 %1300
      %1302 = vrot.lane.b32.xlu0 %v1036, 32
      %v1303 = vpop.permute.xlu0 %1302
      %1304 = vrot.lane.b32.xlu0 %v1037, 32
      %v1305 = vpop.permute.xlu0 %1304
      %1306 = vrot.lane.b32.xlu0 %v1038, 32
      %v1307 = vpop.permute.xlu0 %1306
      %1308 = vrot.lane.b32.xlu0 %v1039, 32
      %v1309 = vpop.permute.xlu0 %1308
      %1310 = vrot.lane.b32.xlu0 %v1040, 32
      %v1311 = vpop.permute.xlu0 %1310
      %1312 = vrot.lane.b32.xlu0 %v1041, 32
      %v1313 = vpop.permute.xlu0 %1312
      %1314 = vrot.lane.b32.xlu0 %v1042, 32
      %v1315 = vpop.permute.xlu0 %1314
      %1316 = vrot.lane.b32.xlu0 %v1043, 32
      %v1317 = vpop.permute.xlu0 %1316
      %1318 = vrot.lane.b32.xlu0 %v1044, 32
      %v1319 = vpop.permute.xlu0 %1318
      %1320 = vrot.lane.b32.xlu0 %v1045, 32
      %v1321 = vpop.permute.xlu0 %1320
      %1322 = vrot.lane.b32.xlu0 %v1046, 32
      %v1323 = vpop.permute.xlu0 %1322
      %1324 = vrot.lane.b32.xlu0 %v1047, 32
      %v1325 = vpop.permute.xlu0 %1324
      %1326 = vrot.lane.b32.xlu0 %v1048, 32
      %v1327 = vpop.permute.xlu0 %1326
      %1328 = vrot.lane.b32.xlu0 %v1049, 32
      %v1329 = vpop.permute.xlu0 %1328
      %v1330 = vunpack.c.l.b16 %v1010
      %v1331 = vunpack.c.l.b16 %v1011
      %v1332 = vunpack.c.l.b16 %v1012
      %v1333 = vunpack.c.l.b16 %v1013
      %v1334 = vunpack.c.l.b16 %v1014
      %v1335 = vunpack.c.l.b16 %v1015
      %v1336 = vunpack.c.l.b16 %v1016
      %v1337 = vunpack.c.l.b16 %v1017
      %v1338 = vpack.c.b16 %v1331, %v1330
      %v1339 = vpack.c.b16 %v1333, %v1332
      %v1340 = vpack.c.b16 %v1335, %v1334
      %v1341 = vpack.c.b16 %v1337, %v1336
      %v1342 = vunpack.c.l.b16 %v1018
      %v1343 = vunpack.c.l.b16 %v1019
      %v1344 = vunpack.c.l.b16 %v1020
      %v1345 = vunpack.c.l.b16 %v1021
      %v1346 = vunpack.c.l.b16 %v1022
      %v1347 = vunpack.c.l.b16 %v1023
      %v1348 = vunpack.c.l.b16 %v1024
      %v1349 = vunpack.c.l.b16 %v1025
      %v1350 = vunpack.c.l.b16 %v1026
      %v1351 = vunpack.c.l.b16 %v1027
      %v1352 = vunpack.c.l.b16 %v1028
      %v1353 = vunpack.c.l.b16 %v1029
      %v1354 = vunpack.c.l.b16 %v1030
      %v1355 = vunpack.c.l.b16 %v1031
      %v1356 = vunpack.c.l.b16 %v1032
      %v1357 = vunpack.c.l.b16 %v1033
      %v1358 = vpack.c.b16 %v1343, %v1342
      %v1359 = vpack.c.b16 %v1345, %v1344
      %v1360 = vpack.c.b16 %v1347, %v1346
      %v1361 = vpack.c.b16 %v1349, %v1348
      %v1362 = vpack.c.b16 %v1351, %v1350
      %v1363 = vpack.c.b16 %v1353, %v1352
      %v1364 = vpack.c.b16 %v1355, %v1354
      %v1365 = vpack.c.b16 %v1357, %v1356
      %vm1366 = vcmask 261120
      %v1368 = vsel %vm1366, %v1338, 0
      %v1371 = vsel %vm1366, %v1339, 0
      %v1374 = vsel %vm1366, %v1340, 0
      %v1377 = vsel %vm1366, %v1341, 0
      %v1380 = vsel %vm1366, %v1358, 0
      %v1383 = vsel %vm1366, %v1359, 0
      %v1386 = vsel %vm1366, %v1360, 0
      %v1389 = vsel %vm1366, %v1361, 0
      %v1392 = vsel %vm1366, %v1362, 0
      %v1395 = vsel %vm1366, %v1363, 0
      %v1398 = vsel %vm1366, %v1364, 0
      %v1401 = vsel %vm1366, %v1365, 0
      %1403 = vmatpush.bf16.xpose.msra.mxu0 %v1401
      %1404 = vmatpush.bf16.xpose.msra.mxu0 %v1398
      %1405 = vmatpush.bf16.xpose.msra.mxu0 %v1395
      %1406 = vmatpush.bf16.xpose.msra.mxu0 %v1392
      %1407 = vmatpush.bf16.xpose.msra.mxu0 %v1389
      %1408 = vmatpush.bf16.xpose.msra.mxu0 %v1386
      %1409 = vmatpush.bf16.xpose.msra.mxu0 %v1383
      %1410 = vmatpush.bf16.xpose.msra.mxu0 %v1380
      %1411 = vmatmul.bf16.gmra.mxu0 %v1368
      %v1412 = vpop.f32.mrf.mxu0
      %v1413 = vadd.f32 0.0, %v1412
      %v1414 = vpop.f32.mrf.mxu0
      %v1415 = vadd.f32 0.0, %v1414
      %1416 = vmatmul.bf16.gmra.mxu0 %v1371
      %v1417 = vpop.f32.mrf.mxu0
      %v1418 = vadd.f32 0.0, %v1417
      %v1419 = vpop.f32.mrf.mxu0
      %v1420 = vadd.f32 0.0, %v1419
      %1421 = vmatmul.bf16.gmra.mxu0 %v1374
      %v1422 = vpop.f32.mrf.mxu0
      %v1423 = vadd.f32 0.0, %v1422
      %v1424 = vpop.f32.mrf.mxu0
      %v1425 = vadd.f32 0.0, %v1424
      %1426 = vmatmul.bf16.gmra.mxu0 %v1377
      %v1427 = vpop.f32.mrf.mxu0
      %v1428 = vadd.f32 0.0, %v1427
      %v1429 = vpop.f32.mrf.mxu0
      %v1430 = vadd.f32 0.0, %v1429
      %1431 = vdwg.mxu0
      %v1432 = vunpack.c.l.b16 %v1059
      %v1433 = vunpack.c.l.b16 %v1061
      %v1434 = vunpack.c.l.b16 %v1063
      %v1435 = vunpack.c.l.b16 %v1065
      %v1436 = vunpack.c.l.b16 %v1067
      %v1437 = vunpack.c.l.b16 %v1069
      %v1438 = vunpack.c.l.b16 %v1071
      %v1439 = vunpack.c.l.b16 %v1073
      %v1440 = vpack.c.b16 %v1433, %v1432
      %v1441 = vpack.c.b16 %v1435, %v1434
      %v1442 = vpack.c.b16 %v1437, %v1436
      %v1443 = vpack.c.b16 %v1439, %v1438
      %v1444 = vunpack.c.l.b16 %v1123
      %v1445 = vunpack.c.l.b16 %v1125
      %v1446 = vunpack.c.l.b16 %v1127
      %v1447 = vunpack.c.l.b16 %v1129
      %v1448 = vunpack.c.l.b16 %v1131
      %v1449 = vunpack.c.l.b16 %v1133
      %v1450 = vunpack.c.l.b16 %v1135
      %v1451 = vunpack.c.l.b16 %v1137
      %v1452 = vunpack.c.l.b16 %v1139
      %v1453 = vunpack.c.l.b16 %v1141
      %v1454 = vunpack.c.l.b16 %v1143
      %v1455 = vunpack.c.l.b16 %v1145
      %v1456 = vunpack.c.l.b16 %v1147
      %v1457 = vunpack.c.l.b16 %v1149
      %v1458 = vunpack.c.l.b16 %v1151
      %v1459 = vunpack.c.l.b16 %v1153
      %v1460 = vpack.c.b16 %v1445, %v1444
      %v1461 = vpack.c.b16 %v1447, %v1446
      %v1462 = vpack.c.b16 %v1449, %v1448
      %v1463 = vpack.c.b16 %v1451, %v1450
      %v1464 = vpack.c.b16 %v1453, %v1452
      %v1465 = vpack.c.b16 %v1455, %v1454
      %v1466 = vpack.c.b16 %v1457, %v1456
      %v1467 = vpack.c.b16 %v1459, %v1458
      %v1469 = vsel %vm1366, %v1440, 0
      %v1472 = vsel %vm1366, %v1441, 0
      %v1475 = vsel %vm1366, %v1442, 0
      %v1478 = vsel %vm1366, %v1443, 0
      %v1481 = vsel %vm1366, %v1460, 0
      %v1484 = vsel %vm1366, %v1461, 0
      %v1487 = vsel %vm1366, %v1462, 0
      %v1490 = vsel %vm1366, %v1463, 0
      %v1493 = vsel %vm1366, %v1464, 0
      %v1496 = vsel %vm1366, %v1465, 0
      %v1499 = vsel %vm1366, %v1466, 0
      %v1502 = vsel %vm1366, %v1467, 0
      %1504 = vmatpush.bf16.xpose.msra.mxu0 %v1502
      %1505 = vmatpush.bf16.xpose.msra.mxu0 %v1499
      %1506 = vmatpush.bf16.xpose.msra.mxu0 %v1496
      %1507 = vmatpush.bf16.xpose.msra.mxu0 %v1493
      %1508 = vmatpush.bf16.xpose.msra.mxu0 %v1490
      %1509 = vmatpush.bf16.xpose.msra.mxu0 %v1487
      %1510 = vmatpush.bf16.xpose.msra.mxu0 %v1484
      %1511 = vmatpush.bf16.xpose.msra.mxu0 %v1481
      %1512 = vmatmul.bf16.gmra.mxu0 %v1469
      %v1513 = vpop.f32.mrf.mxu0
      %v1514 = vadd.f32 0.0, %v1513
      %v1515 = vpop.f32.mrf.mxu0
      %v1516 = vadd.f32 0.0, %v1515
      %1517 = vmatmul.bf16.gmra.mxu0 %v1472
      %v1518 = vpop.f32.mrf.mxu0
      %v1519 = vadd.f32 0.0, %v1518
      %v1520 = vpop.f32.mrf.mxu0
      %v1521 = vadd.f32 0.0, %v1520
      %1522 = vmatmul.bf16.gmra.mxu0 %v1475
      %v1523 = vpop.f32.mrf.mxu0
      %v1524 = vadd.f32 0.0, %v1523
      %v1525 = vpop.f32.mrf.mxu0
      %v1526 = vadd.f32 0.0, %v1525
      %1527 = vmatmul.bf16.gmra.mxu0 %v1478
      %v1528 = vpop.f32.mrf.mxu0
      %v1529 = vadd.f32 0.0, %v1528
      %v1530 = vpop.f32.mrf.mxu0
      %v1531 = vadd.f32 0.0, %v1530
      %1532 = vdwg.mxu0
      %v1533 = vunpack.c.l.b16 %v1075
      %v1534 = vunpack.c.l.b16 %v1077
      %v1535 = vunpack.c.l.b16 %v1079
      %v1536 = vunpack.c.l.b16 %v1081
      %v1537 = vunpack.c.l.b16 %v1083
      %v1538 = vunpack.c.l.b16 %v1085
      %v1539 = vunpack.c.l.b16 %v1087
      %v1540 = vunpack.c.l.b16 %v1089
      %v1541 = vpack.c.b16 %v1534, %v1533
      %v1542 = vpack.c.b16 %v1536, %v1535
      %v1543 = vpack.c.b16 %v1538, %v1537
      %v1544 = vpack.c.b16 %v1540, %v1539
      %v1545 = vunpack.c.l.b16 %v1155
      %v1546 = vunpack.c.l.b16 %v1157
      %v1547 = vunpack.c.l.b16 %v1159
      %v1548 = vunpack.c.l.b16 %v1161
      %v1549 = vunpack.c.l.b16 %v1163
      %v1550 = vunpack.c.l.b16 %v1165
      %v1551 = vunpack.c.l.b16 %v1167
      %v1552 = vunpack.c.l.b16 %v1169
      %v1553 = vunpack.c.l.b16 %v1171
      %v1554 = vunpack.c.l.b16 %v1173
      %v1555 = vunpack.c.l.b16 %v1175
      %v1556 = vunpack.c.l.b16 %v1177
      %v1557 = vunpack.c.l.b16 %v1179
      %v1558 = vunpack.c.l.b16 %v1181
      %v1559 = vunpack.c.l.b16 %v1183
      %v1560 = vunpack.c.l.b16 %v1185
      %v1561 = vpack.c.b16 %v1546, %v1545
      %v1562 = vpack.c.b16 %v1548, %v1547
      %v1563 = vpack.c.b16 %v1550, %v1549
      %v1564 = vpack.c.b16 %v1552, %v1551
      %v1565 = vpack.c.b16 %v1554, %v1553
      %v1566 = vpack.c.b16 %v1556, %v1555
      %v1567 = vpack.c.b16 %v1558, %v1557
      %v1568 = vpack.c.b16 %v1560, %v1559
      %v1570 = vsel %vm1366, %v1541, 0
      %v1573 = vsel %vm1366, %v1542, 0
      %v1576 = vsel %vm1366, %v1543, 0
      %v1579 = vsel %vm1366, %v1544, 0
      %v1582 = vsel %vm1366, %v1561, 0
      %v1585 = vsel %vm1366, %v1562, 0
      %v1588 = vsel %vm1366, %v1563, 0
      %v1591 = vsel %vm1366, %v1564, 0
      %v1594 = vsel %vm1366, %v1565, 0
      %v1597 = vsel %vm1366, %v1566, 0
      %v1600 = vsel %vm1366, %v1567, 0
      %v1603 = vsel %vm1366, %v1568, 0
      %1605 = vmatpush.bf16.xpose.msra.mxu0 %v1603
      %1606 = vmatpush.bf16.xpose.msra.mxu0 %v1600
      %1607 = vmatpush.bf16.xpose.msra.mxu0 %v1597
      %1608 = vmatpush.bf16.xpose.msra.mxu0 %v1594
      %1609 = vmatpush.bf16.xpose.msra.mxu0 %v1591
      %1610 = vmatpush.bf16.xpose.msra.mxu0 %v1588
      %1611 = vmatpush.bf16.xpose.msra.mxu0 %v1585
      %1612 = vmatpush.bf16.xpose.msra.mxu0 %v1582
      %1613 = vmatmul.bf16.gmra.mxu0 %v1570
      %v1614 = vpop.f32.mrf.mxu0
      %v1615 = vadd.f32 0.0, %v1614
      %v1616 = vpop.f32.mrf.mxu0
      %v1617 = vadd.f32 0.0, %v1616
      %1618 = vmatmul.bf16.gmra.mxu0 %v1573
      %v1619 = vpop.f32.mrf.mxu0
      %v1620 = vadd.f32 0.0, %v1619
      %v1621 = vpop.f32.mrf.mxu0
      %v1622 = vadd.f32 0.0, %v1621
      %1623 = vmatmul.bf16.gmra.mxu0 %v1576
      %v1624 = vpop.f32.mrf.mxu0
      %v1625 = vadd.f32 0.0, %v1624
      %v1626 = vpop.f32.mrf.mxu0
      %v1627 = vadd.f32 0.0, %v1626
      %1628 = vmatmul.bf16.gmra.mxu0 %v1579
      %v1629 = vpop.f32.mrf.mxu0
      %v1630 = vadd.f32 0.0, %v1629
      %v1631 = vpop.f32.mrf.mxu0
      %v1632 = vadd.f32 0.0, %v1631
      %1633 = vdwg.mxu0
      %v1634 = vunpack.c.l.b16 %v1091
      %v1635 = vunpack.c.l.b16 %v1093
      %v1636 = vunpack.c.l.b16 %v1095
      %v1637 = vunpack.c.l.b16 %v1097
      %v1638 = vunpack.c.l.b16 %v1099
      %v1639 = vunpack.c.l.b16 %v1101
      %v1640 = vunpack.c.l.b16 %v1103
      %v1641 = vunpack.c.l.b16 %v1105
      %v1642 = vpack.c.b16 %v1635, %v1634
      %v1643 = vpack.c.b16 %v1637, %v1636
      %v1644 = vpack.c.b16 %v1639, %v1638
      %v1645 = vpack.c.b16 %v1641, %v1640
      %v1646 = vunpack.c.l.b16 %v1187
      %v1647 = vunpack.c.l.b16 %v1189
      %v1648 = vunpack.c.l.b16 %v1191
      %v1649 = vunpack.c.l.b16 %v1193
      %v1650 = vunpack.c.l.b16 %v1195
      %v1651 = vunpack.c.l.b16 %v1197
      %v1652 = vunpack.c.l.b16 %v1199
      %v1653 = vunpack.c.l.b16 %v1201
      %v1654 = vunpack.c.l.b16 %v1203
      %v1655 = vunpack.c.l.b16 %v1205
      %v1656 = vunpack.c.l.b16 %v1207
      %v1657 = vunpack.c.l.b16 %v1209
      %v1658 = vunpack.c.l.b16 %v1211
      %v1659 = vunpack.c.l.b16 %v1213
      %v1660 = vunpack.c.l.b16 %v1215
      %v1661 = vunpack.c.l.b16 %v1217
      %v1662 = vpack.c.b16 %v1647, %v1646
      %v1663 = vpack.c.b16 %v1649, %v1648
      %v1664 = vpack.c.b16 %v1651, %v1650
      %v1665 = vpack.c.b16 %v1653, %v1652
      %v1666 = vpack.c.b16 %v1655, %v1654
      %v1667 = vpack.c.b16 %v1657, %v1656
      %v1668 = vpack.c.b16 %v1659, %v1658
      %v1669 = vpack.c.b16 %v1661, %v1660
      %v1671 = vsel %vm1366, %v1642, 0
      %v1674 = vsel %vm1366, %v1643, 0
      %v1677 = vsel %vm1366, %v1644, 0
      %v1680 = vsel %vm1366, %v1645, 0
      %v1683 = vsel %vm1366, %v1662, 0
      %v1686 = vsel %vm1366, %v1663, 0
      %v1689 = vsel %vm1366, %v1664, 0
      %v1692 = vsel %vm1366, %v1665, 0
      %v1695 = vsel %vm1366, %v1666, 0
      %v1698 = vsel %vm1366, %v1667, 0
      %v1701 = vsel %vm1366, %v1668, 0
      %v1704 = vsel %vm1366, %v1669, 0
      %1706 = vmatpush.bf16.xpose.msra.mxu0 %v1704
      %1707 = vmatpush.bf16.xpose.msra.mxu0 %v1701
      %1708 = vmatpush.bf16.xpose.msra.mxu0 %v1698
      %1709 = vmatpush.bf16.xpose.msra.mxu0 %v1695
      %1710 = vmatpush.bf16.xpose.msra.mxu0 %v1692
      %1711 = vmatpush.bf16.xpose.msra.mxu0 %v1689
      %1712 = vmatpush.bf16.xpose.msra.mxu0 %v1686
      %1713 = vmatpush.bf16.xpose.msra.mxu0 %v1683
      %1714 = vmatmul.bf16.gmra.mxu0 %v1671
      %v1715 = vpop.f32.mrf.mxu0
      %v1716 = vadd.f32 0.0, %v1715
      %v1717 = vpop.f32.mrf.mxu0
      %v1718 = vadd.f32 0.0, %v1717
      %1719 = vmatmul.bf16.gmra.mxu0 %v1674
      %v1720 = vpop.f32.mrf.mxu0
      %v1721 = vadd.f32 0.0, %v1720
      %v1722 = vpop.f32.mrf.mxu0
      %v1723 = vadd.f32 0.0, %v1722
      %1724 = vmatmul.bf16.gmra.mxu0 %v1677
      %v1725 = vpop.f32.mrf.mxu0
      %v1726 = vadd.f32 0.0, %v1725
      %v1727 = vpop.f32.mrf.mxu0
      %v1728 = vadd.f32 0.0, %v1727
      %1729 = vmatmul.bf16.gmra.mxu0 %v1680
      %v1730 = vpop.f32.mrf.mxu0
      %v1731 = vadd.f32 0.0, %v1730
      %v1732 = vpop.f32.mrf.mxu0
      %v1733 = vadd.f32 0.0, %v1732
      %1734 = vdwg.mxu0
      %1735 = vmax.xlane.f32.xlu0 %v1413
      %v1736 = vpop.xlane.xlu0 %1735
      %1737 = vmax.xlane.f32.xlu0 %v1415
      %v1738 = vpop.xlane.xlu0 %1737
      %1739 = vmax.xlane.f32.xlu0 %v1418
      %v1740 = vpop.xlane.xlu0 %1739
      %1741 = vmax.xlane.f32.xlu0 %v1420
      %v1742 = vpop.xlane.xlu0 %1741
      %1743 = vmax.xlane.f32.xlu0 %v1423
      %v1744 = vpop.xlane.xlu0 %1743
      %1745 = vmax.xlane.f32.xlu0 %v1425
      %v1746 = vpop.xlane.xlu0 %1745
      %1747 = vmax.xlane.f32.xlu0 %v1428
      %v1748 = vpop.xlane.xlu0 %1747
      %1749 = vmax.xlane.f32.xlu0 %v1430
      %v1750 = vpop.xlane.xlu0 %1749
      %1751 = vmax.xlane.f32.xlu0 %v1514
      %v1752 = vpop.xlane.xlu0 %1751
      %1753 = vmax.xlane.f32.xlu0 %v1516
      %v1754 = vpop.xlane.xlu0 %1753
      %1755 = vmax.xlane.f32.xlu0 %v1519
      %v1756 = vpop.xlane.xlu0 %1755
      %1757 = vmax.xlane.f32.xlu0 %v1521
      %v1758 = vpop.xlane.xlu0 %1757
      %1759 = vmax.xlane.f32.xlu0 %v1524
      %v1760 = vpop.xlane.xlu0 %1759
      %1761 = vmax.xlane.f32.xlu0 %v1526
      %v1762 = vpop.xlane.xlu0 %1761
      %1763 = vmax.xlane.f32.xlu0 %v1529
      %v1764 = vpop.xlane.xlu0 %1763
      %1765 = vmax.xlane.f32.xlu0 %v1531
      %v1766 = vpop.xlane.xlu0 %1765
      %1767 = vmax.xlane.f32.xlu0 %v1615
      %v1768 = vpop.xlane.xlu0 %1767
      %1769 = vmax.xlane.f32.xlu0 %v1617
      %v1770 = vpop.xlane.xlu0 %1769
      %1771 = vmax.xlane.f32.xlu0 %v1620
      %v1772 = vpop.xlane.xlu0 %1771
      %1773 = vmax.xlane.f32.xlu0 %v1622
      %v1774 = vpop.xlane.xlu0 %1773
      %1775 = vmax.xlane.f32.xlu0 %v1625
      %v1776 = vpop.xlane.xlu0 %1775
      %1777 = vmax.xlane.f32.xlu0 %v1627
      %v1778 = vpop.xlane.xlu0 %1777
      %1779 = vmax.xlane.f32.xlu0 %v1630
      %v1780 = vpop.xlane.xlu0 %1779
      %1781 = vmax.xlane.f32.xlu0 %v1632
      %v1782 = vpop.xlane.xlu0 %1781
      %1783 = vmax.xlane.f32.xlu0 %v1716
      %v1784 = vpop.xlane.xlu0 %1783
      %1785 = vmax.xlane.f32.xlu0 %v1718
      %v1786 = vpop.xlane.xlu0 %1785
      %1787 = vmax.xlane.f32.xlu0 %v1721
      %v1788 = vpop.xlane.xlu0 %1787
      %1789 = vmax.xlane.f32.xlu0 %v1723
      %v1790 = vpop.xlane.xlu0 %1789
      %1791 = vmax.xlane.f32.xlu0 %v1726
      %v1792 = vpop.xlane.xlu0 %1791
      %1793 = vmax.xlane.f32.xlu0 %v1728
      %v1794 = vpop.xlane.xlu0 %1793
      %1795 = vmax.xlane.f32.xlu0 %v1731
      %v1796 = vpop.xlane.xlu0 %1795
      %1797 = vmax.xlane.f32.xlu0 %v1733
      %v1798 = vpop.xlane.xlu0 %1797
      %v1799 = vsub.f32 %v1413, %v1736
      %v1800 = vsub.f32 %v1415, %v1738
      %v1801 = vsub.f32 %v1418, %v1740
      %v1802 = vsub.f32 %v1420, %v1742
      %v1803 = vsub.f32 %v1423, %v1744
      %v1804 = vsub.f32 %v1425, %v1746
      %v1805 = vsub.f32 %v1428, %v1748
      %v1806 = vsub.f32 %v1430, %v1750
      %v1807 = vsub.f32 %v1514, %v1752
      %v1808 = vsub.f32 %v1516, %v1754
      %v1809 = vsub.f32 %v1519, %v1756
      %v1810 = vsub.f32 %v1521, %v1758
      %v1811 = vsub.f32 %v1524, %v1760
      %v1812 = vsub.f32 %v1526, %v1762
      %v1813 = vsub.f32 %v1529, %v1764
      %v1814 = vsub.f32 %v1531, %v1766
      %v1815 = vsub.f32 %v1615, %v1768
      %v1816 = vsub.f32 %v1617, %v1770
      %v1817 = vsub.f32 %v1620, %v1772
      %v1818 = vsub.f32 %v1622, %v1774
      %v1819 = vsub.f32 %v1625, %v1776
      %v1820 = vsub.f32 %v1627, %v1778
      %v1821 = vsub.f32 %v1630, %v1780
      %v1822 = vsub.f32 %v1632, %v1782
      %v1823 = vsub.f32 %v1716, %v1784
      %v1824 = vsub.f32 %v1718, %v1786
      %v1825 = vsub.f32 %v1721, %v1788
      %v1826 = vsub.f32 %v1723, %v1790
      %v1827 = vsub.f32 %v1726, %v1792
      %v1828 = vsub.f32 %v1728, %v1794
      %v1829 = vsub.f32 %v1731, %v1796
      %v1830 = vsub.f32 %v1733, %v1798
      %v1831 = vmul.f32 %v1799, 1.442695
      %v1832 = vpow.pop %v1831
      %v1833 = vmul.f32 %v1800, 1.442695
      %v1834 = vpow.pop %v1833
      %v1835 = vmul.f32 %v1801, 1.442695
      %v1836 = vpow.pop %v1835
      %v1837 = vmul.f32 %v1802, 1.442695
      %v1838 = vpow.pop %v1837
      %v1839 = vmul.f32 %v1803, 1.442695
      %v1840 = vpow.pop %v1839
      %v1841 = vmul.f32 %v1804, 1.442695
      %v1842 = vpow.pop %v1841
      %v1843 = vmul.f32 %v1805, 1.442695
      %v1844 = vpow.pop %v1843
      %v1845 = vmul.f32 %v1806, 1.442695
      %v1846 = vpow.pop %v1845
      %v1847 = vmul.f32 %v1807, 1.442695
      %v1848 = vpow.pop %v1847
      %v1849 = vmul.f32 %v1808, 1.442695
      %v1850 = vpow.pop %v1849
      %v1851 = vmul.f32 %v1809, 1.442695
      %v1852 = vpow.pop %v1851
      %v1853 = vmul.f32 %v1810, 1.442695
      %v1854 = vpow.pop %v1853
      %v1855 = vmul.f32 %v1811, 1.442695
      %v1856 = vpow.pop %v1855
      %v1857 = vmul.f32 %v1812, 1.442695
      %v1858 = vpow.pop %v1857
      %v1859 = vmul.f32 %v1813, 1.442695
      %v1860 = vpow.pop %v1859
      %v1861 = vmul.f32 %v1814, 1.442695
      %v1862 = vpow.pop %v1861
      %v1863 = vmul.f32 %v1815, 1.442695
      %v1864 = vpow.pop %v1863
      %v1865 = vmul.f32 %v1816, 1.442695
      %v1866 = vpow.pop %v1865
      %v1867 = vmul.f32 %v1817, 1.442695
      %v1868 = vpow.pop %v1867
      %v1869 = vmul.f32 %v1818, 1.442695
      %v1870 = vpow.pop %v1869
      %v1871 = vmul.f32 %v1819, 1.442695
      %v1872 = vpow.pop %v1871
      %v1873 = vmul.f32 %v1820, 1.442695
      %v1874 = vpow.pop %v1873
      %v1875 = vmul.f32 %v1821, 1.442695
      %v1876 = vpow.pop %v1875
      %v1877 = vmul.f32 %v1822, 1.442695
      %v1878 = vpow.pop %v1877
      %v1879 = vmul.f32 %v1823, 1.442695
      %v1880 = vpow.pop %v1879
      %v1881 = vmul.f32 %v1824, 1.442695
      %v1882 = vpow.pop %v1881
      %v1883 = vmul.f32 %v1825, 1.442695
      %v1884 = vpow.pop %v1883
      %v1885 = vmul.f32 %v1826, 1.442695
      %v1886 = vpow.pop %v1885
      %v1887 = vmul.f32 %v1827, 1.442695
      %v1888 = vpow.pop %v1887
      %v1889 = vmul.f32 %v1828, 1.442695
      %v1890 = vpow.pop %v1889
      %v1891 = vmul.f32 %v1829, 1.442695
      %v1892 = vpow.pop %v1891
      %v1893 = vmul.f32 %v1830, 1.442695
      %v1894 = vpow.pop %v1893
      %1895 = vadd.xlane.f32.xlu0 %v1832
      %v1896 = vpop.xlane.xlu0 %1895
      %1897 = vadd.xlane.f32.xlu0 %v1834
      %v1898 = vpop.xlane.xlu0 %1897
      %1899 = vadd.xlane.f32.xlu0 %v1836
      %v1900 = vpop.xlane.xlu0 %1899
      %1901 = vadd.xlane.f32.xlu0 %v1838
      %v1902 = vpop.xlane.xlu0 %1901
      %1903 = vadd.xlane.f32.xlu0 %v1840
      %v1904 = vpop.xlane.xlu0 %1903
      %1905 = vadd.xlane.f32.xlu0 %v1842
      %v1906 = vpop.xlane.xlu0 %1905
      %1907 = vadd.xlane.f32.xlu0 %v1844
      %v1908 = vpop.xlane.xlu0 %1907
      %1909 = vadd.xlane.f32.xlu0 %v1846
      %v1910 = vpop.xlane.xlu0 %1909
      %1911 = vadd.xlane.f32.xlu0 %v1848
      %v1912 = vpop.xlane.xlu0 %1911
      %1913 = vadd.xlane.f32.xlu0 %v1850
      %v1914 = vpop.xlane.xlu0 %1913
      %1915 = vadd.xlane.f32.xlu0 %v1852
      %v1916 = vpop.xlane.xlu0 %1915
      %1917 = vadd.xlane.f32.xlu0 %v1854
      %v1918 = vpop.xlane.xlu0 %1917
      %1919 = vadd.xlane.f32.xlu0 %v1856
      %v1920 = vpop.xlane.xlu0 %1919
      %1921 = vadd.xlane.f32.xlu0 %v1858
      %v1922 = vpop.xlane.xlu0 %1921
      %1923 = vadd.xlane.f32.xlu0 %v1860
      %v1924 = vpop.xlane.xlu0 %1923
      %1925 = vadd.xlane.f32.xlu0 %v1862
      %v1926 = vpop.xlane.xlu0 %1925
      %1927 = vadd.xlane.f32.xlu0 %v1864
      %v1928 = vpop.xlane.xlu0 %1927
      %1929 = vadd.xlane.f32.xlu0 %v1866
      %v1930 = vpop.xlane.xlu0 %1929
      %1931 = vadd.xlane.f32.xlu0 %v1868
      %v1932 = vpop.xlane.xlu0 %1931
      %1933 = vadd.xlane.f32.xlu0 %v1870
      %v1934 = vpop.xlane.xlu0 %1933
      %1935 = vadd.xlane.f32.xlu0 %v1872
      %v1936 = vpop.xlane.xlu0 %1935
      %1937 = vadd.xlane.f32.xlu0 %v1874
      %v1938 = vpop.xlane.xlu0 %1937
      %1939 = vadd.xlane.f32.xlu0 %v1876
      %v1940 = vpop.xlane.xlu0 %1939
      %1941 = vadd.xlane.f32.xlu0 %v1878
      %v1942 = vpop.xlane.xlu0 %1941
      %1943 = vadd.xlane.f32.xlu0 %v1880
      %v1944 = vpop.xlane.xlu0 %1943
      %1945 = vadd.xlane.f32.xlu0 %v1882
      %v1946 = vpop.xlane.xlu0 %1945
      %1947 = vadd.xlane.f32.xlu0 %v1884
      %v1948 = vpop.xlane.xlu0 %1947
      %1949 = vadd.xlane.f32.xlu0 %v1886
      %v1950 = vpop.xlane.xlu0 %1949
      %1951 = vadd.xlane.f32.xlu0 %v1888
      %v1952 = vpop.xlane.xlu0 %1951
      %1953 = vadd.xlane.f32.xlu0 %v1890
      %v1954 = vpop.xlane.xlu0 %1953
      %1955 = vadd.xlane.f32.xlu0 %v1892
      %v1956 = vpop.xlane.xlu0 %1955
      %1957 = vadd.xlane.f32.xlu0 %v1894
      %v1958 = vpop.xlane.xlu0 %1957
      %v1959 = vrcp.pop %v1896
      %v1960 = vmul.f32 %v1896, %v1959
      %v1961 = vsub.f32 1.0, %v1960
      %v1962 = vmul.f32 %v1959, %v1961
      %v1963 = vadd.f32 %v1959, %v1962
      %vm1964 = vweird.f32 %v1896
      %vm1965 = vweird.f32 %v1959
      %vm1966 = vmor %vm1964, %vm1965
      %v1967 = vsel %vm1966, %v1959, %v1963
      %v1968 = vand.u32 2147483647, %v1896
      %vm1969 = vcmp.eq.f32.partialorder %v1968, 8.507059e+37
      %v1970 = vand.u32 %v1896, 2147483648
      %v1971 = vor.u32 1.1754944e-38, %v1970
      %v1972 = vsel %vm1969, %v1971, %v1967
      %v1973 = vrcp.pop %v1898
      %v1974 = vmul.f32 %v1898, %v1973
      %v1975 = vsub.f32 1.0, %v1974
      %v1976 = vmul.f32 %v1973, %v1975
      %v1977 = vadd.f32 %v1973, %v1976
      %vm1978 = vweird.f32 %v1898
      %vm1979 = vweird.f32 %v1973
      %vm1980 = vmor %vm1978, %vm1979
      %v1981 = vsel %vm1980, %v1973, %v1977
      %v1982 = vand.u32 2147483647, %v1898
      %vm1983 = vcmp.eq.f32.partialorder %v1982, 8.507059e+37
      %v1984 = vand.u32 %v1898, 2147483648
      %v1985 = vor.u32 1.1754944e-38, %v1984
      %v1986 = vsel %vm1983, %v1985, %v1981
      %v1987 = vrcp.pop %v1900
      %v1988 = vmul.f32 %v1900, %v1987
      %v1989 = vsub.f32 1.0, %v1988
      %v1990 = vmul.f32 %v1987, %v1989
      %v1991 = vadd.f32 %v1987, %v1990
      %vm1992 = vweird.f32 %v1900
      %vm1993 = vweird.f32 %v1987
      %vm1994 = vmor %vm1992, %vm1993
      %v1995 = vsel %vm1994, %v1987, %v1991
      %v1996 = vand.u32 2147483647, %v1900
      %vm1997 = vcmp.eq.f32.partialorder %v1996, 8.507059e+37
      %v1998 = vand.u32 %v1900, 2147483648
      %v1999 = vor.u32 1.1754944e-38, %v1998
      %v2000 = vsel %vm1997, %v1999, %v1995
      %v2001 = vrcp.pop %v1902
      %v2002 = vmul.f32 %v1902, %v2001
      %v2003 = vsub.f32 1.0, %v2002
      %v2004 = vmul.f32 %v2001, %v2003
      %v2005 = vadd.f32 %v2001, %v2004
      %vm2006 = vweird.f32 %v1902
      %vm2007 = vweird.f32 %v2001
      %vm2008 = vmor %vm2006, %vm2007
      %v2009 = vsel %vm2008, %v2001, %v2005
      %v2010 = vand.u32 2147483647, %v1902
      %vm2011 = vcmp.eq.f32.partialorder %v2010, 8.507059e+37
      %v2012 = vand.u32 %v1902, 2147483648
      %v2013 = vor.u32 1.1754944e-38, %v2012
      %v2014 = vsel %vm2011, %v2013, %v2009
      %v2015 = vrcp.pop %v1904
      %v2016 = vmul.f32 %v1904, %v2015
      %v2017 = vsub.f32 1.0, %v2016
      %v2018 = vmul.f32 %v2015, %v2017
      %v2019 = vadd.f32 %v2015, %v2018
      %vm2020 = vweird.f32 %v1904
      %vm2021 = vweird.f32 %v2015
      %vm2022 = vmor %vm2020, %vm2021
      %v2023 = vsel %vm2022, %v2015, %v2019
      %v2024 = vand.u32 2147483647, %v1904
      %vm2025 = vcmp.eq.f32.partialorder %v2024, 8.507059e+37
      %v2026 = vand.u32 %v1904, 2147483648
      %v2027 = vor.u32 1.1754944e-38, %v2026
      %v2028 = vsel %vm2025, %v2027, %v2023
      %v2029 = vrcp.pop %v1906
      %v2030 = vmul.f32 %v1906, %v2029
      %v2031 = vsub.f32 1.0, %v2030
      %v2032 = vmul.f32 %v2029, %v2031
      %v2033 = vadd.f32 %v2029, %v2032
      %vm2034 = vweird.f32 %v1906
      %vm2035 = vweird.f32 %v2029
      %vm2036 = vmor %vm2034, %vm2035
      %v2037 = vsel %vm2036, %v2029, %v2033
      %v2038 = vand.u32 2147483647, %v1906
      %vm2039 = vcmp.eq.f32.partialorder %v2038, 8.507059e+37
      %v2040 = vand.u32 %v1906, 2147483648
      %v2041 = vor.u32 1.1754944e-38, %v2040
      %v2042 = vsel %vm2039, %v2041, %v2037
      %v2043 = vrcp.pop %v1908
      %v2044 = vmul.f32 %v1908, %v2043
      %v2045 = vsub.f32 1.0, %v2044
      %v2046 = vmul.f32 %v2043, %v2045
      %v2047 = vadd.f32 %v2043, %v2046
      %vm2048 = vweird.f32 %v1908
      %vm2049 = vweird.f32 %v2043
      %vm2050 = vmor %vm2048, %vm2049
      %v2051 = vsel %vm2050, %v2043, %v2047
      %v2052 = vand.u32 2147483647, %v1908
      %vm2053 = vcmp.eq.f32.partialorder %v2052, 8.507059e+37
      %v2054 = vand.u32 %v1908, 2147483648
      %v2055 = vor.u32 1.1754944e-38, %v2054
      %v2056 = vsel %vm2053, %v2055, %v2051
      %v2057 = vrcp.pop %v1910
      %v2058 = vmul.f32 %v1910, %v2057
      %v2059 = vsub.f32 1.0, %v2058
      %v2060 = vmul.f32 %v2057, %v2059
      %v2061 = vadd.f32 %v2057, %v2060
      %vm2062 = vweird.f32 %v1910
      %vm2063 = vweird.f32 %v2057
      %vm2064 = vmor %vm2062, %vm2063
      %v2065 = vsel %vm2064, %v2057, %v2061
      %v2066 = vand.u32 2147483647, %v1910
      %vm2067 = vcmp.eq.f32.partialorder %v2066, 8.507059e+37
      %v2068 = vand.u32 %v1910, 2147483648
      %v2069 = vor.u32 1.1754944e-38, %v2068
      %v2070 = vsel %vm2067, %v2069, %v2065
      %v2071 = vrcp.pop %v1912
      %v2072 = vmul.f32 %v1912, %v2071
      %v2073 = vsub.f32 1.0, %v2072
      %v2074 = vmul.f32 %v2071, %v2073
      %v2075 = vadd.f32 %v2071, %v2074
      %vm2076 = vweird.f32 %v1912
      %vm2077 = vweird.f32 %v2071
      %vm2078 = vmor %vm2076, %vm2077
      %v2079 = vsel %vm2078, %v2071, %v2075
      %v2080 = vand.u32 2147483647, %v1912
      %vm2081 = vcmp.eq.f32.partialorder %v2080, 8.507059e+37
      %v2082 = vand.u32 %v1912, 2147483648
      %v2083 = vor.u32 1.1754944e-38, %v2082
      %v2084 = vsel %vm2081, %v2083, %v2079
      %v2085 = vrcp.pop %v1914
      %v2086 = vmul.f32 %v1914, %v2085
      %v2087 = vsub.f32 1.0, %v2086
      %v2088 = vmul.f32 %v2085, %v2087
      %v2089 = vadd.f32 %v2085, %v2088
      %vm2090 = vweird.f32 %v1914
      %vm2091 = vweird.f32 %v2085
      %vm2092 = vmor %vm2090, %vm2091
      %v2093 = vsel %vm2092, %v2085, %v2089
      %v2094 = vand.u32 2147483647, %v1914
      %vm2095 = vcmp.eq.f32.partialorder %v2094, 8.507059e+37
      %v2096 = vand.u32 %v1914, 2147483648
      %v2097 = vor.u32 1.1754944e-38, %v2096
      %v2098 = vsel %vm2095, %v2097, %v2093
      %v2099 = vrcp.pop %v1916
      %v2100 = vmul.f32 %v1916, %v2099
      %v2101 = vsub.f32 1.0, %v2100
      %v2102 = vmul.f32 %v2099, %v2101
      %v2103 = vadd.f32 %v2099, %v2102
      %vm2104 = vweird.f32 %v1916
      %vm2105 = vweird.f32 %v2099
      %vm2106 = vmor %vm2104, %vm2105
      %v2107 = vsel %vm2106, %v2099, %v2103
      %v2108 = vand.u32 2147483647, %v1916
      %vm2109 = vcmp.eq.f32.partialorder %v2108, 8.507059e+37
      %v2110 = vand.u32 %v1916, 2147483648
      %v2111 = vor.u32 1.1754944e-38, %v2110
      %v2112 = vsel %vm2109, %v2111, %v2107
      %v2113 = vrcp.pop %v1918
      %v2114 = vmul.f32 %v1918, %v2113
      %v2115 = vsub.f32 1.0, %v2114
      %v2116 = vmul.f32 %v2113, %v2115
      %v2117 = vadd.f32 %v2113, %v2116
      %vm2118 = vweird.f32 %v1918
      %vm2119 = vweird.f32 %v2113
      %vm2120 = vmor %vm2118, %vm2119
      %v2121 = vsel %vm2120, %v2113, %v2117
      %v2122 = vand.u32 2147483647, %v1918
      %vm2123 = vcmp.eq.f32.partialorder %v2122, 8.507059e+37
      %v2124 = vand.u32 %v1918, 2147483648
      %v2125 = vor.u32 1.1754944e-38, %v2124
      %v2126 = vsel %vm2123, %v2125, %v2121
      %v2127 = vrcp.pop %v1920
      %v2128 = vmul.f32 %v1920, %v2127
      %v2129 = vsub.f32 1.0, %v2128
      %v2130 = vmul.f32 %v2127, %v2129
      %v2131 = vadd.f32 %v2127, %v2130
      %vm2132 = vweird.f32 %v1920
      %vm2133 = vweird.f32 %v2127
      %vm2134 = vmor %vm2132, %vm2133
      %v2135 = vsel %vm2134, %v2127, %v2131
      %v2136 = vand.u32 2147483647, %v1920
      %vm2137 = vcmp.eq.f32.partialorder %v2136, 8.507059e+37
      %v2138 = vand.u32 %v1920, 2147483648
      %v2139 = vor.u32 1.1754944e-38, %v2138
      %v2140 = vsel %vm2137, %v2139, %v2135
      %v2141 = vrcp.pop %v1922
      %v2142 = vmul.f32 %v1922, %v2141
      %v2143 = vsub.f32 1.0, %v2142
      %v2144 = vmul.f32 %v2141, %v2143
      %v2145 = vadd.f32 %v2141, %v2144
      %vm2146 = vweird.f32 %v1922
      %vm2147 = vweird.f32 %v2141
      %vm2148 = vmor %vm2146, %vm2147
      %v2149 = vsel %vm2148, %v2141, %v2145
      %v2150 = vand.u32 2147483647, %v1922
      %vm2151 = vcmp.eq.f32.partialorder %v2150, 8.507059e+37
      %v2152 = vand.u32 %v1922, 2147483648
      %v2153 = vor.u32 1.1754944e-38, %v2152
      %v2154 = vsel %vm2151, %v2153, %v2149
      %v2155 = vrcp.pop %v1924
      %v2156 = vmul.f32 %v1924, %v2155
      %v2157 = vsub.f32 1.0, %v2156
      %v2158 = vmul.f32 %v2155, %v2157
      %v2159 = vadd.f32 %v2155, %v2158
      %vm2160 = vweird.f32 %v1924
      %vm2161 = vweird.f32 %v2155
      %vm2162 = vmor %vm2160, %vm2161
      %v2163 = vsel %vm2162, %v2155, %v2159
      %v2164 = vand.u32 2147483647, %v1924
      %vm2165 = vcmp.eq.f32.partialorder %v2164, 8.507059e+37
      %v2166 = vand.u32 %v1924, 2147483648
      %v2167 = vor.u32 1.1754944e-38, %v2166
      %v2168 = vsel %vm2165, %v2167, %v2163
      %v2169 = vrcp.pop %v1926
      %v2170 = vmul.f32 %v1926, %v2169
      %v2171 = vsub.f32 1.0, %v2170
      %v2172 = vmul.f32 %v2169, %v2171
      %v2173 = vadd.f32 %v2169, %v2172
      %vm2174 = vweird.f32 %v1926
      %vm2175 = vweird.f32 %v2169
      %vm2176 = vmor %vm2174, %vm2175
      %v2177 = vsel %vm2176, %v2169, %v2173
      %v2178 = vand.u32 2147483647, %v1926
      %vm2179 = vcmp.eq.f32.partialorder %v2178, 8.507059e+37
      %v2180 = vand.u32 %v1926, 2147483648
      %v2181 = vor.u32 1.1754944e-38, %v2180
      %v2182 = vsel %vm2179, %v2181, %v2177
      %v2183 = vrcp.pop %v1928
      %v2184 = vmul.f32 %v1928, %v2183
      %v2185 = vsub.f32 1.0, %v2184
      %v2186 = vmul.f32 %v2183, %v2185
      %v2187 = vadd.f32 %v2183, %v2186
      %vm2188 = vweird.f32 %v1928
      %vm2189 = vweird.f32 %v2183
      %vm2190 = vmor %vm2188, %vm2189
      %v2191 = vsel %vm2190, %v2183, %v2187
      %v2192 = vand.u32 2147483647, %v1928
      %vm2193 = vcmp.eq.f32.partialorder %v2192, 8.507059e+37
      %v2194 = vand.u32 %v1928, 2147483648
      %v2195 = vor.u32 1.1754944e-38, %v2194
      %v2196 = vsel %vm2193, %v2195, %v2191
      %v2197 = vrcp.pop %v1930
      %v2198 = vmul.f32 %v1930, %v2197
      %v2199 = vsub.f32 1.0, %v2198
      %v2200 = vmul.f32 %v2197, %v2199
      %v2201 = vadd.f32 %v2197, %v2200
      %vm2202 = vweird.f32 %v1930
      %vm2203 = vweird.f32 %v2197
      %vm2204 = vmor %vm2202, %vm2203
      %v2205 = vsel %vm2204, %v2197, %v2201
      %v2206 = vand.u32 2147483647, %v1930
      %vm2207 = vcmp.eq.f32.partialorder %v2206, 8.507059e+37
      %v2208 = vand.u32 %v1930, 2147483648
      %v2209 = vor.u32 1.1754944e-38, %v2208
      %v2210 = vsel %vm2207, %v2209, %v2205
      %v2211 = vrcp.pop %v1932
      %v2212 = vmul.f32 %v1932, %v2211
      %v2213 = vsub.f32 1.0, %v2212
      %v2214 = vmul.f32 %v2211, %v2213
      %v2215 = vadd.f32 %v2211, %v2214
      %vm2216 = vweird.f32 %v1932
      %vm2217 = vweird.f32 %v2211
      %vm2218 = vmor %vm2216, %vm2217
      %v2219 = vsel %vm2218, %v2211, %v2215
      %v2220 = vand.u32 2147483647, %v1932
      %vm2221 = vcmp.eq.f32.partialorder %v2220, 8.507059e+37
      %v2222 = vand.u32 %v1932, 2147483648
      %v2223 = vor.u32 1.1754944e-38, %v2222
      %v2224 = vsel %vm2221, %v2223, %v2219
      %v2225 = vrcp.pop %v1934
      %v2226 = vmul.f32 %v1934, %v2225
      %v2227 = vsub.f32 1.0, %v2226
      %v2228 = vmul.f32 %v2225, %v2227
      %v2229 = vadd.f32 %v2225, %v2228
      %vm2230 = vweird.f32 %v1934
      %vm2231 = vweird.f32 %v2225
      %vm2232 = vmor %vm2230, %vm2231
      %v2233 = vsel %vm2232, %v2225, %v2229
      %v2234 = vand.u32 2147483647, %v1934
      %vm2235 = vcmp.eq.f32.partialorder %v2234, 8.507059e+37
      %v2236 = vand.u32 %v1934, 2147483648
      %v2237 = vor.u32 1.1754944e-38, %v2236
      %v2238 = vsel %vm2235, %v2237, %v2233
      %v2239 = vrcp.pop %v1936
      %v2240 = vmul.f32 %v1936, %v2239
      %v2241 = vsub.f32 1.0, %v2240
      %v2242 = vmul.f32 %v2239, %v2241
      %v2243 = vadd.f32 %v2239, %v2242
      %vm2244 = vweird.f32 %v1936
      %vm2245 = vweird.f32 %v2239
      %vm2246 = vmor %vm2244, %vm2245
      %v2247 = vsel %vm2246, %v2239, %v2243
      %v2248 = vand.u32 2147483647, %v1936
      %vm2249 = vcmp.eq.f32.partialorder %v2248, 8.507059e+37
      %v2250 = vand.u32 %v1936, 2147483648
      %v2251 = vor.u32 1.1754944e-38, %v2250
      %v2252 = vsel %vm2249, %v2251, %v2247
      %v2253 = vrcp.pop %v1938
      %v2254 = vmul.f32 %v1938, %v2253
      %v2255 = vsub.f32 1.0, %v2254
      %v2256 = vmul.f32 %v2253, %v2255
      %v2257 = vadd.f32 %v2253, %v2256
      %vm2258 = vweird.f32 %v1938
      %vm2259 = vweird.f32 %v2253
      %vm2260 = vmor %vm2258, %vm2259
      %v2261 = vsel %vm2260, %v2253, %v2257
      %v2262 = vand.u32 2147483647, %v1938
      %vm2263 = vcmp.eq.f32.partialorder %v2262, 8.507059e+37
      %v2264 = vand.u32 %v1938, 2147483648
      %v2265 = vor.u32 1.1754944e-38, %v2264
      %v2266 = vsel %vm2263, %v2265, %v2261
      %v2267 = vrcp.pop %v1940
      %v2268 = vmul.f32 %v1940, %v2267
      %v2269 = vsub.f32 1.0, %v2268
      %v2270 = vmul.f32 %v2267, %v2269
      %v2271 = vadd.f32 %v2267, %v2270
      %vm2272 = vweird.f32 %v1940
      %vm2273 = vweird.f32 %v2267
      %vm2274 = vmor %vm2272, %vm2273
      %v2275 = vsel %vm2274, %v2267, %v2271
      %v2276 = vand.u32 2147483647, %v1940
      %vm2277 = vcmp.eq.f32.partialorder %v2276, 8.507059e+37
      %v2278 = vand.u32 %v1940, 2147483648
      %v2279 = vor.u32 1.1754944e-38, %v2278
      %v2280 = vsel %vm2277, %v2279, %v2275
      %v2281 = vrcp.pop %v1942
      %v2282 = vmul.f32 %v1942, %v2281
      %v2283 = vsub.f32 1.0, %v2282
      %v2284 = vmul.f32 %v2281, %v2283
      %v2285 = vadd.f32 %v2281, %v2284
      %vm2286 = vweird.f32 %v1942
      %vm2287 = vweird.f32 %v2281
      %vm2288 = vmor %vm2286, %vm2287
      %v2289 = vsel %vm2288, %v2281, %v2285
      %v2290 = vand.u32 2147483647, %v1942
      %vm2291 = vcmp.eq.f32.partialorder %v2290, 8.507059e+37
      %v2292 = vand.u32 %v1942, 2147483648
      %v2293 = vor.u32 1.1754944e-38, %v2292
      %v2294 = vsel %vm2291, %v2293, %v2289
      %v2295 = vrcp.pop %v1944
      %v2296 = vmul.f32 %v1944, %v2295
      %v2297 = vsub.f32 1.0, %v2296
      %v2298 = vmul.f32 %v2295, %v2297
      %v2299 = vadd.f32 %v2295, %v2298
      %vm2300 = vweird.f32 %v1944
      %vm2301 = vweird.f32 %v2295
      %vm2302 = vmor %vm2300, %vm2301
      %v2303 = vsel %vm2302, %v2295, %v2299
      %v2304 = vand.u32 2147483647, %v1944
      %vm2305 = vcmp.eq.f32.partialorder %v2304, 8.507059e+37
      %v2306 = vand.u32 %v1944, 2147483648
      %v2307 = vor.u32 1.1754944e-38, %v2306
      %v2308 = vsel %vm2305, %v2307, %v2303
      %v2309 = vrcp.pop %v1946
      %v2310 = vmul.f32 %v1946, %v2309
      %v2311 = vsub.f32 1.0, %v2310
      %v2312 = vmul.f32 %v2309, %v2311
      %v2313 = vadd.f32 %v2309, %v2312
      %vm2314 = vweird.f32 %v1946
      %vm2315 = vweird.f32 %v2309
      %vm2316 = vmor %vm2314, %vm2315
      %v2317 = vsel %vm2316, %v2309, %v2313
      %v2318 = vand.u32 2147483647, %v1946
      %vm2319 = vcmp.eq.f32.partialorder %v2318, 8.507059e+37
      %v2320 = vand.u32 %v1946, 2147483648
      %v2321 = vor.u32 1.1754944e-38, %v2320
      %v2322 = vsel %vm2319, %v2321, %v2317
      %v2323 = vrcp.pop %v1948
      %v2324 = vmul.f32 %v1948, %v2323
      %v2325 = vsub.f32 1.0, %v2324
      %v2326 = vmul.f32 %v2323, %v2325
      %v2327 = vadd.f32 %v2323, %v2326
      %vm2328 = vweird.f32 %v1948
      %vm2329 = vweird.f32 %v2323
      %vm2330 = vmor %vm2328, %vm2329
      %v2331 = vsel %vm2330, %v2323, %v2327
      %v2332 = vand.u32 2147483647, %v1948
      %vm2333 = vcmp.eq.f32.partialorder %v2332, 8.507059e+37
      %v2334 = vand.u32 %v1948, 2147483648
      %v2335 = vor.u32 1.1754944e-38, %v2334
      %v2336 = vsel %vm2333, %v2335, %v2331
      %v2337 = vrcp.pop %v1950
      %v2338 = vmul.f32 %v1950, %v2337
      %v2339 = vsub.f32 1.0, %v2338
      %v2340 = vmul.f32 %v2337, %v2339
      %v2341 = vadd.f32 %v2337, %v2340
      %vm2342 = vweird.f32 %v1950
      %vm2343 = vweird.f32 %v2337
      %vm2344 = vmor %vm2342, %vm2343
      %v2345 = vsel %vm2344, %v2337, %v2341
      %v2346 = vand.u32 2147483647, %v1950
      %vm2347 = vcmp.eq.f32.partialorder %v2346, 8.507059e+37
      %v2348 = vand.u32 %v1950, 2147483648
      %v2349 = vor.u32 1.1754944e-38, %v2348
      %v2350 = vsel %vm2347, %v2349, %v2345
      %v2351 = vrcp.pop %v1952
      %v2352 = vmul.f32 %v1952, %v2351
      %v2353 = vsub.f32 1.0, %v2352
      %v2354 = vmul.f32 %v2351, %v2353
      %v2355 = vadd.f32 %v2351, %v2354
      %vm2356 = vweird.f32 %v1952
      %vm2357 = vweird.f32 %v2351
      %vm2358 = vmor %vm2356, %vm2357
      %v2359 = vsel %vm2358, %v2351, %v2355
      %v2360 = vand.u32 2147483647, %v1952
      %vm2361 = vcmp.eq.f32.partialorder %v2360, 8.507059e+37
      %v2362 = vand.u32 %v1952, 2147483648
      %v2363 = vor.u32 1.1754944e-38, %v2362
      %v2364 = vsel %vm2361, %v2363, %v2359
      %v2365 = vrcp.pop %v1954
      %v2366 = vmul.f32 %v1954, %v2365
      %v2367 = vsub.f32 1.0, %v2366
      %v2368 = vmul.f32 %v2365, %v2367
      %v2369 = vadd.f32 %v2365, %v2368
      %vm2370 = vweird.f32 %v1954
      %vm2371 = vweird.f32 %v2365
      %vm2372 = vmor %vm2370, %vm2371
      %v2373 = vsel %vm2372, %v2365, %v2369
      %v2374 = vand.u32 2147483647, %v1954
      %vm2375 = vcmp.eq.f32.partialorder %v2374, 8.507059e+37
      %v2376 = vand.u32 %v1954, 2147483648
      %v2377 = vor.u32 1.1754944e-38, %v2376
      %v2378 = vsel %vm2375, %v2377, %v2373
      %v2379 = vrcp.pop %v1956
      %v2380 = vmul.f32 %v1956, %v2379
      %v2381 = vsub.f32 1.0, %v2380
      %v2382 = vmul.f32 %v2379, %v2381
      %v2383 = vadd.f32 %v2379, %v2382
      %vm2384 = vweird.f32 %v1956
      %vm2385 = vweird.f32 %v2379
      %vm2386 = vmor %vm2384, %vm2385
      %v2387 = vsel %vm2386, %v2379, %v2383
      %v2388 = vand.u32 2147483647, %v1956
      %vm2389 = vcmp.eq.f32.partialorder %v2388, 8.507059e+37
      %v2390 = vand.u32 %v1956, 2147483648
      %v2391 = vor.u32 1.1754944e-38, %v2390
      %v2392 = vsel %vm2389, %v2391, %v2387
      %v2393 = vrcp.pop %v1958
      %v2394 = vmul.f32 %v1958, %v2393
      %v2395 = vsub.f32 1.0, %v2394
      %v2396 = vmul.f32 %v2393, %v2395
      %v2397 = vadd.f32 %v2393, %v2396
      %vm2398 = vweird.f32 %v1958
      %vm2399 = vweird.f32 %v2393
      %vm2400 = vmor %vm2398, %vm2399
      %v2401 = vsel %vm2400, %v2393, %v2397
      %v2402 = vand.u32 2147483647, %v1958
      %vm2403 = vcmp.eq.f32.partialorder %v2402, 8.507059e+37
      %v2404 = vand.u32 %v1958, 2147483648
      %v2405 = vor.u32 1.1754944e-38, %v2404
      %v2406 = vsel %vm2403, %v2405, %v2401
      %v2407 = vmul.f32 %v1832, %v1972
      %v2408 = vmul.f32 %v1834, %v1986
      %v2409 = vmul.f32 %v1836, %v2000
      %v2410 = vmul.f32 %v1838, %v2014
      %v2411 = vmul.f32 %v1840, %v2028
      %v2412 = vmul.f32 %v1842, %v2042
      %v2413 = vmul.f32 %v1844, %v2056
      %v2414 = vmul.f32 %v1846, %v2070
      %v2415 = vmul.f32 %v1848, %v2084
      %v2416 = vmul.f32 %v1850, %v2098
      %v2417 = vmul.f32 %v1852, %v2112
      %v2418 = vmul.f32 %v1854, %v2126
      %v2419 = vmul.f32 %v1856, %v2140
      %v2420 = vmul.f32 %v1858, %v2154
      %v2421 = vmul.f32 %v1860, %v2168
      %v2422 = vmul.f32 %v1862, %v2182
      %v2423 = vmul.f32 %v1864, %v2196
      %v2424 = vmul.f32 %v1866, %v2210
      %v2425 = vmul.f32 %v1868, %v2224
      %v2426 = vmul.f32 %v1870, %v2238
      %v2427 = vmul.f32 %v1872, %v2252
      %v2428 = vmul.f32 %v1874, %v2266
      %v2429 = vmul.f32 %v1876, %v2280
      %v2430 = vmul.f32 %v1878, %v2294
      %v2431 = vmul.f32 %v1880, %v2308
      %v2432 = vmul.f32 %v1882, %v2322
      %v2433 = vmul.f32 %v1884, %v2336
      %v2434 = vmul.f32 %v1886, %v2350
      %v2435 = vmul.f32 %v1888, %v2364
      %v2436 = vmul.f32 %v1890, %v2378
      %v2437 = vmul.f32 %v1892, %v2392
      %v2438 = vmul.f32 %v1894, %v2406
      %v2439 = vpack.c.bf16 %v2407, %v2407
      %v2440 = vpack.c.bf16 %v2408, %v2408
      %v2441 = vpack.c.bf16 %v2409, %v2409
      %v2442 = vpack.c.bf16 %v2410, %v2410
      %v2443 = vpack.c.bf16 %v2411, %v2411
      %v2444 = vpack.c.bf16 %v2412, %v2412
      %v2445 = vpack.c.bf16 %v2413, %v2413
      %v2446 = vpack.c.bf16 %v2414, %v2414
      %v2447 = vpack.c.bf16 %v2415, %v2415
      %v2448 = vpack.c.bf16 %v2416, %v2416
      %v2449 = vpack.c.bf16 %v2417, %v2417
      %v2450 = vpack.c.bf16 %v2418, %v2418
      %v2451 = vpack.c.bf16 %v2419, %v2419
      %v2452 = vpack.c.bf16 %v2420, %v2420
      %v2453 = vpack.c.bf16 %v2421, %v2421
      %v2454 = vpack.c.bf16 %v2422, %v2422
      %v2455 = vpack.c.bf16 %v2423, %v2423
      %v2456 = vpack.c.bf16 %v2424, %v2424
      %v2457 = vpack.c.bf16 %v2425, %v2425
      %v2458 = vpack.c.bf16 %v2426, %v2426
      %v2459 = vpack.c.bf16 %v2427, %v2427
      %v2460 = vpack.c.bf16 %v2428, %v2428
      %v2461 = vpack.c.bf16 %v2429, %v2429
      %v2462 = vpack.c.bf16 %v2430, %v2430
      %v2463 = vpack.c.bf16 %v2431, %v2431
      %v2464 = vpack.c.bf16 %v2432, %v2432
      %v2465 = vpack.c.bf16 %v2433, %v2433
      %v2466 = vpack.c.bf16 %v2434, %v2434
      %v2467 = vpack.c.bf16 %v2435, %v2435
      %v2468 = vpack.c.bf16 %v2436, %v2436
      %v2469 = vpack.c.bf16 %v2437, %v2437
      %v2470 = vpack.c.bf16 %v2438, %v2438
      %v2479 = vunpack.c.l.b16 %v2439
      %v2480 = vunpack.c.l.b16 %v2440
      %v2481 = vunpack.c.l.b16 %v2441
      %v2482 = vunpack.c.l.b16 %v2442
      %v2483 = vunpack.c.l.b16 %v2443
      %v2484 = vunpack.c.l.b16 %v2444
      %v2485 = vunpack.c.l.b16 %v2445
      %v2486 = vunpack.c.l.b16 %v2446
      %v2487 = vpack.c.b16 %v2480, %v2479
      %v2488 = vpack.c.b16 %v2482, %v2481
      %v2489 = vpack.c.b16 %v2484, %v2483
      %v2490 = vpack.c.b16 %v2486, %v2485
      %v2495 = vunpack.c.l.b16 %v1034
      %v2496 = vunpack.c.l.b16 %v1035
      %v2497 = vunpack.c.l.b16 %v1036
      %v2498 = vunpack.c.l.b16 %v1037
      %v2499 = vunpack.c.l.b16 %v1038
      %v2500 = vunpack.c.l.b16 %v1039
      %v2501 = vunpack.c.l.b16 %v1040
      %v2502 = vunpack.c.l.b16 %v1041
      %v2503 = vunpack.c.l.b16 %v1042
      %v2504 = vunpack.c.l.b16 %v1043
      %v2505 = vunpack.c.l.b16 %v1044
      %v2506 = vunpack.c.l.b16 %v1045
      %v2507 = vunpack.c.l.b16 %v1046
      %v2508 = vunpack.c.l.b16 %v1047
      %v2509 = vunpack.c.l.b16 %v1048
      %v2510 = vunpack.c.l.b16 %v1049
      %v2511 = vpack.c.b16 %v2496, %v2495
      %v2512 = vpack.c.b16 %v2498, %v2497
      %v2513 = vpack.c.b16 %v2500, %v2499
      %v2514 = vpack.c.b16 %v2502, %v2501
      %v2515 = vpack.c.b16 %v2504, %v2503
      %v2516 = vpack.c.b16 %v2506, %v2505
      %v2517 = vpack.c.b16 %v2508, %v2507
      %v2518 = vpack.c.b16 %v2510, %v2509
      %2527 = vmatpush.bf16.msra.mxu0 %v2518
      %2528 = vmatpush.bf16.msra.mxu0 %v2517
      %2529 = vmatpush.bf16.msra.mxu0 %v2516
      %2530 = vmatpush.bf16.msra.mxu0 %v2515
      %2531 = vmatpush.bf16.msra.mxu0 %v2514
      %2532 = vmatpush.bf16.msra.mxu0 %v2513
      %2533 = vmatpush.bf16.msra.mxu0 %v2512
      %2534 = vmatpush.bf16.msra.mxu0 %v2511
      %2535 = vmatmul.bf16.gmra.mxu0 %v2487
      %v2536 = vpop.f32.mrf.mxu0
      %v2537 = vadd.f32 0.0, %v2536
      %v2538 = vpop.f32.mrf.mxu0
      %v2539 = vadd.f32 0.0, %v2538
      %2540 = vmatmul.bf16.gmra.mxu0 %v2488
      %v2541 = vpop.f32.mrf.mxu0
      %v2542 = vadd.f32 0.0, %v2541
      %v2543 = vpop.f32.mrf.mxu0
      %v2544 = vadd.f32 0.0, %v2543
      %2545 = vmatmul.bf16.gmra.mxu0 %v2489
      %v2546 = vpop.f32.mrf.mxu0
      %v2547 = vadd.f32 0.0, %v2546
      %v2548 = vpop.f32.mrf.mxu0
      %v2549 = vadd.f32 0.0, %v2548
      %2550 = vmatmul.bf16.gmra.mxu0 %v2490
      %v2551 = vpop.f32.mrf.mxu0
      %v2552 = vadd.f32 0.0, %v2551
      %v2553 = vpop.f32.mrf.mxu0
      %v2554 = vadd.f32 0.0, %v2553
      %2555 = vdwg.mxu0
      %v2564 = vunpack.c.l.b16 %v2447
      %v2565 = vunpack.c.l.b16 %v2448
      %v2566 = vunpack.c.l.b16 %v2449
      %v2567 = vunpack.c.l.b16 %v2450
      %v2568 = vunpack.c.l.b16 %v2451
      %v2569 = vunpack.c.l.b16 %v2452
      %v2570 = vunpack.c.l.b16 %v2453
      %v2571 = vunpack.c.l.b16 %v2454
      %v2572 = vpack.c.b16 %v2565, %v2564
      %v2573 = vpack.c.b16 %v2567, %v2566
      %v2574 = vpack.c.b16 %v2569, %v2568
      %v2575 = vpack.c.b16 %v2571, %v2570
      %v2580 = vunpack.c.l.b16 %v1235
      %v2581 = vunpack.c.l.b16 %v1237
      %v2582 = vunpack.c.l.b16 %v1239
      %v2583 = vunpack.c.l.b16 %v1241
      %v2584 = vunpack.c.l.b16 %v1243
      %v2585 = vunpack.c.l.b16 %v1245
      %v2586 = vunpack.c.l.b16 %v1247
      %v2587 = vunpack.c.l.b16 %v1249
      %v2588 = vunpack.c.l.b16 %v1251
      %v2589 = vunpack.c.l.b16 %v1253
      %v2590 = vunpack.c.l.b16 %v1255
      %v2591 = vunpack.c.l.b16 %v1257
      %v2592 = vunpack.c.l.b16 %v1259
      %v2593 = vunpack.c.l.b16 %v1261
      %v2594 = vunpack.c.l.b16 %v1263
      %v2595 = vunpack.c.l.b16 %v1265
      %v2596 = vpack.c.b16 %v2581, %v2580
      %v2597 = vpack.c.b16 %v2583, %v2582
      %v2598 = vpack.c.b16 %v2585, %v2584
      %v2599 = vpack.c.b16 %v2587, %v2586
      %v2600 = vpack.c.b16 %v2589, %v2588
      %v2601 = vpack.c.b16 %v2591, %v2590
      %v2602 = vpack.c.b16 %v2593, %v2592
      %v2603 = vpack.c.b16 %v2595, %v2594
      %2612 = vmatpush.bf16.msra.mxu0 %v2603
      %2613 = vmatpush.bf16.msra.mxu0 %v2602
      %2614 = vmatpush.bf16.msra.mxu0 %v2601
      %2615 = vmatpush.bf16.msra.mxu0 %v2600
      %2616 = vmatpush.bf16.msra.mxu0 %v2599
      %2617 = vmatpush.bf16.msra.mxu0 %v2598
      %2618 = vmatpush.bf16.msra.mxu0 %v2597
      %2619 = vmatpush.bf16.msra.mxu0 %v2596
      %2620 = vmatmul.bf16.gmra.mxu0 %v2572
      %v2621 = vpop.f32.mrf.mxu0
      %v2622 = vadd.f32 0.0, %v2621
      %v2623 = vpop.f32.mrf.mxu0
      %v2624 = vadd.f32 0.0, %v2623
      %2625 = vmatmul.bf16.gmra.mxu0 %v2573
      %v2626 = vpop.f32.mrf.mxu0
      %v2627 = vadd.f32 0.0, %v2626
      %v2628 = vpop.f32.mrf.mxu0
      %v2629 = vadd.f32 0.0, %v2628
      %2630 = vmatmul.bf16.gmra.mxu0 %v2574
      %v2631 = vpop.f32.mrf.mxu0
      %v2632 = vadd.f32 0.0, %v2631
      %v2633 = vpop.f32.mrf.mxu0
      %v2634 = vadd.f32 0.0, %v2633
      %2635 = vmatmul.bf16.gmra.mxu0 %v2575
      %v2636 = vpop.f32.mrf.mxu0
      %v2637 = vadd.f32 0.0, %v2636
      %v2638 = vpop.f32.mrf.mxu0
      %v2639 = vadd.f32 0.0, %v2638
      %2640 = vdwg.mxu0
      %v2649 = vunpack.c.l.b16 %v2455
      %v2650 = vunpack.c.l.b16 %v2456
      %v2651 = vunpack.c.l.b16 %v2457
      %v2652 = vunpack.c.l.b16 %v2458
      %v2653 = vunpack.c.l.b16 %v2459
      %v2654 = vunpack.c.l.b16 %v2460
      %v2655 = vunpack.c.l.b16 %v2461
      %v2656 = vunpack.c.l.b16 %v2462
      %v2657 = vpack.c.b16 %v2650, %v2649
      %v2658 = vpack.c.b16 %v2652, %v2651
      %v2659 = vpack.c.b16 %v2654, %v2653
      %v2660 = vpack.c.b16 %v2656, %v2655
      %v2665 = vunpack.c.l.b16 %v1267
      %v2666 = vunpack.c.l.b16 %v1269
      %v2667 = vunpack.c.l.b16 %v1271
      %v2668 = vunpack.c.l.b16 %v1273
      %v2669 = vunpack.c.l.b16 %v1275
      %v2670 = vunpack.c.l.b16 %v1277
      %v2671 = vunpack.c.l.b16 %v1279
      %v2672 = vunpack.c.l.b16 %v1281
      %v2673 = vunpack.c.l.b16 %v1283
      %v2674 = vunpack.c.l.b16 %v1285
      %v2675 = vunpack.c.l.b16 %v1287
      %v2676 = vunpack.c.l.b16 %v1289
      %v2677 = vunpack.c.l.b16 %v1291
      %v2678 = vunpack.c.l.b16 %v1293
      %v2679 = vunpack.c.l.b16 %v1295
      %v2680 = vunpack.c.l.b16 %v1297
      %v2681 = vpack.c.b16 %v2666, %v2665
      %v2682 = vpack.c.b16 %v2668, %v2667
      %v2683 = vpack.c.b16 %v2670, %v2669
      %v2684 = vpack.c.b16 %v2672, %v2671
      %v2685 = vpack.c.b16 %v2674, %v2673
      %v2686 = vpack.c.b16 %v2676, %v2675
      %v2687 = vpack.c.b16 %v2678, %v2677
      %v2688 = vpack.c.b16 %v2680, %v2679
      %2697 = vmatpush.bf16.msra.mxu0 %v2688
      %2698 = vmatpush.bf16.msra.mxu0 %v2687
      %2699 = vmatpush.bf16.msra.mxu0 %v2686
      %2700 = vmatpush.bf16.msra.mxu0 %v2685
      %2701 = vmatpush.bf16.msra.mxu0 %v2684
      %2702 = vmatpush.bf16.msra.mxu0 %v2683
      %2703 = vmatpush.bf16.msra.mxu0 %v2682
      %2704 = vmatpush.bf16.msra.mxu0 %v2681
      %2705 = vmatmul.bf16.gmra.mxu0 %v2657
      %v2706 = vpop.f32.mrf.mxu0
      %v2707 = vadd.f32 0.0, %v2706
      %v2708 = vpop.f32.mrf.mxu0
      %v2709 = vadd.f32 0.0, %v2708
      %2710 = vmatmul.bf16.gmra.mxu0 %v2658
      %v2711 = vpop.f32.mrf.mxu0
      %v2712 = vadd.f32 0.0, %v2711
      %v2713 = vpop.f32.mrf.mxu0
      %v2714 = vadd.f32 0.0, %v2713
      %2715 = vmatmul.bf16.gmra.mxu0 %v2659
      %v2716 = vpop.f32.mrf.mxu0
      %v2717 = vadd.f32 0.0, %v2716
      %v2718 = vpop.f32.mrf.mxu0
      %v2719 = vadd.f32 0.0, %v2718
      %2720 = vmatmul.bf16.gmra.mxu0 %v2660
      %v2721 = vpop.f32.mrf.mxu0
      %v2722 = vadd.f32 0.0, %v2721
      %v2723 = vpop.f32.mrf.mxu0
      %v2724 = vadd.f32 0.0, %v2723
      %2725 = vdwg.mxu0
      %v2734 = vunpack.c.l.b16 %v2463
      %v2735 = vunpack.c.l.b16 %v2464
      %v2736 = vunpack.c.l.b16 %v2465
      %v2737 = vunpack.c.l.b16 %v2466
      %v2738 = vunpack.c.l.b16 %v2467
      %v2739 = vunpack.c.l.b16 %v2468
      %v2740 = vunpack.c.l.b16 %v2469
      %v2741 = vunpack.c.l.b16 %v2470
      %v2742 = vpack.c.b16 %v2735, %v2734
      %v2743 = vpack.c.b16 %v2737, %v2736
      %v2744 = vpack.c.b16 %v2739, %v2738
      %v2745 = vpack.c.b16 %v2741, %v2740
      %v2750 = vunpack.c.l.b16 %v1299
      %v2751 = vunpack.c.l.b16 %v1301
      %v2752 = vunpack.c.l.b16 %v1303
      %v2753 = vunpack.c.l.b16 %v1305
      %v2754 = vunpack.c.l.b16 %v1307
      %v2755 = vunpack.c.l.b16 %v1309
      %v2756 = vunpack.c.l.b16 %v1311
      %v2757 = vunpack.c.l.b16 %v1313
      %v2758 = vunpack.c.l.b16 %v1315
      %v2759 = vunpack.c.l.b16 %v1317
      %v2760 = vunpack.c.l.b16 %v1319
      %v2761 = vunpack.c.l.b16 %v1321
      %v2762 = vunpack.c.l.b16 %v1323
      %v2763 = vunpack.c.l.b16 %v1325
      %v2764 = vunpack.c.l.b16 %v1327
      %v2765 = vunpack.c.l.b16 %v1329
      %v2766 = vpack.c.b16 %v2751, %v2750
      %v2767 = vpack.c.b16 %v2753, %v2752
      %v2768 = vpack.c.b16 %v2755, %v2754
      %v2769 = vpack.c.b16 %v2757, %v2756
      %v2770 = vpack.c.b16 %v2759, %v2758
      %v2771 = vpack.c.b16 %v2761, %v2760
      %v2772 = vpack.c.b16 %v2763, %v2762
      %v2773 = vpack.c.b16 %v2765, %v2764
      %2782 = vmatpush.bf16.msra.mxu0 %v2773
      %2783 = vmatpush.bf16.msra.mxu0 %v2772
      %2784 = vmatpush.bf16.msra.mxu0 %v2771
      %2785 = vmatpush.bf16.msra.mxu0 %v2770
      %2786 = vmatpush.bf16.msra.mxu0 %v2769
      %2787 = vmatpush.bf16.msra.mxu0 %v2768
      %2788 = vmatpush.bf16.msra.mxu0 %v2767
      %2789 = vmatpush.bf16.msra.mxu0 %v2766
      %2790 = vmatmul.bf16.gmra.mxu0 %v2742
      %v2791 = vpop.f32.mrf.mxu0
      %v2792 = vadd.f32 0.0, %v2791
      %v2793 = vpop.f32.mrf.mxu0
      %v2794 = vadd.f32 0.0, %v2793
      %2795 = vmatmul.bf16.gmra.mxu0 %v2743
      %v2796 = vpop.f32.mrf.mxu0
      %v2797 = vadd.f32 0.0, %v2796
      %v2798 = vpop.f32.mrf.mxu0
      %v2799 = vadd.f32 0.0, %v2798
      %2800 = vmatmul.bf16.gmra.mxu0 %v2744
      %v2801 = vpop.f32.mrf.mxu0
      %v2802 = vadd.f32 0.0, %v2801
      %v2803 = vpop.f32.mrf.mxu0
      %v2804 = vadd.f32 0.0, %v2803
      %2805 = vmatmul.bf16.gmra.mxu0 %v2745
      %v2806 = vpop.f32.mrf.mxu0
      %v2807 = vadd.f32 0.0, %v2806
      %v2808 = vpop.f32.mrf.mxu0
      %v2809 = vadd.f32 0.0, %v2808
      %2810 = vdwg.mxu0
      %2819 = vrot.lane.b32.xlu0 %v2622, 32
      %v2820 = vpop.permute.xlu0 %2819
      %2821 = vrot.lane.b32.xlu0 %v2624, 32
      %v2822 = vpop.permute.xlu0 %2821
      %2823 = vrot.lane.b32.xlu0 %v2627, 32
      %v2824 = vpop.permute.xlu0 %2823
      %2825 = vrot.lane.b32.xlu0 %v2629, 32
      %v2826 = vpop.permute.xlu0 %2825
      %2827 = vrot.lane.b32.xlu0 %v2632, 32
      %v2828 = vpop.permute.xlu0 %2827
      %2829 = vrot.lane.b32.xlu0 %v2634, 32
      %v2830 = vpop.permute.xlu0 %2829
      %2831 = vrot.lane.b32.xlu0 %v2637, 32
      %v2832 = vpop.permute.xlu0 %2831
      %2833 = vrot.lane.b32.xlu0 %v2639, 32
      %v2834 = vpop.permute.xlu0 %2833
      %2851 = vrot.lane.b32.xlu0 %v2707, 64
      %v2852 = vpop.permute.xlu0 %2851
      %2853 = vrot.lane.b32.xlu0 %v2709, 64
      %v2854 = vpop.permute.xlu0 %2853
      %2855 = vrot.lane.b32.xlu0 %v2712, 64
      %v2856 = vpop.permute.xlu0 %2855
      %2857 = vrot.lane.b32.xlu0 %v2714, 64
      %v2858 = vpop.permute.xlu0 %2857
      %2859 = vrot.lane.b32.xlu0 %v2717, 64
      %v2860 = vpop.permute.xlu0 %2859
      %2861 = vrot.lane.b32.xlu0 %v2719, 64
      %v2862 = vpop.permute.xlu0 %2861
      %2863 = vrot.lane.b32.xlu0 %v2722, 64
      %v2864 = vpop.permute.xlu0 %2863
      %2865 = vrot.lane.b32.xlu0 %v2724, 64
      %v2866 = vpop.permute.xlu0 %2865
      %2883 = vrot.lane.b32.xlu0 %v2792, 96
      %v2884 = vpop.permute.xlu0 %2883
      %2885 = vrot.lane.b32.xlu0 %v2794, 96
      %v2886 = vpop.permute.xlu0 %2885
      %2887 = vrot.lane.b32.xlu0 %v2797, 96
      %v2888 = vpop.permute.xlu0 %2887
      %2889 = vrot.lane.b32.xlu0 %v2799, 96
      %v2890 = vpop.permute.xlu0 %2889
      %2891 = vrot.lane.b32.xlu0 %v2802, 96
      %v2892 = vpop.permute.xlu0 %2891
      %2893 = vrot.lane.b32.xlu0 %v2804, 96
      %v2894 = vpop.permute.xlu0 %2893
      %2895 = vrot.lane.b32.xlu0 %v2807, 96
      %v2896 = vpop.permute.xlu0 %2895
      %2897 = vrot.lane.b32.xlu0 %v2809, 96
      %v2898 = vpop.permute.xlu0 %2897
      %v2907 = vsel %vm1366, %v2537, %v2820
      %v2908 = vsel %vm1366, %v2539, %v2822
      %v2909 = vsel %vm1366, %v2542, %v2824
      %v2910 = vsel %vm1366, %v2544, %v2826
      %v2911 = vsel %vm1366, %v2547, %v2828
      %v2912 = vsel %vm1366, %v2549, %v2830
      %v2913 = vsel %vm1366, %v2552, %v2832
      %v2914 = vsel %vm1366, %v2554, %v2834
      %vm2915 = vcmask 523264
      %v2916 = vsel %vm2915, %v2907, %v2852
      %v2917 = vsel %vm2915, %v2908, %v2854
      %v2918 = vsel %vm2915, %v2909, %v2856
      %v2919 = vsel %vm2915, %v2910, %v2858
      %v2920 = vsel %vm2915, %v2911, %v2860
      %v2921 = vsel %vm2915, %v2912, %v2862
      %v2922 = vsel %vm2915, %v2913, %v2864
      %v2923 = vsel %vm2915, %v2914, %v2866
      %vm2924 = vcmask 785408
      %v2925 = vsel %vm2924, %v2916, %v2884
      %v2926 = vsel %vm2924, %v2917, %v2886
      %v2927 = vsel %vm2924, %v2918, %v2888
      %v2928 = vsel %vm2924, %v2919, %v2890
      %v2929 = vsel %vm2924, %v2920, %v2892
      %v2930 = vsel %vm2924, %v2921, %v2894
      %v2931 = vsel %vm2924, %v2922, %v2896
      %v2932 = vsel %vm2924, %v2923, %v2898
      %v2933 = vpack.c.bf16 %v2926, %v2925
      %v2934 = vpack.c.bf16 %v2928, %v2927
      %v2935 = vpack.c.bf16 %v2930, %v2929
      %v2936 = vpack.c.bf16 %v2932, %v2931
      %v2937 = vld [vmem:[%s8] sm:$0xf]
      %v2938 = vld [vmem:[%s8 + $0x4] sm:$0xf]
      %v2939 = vld [vmem:[%s8 + $0x8] sm:$0xf]
      %v2940 = vld [vmem:[%s8 + $0xc] sm:$0xf]
      %v2941 = vld [vmem:[%s8 + $0x10] sm:$0xf]
      %v2942 = vld [vmem:[%s8 + $0x14] sm:$0xf]
      %v2943 = vld [vmem:[%s8 + $0x18] sm:$0xf]
      %v2944 = vld [vmem:[%s8 + $0x1c] sm:$0xf]
      %v2945 = vld [vmem:[%s8 + $0x20] sm:$0xf]
      %v2946 = vld [vmem:[%s8 + $0x24] sm:$0xf]
      %v2947 = vld [vmem:[%s8 + $0x28] sm:$0xf]
      %v2948 = vld [vmem:[%s8 + $0x2c] sm:$0xf]
      %v2949 = vld [vmem:[%s8 + $0x30] sm:$0xf]
      %v2950 = vld [vmem:[%s8 + $0x34] sm:$0xf]
      %v2951 = vld [vmem:[%s8 + $0x38] sm:$0xf]
      %v2952 = vld [vmem:[%s8 + $0x3c] sm:$0xf]
      %v2953 = vld [vmem:[%s9] sm:$0x1]
      %v2955 = vperm.slane %v2953, 0
      %v2973 = vunpack.c.l.b16 %v2937
      %v2974 = vunpack.c.l.b16 %v2938
      %v2975 = vunpack.c.l.b16 %v2939
      %v2976 = vunpack.c.l.b16 %v2940
      %v2977 = vunpack.c.l.b16 %v2941
      %v2978 = vunpack.c.l.b16 %v2942
      %v2979 = vunpack.c.l.b16 %v2943
      %v2980 = vunpack.c.l.b16 %v2944
      %v2981 = vunpack.c.l.b16 %v2945
      %v2982 = vunpack.c.l.b16 %v2946
      %v2983 = vunpack.c.l.b16 %v2947
      %v2984 = vunpack.c.l.b16 %v2948
      %v2985 = vunpack.c.l.b16 %v2949
      %v2986 = vunpack.c.l.b16 %v2950
      %v2987 = vunpack.c.l.b16 %v2951
      %v2988 = vunpack.c.l.b16 %v2952
      %v2989 = vpack.c.b16 %v2974, %v2973
      %v2990 = vpack.c.b16 %v2976, %v2975
      %v2991 = vpack.c.b16 %v2978, %v2977
      %v2992 = vpack.c.b16 %v2980, %v2979
      %v2993 = vpack.c.b16 %v2982, %v2981
      %v2994 = vpack.c.b16 %v2984, %v2983
      %v2995 = vpack.c.b16 %v2986, %v2985
      %v2996 = vpack.c.b16 %v2988, %v2987
      %3005 = vmatpush.bf16.msra.mxu0 %v2996
      %3006 = vmatpush.bf16.msra.mxu0 %v2995
      %3007 = vmatpush.bf16.msra.mxu0 %v2994
      %3008 = vmatpush.bf16.msra.mxu0 %v2993
      %3009 = vmatpush.bf16.msra.mxu0 %v2992
      %3010 = vmatpush.bf16.msra.mxu0 %v2991
      %3011 = vmatpush.bf16.msra.mxu0 %v2990
      %3012 = vmatpush.bf16.msra.mxu0 %v2989
      %3013 = vmatmul.bf16.gmra.mxu0 %v2933
      %v3014 = vpop.f32.mrf.mxu0
      %v3015 = vadd.f32 %v2955, %v3014
      %v3016 = vpop.f32.mrf.mxu0
      %v3017 = vadd.f32 %v2955, %v3016
      %3018 = vmatmul.bf16.gmra.mxu0 %v2934
      %v3019 = vpop.f32.mrf.mxu0
      %v3020 = vadd.f32 %v2955, %v3019
      %v3021 = vpop.f32.mrf.mxu0
      %v3022 = vadd.f32 %v2955, %v3021
      %3023 = vmatmul.bf16.gmra.mxu0 %v2935
      %v3024 = vpop.f32.mrf.mxu0
      %v3025 = vadd.f32 %v2955, %v3024
      %v3026 = vpop.f32.mrf.mxu0
      %v3027 = vadd.f32 %v2955, %v3026
      %3028 = vmatmul.bf16.gmra.mxu0 %v2936
      %v3029 = vpop.f32.mrf.mxu0
      %v3030 = vadd.f32 %v2955, %v3029
      %v3031 = vpop.f32.mrf.mxu0
      %v3032 = vadd.f32 %v2955, %v3031
      %3033 = vdwg.mxu0
      %v3034 = vadd.f32 %v635, %v3015
      %v3035 = vadd.f32 %v636, %v3017
      %v3036 = vadd.f32 %v637, %v3020
      %v3037 = vadd.f32 %v638, %v3022
      %v3038 = vadd.f32 %v639, %v3025
      %v3039 = vadd.f32 %v640, %v3027
      %v3040 = vadd.f32 %v641, %v3030
      %v3041 = vadd.f32 %v642, %v3032
      %v3042 = vld [vmem:[%s10] sm:$0x1]
      %v3043 = vld [vmem:[%s11] sm:$0x1]
      %3044 = vadd.xlane.f32.xlu0 %v3034
      %v3045 = vpop.xlane.xlu0 %3044
      %3046 = vadd.xlane.f32.xlu0 %v3035
      %v3047 = vpop.xlane.xlu0 %3046
      %3048 = vadd.xlane.f32.xlu0 %v3036
      %v3049 = vpop.xlane.xlu0 %3048
      %3050 = vadd.xlane.f32.xlu0 %v3037
      %v3051 = vpop.xlane.xlu0 %3050
      %3052 = vadd.xlane.f32.xlu0 %v3038
      %v3053 = vpop.xlane.xlu0 %3052
      %3054 = vadd.xlane.f32.xlu0 %v3039
      %v3055 = vpop.xlane.xlu0 %3054
      %3056 = vadd.xlane.f32.xlu0 %v3040
      %v3057 = vpop.xlane.xlu0 %3056
      %3058 = vadd.xlane.f32.xlu0 %v3041
      %v3059 = vpop.xlane.xlu0 %3058
      %v3060 = vrcp.pop 128.0
      %v3061 = vmul.f32 128.0, %v3060
      %v3062 = vsub.f32 1.0, %v3061
      %v3063 = vmul.f32 %v3060, %v3062
      %v3064 = vadd.f32 %v3060, %v3063
      %vm3065 = vweird.f32 %v3060
      %v3066 = vsel %vm3065, %v3060, %v3064
      %v3067 = vmul.f32 %v3045, %v3066
      %v3068 = vmul.f32 %v3047, %v3066
      %v3069 = vmul.f32 %v3049, %v3066
      %v3070 = vmul.f32 %v3051, %v3066
      %v3071 = vmul.f32 %v3053, %v3066
      %v3072 = vmul.f32 %v3055, %v3066
      %v3073 = vmul.f32 %v3057, %v3066
      %v3074 = vmul.f32 %v3059, %v3066
      %v3075 = vsub.f32 %v3034, %v3067
      %v3076 = vsub.f32 %v3035, %v3068
      %v3077 = vsub.f32 %v3036, %v3069
      %v3078 = vsub.f32 %v3037, %v3070
      %v3079 = vsub.f32 %v3038, %v3071
      %v3080 = vsub.f32 %v3039, %v3072
      %v3081 = vsub.f32 %v3040, %v3073
      %v3082 = vsub.f32 %v3041, %v3074
      %v3083 = vmul.f32 %v3075, %v3075
      %v3084 = vmul.f32 %v3076, %v3076
      %v3085 = vmul.f32 %v3077, %v3077
      %v3086 = vmul.f32 %v3078, %v3078
      %v3087 = vmul.f32 %v3079, %v3079
      %v3088 = vmul.f32 %v3080, %v3080
      %v3089 = vmul.f32 %v3081, %v3081
      %v3090 = vmul.f32 %v3082, %v3082
      %3091 = vadd.xlane.f32.xlu0 %v3083
      %v3092 = vpop.xlane.xlu0 %3091
      %3093 = vadd.xlane.f32.xlu0 %v3084
      %v3094 = vpop.xlane.xlu0 %3093
      %3095 = vadd.xlane.f32.xlu0 %v3085
      %v3096 = vpop.xlane.xlu0 %3095
      %3097 = vadd.xlane.f32.xlu0 %v3086
      %v3098 = vpop.xlane.xlu0 %3097
      %3099 = vadd.xlane.f32.xlu0 %v3087
      %v3100 = vpop.xlane.xlu0 %3099
      %3101 = vadd.xlane.f32.xlu0 %v3088
      %v3102 = vpop.xlane.xlu0 %3101
      %3103 = vadd.xlane.f32.xlu0 %v3089
      %v3104 = vpop.xlane.xlu0 %3103
      %3105 = vadd.xlane.f32.xlu0 %v3090
      %v3106 = vpop.xlane.xlu0 %3105
      %v3107 = vrcp.pop 127.0
      %v3108 = vmul.f32 127.0, %v3107
      %v3109 = vsub.f32 1.0, %v3108
      %v3110 = vmul.f32 %v3107, %v3109
      %v3111 = vadd.f32 %v3107, %v3110
      %vm3112 = vweird.f32 %v3107
      %v3113 = vsel %vm3112, %v3107, %v3111
      %v3114 = vmul.f32 %v3092, %v3113
      %v3115 = vmul.f32 %v3094, %v3113
      %v3116 = vmul.f32 %v3096, %v3113
      %v3117 = vmul.f32 %v3098, %v3113
      %v3118 = vmul.f32 %v3100, %v3113
      %v3119 = vmul.f32 %v3102, %v3113
      %v3120 = vmul.f32 %v3104, %v3113
      %v3121 = vmul.f32 %v3106, %v3113
      %v3122 = vrsqrt.pop %v3114
      %v3123 = vmul.f32 %v3122, %v3114
      %v3124 = vmul.f32 %v3123, %v3122
      %v3125 = vmul.f32 0.5, %v3124
      %v3126 = vsub.f32 1.5, %v3125
      %v3127 = vmul.f32 %v3122, %v3126
      %v3128 = vmul.f32 %v3114, %v3127
      %vm3129 = vcmp.eq.f32.partialorder %v3114, inf
      %v3130 = vsel %vm3129, %v3114, %v3128
      %vm3131 = vcmp.eq.f32.partialorder %v3114, 0.0
      %v3132 = vand.u32 %v3114, 2147483648
      %v3133 = vsel %vm3131, %v3132, %v3130
      %v3134 = vrsqrt.pop %v3115
      %v3135 = vmul.f32 %v3134, %v3115
      %v3136 = vmul.f32 %v3135, %v3134
      %v3137 = vmul.f32 0.5, %v3136
      %v3138 = vsub.f32 1.5, %v3137
      %v3139 = vmul.f32 %v3134, %v3138
      %v3140 = vmul.f32 %v3115, %v3139
      %vm3141 = vcmp.eq.f32.partialorder %v3115, inf
      %v3142 = vsel %vm3141, %v3115, %v3140
      %vm3143 = vcmp.eq.f32.partialorder %v3115, 0.0
      %v3144 = vand.u32 %v3115, 2147483648
      %v3145 = vsel %vm3143, %v3144, %v3142
      %v3146 = vrsqrt.pop %v3116
      %v3147 = vmul.f32 %v3146, %v3116
      %v3148 = vmul.f32 %v3147, %v3146
      %v3149 = vmul.f32 0.5, %v3148
      %v3150 = vsub.f32 1.5, %v3149
      %v3151 = vmul.f32 %v3146, %v3150
      %v3152 = vmul.f32 %v3116, %v3151
      %vm3153 = vcmp.eq.f32.partialorder %v3116, inf
      %v3154 = vsel %vm3153, %v3116, %v3152
      %vm3155 = vcmp.eq.f32.partialorder %v3116, 0.0
      %v3156 = vand.u32 %v3116, 2147483648
      %v3157 = vsel %vm3155, %v3156, %v3154
      %v3158 = vrsqrt.pop %v3117
      %v3159 = vmul.f32 %v3158, %v3117
      %v3160 = vmul.f32 %v3159, %v3158
      %v3161 = vmul.f32 0.5, %v3160
      %v3162 = vsub.f32 1.5, %v3161
      %v3163 = vmul.f32 %v3158, %v3162
      %v3164 = vmul.f32 %v3117, %v3163
      %vm3165 = vcmp.eq.f32.partialorder %v3117, inf
      %v3166 = vsel %vm3165, %v3117, %v3164
      %vm3167 = vcmp.eq.f32.partialorder %v3117, 0.0
      %v3168 = vand.u32 %v3117, 2147483648
      %v3169 = vsel %vm3167, %v3168, %v3166
      %v3170 = vrsqrt.pop %v3118
      %v3171 = vmul.f32 %v3170, %v3118
      %v3172 = vmul.f32 %v3171, %v3170
      %v3173 = vmul.f32 0.5, %v3172
      %v3174 = vsub.f32 1.5, %v3173
      %v3175 = vmul.f32 %v3170, %v3174
      %v3176 = vmul.f32 %v3118, %v3175
      %vm3177 = vcmp.eq.f32.partialorder %v3118, inf
      %v3178 = vsel %vm3177, %v3118, %v3176
      %vm3179 = vcmp.eq.f32.partialorder %v3118, 0.0
      %v3180 = vand.u32 %v3118, 2147483648
      %v3181 = vsel %vm3179, %v3180, %v3178
      %v3182 = vrsqrt.pop %v3119
      %v3183 = vmul.f32 %v3182, %v3119
      %v3184 = vmul.f32 %v3183, %v3182
      %v3185 = vmul.f32 0.5, %v3184
      %v3186 = vsub.f32 1.5, %v3185
      %v3187 = vmul.f32 %v3182, %v3186
      %v3188 = vmul.f32 %v3119, %v3187
      %vm3189 = vcmp.eq.f32.partialorder %v3119, inf
      %v3190 = vsel %vm3189, %v3119, %v3188
      %vm3191 = vcmp.eq.f32.partialorder %v3119, 0.0
      %v3192 = vand.u32 %v3119, 2147483648
      %v3193 = vsel %vm3191, %v3192, %v3190
      %v3194 = vrsqrt.pop %v3120
      %v3195 = vmul.f32 %v3194, %v3120
      %v3196 = vmul.f32 %v3195, %v3194
      %v3197 = vmul.f32 0.5, %v3196
      %v3198 = vsub.f32 1.5, %v3197
      %v3199 = vmul.f32 %v3194, %v3198
      %v3200 = vmul.f32 %v3120, %v3199
      %vm3201 = vcmp.eq.f32.partialorder %v3120, inf
      %v3202 = vsel %vm3201, %v3120, %v3200
      %vm3203 = vcmp.eq.f32.partialorder %v3120, 0.0
      %v3204 = vand.u32 %v3120, 2147483648
      %v3205 = vsel %vm3203, %v3204, %v3202
      %v3206 = vrsqrt.pop %v3121
      %v3207 = vmul.f32 %v3206, %v3121
      %v3208 = vmul.f32 %v3207, %v3206
      %v3209 = vmul.f32 0.5, %v3208
      %v3210 = vsub.f32 1.5, %v3209
      %v3211 = vmul.f32 %v3206, %v3210
      %v3212 = vmul.f32 %v3121, %v3211
      %vm3213 = vcmp.eq.f32.partialorder %v3121, inf
      %v3214 = vsel %vm3213, %v3121, %v3212
      %vm3215 = vcmp.eq.f32.partialorder %v3121, 0.0
      %v3216 = vand.u32 %v3121, 2147483648
      %v3217 = vsel %vm3215, %v3216, %v3214
      %v3218 = vadd.f32 %v3133, 1e-12
      %v3219 = vadd.f32 %v3145, 1e-12
      %v3220 = vadd.f32 %v3157, 1e-12
      %v3221 = vadd.f32 %v3169, 1e-12
      %v3222 = vadd.f32 %v3181, 1e-12
      %v3223 = vadd.f32 %v3193, 1e-12
      %v3224 = vadd.f32 %v3205, 1e-12
      %v3225 = vadd.f32 %v3217, 1e-12
      %v3226 = vrcp.pop %v3218
      %v3227 = vmul.f32 %v3218, %v3226
      %v3228 = vsub.f32 1.0, %v3227
      %v3229 = vmul.f32 %v3226, %v3228
      %v3230 = vadd.f32 %v3226, %v3229
      %vm3231 = vweird.f32 %v3218
      %vm3232 = vweird.f32 %v3226
      %vm3233 = vmor %vm3231, %vm3232
      %v3234 = vsel %vm3233, %v3226, %v3230
      %v3235 = vand.u32 2147483647, %v3218
      %vm3236 = vcmp.eq.f32.partialorder %v3235, 8.507059e+37
      %v3237 = vand.u32 %v3218, 2147483648
      %v3238 = vor.u32 1.1754944e-38, %v3237
      %v3239 = vsel %vm3236, %v3238, %v3234
      %v3240 = vmul.f32 %v3075, %v3239
      %v3241 = vrcp.pop %v3219
      %v3242 = vmul.f32 %v3219, %v3241
      %v3243 = vsub.f32 1.0, %v3242
      %v3244 = vmul.f32 %v3241, %v3243
      %v3245 = vadd.f32 %v3241, %v3244
      %vm3246 = vweird.f32 %v3219
      %vm3247 = vweird.f32 %v3241
      %vm3248 = vmor %vm3246, %vm3247
      %v3249 = vsel %vm3248, %v3241, %v3245
      %v3250 = vand.u32 2147483647, %v3219
      %vm3251 = vcmp.eq.f32.partialorder %v3250, 8.507059e+37
      %v3252 = vand.u32 %v3219, 2147483648
      %v3253 = vor.u32 1.1754944e-38, %v3252
      %v3254 = vsel %vm3251, %v3253, %v3249
      %v3255 = vmul.f32 %v3076, %v3254
      %v3256 = vrcp.pop %v3220
      %v3257 = vmul.f32 %v3220, %v3256
      %v3258 = vsub.f32 1.0, %v3257
      %v3259 = vmul.f32 %v3256, %v3258
      %v3260 = vadd.f32 %v3256, %v3259
      %vm3261 = vweird.f32 %v3220
      %vm3262 = vweird.f32 %v3256
      %vm3263 = vmor %vm3261, %vm3262
      %v3264 = vsel %vm3263, %v3256, %v3260
      %v3265 = vand.u32 2147483647, %v3220
      %vm3266 = vcmp.eq.f32.partialorder %v3265, 8.507059e+37
      %v3267 = vand.u32 %v3220, 2147483648
      %v3268 = vor.u32 1.1754944e-38, %v3267
      %v3269 = vsel %vm3266, %v3268, %v3264
      %v3270 = vmul.f32 %v3077, %v3269
      %v3271 = vrcp.pop %v3221
      %v3272 = vmul.f32 %v3221, %v3271
      %v3273 = vsub.f32 1.0, %v3272
      %v3274 = vmul.f32 %v3271, %v3273
      %v3275 = vadd.f32 %v3271, %v3274
      %vm3276 = vweird.f32 %v3221
      %vm3277 = vweird.f32 %v3271
      %vm3278 = vmor %vm3276, %vm3277
      %v3279 = vsel %vm3278, %v3271, %v3275
      %v3280 = vand.u32 2147483647, %v3221
      %vm3281 = vcmp.eq.f32.partialorder %v3280, 8.507059e+37
      %v3282 = vand.u32 %v3221, 2147483648
      %v3283 = vor.u32 1.1754944e-38, %v3282
      %v3284 = vsel %vm3281, %v3283, %v3279
      %v3285 = vmul.f32 %v3078, %v3284
      %v3286 = vrcp.pop %v3222
      %v3287 = vmul.f32 %v3222, %v3286
      %v3288 = vsub.f32 1.0, %v3287
      %v3289 = vmul.f32 %v3286, %v3288
      %v3290 = vadd.f32 %v3286, %v3289
      %vm3291 = vweird.f32 %v3222
      %vm3292 = vweird.f32 %v3286
      %vm3293 = vmor %vm3291, %vm3292
      %v3294 = vsel %vm3293, %v3286, %v3290
      %v3295 = vand.u32 2147483647, %v3222
      %vm3296 = vcmp.eq.f32.partialorder %v3295, 8.507059e+37
      %v3297 = vand.u32 %v3222, 2147483648
      %v3298 = vor.u32 1.1754944e-38, %v3297
      %v3299 = vsel %vm3296, %v3298, %v3294
      %v3300 = vmul.f32 %v3079, %v3299
      %v3301 = vrcp.pop %v3223
      %v3302 = vmul.f32 %v3223, %v3301
      %v3303 = vsub.f32 1.0, %v3302
      %v3304 = vmul.f32 %v3301, %v3303
      %v3305 = vadd.f32 %v3301, %v3304
      %vm3306 = vweird.f32 %v3223
      %vm3307 = vweird.f32 %v3301
      %vm3308 = vmor %vm3306, %vm3307
      %v3309 = vsel %vm3308, %v3301, %v3305
      %v3310 = vand.u32 2147483647, %v3223
      %vm3311 = vcmp.eq.f32.partialorder %v3310, 8.507059e+37
      %v3312 = vand.u32 %v3223, 2147483648
      %v3313 = vor.u32 1.1754944e-38, %v3312
      %v3314 = vsel %vm3311, %v3313, %v3309
      %v3315 = vmul.f32 %v3080, %v3314
      %v3316 = vrcp.pop %v3224
      %v3317 = vmul.f32 %v3224, %v3316
      %v3318 = vsub.f32 1.0, %v3317
      %v3319 = vmul.f32 %v3316, %v3318
      %v3320 = vadd.f32 %v3316, %v3319
      %vm3321 = vweird.f32 %v3224
      %vm3322 = vweird.f32 %v3316
      %vm3323 = vmor %vm3321, %vm3322
      %v3324 = vsel %vm3323, %v3316, %v3320
      %v3325 = vand.u32 2147483647, %v3224
      %vm3326 = vcmp.eq.f32.partialorder %v3325, 8.507059e+37
      %v3327 = vand.u32 %v3224, 2147483648
      %v3328 = vor.u32 1.1754944e-38, %v3327
      %v3329 = vsel %vm3326, %v3328, %v3324
      %v3330 = vmul.f32 %v3081, %v3329
      %v3331 = vrcp.pop %v3225
      %v3332 = vmul.f32 %v3225, %v3331
      %v3333 = vsub.f32 1.0, %v3332
      %v3334 = vmul.f32 %v3331, %v3333
      %v3335 = vadd.f32 %v3331, %v3334
      %vm3336 = vweird.f32 %v3225
      %vm3337 = vweird.f32 %v3331
      %vm3338 = vmor %vm3336, %vm3337
      %v3339 = vsel %vm3338, %v3331, %v3335
      %v3340 = vand.u32 2147483647, %v3225
      %vm3341 = vcmp.eq.f32.partialorder %v3340, 8.507059e+37
      %v3342 = vand.u32 %v3225, 2147483648
      %v3343 = vor.u32 1.1754944e-38, %v3342
      %v3344 = vsel %vm3341, %v3343, %v3339
      %v3345 = vmul.f32 %v3082, %v3344
      %v3347 = vperm.slane %v3042, 0
      %v3349 = vmul.f32 %v3347, %v3240
      %v3350 = vmul.f32 %v3347, %v3255
      %v3351 = vmul.f32 %v3347, %v3270
      %v3352 = vmul.f32 %v3347, %v3285
      %v3353 = vmul.f32 %v3347, %v3300
      %v3354 = vmul.f32 %v3347, %v3315
      %v3355 = vmul.f32 %v3347, %v3330
      %v3356 = vmul.f32 %v3347, %v3345
      %v3358 = vperm.slane %v3043, 0
      %v3360 = vadd.f32 %v3349, %v3358
      %v3361 = vadd.f32 %v3350, %v3358
      %v3362 = vadd.f32 %v3351, %v3358
      %v3363 = vadd.f32 %v3352, %v3358
      %v3364 = vadd.f32 %v3353, %v3358
      %v3365 = vadd.f32 %v3354, %v3358
      %v3366 = vadd.f32 %v3355, %v3358
      %v3367 = vadd.f32 %v3356, %v3358
      %v3368 = vpack.c.bf16 %v3361, %v3360
      %v3369 = vpack.c.bf16 %v3363, %v3362
      %v3370 = vpack.c.bf16 %v3365, %v3364
      %v3371 = vpack.c.bf16 %v3367, %v3366
      %v3372 = vld [vmem:[%s12] sm:$0xff]
      %v3373 = vld [vmem:[%s12 + $0x8] sm:$0xff]
      %v3374 = vld [vmem:[%s12 + $0x10] sm:$0xff]
      %v3375 = vld [vmem:[%s12 + $0x18] sm:$0xff]
      %v3376 = vld [vmem:[%s12 + $0x20] sm:$0xff]
      %v3377 = vld [vmem:[%s12 + $0x28] sm:$0xff]
      %v3378 = vld [vmem:[%s12 + $0x30] sm:$0xff]
      %v3379 = vld [vmem:[%s12 + $0x38] sm:$0xff]
      %v3380 = vld [vmem:[%s12 + $0x40] sm:$0xff]
      %v3381 = vld [vmem:[%s12 + $0x48] sm:$0xff]
      %v3382 = vld [vmem:[%s12 + $0x50] sm:$0xff]
      %v3383 = vld [vmem:[%s12 + $0x58] sm:$0xff]
      %v3384 = vld [vmem:[%s12 + $0x60] sm:$0xff]
      %v3385 = vld [vmem:[%s12 + $0x68] sm:$0xff]
      %v3386 = vld [vmem:[%s12 + $0x70] sm:$0xff]
      %v3387 = vld [vmem:[%s12 + $0x78] sm:$0xff]
      %v3388 = vld [vmem:[%s13] sm:$0x3]
      %v3390 = vperm.slane %v3388, 0
      %v3391 = vperm.slane %v3388, 1
      %v3410 = vunpack.c.l.b16 %v3372
      %v3411 = vunpack.c.h.b16 %v3372
      %v3412 = vunpack.c.l.b16 %v3373
      %v3413 = vunpack.c.h.b16 %v3373
      %v3414 = vunpack.c.l.b16 %v3374
      %v3415 = vunpack.c.h.b16 %v3374
      %v3416 = vunpack.c.l.b16 %v3375
      %v3417 = vunpack.c.h.b16 %v3375
      %v3418 = vunpack.c.l.b16 %v3376
      %v3419 = vunpack.c.h.b16 %v3376
      %v3420 = vunpack.c.l.b16 %v3377
      %v3421 = vunpack.c.h.b16 %v3377
      %v3422 = vunpack.c.l.b16 %v3378
      %v3423 = vunpack.c.h.b16 %v3378
      %v3424 = vunpack.c.l.b16 %v3379
      %v3425 = vunpack.c.h.b16 %v3379
      %v3426 = vunpack.c.l.b16 %v3380
      %v3427 = vunpack.c.h.b16 %v3380
      %v3428 = vunpack.c.l.b16 %v3381
      %v3429 = vunpack.c.h.b16 %v3381
      %v3430 = vunpack.c.l.b16 %v3382
      %v3431 = vunpack.c.h.b16 %v3382
      %v3432 = vunpack.c.l.b16 %v3383
      %v3433 = vunpack.c.h.b16 %v3383
      %v3434 = vunpack.c.l.b16 %v3384
      %v3435 = vunpack.c.h.b16 %v3384
      %v3436 = vunpack.c.l.b16 %v3385
      %v3437 = vunpack.c.h.b16 %v3385
      %v3438 = vunpack.c.l.b16 %v3386
      %v3439 = vunpack.c.h.b16 %v3386
      %v3440 = vunpack.c.l.b16 %v3387
      %v3441 = vunpack.c.h.b16 %v3387
      %v3442 = vpack.c.b16 %v3412, %v3410
      %v3443 = vpack.c.b16 %v3413, %v3411
      %v3444 = vpack.c.b16 %v3416, %v3414
      %v3445 = vpack.c.b16 %v3417, %v3415
      %v3446 = vpack.c.b16 %v3420, %v3418
      %v3447 = vpack.c.b16 %v3421, %v3419
      %v3448 = vpack.c.b16 %v3424, %v3422
      %v3449 = vpack.c.b16 %v3425, %v3423
      %v3450 = vpack.c.b16 %v3428, %v3426
      %v3451 = vpack.c.b16 %v3429, %v3427
      %v3452 = vpack.c.b16 %v3432, %v3430
      %v3453 = vpack.c.b16 %v3433, %v3431
      %v3454 = vpack.c.b16 %v3436, %v3434
      %v3455 = vpack.c.b16 %v3437, %v3435
      %v3456 = vpack.c.b16 %v3440, %v3438
      %v3457 = vpack.c.b16 %v3441, %v3439
      %3474 = vmatpush.bf16.msra.mxu0 %v3456
      %3475 = vmatpush.bf16.msra.mxu0 %v3454
      %3476 = vmatpush.bf16.msra.mxu0 %v3452
      %3477 = vmatpush.bf16.msra.mxu0 %v3450
      %3478 = vmatpush.bf16.msra.mxu0 %v3448
      %3479 = vmatpush.bf16.msra.mxu0 %v3446
      %3480 = vmatpush.bf16.msra.mxu0 %v3444
      %3481 = vmatpush.bf16.msra.mxu0 %v3442
      %3482 = vmatmul.bf16.gmra.mxu0 %v3368
      %v3483 = vpop.f32.mrf.mxu0
      %v3484 = vadd.f32 %v3390, %v3483
      %v3485 = vpop.f32.mrf.mxu0
      %v3486 = vadd.f32 %v3390, %v3485
      %3487 = vmatmul.bf16.gmra.mxu0 %v3369
      %v3488 = vpop.f32.mrf.mxu0
      %v3489 = vadd.f32 %v3390, %v3488
      %v3490 = vpop.f32.mrf.mxu0
      %v3491 = vadd.f32 %v3390, %v3490
      %3492 = vmatmul.bf16.gmra.mxu0 %v3370
      %v3493 = vpop.f32.mrf.mxu0
      %v3494 = vadd.f32 %v3390, %v3493
      %v3495 = vpop.f32.mrf.mxu0
      %v3496 = vadd.f32 %v3390, %v3495
      %3497 = vmatmul.bf16.gmra.mxu0 %v3371
      %v3498 = vpop.f32.mrf.mxu0
      %v3499 = vadd.f32 %v3390, %v3498
      %v3500 = vpop.f32.mrf.mxu0
      %v3501 = vadd.f32 %v3390, %v3500
      %3502 = vdwg.mxu0
      %3503 = vmatpush.bf16.msra.mxu0 %v3457
      %3504 = vmatpush.bf16.msra.mxu0 %v3455
      %3505 = vmatpush.bf16.msra.mxu0 %v3453
      %3506 = vmatpush.bf16.msra.mxu0 %v3451
      %3507 = vmatpush.bf16.msra.mxu0 %v3449
      %3508 = vmatpush.bf16.msra.mxu0 %v3447
      %3509 = vmatpush.bf16.msra.mxu0 %v3445
      %3510 = vmatpush.bf16.msra.mxu0 %v3443
      %3511 = vmatmul.bf16.gmra.mxu0 %v3368
      %v3512 = vpop.f32.mrf.mxu0
      %v3513 = vadd.f32 %v3391, %v3512
      %v3514 = vpop.f32.mrf.mxu0
      %v3515 = vadd.f32 %v3391, %v3514
      %3516 = vmatmul.bf16.gmra.mxu0 %v3369
      %v3517 = vpop.f32.mrf.mxu0
      %v3518 = vadd.f32 %v3391, %v3517
      %v3519 = vpop.f32.mrf.mxu0
      %v3520 = vadd.f32 %v3391, %v3519
      %3521 = vmatmul.bf16.gmra.mxu0 %v3370
      %v3522 = vpop.f32.mrf.mxu0
      %v3523 = vadd.f32 %v3391, %v3522
      %v3524 = vpop.f32.mrf.mxu0
      %v3525 = vadd.f32 %v3391, %v3524
      %3526 = vmatmul.bf16.gmra.mxu0 %v3371
      %v3527 = vpop.f32.mrf.mxu0
      %v3528 = vadd.f32 %v3391, %v3527
      %v3529 = vpop.f32.mrf.mxu0
      %v3530 = vadd.f32 %v3391, %v3529
      %3531 = vdwg.mxu0
      %v3532 = vmax.f32 %v3484, 0.0
      %v3533 = vmax.f32 %v3513, 0.0
      %v3534 = vmax.f32 %v3486, 0.0
      %v3535 = vmax.f32 %v3515, 0.0
      %v3536 = vmax.f32 %v3489, 0.0
      %v3537 = vmax.f32 %v3518, 0.0
      %v3538 = vmax.f32 %v3491, 0.0
      %v3539 = vmax.f32 %v3520, 0.0
      %v3540 = vmax.f32 %v3494, 0.0
      %v3541 = vmax.f32 %v3523, 0.0
      %v3542 = vmax.f32 %v3496, 0.0
      %v3543 = vmax.f32 %v3525, 0.0
      %v3544 = vmax.f32 %v3499, 0.0
      %v3545 = vmax.f32 %v3528, 0.0
      %v3546 = vmax.f32 %v3501, 0.0
      %v3547 = vmax.f32 %v3530, 0.0
      %v3548 = vpack.c.bf16 %v3534, %v3532
      %v3549 = vpack.c.bf16 %v3535, %v3533
      %v3550 = vpack.c.bf16 %v3538, %v3536
      %v3551 = vpack.c.bf16 %v3539, %v3537
      %v3552 = vpack.c.bf16 %v3542, %v3540
      %v3553 = vpack.c.bf16 %v3543, %v3541
      %v3554 = vpack.c.bf16 %v3546, %v3544
      %v3555 = vpack.c.bf16 %v3547, %v3545
      %v3556 = vld [vmem:[%s14] sm:$0xf]
      %v3557 = vld [vmem:[%s14 + $0x4] sm:$0xf]
      %v3558 = vld [vmem:[%s14 + $0x8] sm:$0xf]
      %v3559 = vld [vmem:[%s14 + $0xc] sm:$0xf]
      %v3560 = vld [vmem:[%s14 + $0x10] sm:$0xf]
      %v3561 = vld [vmem:[%s14 + $0x14] sm:$0xf]
      %v3562 = vld [vmem:[%s14 + $0x18] sm:$0xf]
      %v3563 = vld [vmem:[%s14 + $0x1c] sm:$0xf]
      %v3564 = vld [vmem:[%s14 + $0x20] sm:$0xf]
      %v3565 = vld [vmem:[%s14 + $0x24] sm:$0xf]
      %v3566 = vld [vmem:[%s14 + $0x28] sm:$0xf]
      %v3567 = vld [vmem:[%s14 + $0x2c] sm:$0xf]
      %v3568 = vld [vmem:[%s14 + $0x30] sm:$0xf]
      %v3569 = vld [vmem:[%s14 + $0x34] sm:$0xf]
      %v3570 = vld [vmem:[%s14 + $0x38] sm:$0xf]
      %v3571 = vld [vmem:[%s14 + $0x3c] sm:$0xf]
      %v3572 = vld [vmem:[%s14 + $0x40] sm:$0xf]
      %v3573 = vld [vmem:[%s14 + $0x44] sm:$0xf]
      %v3574 = vld [vmem:[%s14 + $0x48] sm:$0xf]
      %v3575 = vld [vmem:[%s14 + $0x4c] sm:$0xf]
      %v3576 = vld [vmem:[%s14 + $0x50] sm:$0xf]
      %v3577 = vld [vmem:[%s14 + $0x54] sm:$0xf]
      %v3578 = vld [vmem:[%s14 + $0x58] sm:$0xf]
      %v3579 = vld [vmem:[%s14 + $0x5c] sm:$0xf]
      %v3580 = vld [vmem:[%s14 + $0x60] sm:$0xf]
      %v3581 = vld [vmem:[%s14 + $0x64] sm:$0xf]
      %v3582 = vld [vmem:[%s14 + $0x68] sm:$0xf]
      %v3583 = vld [vmem:[%s14 + $0x6c] sm:$0xf]
      %v3584 = vld [vmem:[%s14 + $0x70] sm:$0xf]
      %v3585 = vld [vmem:[%s14 + $0x74] sm:$0xf]
      %v3586 = vld [vmem:[%s14 + $0x78] sm:$0xf]
      %v3587 = vld [vmem:[%s14 + $0x7c] sm:$0xf]
      %v3588 = vld [vmem:[%s15] sm:$0x1]
      %v3590 = vperm.slane %v3588, 0
      %v3624 = vunpack.c.l.b16 %v3556
      %v3625 = vunpack.c.l.b16 %v3557
      %v3626 = vunpack.c.l.b16 %v3558
      %v3627 = vunpack.c.l.b16 %v3559
      %v3628 = vunpack.c.l.b16 %v3560
      %v3629 = vunpack.c.l.b16 %v3561
      %v3630 = vunpack.c.l.b16 %v3562
      %v3631 = vunpack.c.l.b16 %v3563
      %v3632 = vunpack.c.l.b16 %v3564
      %v3633 = vunpack.c.l.b16 %v3565
      %v3634 = vunpack.c.l.b16 %v3566
      %v3635 = vunpack.c.l.b16 %v3567
      %v3636 = vunpack.c.l.b16 %v3568
      %v3637 = vunpack.c.l.b16 %v3569
      %v3638 = vunpack.c.l.b16 %v3570
      %v3639 = vunpack.c.l.b16 %v3571
      %v3640 = vunpack.c.l.b16 %v3572
      %v3641 = vunpack.c.l.b16 %v3573
      %v3642 = vunpack.c.l.b16 %v3574
      %v3643 = vunpack.c.l.b16 %v3575
      %v3644 = vunpack.c.l.b16 %v3576
      %v3645 = vunpack.c.l.b16 %v3577
      %v3646 = vunpack.c.l.b16 %v3578
      %v3647 = vunpack.c.l.b16 %v3579
      %v3648 = vunpack.c.l.b16 %v3580
      %v3649 = vunpack.c.l.b16 %v3581
      %v3650 = vunpack.c.l.b16 %v3582
      %v3651 = vunpack.c.l.b16 %v3583
      %v3652 = vunpack.c.l.b16 %v3584
      %v3653 = vunpack.c.l.b16 %v3585
      %v3654 = vunpack.c.l.b16 %v3586
      %v3655 = vunpack.c.l.b16 %v3587
      %v3656 = vpack.c.b16 %v3625, %v3624
      %v3657 = vpack.c.b16 %v3627, %v3626
      %v3658 = vpack.c.b16 %v3629, %v3628
      %v3659 = vpack.c.b16 %v3631, %v3630
      %v3660 = vpack.c.b16 %v3633, %v3632
      %v3661 = vpack.c.b16 %v3635, %v3634
      %v3662 = vpack.c.b16 %v3637, %v3636
      %v3663 = vpack.c.b16 %v3639, %v3638
      %v3664 = vpack.c.b16 %v3641, %v3640
      %v3665 = vpack.c.b16 %v3643, %v3642
      %v3666 = vpack.c.b16 %v3645, %v3644
      %v3667 = vpack.c.b16 %v3647, %v3646
      %v3668 = vpack.c.b16 %v3649, %v3648
      %v3669 = vpack.c.b16 %v3651, %v3650
      %v3670 = vpack.c.b16 %v3653, %v3652
      %v3671 = vpack.c.b16 %v3655, %v3654
      %3688 = vmatpush.bf16.msra.mxu0 %v3663
      %3689 = vmatpush.bf16.msra.mxu0 %v3662
      %3690 = vmatpush.bf16.msra.mxu0 %v3661
      %3691 = vmatpush.bf16.msra.mxu0 %v3660
      %3692 = vmatpush.bf16.msra.mxu0 %v3659
      %3693 = vmatpush.bf16.msra.mxu0 %v3658
      %3694 = vmatpush.bf16.msra.mxu0 %v3657
      %3695 = vmatpush.bf16.msra.mxu0 %v3656
      %3696 = vmatmul.bf16.gmra.mxu0 %v3548
      %v3697 = vpop.f32.mrf.mxu0
      %v3698 = vadd.f32 %v3590, %v3697
      %v3699 = vpop.f32.mrf.mxu0
      %v3700 = vadd.f32 %v3590, %v3699
      %3701 = vmatmul.bf16.gmra.mxu0 %v3550
      %v3702 = vpop.f32.mrf.mxu0
      %v3703 = vadd.f32 %v3590, %v3702
      %v3704 = vpop.f32.mrf.mxu0
      %v3705 = vadd.f32 %v3590, %v3704
      %3706 = vmatmul.bf16.gmra.mxu0 %v3552
      %v3707 = vpop.f32.mrf.mxu0
      %v3708 = vadd.f32 %v3590, %v3707
      %v3709 = vpop.f32.mrf.mxu0
      %v3710 = vadd.f32 %v3590, %v3709
      %3711 = vmatmul.bf16.gmra.mxu0 %v3554
      %v3712 = vpop.f32.mrf.mxu0
      %v3713 = vadd.f32 %v3590, %v3712
      %v3714 = vpop.f32.mrf.mxu0
      %v3715 = vadd.f32 %v3590, %v3714
      %3716 = vdwg.mxu0
      %3717 = vmatpush.bf16.msra.mxu0 %v3671
      %3718 = vmatpush.bf16.msra.mxu0 %v3670
      %3719 = vmatpush.bf16.msra.mxu0 %v3669
      %3720 = vmatpush.bf16.msra.mxu0 %v3668
      %3721 = vmatpush.bf16.msra.mxu0 %v3667
      %3722 = vmatpush.bf16.msra.mxu0 %v3666
      %3723 = vmatpush.bf16.msra.mxu0 %v3665
      %3724 = vmatpush.bf16.msra.mxu0 %v3664
      %3725 = vmatmul.bf16.gmra.mxu0 %v3549
      %v3726 = vpop.f32.mrf.mxu0
      %v3727 = vadd.f32 %v3698, %v3726
      %v3728 = vpop.f32.mrf.mxu0
      %v3729 = vadd.f32 %v3700, %v3728
      %3730 = vmatmul.bf16.gmra.mxu0 %v3551
      %v3731 = vpop.f32.mrf.mxu0
      %v3732 = vadd.f32 %v3703, %v3731
      %v3733 = vpop.f32.mrf.mxu0
      %v3734 = vadd.f32 %v3705, %v3733
      %3735 = vmatmul.bf16.gmra.mxu0 %v3553
      %v3736 = vpop.f32.mrf.mxu0
      %v3737 = vadd.f32 %v3708, %v3736
      %v3738 = vpop.f32.mrf.mxu0
      %v3739 = vadd.f32 %v3710, %v3738
      %3740 = vmatmul.bf16.gmra.mxu0 %v3555
      %v3741 = vpop.f32.mrf.mxu0
      %v3742 = vadd.f32 %v3713, %v3741
      %v3743 = vpop.f32.mrf.mxu0
      %v3744 = vadd.f32 %v3715, %v3743
      %3745 = vdwg.mxu0
      %v3746 = vadd.f32 %v3360, %v3727
      %v3747 = vadd.f32 %v3361, %v3729
      %v3748 = vadd.f32 %v3362, %v3732
      %v3749 = vadd.f32 %v3363, %v3734
      %v3750 = vadd.f32 %v3364, %v3737
      %v3751 = vadd.f32 %v3365, %v3739
      %v3752 = vadd.f32 %v3366, %v3742
      %v3753 = vadd.f32 %v3367, %v3744
      %v3754 = vld [vmem:[%s16] sm:$0x1]
      %v3755 = vld [vmem:[%s17] sm:$0x1]
      %3756 = vadd.xlane.f32.xlu0 %v3746
      %v3757 = vpop.xlane.xlu0 %3756
      %3758 = vadd.xlane.f32.xlu0 %v3747
      %v3759 = vpop.xlane.xlu0 %3758
      %3760 = vadd.xlane.f32.xlu0 %v3748
      %v3761 = vpop.xlane.xlu0 %3760
      %3762 = vadd.xlane.f32.xlu0 %v3749
      %v3763 = vpop.xlane.xlu0 %3762
      %3764 = vadd.xlane.f32.xlu0 %v3750
      %v3765 = vpop.xlane.xlu0 %3764
      %3766 = vadd.xlane.f32.xlu0 %v3751
      %v3767 = vpop.xlane.xlu0 %3766
      %3768 = vadd.xlane.f32.xlu0 %v3752
      %v3769 = vpop.xlane.xlu0 %3768
      %3770 = vadd.xlane.f32.xlu0 %v3753
      %v3771 = vpop.xlane.xlu0 %3770
      %v3772 = vmul.f32 %v3757, %v3066
      %v3773 = vmul.f32 %v3759, %v3066
      %v3774 = vmul.f32 %v3761, %v3066
      %v3775 = vmul.f32 %v3763, %v3066
      %v3776 = vmul.f32 %v3765, %v3066
      %v3777 = vmul.f32 %v3767, %v3066
      %v3778 = vmul.f32 %v3769, %v3066
      %v3779 = vmul.f32 %v3771, %v3066
      %v3780 = vsub.f32 %v3746, %v3772
      %v3781 = vsub.f32 %v3747, %v3773
      %v3782 = vsub.f32 %v3748, %v3774
      %v3783 = vsub.f32 %v3749, %v3775
      %v3784 = vsub.f32 %v3750, %v3776
      %v3785 = vsub.f32 %v3751, %v3777
      %v3786 = vsub.f32 %v3752, %v3778
      %v3787 = vsub.f32 %v3753, %v3779
      %v3788 = vmul.f32 %v3780, %v3780
      %v3789 = vmul.f32 %v3781, %v3781
      %v3790 = vmul.f32 %v3782, %v3782
      %v3791 = vmul.f32 %v3783, %v3783
      %v3792 = vmul.f32 %v3784, %v3784
      %v3793 = vmul.f32 %v3785, %v3785
      %v3794 = vmul.f32 %v3786, %v3786
      %v3795 = vmul.f32 %v3787, %v3787
      %3796 = vadd.xlane.f32.xlu0 %v3788
      %v3797 = vpop.xlane.xlu0 %3796
      %3798 = vadd.xlane.f32.xlu0 %v3789
      %v3799 = vpop.xlane.xlu0 %3798
      %3800 = vadd.xlane.f32.xlu0 %v3790
      %v3801 = vpop.xlane.xlu0 %3800
      %3802 = vadd.xlane.f32.xlu0 %v3791
      %v3803 = vpop.xlane.xlu0 %3802
      %3804 = vadd.xlane.f32.xlu0 %v3792
      %v3805 = vpop.xlane.xlu0 %3804
      %3806 = vadd.xlane.f32.xlu0 %v3793
      %v3807 = vpop.xlane.xlu0 %3806
      %3808 = vadd.xlane.f32.xlu0 %v3794
      %v3809 = vpop.xlane.xlu0 %3808
      %3810 = vadd.xlane.f32.xlu0 %v3795
      %v3811 = vpop.xlane.xlu0 %3810
      %v3812 = vmul.f32 %v3797, %v3113
      %v3813 = vmul.f32 %v3799, %v3113
      %v3814 = vmul.f32 %v3801, %v3113
      %v3815 = vmul.f32 %v3803, %v3113
      %v3816 = vmul.f32 %v3805, %v3113
      %v3817 = vmul.f32 %v3807, %v3113
      %v3818 = vmul.f32 %v3809, %v3113
      %v3819 = vmul.f32 %v3811, %v3113
      %v3820 = vrsqrt.pop %v3812
      %v3821 = vmul.f32 %v3820, %v3812
      %v3822 = vmul.f32 %v3821, %v3820
      %v3823 = vmul.f32 0.5, %v3822
      %v3824 = vsub.f32 1.5, %v3823
      %v3825 = vmul.f32 %v3820, %v3824
      %v3826 = vmul.f32 %v3812, %v3825
      %vm3827 = vcmp.eq.f32.partialorder %v3812, inf
      %v3828 = vsel %vm3827, %v3812, %v3826
      %vm3829 = vcmp.eq.f32.partialorder %v3812, 0.0
      %v3830 = vand.u32 %v3812, 2147483648
      %v3831 = vsel %vm3829, %v3830, %v3828
      %v3832 = vrsqrt.pop %v3813
      %v3833 = vmul.f32 %v3832, %v3813
      %v3834 = vmul.f32 %v3833, %v3832
      %v3835 = vmul.f32 0.5, %v3834
      %v3836 = vsub.f32 1.5, %v3835
      %v3837 = vmul.f32 %v3832, %v3836
      %v3838 = vmul.f32 %v3813, %v3837
      %vm3839 = vcmp.eq.f32.partialorder %v3813, inf
      %v3840 = vsel %vm3839, %v3813, %v3838
      %vm3841 = vcmp.eq.f32.partialorder %v3813, 0.0
      %v3842 = vand.u32 %v3813, 2147483648
      %v3843 = vsel %vm3841, %v3842, %v3840
      %v3844 = vrsqrt.pop %v3814
      %v3845 = vmul.f32 %v3844, %v3814
      %v3846 = vmul.f32 %v3845, %v3844
      %v3847 = vmul.f32 0.5, %v3846
      %v3848 = vsub.f32 1.5, %v3847
      %v3849 = vmul.f32 %v3844, %v3848
      %v3850 = vmul.f32 %v3814, %v3849
      %vm3851 = vcmp.eq.f32.partialorder %v3814, inf
      %v3852 = vsel %vm3851, %v3814, %v3850
      %vm3853 = vcmp.eq.f32.partialorder %v3814, 0.0
      %v3854 = vand.u32 %v3814, 2147483648
      %v3855 = vsel %vm3853, %v3854, %v3852
      %v3856 = vrsqrt.pop %v3815
      %v3857 = vmul.f32 %v3856, %v3815
      %v3858 = vmul.f32 %v3857, %v3856
      %v3859 = vmul.f32 0.5, %v3858
      %v3860 = vsub.f32 1.5, %v3859
      %v3861 = vmul.f32 %v3856, %v3860
      %v3862 = vmul.f32 %v3815, %v3861
      %vm3863 = vcmp.eq.f32.partialorder %v3815, inf
      %v3864 = vsel %vm3863, %v3815, %v3862
      %vm3865 = vcmp.eq.f32.partialorder %v3815, 0.0
      %v3866 = vand.u32 %v3815, 2147483648
      %v3867 = vsel %vm3865, %v3866, %v3864
      %v3868 = vrsqrt.pop %v3816
      %v3869 = vmul.f32 %v3868, %v3816
      %v3870 = vmul.f32 %v3869, %v3868
      %v3871 = vmul.f32 0.5, %v3870
      %v3872 = vsub.f32 1.5, %v3871
      %v3873 = vmul.f32 %v3868, %v3872
      %v3874 = vmul.f32 %v3816, %v3873
      %vm3875 = vcmp.eq.f32.partialorder %v3816, inf
      %v3876 = vsel %vm3875, %v3816, %v3874
      %vm3877 = vcmp.eq.f32.partialorder %v3816, 0.0
      %v3878 = vand.u32 %v3816, 2147483648
      %v3879 = vsel %vm3877, %v3878, %v3876
      %v3880 = vrsqrt.pop %v3817
      %v3881 = vmul.f32 %v3880, %v3817
      %v3882 = vmul.f32 %v3881, %v3880
      %v3883 = vmul.f32 0.5, %v3882
      %v3884 = vsub.f32 1.5, %v3883
      %v3885 = vmul.f32 %v3880, %v3884
      %v3886 = vmul.f32 %v3817, %v3885
      %vm3887 = vcmp.eq.f32.partialorder %v3817, inf
      %v3888 = vsel %vm3887, %v3817, %v3886
      %vm3889 = vcmp.eq.f32.partialorder %v3817, 0.0
      %v3890 = vand.u32 %v3817, 2147483648
      %v3891 = vsel %vm3889, %v3890, %v3888
      %v3892 = vrsqrt.pop %v3818
      %v3893 = vmul.f32 %v3892, %v3818
      %v3894 = vmul.f32 %v3893, %v3892
      %v3895 = vmul.f32 0.5, %v3894
      %v3896 = vsub.f32 1.5, %v3895
      %v3897 = vmul.f32 %v3892, %v3896
      %v3898 = vmul.f32 %v3818, %v3897
      %vm3899 = vcmp.eq.f32.partialorder %v3818, inf
      %v3900 = vsel %vm3899, %v3818, %v3898
      %vm3901 = vcmp.eq.f32.partialorder %v3818, 0.0
      %v3902 = vand.u32 %v3818, 2147483648
      %v3903 = vsel %vm3901, %v3902, %v3900
      %v3904 = vrsqrt.pop %v3819
      %v3905 = vmul.f32 %v3904, %v3819
      %v3906 = vmul.f32 %v3905, %v3904
      %v3907 = vmul.f32 0.5, %v3906
      %v3908 = vsub.f32 1.5, %v3907
      %v3909 = vmul.f32 %v3904, %v3908
      %v3910 = vmul.f32 %v3819, %v3909
      %vm3911 = vcmp.eq.f32.partialorder %v3819, inf
      %v3912 = vsel %vm3911, %v3819, %v3910
      %vm3913 = vcmp.eq.f32.partialorder %v3819, 0.0
      %v3914 = vand.u32 %v3819, 2147483648
      %v3915 = vsel %vm3913, %v3914, %v3912
      %v3916 = vadd.f32 %v3831, 1e-12
      %v3917 = vadd.f32 %v3843, 1e-12
      %v3918 = vadd.f32 %v3855, 1e-12
      %v3919 = vadd.f32 %v3867, 1e-12
      %v3920 = vadd.f32 %v3879, 1e-12
      %v3921 = vadd.f32 %v3891, 1e-12
      %v3922 = vadd.f32 %v3903, 1e-12
      %v3923 = vadd.f32 %v3915, 1e-12
      %v3924 = vrcp.pop %v3916
      %v3925 = vmul.f32 %v3916, %v3924
      %v3926 = vsub.f32 1.0, %v3925
      %v3927 = vmul.f32 %v3924, %v3926
      %v3928 = vadd.f32 %v3924, %v3927
      %vm3929 = vweird.f32 %v3916
      %vm3930 = vweird.f32 %v3924
      %vm3931 = vmor %vm3929, %vm3930
      %v3932 = vsel %vm3931, %v3924, %v3928
      %v3933 = vand.u32 2147483647, %v3916
      %vm3934 = vcmp.eq.f32.partialorder %v3933, 8.507059e+37
      %v3935 = vand.u32 %v3916, 2147483648
      %v3936 = vor.u32 1.1754944e-38, %v3935
      %v3937 = vsel %vm3934, %v3936, %v3932
      %v3938 = vmul.f32 %v3780, %v3937
      %v3939 = vrcp.pop %v3917
      %v3940 = vmul.f32 %v3917, %v3939
      %v3941 = vsub.f32 1.0, %v3940
      %v3942 = vmul.f32 %v3939, %v3941
      %v3943 = vadd.f32 %v3939, %v3942
      %vm3944 = vweird.f32 %v3917
      %vm3945 = vweird.f32 %v3939
      %vm3946 = vmor %vm3944, %vm3945
      %v3947 = vsel %vm3946, %v3939, %v3943
      %v3948 = vand.u32 2147483647, %v3917
      %vm3949 = vcmp.eq.f32.partialorder %v3948, 8.507059e+37
      %v3950 = vand.u32 %v3917, 2147483648
      %v3951 = vor.u32 1.1754944e-38, %v3950
      %v3952 = vsel %vm3949, %v3951, %v3947
      %v3953 = vmul.f32 %v3781, %v3952
      %v3954 = vrcp.pop %v3918
      %v3955 = vmul.f32 %v3918, %v3954
      %v3956 = vsub.f32 1.0, %v3955
      %v3957 = vmul.f32 %v3954, %v3956
      %v3958 = vadd.f32 %v3954, %v3957
      %vm3959 = vweird.f32 %v3918
      %vm3960 = vweird.f32 %v3954
      %vm3961 = vmor %vm3959, %vm3960
      %v3962 = vsel %vm3961, %v3954, %v3958
      %v3963 = vand.u32 2147483647, %v3918
      %vm3964 = vcmp.eq.f32.partialorder %v3963, 8.507059e+37
      %v3965 = vand.u32 %v3918, 2147483648
      %v3966 = vor.u32 1.1754944e-38, %v3965
      %v3967 = vsel %vm3964, %v3966, %v3962
      %v3968 = vmul.f32 %v3782, %v3967
      %v3969 = vrcp.pop %v3919
      %v3970 = vmul.f32 %v3919, %v3969
      %v3971 = vsub.f32 1.0, %v3970
      %v3972 = vmul.f32 %v3969, %v3971
      %v3973 = vadd.f32 %v3969, %v3972
      %vm3974 = vweird.f32 %v3919
      %vm3975 = vweird.f32 %v3969
      %vm3976 = vmor %vm3974, %vm3975
      %v3977 = vsel %vm3976, %v3969, %v3973
      %v3978 = vand.u32 2147483647, %v3919
      %vm3979 = vcmp.eq.f32.partialorder %v3978, 8.507059e+37
      %v3980 = vand.u32 %v3919, 2147483648
      %v3981 = vor.u32 1.1754944e-38, %v3980
      %v3982 = vsel %vm3979, %v3981, %v3977
      %v3983 = vmul.f32 %v3783, %v3982
      %v3984 = vrcp.pop %v3920
      %v3985 = vmul.f32 %v3920, %v3984
      %v3986 = vsub.f32 1.0, %v3985
      %v3987 = vmul.f32 %v3984, %v3986
      %v3988 = vadd.f32 %v3984, %v3987
      %vm3989 = vweird.f32 %v3920
      %vm3990 = vweird.f32 %v3984
      %vm3991 = vmor %vm3989, %vm3990
      %v3992 = vsel %vm3991, %v3984, %v3988
      %v3993 = vand.u32 2147483647, %v3920
      %vm3994 = vcmp.eq.f32.partialorder %v3993, 8.507059e+37
      %v3995 = vand.u32 %v3920, 2147483648
      %v3996 = vor.u32 1.1754944e-38, %v3995
      %v3997 = vsel %vm3994, %v3996, %v3992
      %v3998 = vmul.f32 %v3784, %v3997
      %v3999 = vrcp.pop %v3921
      %v4000 = vmul.f32 %v3921, %v3999
      %v4001 = vsub.f32 1.0, %v4000
      %v4002 = vmul.f32 %v3999, %v4001
      %v4003 = vadd.f32 %v3999, %v4002
      %vm4004 = vweird.f32 %v3921
      %vm4005 = vweird.f32 %v3999
      %vm4006 = vmor %vm4004, %vm4005
      %v4007 = vsel %vm4006, %v3999, %v4003
      %v4008 = vand.u32 2147483647, %v3921
      %vm4009 = vcmp.eq.f32.partialorder %v4008, 8.507059e+37
      %v4010 = vand.u32 %v3921, 2147483648
      %v4011 = vor.u32 1.1754944e-38, %v4010
      %v4012 = vsel %vm4009, %v4011, %v4007
      %v4013 = vmul.f32 %v3785, %v4012
      %v4014 = vrcp.pop %v3922
      %v4015 = vmul.f32 %v3922, %v4014
      %v4016 = vsub.f32 1.0, %v4015
      %v4017 = vmul.f32 %v4014, %v4016
      %v4018 = vadd.f32 %v4014, %v4017
      %vm4019 = vweird.f32 %v3922
      %vm4020 = vweird.f32 %v4014
      %vm4021 = vmor %vm4019, %vm4020
      %v4022 = vsel %vm4021, %v4014, %v4018
      %v4023 = vand.u32 2147483647, %v3922
      %vm4024 = vcmp.eq.f32.partialorder %v4023, 8.507059e+37
      %v4025 = vand.u32 %v3922, 2147483648
      %v4026 = vor.u32 1.1754944e-38, %v4025
      %v4027 = vsel %vm4024, %v4026, %v4022
      %v4028 = vmul.f32 %v3786, %v4027
      %v4029 = vrcp.pop %v3923
      %v4030 = vmul.f32 %v3923, %v4029
      %v4031 = vsub.f32 1.0, %v4030
      %v4032 = vmul.f32 %v4029, %v4031
      %v4033 = vadd.f32 %v4029, %v4032
      %vm4034 = vweird.f32 %v3923
      %vm4035 = vweird.f32 %v4029
      %vm4036 = vmor %vm4034, %vm4035
      %v4037 = vsel %vm4036, %v4029, %v4033
      %v4038 = vand.u32 2147483647, %v3923
      %vm4039 = vcmp.eq.f32.partialorder %v4038, 8.507059e+37
      %v4040 = vand.u32 %v3923, 2147483648
      %v4041 = vor.u32 1.1754944e-38, %v4040
      %v4042 = vsel %vm4039, %v4041, %v4037
      %v4043 = vmul.f32 %v3787, %v4042
      %v4045 = vperm.slane %v3754, 0
      %v4047 = vmul.f32 %v4045, %v3938
      %v4048 = vmul.f32 %v4045, %v3953
      %v4049 = vmul.f32 %v4045, %v3968
      %v4050 = vmul.f32 %v4045, %v3983
      %v4051 = vmul.f32 %v4045, %v3998
      %v4052 = vmul.f32 %v4045, %v4013
      %v4053 = vmul.f32 %v4045, %v4028
      %v4054 = vmul.f32 %v4045, %v4043
      %v4056 = vperm.slane %v3755, 0
      %v4058 = vadd.f32 %v4047, %v4056
      %v4059 = vadd.f32 %v4048, %v4056
      %v4060 = vadd.f32 %v4049, %v4056
      %v4061 = vadd.f32 %v4050, %v4056
      %v4062 = vadd.f32 %v4051, %v4056
      %v4063 = vadd.f32 %v4052, %v4056
      %v4064 = vadd.f32 %v4053, %v4056
      %v4065 = vadd.f32 %v4054, %v4056
      %4066 = vst [vmem:[%s633] sm:$0xff] %v4058
      %4067 = vst [vmem:[%s633 + $0x8] sm:$0xff] %v4059
      %4068 = vst [vmem:[%s633 + $0x10] sm:$0xff] %v4060
      %4069 = vst [vmem:[%s633 + $0x18] sm:$0xff] %v4061
      %4070 = vst [vmem:[%s633 + $0x20] sm:$0xff] %v4062
      %4071 = vst [vmem:[%s633 + $0x28] sm:$0xff] %v4063
      %4072 = vst [vmem:[%s633 + $0x30] sm:$0xff] %v4064
      %4073 = vst [vmem:[%s633 + $0x38] sm:$0xff] %v4065
      %s4074 = smul.u32 8, %s34
      %p4075 = scmp.lt.s32.totalorder %s33, 1
      %s4076 = scalar_select %p4075, %s33, 1
      %p4077 = scmp.lt.s32.totalorder %s4074, 15
      %s4078 = scalar_select %p4077, %s4074, 15
      %s4079 = smul.addr %s4076, 16
      %s4080 = sadd.s32 %s4078, %s4079
      %s4081 = smul.addr %s4080, 8
      %s4082 = scalar_lea.vmem %s18, %s4081
      // Predicated region
      $region93: #{encoder_forward.4} parent=91 // pred_check
        %p4083 = pneg %p451
      $region94: #{encoder_forward.4} parent=91 // pred_check_branch
        %4085 = sbr.rel (%p4083) target = $region96
      $region95: #{encoder_forward.4} parent=91 // pred_region
        %s4086 = smul.u32 8, %s34
      $region96: #{encoder_forward.4} parent=91 // pred_fallthru
        _
    $region92: #{encoder_forward.4} parent=5 // pred_fallthru
      _
    %p4087 = scmp.le.s32.totalorder 2, %s24
    // Predicated region
    $region97: #{encoder_forward.4} parent=5 // pred_check
      %p4088 = pneg %p4087
    $region98: #{encoder_forward.4} parent=5 // pred_check_branch
      %4090 = sbr.rel (%p4088) target = $region100
    $region99: #{encoder_forward.4} parent=5 // pred_region
      %s4091 = ssub.s32 %s24, 2
      // Predicated region
      $region101: #{encoder_forward.4} parent=99 // pred_check
        %p4092 = pneg %p457
      $region102: #{encoder_forward.4} parent=99 // pred_check_branch
        %4094 = sbr.rel (%p4092) target = $region104
      $region103: #{encoder_forward.4} parent=99 // pred_region
        %s4095 = smul.u32 8, %s36
        %p4096 = scmp.lt.s32.totalorder %s35, 1
        %s4097 = scalar_select %p4096, %s35, 1
        %p4098 = scmp.lt.s32.totalorder %s4095, 15
        %s4099 = scalar_select %p4098, %s4095, 15
        %s4100 = smul.addr %s4097, 16
        %s4101 = sadd.s32 %s4099, %s4100
        %s4102 = smul.addr %s4101, 8
        %s4103 = scalar_lea.vmem %s18, %s4102
      $region104: #{encoder_forward.4} parent=99 // pred_fallthru
        _
    $region100: #{encoder_forward.4} parent=5 // pred_fallthru
      _
  $region6: #{encoder_forward.4} parent=0 // loop_footer
    %s28 = sadd.s32 1, %s24
  $region7: #{encoder_forward.4} parent=0 // loop_footer_branch
    %23 = sbr.rel target = $region3
  $region8: #{encoder_forward.4} parent=0 // loop_exit
    _

</llo_original>
